<compile_context>
chip_gen: v5e
topology: v5e:2x2
jax: 0.10.0
libtpu: 0.0.40
codegen_flags: <defaults>
</compile_context>

<pallas_src>
import math

import jax
import jax.numpy as jnp
from jax import lax
from jax.experimental import pallas as pl
from jax.experimental.pallas import tpu as pltpu


# ----------------------------------------------------------------------------
# In-kernel building blocks
# ----------------------------------------------------------------------------
def _rot_w(a, delta):
    """out[..., w, :] = a[..., (w + delta) % W, :]  (W = second-to-last axis)."""
    if delta == 0:
        return a
    W = a.shape[-2]
    flat = a.reshape((-1,) + a.shape[-2:])              # leading dims merge: free
    return pltpu.roll(flat, (-delta) % W, axis=1).reshape(a.shape)


def _shift_h(a, dy):
    """out[:, h] = a[:, h + dy], zero padded at the H edges (axis=1, untiled)."""
    if dy == 0:
        return a
    pad = jnp.zeros_like(a[:, :abs(dy)])
    if dy > 0:
        return jnp.concatenate([a[:, dy:], pad], axis=1)
    return jnp.concatenate([pad, a[:, :dy]], axis=1)


def _dsconv_relu_bn(a, dww, dwb, pww, pwb, bns, bnt, *, w_stride=1):
    """DepthwiseSeparableConv(3x3, pad=1) + ReLU + BatchNorm(eval, folded).

    a        : (B, H, W, Cin) f32.  When ``w_stride == 2`` only the even W
               columns hold valid data (odd columns carry don't-care values
               that are computed but never read downstream).
    dww      : (9, Cin)    depthwise weights, row = ky*3 + kx
    dwb      : (1, Cin)    depthwise bias
    pww      : (Cin, Cout) pointwise 1x1 weights
    pwb      : (1, Cout)   pointwise bias
    bns, bnt : (1, Cout)   folded BN scale / shift
    returns  : (B, H, W, Cout) f32 (same W convention as the input)
    """
    B, H, W, Cin = a.shape
    Cout = pww.shape[-1]
    wi = lax.broadcasted_iota(jnp.int32, (1, 1, W, 1), 2)

    # 3x3 depthwise on the VPU: W taps via XLU rolls + edge masks, H taps via
    # leading-dim zero-padded shifts.  No padded scratch, no misaligned loads.
    acc = jnp.zeros((B, H, W, Cin), jnp.float32)
    for kx in range(3):
        dx = (kx - 1) * w_stride
        if dx == 0:
            slab = a
        else:
            valid = (wi + dx >= 0) & (wi + dx <= W - 1)
            slab = jnp.where(valid, _rot_w(a, dx), 0.0)
        for ky in range(3):
            acc = acc + _shift_h(slab, ky - 1) * dww[ky * 3 + kx, :]
    acc = acc + dwb[0, :]

    # Pointwise 1x1 conv == (B*H*W, Cin) x (Cin, Cout) MXU matmul.
    # W % 8 == 0 keeps the leading-dim merge layout-free.
    y = jnp.dot(acc.reshape(B * H * W, Cin), pww,
                preferred_element_type=jnp.float32)
    y = jnp.maximum(y + pwb[0, :], 0.0)                 # bias + ReLU
    y = y * bns[0, :] + bnt[0, :]                       # BatchNorm (eval, folded)
    return y.reshape(B, H, W, Cout)


# ----------------------------------------------------------------------------
# Fused whole-network kernel (block_batch images per grid step)
# ----------------------------------------------------------------------------
def _fused_forward_kernel(
        x_ref,
        dw1_ref, db1_ref, pw1_ref, pb1_ref, s1_ref, t1_ref,
        dw2_ref, db2_ref, pw2_ref, pb2_ref, s2_ref, t2_ref,
        dw3_ref, db3_ref, pw3_ref, pb3_ref, s3_ref, t3_ref,
        fcw_ref, fcb_ref,
        out_ref):
    x = x_ref[...]                                       # (B, H, W, 3) f32
    B, H, W, _ = x.shape

    # --- block 1 / block 2: DSConv + ReLU + BN ------------------------------
    # TODO(synk): block 1 (Cin=3) could be fused further into one im2col matmul
    # (B*H*W, 27) x (27, 64); kept on the shared roll-based path for simplicity.
    a1 = _dsconv_relu_bn(x, dw1_ref[...], db1_ref[...], pw1_ref[...],
                         pb1_ref[...], s1_ref[...], t1_ref[...])
    a2 = _dsconv_relu_bn(a1, dw2_ref[...], db2_ref[...], pw2_ref[...],
                         pb2_ref[...], s2_ref[...], t2_ref[...])

    # --- maxpool 2x2 #1 (no scratch) -----------------------------------------
    # H halved via layout-free leading-dim reshape; W pooled pairwise and left
    # uncompacted: valid pooled values live in the even columns.
    c2 = jnp.max(a2.reshape(B, H // 2, 2, W, a2.shape[-1]), axis=2)
    c2 = jnp.maximum(c2, _rot_w(c2, 1))                  # (B, H/2, W, 128)

    # --- block 3 on the stride-2 (uncompacted) W grid -------------------------
    a3 = _dsconv_relu_bn(c2, dw3_ref[...], db3_ref[...], pw3_ref[...],
                         pb3_ref[...], s3_ref[...], t3_ref[...], w_stride=2)

    # --- maxpool 2x2 #2 + global average pool ---------------------------------
    c3 = jnp.max(a3.reshape(B, H // 4, 2, W, a3.shape[-1]), axis=2)
    c3 = jnp.maximum(c3, _rot_w(c3, 2))                  # valid cols: w % 4 == 0
    wi = lax.broadcasted_iota(jnp.int32, (1, 1, W, 1), 2)
    keep = jnp.where(wi % 4 == 0, 1.0, 0.0)
    inv_n = 1.0 / float((H // 4) * (W // 4))
    g = jnp.sum(c3 * keep, axis=(1, 2)) * inv_n          # (B, 256)

    # --- final Linear (output lane-padded to 128 by the wrapper) --------------
    logits = jnp.dot(g, fcw_ref[...], preferred_element_type=jnp.float32)
    out_ref[0] = logits + fcb_ref[0, :]


# ----------------------------------------------------------------------------
# Wrapper
# ----------------------------------------------------------------------------
def _block_args(prm):
    dw_w, dw_b, pw_w, pw_b, bn_scale, bn_shift = prm
    cin, cout = pw_w.shape
    return (dw_w.astype(jnp.float32),
            dw_b.reshape(1, cin).astype(jnp.float32),
            pw_w.astype(jnp.float32),
            pw_b.reshape(1, cout).astype(jnp.float32),
            bn_scale.reshape(1, cout).astype(jnp.float32),
            bn_shift.reshape(1, cout).astype(jnp.float32))


def faster_cnn_forward(x_nchw, params, *, block_batch=2):
    # NCHW (PyTorch) -> NHWC (kernel layout)
    x = jnp.transpose(x_nchw, (0, 2, 3, 1)).astype(jnp.float32)
    N, H, W, Cin = x.shape
    assert H % 4 == 0 and W % 8 == 0, "kernel assumes H % 4 == 0 and W % 8 == 0"

    bb = math.gcd(block_batch, N)          # images per grid step
    steps = N // bb

    K = params["fc_b"].shape[0]
    KP = ((K + 127) // 128) * 128          # lane-dense FC output
    fcw = jnp.zeros((params["fc_w"].shape[0], KP), jnp.float32)
    fcw = fcw.at[:, :K].set(params["fc_w"].astype(jnp.float32))
    fcb = jnp.zeros((1, KP), jnp.float32).at[0, :K].set(
        params["fc_b"].astype(jnp.float32))

    args = ((x,)
            + _block_args(params["block1"])
            + _block_args(params["block2"])
            + _block_args(params["block3"])
            + (fcw, fcb))

    in_specs = [pl.BlockSpec((bb, H, W, Cin), lambda n: (n, 0, 0, 0))]
    in_specs += [pl.BlockSpec(a.shape, lambda n: (0, 0)) for a in args[1:]]

    out = pl.pallas_call(
        _fused_forward_kernel,
        out_shape=jax.ShapeDtypeStruct((steps, bb, KP), jnp.float32),
        grid=(steps,),
        in_specs=in_specs,
        out_specs=pl.BlockSpec((1, bb, KP), lambda n: (n, 0, 0)),
        compiler_params=pltpu.CompilerParams(
            dimension_semantics=("parallel",)),
    )(*args)
    return out.reshape(N, KP)[:, :K]


# ----------------------------------------------------------------------------
# Model parameters
# ----------------------------------------------------------------------------
def init_params(key, num_classes):
    def normal(k, shape, scale=0.1):
        return scale * jax.random.normal(k, shape, jnp.float32)

    def block(k0, cin, cout):
        k = jax.random.split(k0, 8)
        dw_w = normal(k[0], (9, cin))          # (ky*3+kx, channel)
        dw_b = normal(k[1], (cin,))
        pw_w = normal(k[2], (cin, cout))       # transposed vs torch (out,in,1,1)
        pw_b = normal(k[3], (cout,))
        gamma = 1.0 + normal(k[4], (cout,))
        beta = normal(k[5], (cout,))
        rmean = normal(k[6], (cout,))
        rvar = jnp.abs(normal(k[7], (cout,))) + 1.0
        eps = 1e-5
        scale = gamma * jax.lax.rsqrt(rvar + eps)
        shift = beta - rmean * scale
        return (dw_w, dw_b, pw_w, pw_b, scale, shift)

    ks = jax.random.split(key, 5)
    return {
        "block1": block(ks[0], 3, 64),
        "block2": block(ks[1], 64, 128),
        "block3": block(ks[2], 128, 256),
        "fc_w": normal(ks[3], (256, num_classes)),
        "fc_b": normal(ks[4], (num_classes,)),
    }


# ----------------------------------------------------------------------------
# Pure-JAX reference (for correctness check)
# ----------------------------------------------------------------------------
def max_pool_2x2(x):
    N, H, W, C = x.shape
    return jnp.max(x.reshape(N, H // 2, 2, W // 2, 2, C), axis=(2, 4))


def reference_forward(x_nchw, params):
    x = jnp.transpose(x_nchw, (0, 2, 3, 1)).astype(jnp.float32)

    def block(x, prm):
        dw_w, dw_b, pw_w, pw_b, s, t = prm
        cin = x.shape[-1]
        w_dw = dw_w.reshape(3, 3, 1, cin)      # HWIO, groups = cin
        y = jax.lax.conv_general_dilated(
            x, w_dw, window_strides=(1, 1), padding=((1, 1), (1, 1)),
            dimension_numbers=("NHWC", "HWIO", "NHWC"),
            feature_group_count=cin) + dw_b
        y = jnp.einsum("nhwc,cd->nhwd", y, pw_w) + pw_b
        y = jnp.maximum(y, 0.0)
        return y * s + t

    x = block(x, params["block1"])
    x = block(x, params["block2"])
    x = max_pool_2x2(x)
    x = block(x, params["block3"])
    x = max_pool_2x2(x)
    x = jnp.mean(x, axis=(1, 2))
    return x @ params["fc_w"] + params["fc_b"]


# ----------------------------------------------------------------------------
if __name__ == "__main__":
    num_classes = 10
    key = jax.random.PRNGKey(0)
    k_x, k_p = jax.random.split(key)

    # N=4 with block_batch=2 -> 2 "parallel" grid steps, 2 images per step.
    x = jax.random.normal(k_x, (4, 3, 16, 16), jnp.float32)   # NCHW like torch
    params = init_params(k_p, num_classes)

    out = jax.block_until_ready(jax.jit(faster_cnn_forward)(x, params))
    assert out.shape == (4, num_classes), out.shape

    ref = jax.block_until_ready(jax.jit(reference_forward)(x, params))
    rel_err = float(jnp.max(jnp.abs(out - ref)) / (jnp.max(jnp.abs(ref)) + 1e-6))
    assert jnp.all(jnp.isfinite(out)), "non-finite output"
    assert rel_err < 5e-2, f"mismatch vs reference, rel_err={rel_err}"

    print("KERNEL_OK")
</pallas_src>

<mosaic_0001>
module attributes {stable_mosaic.version = 11 : i64} {
  func.func @_fused_forward_kernel(%arg0: i32, %arg1: memref<2x16x16x3xf32, #tpu.memory_space<vmem>>, %arg2: memref<9x3xf32, #tpu.memory_space<vmem>>, %arg3: memref<1x3xf32, #tpu.memory_space<vmem>>, %arg4: memref<3x64xf32, #tpu.memory_space<vmem>>, %arg5: memref<1x64xf32, #tpu.memory_space<vmem>>, %arg6: memref<1x64xf32, #tpu.memory_space<vmem>>, %arg7: memref<1x64xf32, #tpu.memory_space<vmem>>, %arg8: memref<9x64xf32, #tpu.memory_space<vmem>>, %arg9: memref<1x64xf32, #tpu.memory_space<vmem>>, %arg10: memref<64x128xf32, #tpu.memory_space<vmem>>, %arg11: memref<1x128xf32, #tpu.memory_space<vmem>>, %arg12: memref<1x128xf32, #tpu.memory_space<vmem>>, %arg13: memref<1x128xf32, #tpu.memory_space<vmem>>, %arg14: memref<9x128xf32, #tpu.memory_space<vmem>>, %arg15: memref<1x128xf32, #tpu.memory_space<vmem>>, %arg16: memref<128x256xf32, #tpu.memory_space<vmem>>, %arg17: memref<1x256xf32, #tpu.memory_space<vmem>>, %arg18: memref<1x256xf32, #tpu.memory_space<vmem>>, %arg19: memref<1x256xf32, #tpu.memory_space<vmem>>, %arg20: memref<256x128xf32, #tpu.memory_space<vmem>>, %arg21: memref<1x128xf32, #tpu.memory_space<vmem>>, %arg22: memref<1x2x128xf32, #tpu.memory_space<vmem>>) attributes {dimension_semantics = [#tpu.dimension_semantics<parallel>], iteration_bounds = array<i64: 2>, scalar_prefetch = 0 : i64, scratch_operands = 0 : i64, tpu.core_type = #tpu.core_type<tc>, window_params = [{transform_indices = @transform_0, window_bounds = array<i64: 2, 16, 16, 3>}, {pipeline_mode = #tpu.pipeline_mode<synchronous>, transform_indices = @transform_1, window_bounds = array<i64: 9, 3>}, {pipeline_mode = #tpu.pipeline_mode<synchronous>, transform_indices = @transform_2, window_bounds = array<i64: 1, 3>}, {pipeline_mode = #tpu.pipeline_mode<synchronous>, transform_indices = @transform_3, window_bounds = array<i64: 3, 64>}, {pipeline_mode = #tpu.pipeline_mode<synchronous>, transform_indices = @transform_4, window_bounds = array<i64: 1, 64>}, {pipeline_mode = #tpu.pipeline_mode<synchronous>, transform_indices = @transform_5, window_bounds = array<i64: 1, 64>}, {pipeline_mode = #tpu.pipeline_mode<synchronous>, transform_indices = @transform_6, window_bounds = array<i64: 1, 64>}, {pipeline_mode = #tpu.pipeline_mode<synchronous>, transform_indices = @transform_7, window_bounds = array<i64: 9, 64>}, {pipeline_mode = #tpu.pipeline_mode<synchronous>, transform_indices = @transform_8, window_bounds = array<i64: 1, 64>}, {pipeline_mode = #tpu.pipeline_mode<synchronous>, transform_indices = @transform_9, window_bounds = array<i64: 64, 128>}, {pipeline_mode = #tpu.pipeline_mode<synchronous>, transform_indices = @transform_10, window_bounds = array<i64: 1, 128>}, {pipeline_mode = #tpu.pipeline_mode<synchronous>, transform_indices = @transform_11, window_bounds = array<i64: 1, 128>}, {pipeline_mode = #tpu.pipeline_mode<synchronous>, transform_indices = @transform_12, window_bounds = array<i64: 1, 128>}, {pipeline_mode = #tpu.pipeline_mode<synchronous>, transform_indices = @transform_13, window_bounds = array<i64: 9, 128>}, {pipeline_mode = #tpu.pipeline_mode<synchronous>, transform_indices = @transform_14, window_bounds = array<i64: 1, 128>}, {pipeline_mode = #tpu.pipeline_mode<synchronous>, transform_indices = @transform_15, window_bounds = array<i64: 128, 256>}, {pipeline_mode = #tpu.pipeline_mode<synchronous>, transform_indices = @transform_16, window_bounds = array<i64: 1, 256>}, {pipeline_mode = #tpu.pipeline_mode<synchronous>, transform_indices = @transform_17, window_bounds = array<i64: 1, 256>}, {pipeline_mode = #tpu.pipeline_mode<synchronous>, transform_indices = @transform_18, window_bounds = array<i64: 1, 256>}, {pipeline_mode = #tpu.pipeline_mode<synchronous>, transform_indices = @transform_19, window_bounds = array<i64: 256, 128>}, {pipeline_mode = #tpu.pipeline_mode<synchronous>, transform_indices = @transform_20, window_bounds = array<i64: 1, 128>}, {transform_indices = @transform_21, window_bounds = array<i64: 1, 2, 128>}]} {
    %c0 = arith.constant 0 : index
    %c0_0 = arith.constant 0 : index
    %c0_1 = arith.constant 0 : index
    %c0_2 = arith.constant 0 : index
    %0 = vector.load %arg1[%c0, %c0_0, %c0_1, %c0_2] : memref<2x16x16x3xf32, #tpu.memory_space<vmem>>, vector<2x16x16x3xf32>
    %c0_3 = arith.constant 0 : index
    %c0_4 = arith.constant 0 : index
    %1 = vector.load %arg2[%c0_3, %c0_4] : memref<9x3xf32, #tpu.memory_space<vmem>>, vector<9x3xf32>
    %c0_5 = arith.constant 0 : index
    %c0_6 = arith.constant 0 : index
    %2 = vector.load %arg3[%c0_5, %c0_6] : memref<1x3xf32, #tpu.memory_space<vmem>>, vector<1x3xf32>
    %c0_7 = arith.constant 0 : index
    %c0_8 = arith.constant 0 : index
    %3 = vector.load %arg4[%c0_7, %c0_8] : memref<3x64xf32, #tpu.memory_space<vmem>>, vector<3x64xf32>
    %c0_9 = arith.constant 0 : index
    %c0_10 = arith.constant 0 : index
    %4 = vector.load %arg5[%c0_9, %c0_10] : memref<1x64xf32, #tpu.memory_space<vmem>>, vector<1x64xf32>
    %c0_11 = arith.constant 0 : index
    %c0_12 = arith.constant 0 : index
    %5 = vector.load %arg6[%c0_11, %c0_12] : memref<1x64xf32, #tpu.memory_space<vmem>>, vector<1x64xf32>
    %c0_13 = arith.constant 0 : index
    %c0_14 = arith.constant 0 : index
    %6 = vector.load %arg7[%c0_13, %c0_14] : memref<1x64xf32, #tpu.memory_space<vmem>>, vector<1x64xf32>
    %7 = tpu.iota {dimensions = array<i32: 2>} : vector<1x1x16x1xi32>
    %cst = arith.constant 0.000000e+00 : f32
    %8 = vector.broadcast %cst : f32 to vector<2x16x16x3xf32>
    %c-1_i32 = arith.constant -1 : i32
    %9 = vector.broadcast %c-1_i32 : i32 to vector<1x1x16x1xi32>
    %10 = arith.addi %7, %9 : vector<1x1x16x1xi32>
    %c0_i32 = arith.constant 0 : i32
    %11 = vector.broadcast %c0_i32 : i32 to vector<1x1x16x1xi32>
    %12 = arith.cmpi sge, %10, %11 : vector<1x1x16x1xi32>
    %c-1_i32_15 = arith.constant -1 : i32
    %13 = vector.broadcast %c-1_i32_15 : i32 to vector<1x1x16x1xi32>
    %14 = arith.addi %7, %13 : vector<1x1x16x1xi32>
    %c15_i32 = arith.constant 15 : i32
    %15 = vector.broadcast %c15_i32 : i32 to vector<1x1x16x1xi32>
    %16 = arith.cmpi sle, %14, %15 : vector<1x1x16x1xi32>
    %17 = arith.andi %12, %16 : vector<1x1x16x1xi1>
    %18 = vector.shape_cast %0 : vector<2x16x16x3xf32> to vector<32x16x3xf32>
    %c1_i32 = arith.constant 1 : i32
    %19 = tpu.dynamic_rotate %18 by %c1_i32 dim 1 : vector<32x16x3xf32>, i32 -> vector<32x16x3xf32>
    %20 = vector.shape_cast %19 : vector<32x16x3xf32> to vector<2x16x16x3xf32>
    %cst_16 = arith.constant 0.000000e+00 : f32
    %21 = vector.shape_cast %17 : vector<1x1x16x1xi1> to vector<1x1x16x1xi1>
    %22 = vector.broadcast %21 : vector<1x1x16x1xi1> to vector<2x16x16x3xi1>
    %23 = vector.broadcast %cst_16 : f32 to vector<2x16x16x3xf32>
    %24 = arith.select %22, %20, %23 : vector<2x16x16x3xi1>, vector<2x16x16x3xf32>
    %cst_17 = arith.constant 0.000000e+00 : f32
    %25 = vector.broadcast %cst_17 : f32 to vector<2x1x16x3xf32>
    %26 = vector.extract_strided_slice %24 {offsets = [0, 0, 0, 0], sizes = [2, 15, 16, 3], strides = [1, 1, 1, 1]} : vector<2x16x16x3xf32> to vector<2x15x16x3xf32>
    %27 = tpu.concatenate %25, %26 in 1 : vector<2x1x16x3xf32>, vector<2x15x16x3xf32> -> vector<2x16x16x3xf32>
    %28 = vector.extract_strided_slice %1 {offsets = [0, 0], sizes = [1, 3], strides = [1, 1]} : vector<9x3xf32> to vector<1x3xf32>
    %29 = vector.shape_cast %28 : vector<1x3xf32> to vector<3xf32>
    %30 = vector.shape_cast %29 : vector<3xf32> to vector<1x1x1x3xf32>
    %31 = vector.broadcast %30 : vector<1x1x1x3xf32> to vector<2x16x16x3xf32>
    %32 = arith.mulf %27, %31 : vector<2x16x16x3xf32>
    %33 = arith.addf %8, %32 : vector<2x16x16x3xf32>
    %34 = vector.extract_strided_slice %1 {offsets = [3, 0], sizes = [1, 3], strides = [1, 1]} : vector<9x3xf32> to vector<1x3xf32>
    %35 = vector.shape_cast %34 : vector<1x3xf32> to vector<3xf32>
    %36 = vector.shape_cast %35 : vector<3xf32> to vector<1x1x1x3xf32>
    %37 = vector.broadcast %36 : vector<1x1x1x3xf32> to vector<2x16x16x3xf32>
    %38 = arith.mulf %24, %37 : vector<2x16x16x3xf32>
    %39 = arith.addf %33, %38 : vector<2x16x16x3xf32>
    %cst_18 = arith.constant 0.000000e+00 : f32
    %40 = vector.broadcast %cst_18 : f32 to vector<2x1x16x3xf32>
    %41 = vector.extract_strided_slice %24 {offsets = [0, 1, 0, 0], sizes = [2, 15, 16, 3], strides = [1, 1, 1, 1]} : vector<2x16x16x3xf32> to vector<2x15x16x3xf32>
    %42 = tpu.concatenate %41, %40 in 1 : vector<2x15x16x3xf32>, vector<2x1x16x3xf32> -> vector<2x16x16x3xf32>
    %43 = vector.extract_strided_slice %1 {offsets = [6, 0], sizes = [1, 3], strides = [1, 1]} : vector<9x3xf32> to vector<1x3xf32>
    %44 = vector.shape_cast %43 : vector<1x3xf32> to vector<3xf32>
    %45 = vector.shape_cast %44 : vector<3xf32> to vector<1x1x1x3xf32>
    %46 = vector.broadcast %45 : vector<1x1x1x3xf32> to vector<2x16x16x3xf32>
    %47 = arith.mulf %42, %46 : vector<2x16x16x3xf32>
    %48 = arith.addf %39, %47 : vector<2x16x16x3xf32>
    %cst_19 = arith.constant 0.000000e+00 : f32
    %49 = vector.broadcast %cst_19 : f32 to vector<2x1x16x3xf32>
    %50 = vector.extract_strided_slice %0 {offsets = [0, 0, 0, 0], sizes = [2, 15, 16, 3], strides = [1, 1, 1, 1]} : vector<2x16x16x3xf32> to vector<2x15x16x3xf32>
    %51 = tpu.concatenate %49, %50 in 1 : vector<2x1x16x3xf32>, vector<2x15x16x3xf32> -> vector<2x16x16x3xf32>
    %52 = vector.extract_strided_slice %1 {offsets = [1, 0], sizes = [1, 3], strides = [1, 1]} : vector<9x3xf32> to vector<1x3xf32>
    %53 = vector.shape_cast %52 : vector<1x3xf32> to vector<3xf32>
    %54 = vector.shape_cast %53 : vector<3xf32> to vector<1x1x1x3xf32>
    %55 = vector.broadcast %54 : vector<1x1x1x3xf32> to vector<2x16x16x3xf32>
    %56 = arith.mulf %51, %55 : vector<2x16x16x3xf32>
    %57 = arith.addf %48, %56 : vector<2x16x16x3xf32>
    %58 = vector.extract_strided_slice %1 {offsets = [4, 0], sizes = [1, 3], strides = [1, 1]} : vector<9x3xf32> to vector<1x3xf32>
    %59 = vector.shape_cast %58 : vector<1x3xf32> to vector<3xf32>
    %60 = vector.shape_cast %59 : vector<3xf32> to vector<1x1x1x3xf32>
    %61 = vector.broadcast %60 : vector<1x1x1x3xf32> to vector<2x16x16x3xf32>
    %62 = arith.mulf %0, %61 : vector<2x16x16x3xf32>
    %63 = arith.addf %57, %62 : vector<2x16x16x3xf32>
    %cst_20 = arith.constant 0.000000e+00 : f32
    %64 = vector.broadcast %cst_20 : f32 to vector<2x1x16x3xf32>
    %65 = vector.extract_strided_slice %0 {offsets = [0, 1, 0, 0], sizes = [2, 15, 16, 3], strides = [1, 1, 1, 1]} : vector<2x16x16x3xf32> to vector<2x15x16x3xf32>
    %66 = tpu.concatenate %65, %64 in 1 : vector<2x15x16x3xf32>, vector<2x1x16x3xf32> -> vector<2x16x16x3xf32>
    %67 = vector.extract_strided_slice %1 {offsets = [7, 0], sizes = [1, 3], strides = [1, 1]} : vector<9x3xf32> to vector<1x3xf32>
    %68 = vector.shape_cast %67 : vector<1x3xf32> to vector<3xf32>
    %69 = vector.shape_cast %68 : vector<3xf32> to vector<1x1x1x3xf32>
    %70 = vector.broadcast %69 : vector<1x1x1x3xf32> to vector<2x16x16x3xf32>
    %71 = arith.mulf %66, %70 : vector<2x16x16x3xf32>
    %72 = arith.addf %63, %71 : vector<2x16x16x3xf32>
    %c1_i32_21 = arith.constant 1 : i32
    %73 = vector.broadcast %c1_i32_21 : i32 to vector<1x1x16x1xi32>
    %74 = arith.addi %7, %73 : vector<1x1x16x1xi32>
    %c0_i32_22 = arith.constant 0 : i32
    %75 = vector.broadcast %c0_i32_22 : i32 to vector<1x1x16x1xi32>
    %76 = arith.cmpi sge, %74, %75 : vector<1x1x16x1xi32>
    %c1_i32_23 = arith.constant 1 : i32
    %77 = vector.broadcast %c1_i32_23 : i32 to vector<1x1x16x1xi32>
    %78 = arith.addi %7, %77 : vector<1x1x16x1xi32>
    %c15_i32_24 = arith.constant 15 : i32
    %79 = vector.broadcast %c15_i32_24 : i32 to vector<1x1x16x1xi32>
    %80 = arith.cmpi sle, %78, %79 : vector<1x1x16x1xi32>
    %81 = arith.andi %76, %80 : vector<1x1x16x1xi1>
    %82 = vector.shape_cast %0 : vector<2x16x16x3xf32> to vector<32x16x3xf32>
    %c15_i32_25 = arith.constant 15 : i32
    %83 = tpu.dynamic_rotate %82 by %c15_i32_25 dim 1 : vector<32x16x3xf32>, i32 -> vector<32x16x3xf32>
    %84 = vector.shape_cast %83 : vector<32x16x3xf32> to vector<2x16x16x3xf32>
    %cst_26 = arith.constant 0.000000e+00 : f32
    %85 = vector.shape_cast %81 : vector<1x1x16x1xi1> to vector<1x1x16x1xi1>
    %86 = vector.broadcast %85 : vector<1x1x16x1xi1> to vector<2x16x16x3xi1>
    %87 = vector.broadcast %cst_26 : f32 to vector<2x16x16x3xf32>
    %88 = arith.select %86, %84, %87 : vector<2x16x16x3xi1>, vector<2x16x16x3xf32>
    %cst_27 = arith.constant 0.000000e+00 : f32
    %89 = vector.broadcast %cst_27 : f32 to vector<2x1x16x3xf32>
    %90 = vector.extract_strided_slice %88 {offsets = [0, 0, 0, 0], sizes = [2, 15, 16, 3], strides = [1, 1, 1, 1]} : vector<2x16x16x3xf32> to vector<2x15x16x3xf32>
    %91 = tpu.concatenate %89, %90 in 1 : vector<2x1x16x3xf32>, vector<2x15x16x3xf32> -> vector<2x16x16x3xf32>
    %92 = vector.extract_strided_slice %1 {offsets = [2, 0], sizes = [1, 3], strides = [1, 1]} : vector<9x3xf32> to vector<1x3xf32>
    %93 = vector.shape_cast %92 : vector<1x3xf32> to vector<3xf32>
    %94 = vector.shape_cast %93 : vector<3xf32> to vector<1x1x1x3xf32>
    %95 = vector.broadcast %94 : vector<1x1x1x3xf32> to vector<2x16x16x3xf32>
    %96 = arith.mulf %91, %95 : vector<2x16x16x3xf32>
    %97 = arith.addf %72, %96 : vector<2x16x16x3xf32>
    %98 = vector.extract_strided_slice %1 {offsets = [5, 0], sizes = [1, 3], strides = [1, 1]} : vector<9x3xf32> to vector<1x3xf32>
    %99 = vector.shape_cast %98 : vector<1x3xf32> to vector<3xf32>
    %100 = vector.shape_cast %99 : vector<3xf32> to vector<1x1x1x3xf32>
    %101 = vector.broadcast %100 : vector<1x1x1x3xf32> to vector<2x16x16x3xf32>
    %102 = arith.mulf %88, %101 : vector<2x16x16x3xf32>
    %103 = arith.addf %97, %102 : vector<2x16x16x3xf32>
    %cst_28 = arith.constant 0.000000e+00 : f32
    %104 = vector.broadcast %cst_28 : f32 to vector<2x1x16x3xf32>
    %105 = vector.extract_strided_slice %88 {offsets = [0, 1, 0, 0], sizes = [2, 15, 16, 3], strides = [1, 1, 1, 1]} : vector<2x16x16x3xf32> to vector<2x15x16x3xf32>
    %106 = tpu.concatenate %105, %104 in 1 : vector<2x15x16x3xf32>, vector<2x1x16x3xf32> -> vector<2x16x16x3xf32>
    %107 = vector.extract_strided_slice %1 {offsets = [8, 0], sizes = [1, 3], strides = [1, 1]} : vector<9x3xf32> to vector<1x3xf32>
    %108 = vector.shape_cast %107 : vector<1x3xf32> to vector<3xf32>
    %109 = vector.shape_cast %108 : vector<3xf32> to vector<1x1x1x3xf32>
    %110 = vector.broadcast %109 : vector<1x1x1x3xf32> to vector<2x16x16x3xf32>
    %111 = arith.mulf %106, %110 : vector<2x16x16x3xf32>
    %112 = arith.addf %103, %111 : vector<2x16x16x3xf32>
    %113 = vector.shape_cast %2 : vector<1x3xf32> to vector<3xf32>
    %114 = vector.shape_cast %113 : vector<3xf32> to vector<1x1x1x3xf32>
    %115 = vector.broadcast %114 : vector<1x1x1x3xf32> to vector<2x16x16x3xf32>
    %116 = arith.addf %112, %115 : vector<2x16x16x3xf32>
    %117 = vector.shape_cast %116 : vector<2x16x16x3xf32> to vector<512x3xf32>
    %cst_29 = arith.constant dense<0.000000e+00> : vector<512x64xf32>
    %118 = tpu.matmul %117, %3, %cst_29 {dimension_numbers = #tpu.dot_dimension_numbers<[1], [0], [0], [1], [0, 0, 1, 1], [], []>} : vector<512x3xf32>, vector<3x64xf32>, vector<512x64xf32> -> vector<512x64xf32>
    %119 = vector.shape_cast %4 : vector<1x64xf32> to vector<64xf32>
    %120 = vector.shape_cast %119 : vector<64xf32> to vector<1x64xf32>
    %121 = vector.broadcast %120 : vector<1x64xf32> to vector<512x64xf32>
    %122 = arith.addf %118, %121 : vector<512x64xf32>
    %cst_30 = arith.constant 0.000000e+00 : f32
    %123 = vector.broadcast %cst_30 : f32 to vector<512x64xf32>
    %124 = arith.maximumf %122, %123 : vector<512x64xf32>
    %125 = vector.shape_cast %5 : vector<1x64xf32> to vector<64xf32>
    %126 = vector.shape_cast %125 : vector<64xf32> to vector<1x64xf32>
    %127 = vector.broadcast %126 : vector<1x64xf32> to vector<512x64xf32>
    %128 = arith.mulf %124, %127 : vector<512x64xf32>
    %129 = vector.shape_cast %6 : vector<1x64xf32> to vector<64xf32>
    %130 = vector.shape_cast %129 : vector<64xf32> to vector<1x64xf32>
    %131 = vector.broadcast %130 : vector<1x64xf32> to vector<512x64xf32>
    %132 = arith.addf %128, %131 : vector<512x64xf32>
    %133 = vector.shape_cast %132 : vector<512x64xf32> to vector<2x16x16x64xf32>
    %c0_31 = arith.constant 0 : index
    %c0_32 = arith.constant 0 : index
    %134 = vector.load %arg8[%c0_31, %c0_32] : memref<9x64xf32, #tpu.memory_space<vmem>>, vector<9x64xf32>
    %c0_33 = arith.constant 0 : index
    %c0_34 = arith.constant 0 : index
    %135 = vector.load %arg9[%c0_33, %c0_34] : memref<1x64xf32, #tpu.memory_space<vmem>>, vector<1x64xf32>
    %c0_35 = arith.constant 0 : index
    %c0_36 = arith.constant 0 : index
    %136 = vector.load %arg10[%c0_35, %c0_36] : memref<64x128xf32, #tpu.memory_space<vmem>>, vector<64x128xf32>
    %c0_37 = arith.constant 0 : index
    %c0_38 = arith.constant 0 : index
    %137 = vector.load %arg11[%c0_37, %c0_38] : memref<1x128xf32, #tpu.memory_space<vmem>>, vector<1x128xf32>
    %c0_39 = arith.constant 0 : index
    %c0_40 = arith.constant 0 : index
    %138 = vector.load %arg12[%c0_39, %c0_40] : memref<1x128xf32, #tpu.memory_space<vmem>>, vector<1x128xf32>
    %c0_41 = arith.constant 0 : index
    %c0_42 = arith.constant 0 : index
    %139 = vector.load %arg13[%c0_41, %c0_42] : memref<1x128xf32, #tpu.memory_space<vmem>>, vector<1x128xf32>
    %140 = tpu.iota {dimensions = array<i32: 2>} : vector<1x1x16x1xi32>
    %cst_43 = arith.constant 0.000000e+00 : f32
    %141 = vector.broadcast %cst_43 : f32 to vector<2x16x16x64xf32>
    %c-1_i32_44 = arith.constant -1 : i32
    %142 = vector.broadcast %c-1_i32_44 : i32 to vector<1x1x16x1xi32>
    %143 = arith.addi %140, %142 : vector<1x1x16x1xi32>
    %c0_i32_45 = arith.constant 0 : i32
    %144 = vector.broadcast %c0_i32_45 : i32 to vector<1x1x16x1xi32>
    %145 = arith.cmpi sge, %143, %144 : vector<1x1x16x1xi32>
    %c-1_i32_46 = arith.constant -1 : i32
    %146 = vector.broadcast %c-1_i32_46 : i32 to vector<1x1x16x1xi32>
    %147 = arith.addi %140, %146 : vector<1x1x16x1xi32>
    %c15_i32_47 = arith.constant 15 : i32
    %148 = vector.broadcast %c15_i32_47 : i32 to vector<1x1x16x1xi32>
    %149 = arith.cmpi sle, %147, %148 : vector<1x1x16x1xi32>
    %150 = arith.andi %145, %149 : vector<1x1x16x1xi1>
    %151 = vector.shape_cast %133 : vector<2x16x16x64xf32> to vector<32x16x64xf32>
    %c1_i32_48 = arith.constant 1 : i32
    %152 = tpu.dynamic_rotate %151 by %c1_i32_48 dim 1 : vector<32x16x64xf32>, i32 -> vector<32x16x64xf32>
    %153 = vector.shape_cast %152 : vector<32x16x64xf32> to vector<2x16x16x64xf32>
    %cst_49 = arith.constant 0.000000e+00 : f32
    %154 = vector.shape_cast %150 : vector<1x1x16x1xi1> to vector<1x1x16x1xi1>
    %155 = vector.broadcast %154 : vector<1x1x16x1xi1> to vector<2x16x16x64xi1>
    %156 = vector.broadcast %cst_49 : f32 to vector<2x16x16x64xf32>
    %157 = arith.select %155, %153, %156 : vector<2x16x16x64xi1>, vector<2x16x16x64xf32>
    %cst_50 = arith.constant 0.000000e+00 : f32
    %158 = vector.broadcast %cst_50 : f32 to vector<2x1x16x64xf32>
    %159 = vector.extract_strided_slice %157 {offsets = [0, 0, 0, 0], sizes = [2, 15, 16, 64], strides = [1, 1, 1, 1]} : vector<2x16x16x64xf32> to vector<2x15x16x64xf32>
    %160 = tpu.concatenate %158, %159 in 1 : vector<2x1x16x64xf32>, vector<2x15x16x64xf32> -> vector<2x16x16x64xf32>
    %161 = vector.extract_strided_slice %134 {offsets = [0, 0], sizes = [1, 64], strides = [1, 1]} : vector<9x64xf32> to vector<1x64xf32>
    %162 = vector.shape_cast %161 : vector<1x64xf32> to vector<64xf32>
    %163 = vector.shape_cast %162 : vector<64xf32> to vector<1x1x1x64xf32>
    %164 = vector.broadcast %163 : vector<1x1x1x64xf32> to vector<2x16x16x64xf32>
    %165 = arith.mulf %160, %164 : vector<2x16x16x64xf32>
    %166 = arith.addf %141, %165 : vector<2x16x16x64xf32>
    %167 = vector.extract_strided_slice %134 {offsets = [3, 0], sizes = [1, 64], strides = [1, 1]} : vector<9x64xf32> to vector<1x64xf32>
    %168 = vector.shape_cast %167 : vector<1x64xf32> to vector<64xf32>
    %169 = vector.shape_cast %168 : vector<64xf32> to vector<1x1x1x64xf32>
    %170 = vector.broadcast %169 : vector<1x1x1x64xf32> to vector<2x16x16x64xf32>
    %171 = arith.mulf %157, %170 : vector<2x16x16x64xf32>
    %172 = arith.addf %166, %171 : vector<2x16x16x64xf32>
    %cst_51 = arith.constant 0.000000e+00 : f32
    %173 = vector.broadcast %cst_51 : f32 to vector<2x1x16x64xf32>
    %174 = vector.extract_strided_slice %157 {offsets = [0, 1, 0, 0], sizes = [2, 15, 16, 64], strides = [1, 1, 1, 1]} : vector<2x16x16x64xf32> to vector<2x15x16x64xf32>
    %175 = tpu.concatenate %174, %173 in 1 : vector<2x15x16x64xf32>, vector<2x1x16x64xf32> -> vector<2x16x16x64xf32>
    %176 = vector.extract_strided_slice %134 {offsets = [6, 0], sizes = [1, 64], strides = [1, 1]} : vector<9x64xf32> to vector<1x64xf32>
    %177 = vector.shape_cast %176 : vector<1x64xf32> to vector<64xf32>
    %178 = vector.shape_cast %177 : vector<64xf32> to vector<1x1x1x64xf32>
    %179 = vector.broadcast %178 : vector<1x1x1x64xf32> to vector<2x16x16x64xf32>
    %180 = arith.mulf %175, %179 : vector<2x16x16x64xf32>
    %181 = arith.addf %172, %180 : vector<2x16x16x64xf32>
    %cst_52 = arith.constant 0.000000e+00 : f32
    %182 = vector.broadcast %cst_52 : f32 to vector<2x1x16x64xf32>
    %183 = vector.extract_strided_slice %133 {offsets = [0, 0, 0, 0], sizes = [2, 15, 16, 64], strides = [1, 1, 1, 1]} : vector<2x16x16x64xf32> to vector<2x15x16x64xf32>
    %184 = tpu.concatenate %182, %183 in 1 : vector<2x1x16x64xf32>, vector<2x15x16x64xf32> -> vector<2x16x16x64xf32>
    %185 = vector.extract_strided_slice %134 {offsets = [1, 0], sizes = [1, 64], strides = [1, 1]} : vector<9x64xf32> to vector<1x64xf32>
    %186 = vector.shape_cast %185 : vector<1x64xf32> to vector<64xf32>
    %187 = vector.shape_cast %186 : vector<64xf32> to vector<1x1x1x64xf32>
    %188 = vector.broadcast %187 : vector<1x1x1x64xf32> to vector<2x16x16x64xf32>
    %189 = arith.mulf %184, %188 : vector<2x16x16x64xf32>
    %190 = arith.addf %181, %189 : vector<2x16x16x64xf32>
    %191 = vector.extract_strided_slice %134 {offsets = [4, 0], sizes = [1, 64], strides = [1, 1]} : vector<9x64xf32> to vector<1x64xf32>
    %192 = vector.shape_cast %191 : vector<1x64xf32> to vector<64xf32>
    %193 = vector.shape_cast %192 : vector<64xf32> to vector<1x1x1x64xf32>
    %194 = vector.broadcast %193 : vector<1x1x1x64xf32> to vector<2x16x16x64xf32>
    %195 = arith.mulf %133, %194 : vector<2x16x16x64xf32>
    %196 = arith.addf %190, %195 : vector<2x16x16x64xf32>
    %cst_53 = arith.constant 0.000000e+00 : f32
    %197 = vector.broadcast %cst_53 : f32 to vector<2x1x16x64xf32>
    %198 = vector.extract_strided_slice %133 {offsets = [0, 1, 0, 0], sizes = [2, 15, 16, 64], strides = [1, 1, 1, 1]} : vector<2x16x16x64xf32> to vector<2x15x16x64xf32>
    %199 = tpu.concatenate %198, %197 in 1 : vector<2x15x16x64xf32>, vector<2x1x16x64xf32> -> vector<2x16x16x64xf32>
    %200 = vector.extract_strided_slice %134 {offsets = [7, 0], sizes = [1, 64], strides = [1, 1]} : vector<9x64xf32> to vector<1x64xf32>
    %201 = vector.shape_cast %200 : vector<1x64xf32> to vector<64xf32>
    %202 = vector.shape_cast %201 : vector<64xf32> to vector<1x1x1x64xf32>
    %203 = vector.broadcast %202 : vector<1x1x1x64xf32> to vector<2x16x16x64xf32>
    %204 = arith.mulf %199, %203 : vector<2x16x16x64xf32>
    %205 = arith.addf %196, %204 : vector<2x16x16x64xf32>
    %c1_i32_54 = arith.constant 1 : i32
    %206 = vector.broadcast %c1_i32_54 : i32 to vector<1x1x16x1xi32>
    %207 = arith.addi %140, %206 : vector<1x1x16x1xi32>
    %c0_i32_55 = arith.constant 0 : i32
    %208 = vector.broadcast %c0_i32_55 : i32 to vector<1x1x16x1xi32>
    %209 = arith.cmpi sge, %207, %208 : vector<1x1x16x1xi32>
    %c1_i32_56 = arith.constant 1 : i32
    %210 = vector.broadcast %c1_i32_56 : i32 to vector<1x1x16x1xi32>
    %211 = arith.addi %140, %210 : vector<1x1x16x1xi32>
    %c15_i32_57 = arith.constant 15 : i32
    %212 = vector.broadcast %c15_i32_57 : i32 to vector<1x1x16x1xi32>
    %213 = arith.cmpi sle, %211, %212 : vector<1x1x16x1xi32>
    %214 = arith.andi %209, %213 : vector<1x1x16x1xi1>
    %215 = vector.shape_cast %133 : vector<2x16x16x64xf32> to vector<32x16x64xf32>
    %c15_i32_58 = arith.constant 15 : i32
    %216 = tpu.dynamic_rotate %215 by %c15_i32_58 dim 1 : vector<32x16x64xf32>, i32 -> vector<32x16x64xf32>
    %217 = vector.shape_cast %216 : vector<32x16x64xf32> to vector<2x16x16x64xf32>
    %cst_59 = arith.constant 0.000000e+00 : f32
    %218 = vector.shape_cast %214 : vector<1x1x16x1xi1> to vector<1x1x16x1xi1>
    %219 = vector.broadcast %218 : vector<1x1x16x1xi1> to vector<2x16x16x64xi1>
    %220 = vector.broadcast %cst_59 : f32 to vector<2x16x16x64xf32>
    %221 = arith.select %219, %217, %220 : vector<2x16x16x64xi1>, vector<2x16x16x64xf32>
    %cst_60 = arith.constant 0.000000e+00 : f32
    %222 = vector.broadcast %cst_60 : f32 to vector<2x1x16x64xf32>
    %223 = vector.extract_strided_slice %221 {offsets = [0, 0, 0, 0], sizes = [2, 15, 16, 64], strides = [1, 1, 1, 1]} : vector<2x16x16x64xf32> to vector<2x15x16x64xf32>
    %224 = tpu.concatenate %222, %223 in 1 : vector<2x1x16x64xf32>, vector<2x15x16x64xf32> -> vector<2x16x16x64xf32>
    %225 = vector.extract_strided_slice %134 {offsets = [2, 0], sizes = [1, 64], strides = [1, 1]} : vector<9x64xf32> to vector<1x64xf32>
    %226 = vector.shape_cast %225 : vector<1x64xf32> to vector<64xf32>
    %227 = vector.shape_cast %226 : vector<64xf32> to vector<1x1x1x64xf32>
    %228 = vector.broadcast %227 : vector<1x1x1x64xf32> to vector<2x16x16x64xf32>
    %229 = arith.mulf %224, %228 : vector<2x16x16x64xf32>
    %230 = arith.addf %205, %229 : vector<2x16x16x64xf32>
    %231 = vector.extract_strided_slice %134 {offsets = [5, 0], sizes = [1, 64], strides = [1, 1]} : vector<9x64xf32> to vector<1x64xf32>
    %232 = vector.shape_cast %231 : vector<1x64xf32> to vector<64xf32>
    %233 = vector.shape_cast %232 : vector<64xf32> to vector<1x1x1x64xf32>
    %234 = vector.broadcast %233 : vector<1x1x1x64xf32> to vector<2x16x16x64xf32>
    %235 = arith.mulf %221, %234 : vector<2x16x16x64xf32>
    %236 = arith.addf %230, %235 : vector<2x16x16x64xf32>
    %cst_61 = arith.constant 0.000000e+00 : f32
    %237 = vector.broadcast %cst_61 : f32 to vector<2x1x16x64xf32>
    %238 = vector.extract_strided_slice %221 {offsets = [0, 1, 0, 0], sizes = [2, 15, 16, 64], strides = [1, 1, 1, 1]} : vector<2x16x16x64xf32> to vector<2x15x16x64xf32>
    %239 = tpu.concatenate %238, %237 in 1 : vector<2x15x16x64xf32>, vector<2x1x16x64xf32> -> vector<2x16x16x64xf32>
    %240 = vector.extract_strided_slice %134 {offsets = [8, 0], sizes = [1, 64], strides = [1, 1]} : vector<9x64xf32> to vector<1x64xf32>
    %241 = vector.shape_cast %240 : vector<1x64xf32> to vector<64xf32>
    %242 = vector.shape_cast %241 : vector<64xf32> to vector<1x1x1x64xf32>
    %243 = vector.broadcast %242 : vector<1x1x1x64xf32> to vector<2x16x16x64xf32>
    %244 = arith.mulf %239, %243 : vector<2x16x16x64xf32>
    %245 = arith.addf %236, %244 : vector<2x16x16x64xf32>
    %246 = vector.shape_cast %135 : vector<1x64xf32> to vector<64xf32>
    %247 = vector.shape_cast %246 : vector<64xf32> to vector<1x1x1x64xf32>
    %248 = vector.broadcast %247 : vector<1x1x1x64xf32> to vector<2x16x16x64xf32>
    %249 = arith.addf %245, %248 : vector<2x16x16x64xf32>
    %250 = vector.shape_cast %249 : vector<2x16x16x64xf32> to vector<512x64xf32>
    %cst_62 = arith.constant dense<0.000000e+00> : vector<512x128xf32>
    %251 = tpu.matmul %250, %136, %cst_62 {dimension_numbers = #tpu.dot_dimension_numbers<[1], [0], [0], [1], [0, 0, 1, 1], [], []>} : vector<512x64xf32>, vector<64x128xf32>, vector<512x128xf32> -> vector<512x128xf32>
    %252 = vector.shape_cast %137 : vector<1x128xf32> to vector<128xf32>
    %253 = vector.shape_cast %252 : vector<128xf32> to vector<1x128xf32>
    %254 = vector.broadcast %253 : vector<1x128xf32> to vector<512x128xf32>
    %255 = arith.addf %251, %254 : vector<512x128xf32>
    %cst_63 = arith.constant 0.000000e+00 : f32
    %256 = vector.broadcast %cst_63 : f32 to vector<512x128xf32>
    %257 = arith.maximumf %255, %256 : vector<512x128xf32>
    %258 = vector.shape_cast %138 : vector<1x128xf32> to vector<128xf32>
    %259 = vector.shape_cast %258 : vector<128xf32> to vector<1x128xf32>
    %260 = vector.broadcast %259 : vector<1x128xf32> to vector<512x128xf32>
    %261 = arith.mulf %257, %260 : vector<512x128xf32>
    %262 = vector.shape_cast %139 : vector<1x128xf32> to vector<128xf32>
    %263 = vector.shape_cast %262 : vector<128xf32> to vector<1x128xf32>
    %264 = vector.broadcast %263 : vector<1x128xf32> to vector<512x128xf32>
    %265 = arith.addf %261, %264 : vector<512x128xf32>
    %266 = vector.shape_cast %265 : vector<512x128xf32> to vector<2x16x16x128xf32>
    %267 = vector.shape_cast %266 : vector<2x16x16x128xf32> to vector<2x8x2x16x128xf32>
    %cst_64 = arith.constant dense<0xFF800000> : vector<2x8x16x128xf32>
    %268 = vector.multi_reduction <maximumf>, %267, %cst_64 [2] : vector<2x8x2x16x128xf32> to vector<2x8x16x128xf32>
    %269 = vector.shape_cast %268 : vector<2x8x16x128xf32> to vector<16x16x128xf32>
    %c15_i32_65 = arith.constant 15 : i32
    %270 = tpu.dynamic_rotate %269 by %c15_i32_65 dim 1 : vector<16x16x128xf32>, i32 -> vector<16x16x128xf32>
    %271 = vector.shape_cast %270 : vector<16x16x128xf32> to vector<2x8x16x128xf32>
    %272 = arith.maximumf %268, %271 : vector<2x8x16x128xf32>
    %c0_66 = arith.constant 0 : index
    %c0_67 = arith.constant 0 : index
    %273 = vector.load %arg14[%c0_66, %c0_67] : memref<9x128xf32, #tpu.memory_space<vmem>>, vector<9x128xf32>
    %c0_68 = arith.constant 0 : index
    %c0_69 = arith.constant 0 : index
    %274 = vector.load %arg15[%c0_68, %c0_69] : memref<1x128xf32, #tpu.memory_space<vmem>>, vector<1x128xf32>
    %c0_70 = arith.constant 0 : index
    %c0_71 = arith.constant 0 : index
    %275 = vector.load %arg16[%c0_70, %c0_71] : memref<128x256xf32, #tpu.memory_space<vmem>>, vector<128x256xf32>
    %c0_72 = arith.constant 0 : index
    %c0_73 = arith.constant 0 : index
    %276 = vector.load %arg17[%c0_72, %c0_73] : memref<1x256xf32, #tpu.memory_space<vmem>>, vector<1x256xf32>
    %c0_74 = arith.constant 0 : index
    %c0_75 = arith.constant 0 : index
    %277 = vector.load %arg18[%c0_74, %c0_75] : memref<1x256xf32, #tpu.memory_space<vmem>>, vector<1x256xf32>
    %c0_76 = arith.constant 0 : index
    %c0_77 = arith.constant 0 : index
    %278 = vector.load %arg19[%c0_76, %c0_77] : memref<1x256xf32, #tpu.memory_space<vmem>>, vector<1x256xf32>
    %279 = tpu.iota {dimensions = array<i32: 2>} : vector<1x1x16x1xi32>
    %cst_78 = arith.constant 0.000000e+00 : f32
    %280 = vector.broadcast %cst_78 : f32 to vector<2x8x16x128xf32>
    %c-2_i32 = arith.constant -2 : i32
    %281 = vector.broadcast %c-2_i32 : i32 to vector<1x1x16x1xi32>
    %282 = arith.addi %279, %281 : vector<1x1x16x1xi32>
    %c0_i32_79 = arith.constant 0 : i32
    %283 = vector.broadcast %c0_i32_79 : i32 to vector<1x1x16x1xi32>
    %284 = arith.cmpi sge, %282, %283 : vector<1x1x16x1xi32>
    %c-2_i32_80 = arith.constant -2 : i32
    %285 = vector.broadcast %c-2_i32_80 : i32 to vector<1x1x16x1xi32>
    %286 = arith.addi %279, %285 : vector<1x1x16x1xi32>
    %c15_i32_81 = arith.constant 15 : i32
    %287 = vector.broadcast %c15_i32_81 : i32 to vector<1x1x16x1xi32>
    %288 = arith.cmpi sle, %286, %287 : vector<1x1x16x1xi32>
    %289 = arith.andi %284, %288 : vector<1x1x16x1xi1>
    %290 = vector.shape_cast %272 : vector<2x8x16x128xf32> to vector<16x16x128xf32>
    %c2_i32 = arith.constant 2 : i32
    %291 = tpu.dynamic_rotate %290 by %c2_i32 dim 1 : vector<16x16x128xf32>, i32 -> vector<16x16x128xf32>
    %292 = vector.shape_cast %291 : vector<16x16x128xf32> to vector<2x8x16x128xf32>
    %cst_82 = arith.constant 0.000000e+00 : f32
    %293 = vector.shape_cast %289 : vector<1x1x16x1xi1> to vector<1x1x16x1xi1>
    %294 = vector.broadcast %293 : vector<1x1x16x1xi1> to vector<2x8x16x128xi1>
    %295 = vector.broadcast %cst_82 : f32 to vector<2x8x16x128xf32>
    %296 = arith.select %294, %292, %295 : vector<2x8x16x128xi1>, vector<2x8x16x128xf32>
    %cst_83 = arith.constant 0.000000e+00 : f32
    %297 = vector.broadcast %cst_83 : f32 to vector<2x1x16x128xf32>
    %298 = vector.extract_strided_slice %296 {offsets = [0, 0, 0, 0], sizes = [2, 7, 16, 128], strides = [1, 1, 1, 1]} : vector<2x8x16x128xf32> to vector<2x7x16x128xf32>
    %299 = tpu.concatenate %297, %298 in 1 : vector<2x1x16x128xf32>, vector<2x7x16x128xf32> -> vector<2x8x16x128xf32>
    %300 = vector.extract_strided_slice %273 {offsets = [0, 0], sizes = [1, 128], strides = [1, 1]} : vector<9x128xf32> to vector<1x128xf32>
    %301 = vector.shape_cast %300 : vector<1x128xf32> to vector<128xf32>
    %302 = vector.shape_cast %301 : vector<128xf32> to vector<1x1x1x128xf32>
    %303 = vector.broadcast %302 : vector<1x1x1x128xf32> to vector<2x8x16x128xf32>
    %304 = arith.mulf %299, %303 : vector<2x8x16x128xf32>
    %305 = arith.addf %280, %304 : vector<2x8x16x128xf32>
    %306 = vector.extract_strided_slice %273 {offsets = [3, 0], sizes = [1, 128], strides = [1, 1]} : vector<9x128xf32> to vector<1x128xf32>
    %307 = vector.shape_cast %306 : vector<1x128xf32> to vector<128xf32>
    %308 = vector.shape_cast %307 : vector<128xf32> to vector<1x1x1x128xf32>
    %309 = vector.broadcast %308 : vector<1x1x1x128xf32> to vector<2x8x16x128xf32>
    %310 = arith.mulf %296, %309 : vector<2x8x16x128xf32>
    %311 = arith.addf %305, %310 : vector<2x8x16x128xf32>
    %cst_84 = arith.constant 0.000000e+00 : f32
    %312 = vector.broadcast %cst_84 : f32 to vector<2x1x16x128xf32>
    %313 = vector.extract_strided_slice %296 {offsets = [0, 1, 0, 0], sizes = [2, 7, 16, 128], strides = [1, 1, 1, 1]} : vector<2x8x16x128xf32> to vector<2x7x16x128xf32>
    %314 = tpu.concatenate %313, %312 in 1 : vector<2x7x16x128xf32>, vector<2x1x16x128xf32> -> vector<2x8x16x128xf32>
    %315 = vector.extract_strided_slice %273 {offsets = [6, 0], sizes = [1, 128], strides = [1, 1]} : vector<9x128xf32> to vector<1x128xf32>
    %316 = vector.shape_cast %315 : vector<1x128xf32> to vector<128xf32>
    %317 = vector.shape_cast %316 : vector<128xf32> to vector<1x1x1x128xf32>
    %318 = vector.broadcast %317 : vector<1x1x1x128xf32> to vector<2x8x16x128xf32>
    %319 = arith.mulf %314, %318 : vector<2x8x16x128xf32>
    %320 = arith.addf %311, %319 : vector<2x8x16x128xf32>
    %cst_85 = arith.constant 0.000000e+00 : f32
    %321 = vector.broadcast %cst_85 : f32 to vector<2x1x16x128xf32>
    %322 = vector.extract_strided_slice %272 {offsets = [0, 0, 0, 0], sizes = [2, 7, 16, 128], strides = [1, 1, 1, 1]} : vector<2x8x16x128xf32> to vector<2x7x16x128xf32>
    %323 = tpu.concatenate %321, %322 in 1 : vector<2x1x16x128xf32>, vector<2x7x16x128xf32> -> vector<2x8x16x128xf32>
    %324 = vector.extract_strided_slice %273 {offsets = [1, 0], sizes = [1, 128], strides = [1, 1]} : vector<9x128xf32> to vector<1x128xf32>
    %325 = vector.shape_cast %324 : vector<1x128xf32> to vector<128xf32>
    %326 = vector.shape_cast %325 : vector<128xf32> to vector<1x1x1x128xf32>
    %327 = vector.broadcast %326 : vector<1x1x1x128xf32> to vector<2x8x16x128xf32>
    %328 = arith.mulf %323, %327 : vector<2x8x16x128xf32>
    %329 = arith.addf %320, %328 : vector<2x8x16x128xf32>
    %330 = vector.extract_strided_slice %273 {offsets = [4, 0], sizes = [1, 128], strides = [1, 1]} : vector<9x128xf32> to vector<1x128xf32>
    %331 = vector.shape_cast %330 : vector<1x128xf32> to vector<128xf32>
    %332 = vector.shape_cast %331 : vector<128xf32> to vector<1x1x1x128xf32>
    %333 = vector.broadcast %332 : vector<1x1x1x128xf32> to vector<2x8x16x128xf32>
    %334 = arith.mulf %272, %333 : vector<2x8x16x128xf32>
    %335 = arith.addf %329, %334 : vector<2x8x16x128xf32>
    %cst_86 = arith.constant 0.000000e+00 : f32
    %336 = vector.broadcast %cst_86 : f32 to vector<2x1x16x128xf32>
    %337 = vector.extract_strided_slice %272 {offsets = [0, 1, 0, 0], sizes = [2, 7, 16, 128], strides = [1, 1, 1, 1]} : vector<2x8x16x128xf32> to vector<2x7x16x128xf32>
    %338 = tpu.concatenate %337, %336 in 1 : vector<2x7x16x128xf32>, vector<2x1x16x128xf32> -> vector<2x8x16x128xf32>
    %339 = vector.extract_strided_slice %273 {offsets = [7, 0], sizes = [1, 128], strides = [1, 1]} : vector<9x128xf32> to vector<1x128xf32>
    %340 = vector.shape_cast %339 : vector<1x128xf32> to vector<128xf32>
    %341 = vector.shape_cast %340 : vector<128xf32> to vector<1x1x1x128xf32>
    %342 = vector.broadcast %341 : vector<1x1x1x128xf32> to vector<2x8x16x128xf32>
    %343 = arith.mulf %338, %342 : vector<2x8x16x128xf32>
    %344 = arith.addf %335, %343 : vector<2x8x16x128xf32>
    %c2_i32_87 = arith.constant 2 : i32
    %345 = vector.broadcast %c2_i32_87 : i32 to vector<1x1x16x1xi32>
    %346 = arith.addi %279, %345 : vector<1x1x16x1xi32>
    %c0_i32_88 = arith.constant 0 : i32
    %347 = vector.broadcast %c0_i32_88 : i32 to vector<1x1x16x1xi32>
    %348 = arith.cmpi sge, %346, %347 : vector<1x1x16x1xi32>
    %c2_i32_89 = arith.constant 2 : i32
    %349 = vector.broadcast %c2_i32_89 : i32 to vector<1x1x16x1xi32>
    %350 = arith.addi %279, %349 : vector<1x1x16x1xi32>
    %c15_i32_90 = arith.constant 15 : i32
    %351 = vector.broadcast %c15_i32_90 : i32 to vector<1x1x16x1xi32>
    %352 = arith.cmpi sle, %350, %351 : vector<1x1x16x1xi32>
    %353 = arith.andi %348, %352 : vector<1x1x16x1xi1>
    %354 = vector.shape_cast %272 : vector<2x8x16x128xf32> to vector<16x16x128xf32>
    %c14_i32 = arith.constant 14 : i32
    %355 = tpu.dynamic_rotate %354 by %c14_i32 dim 1 : vector<16x16x128xf32>, i32 -> vector<16x16x128xf32>
    %356 = vector.shape_cast %355 : vector<16x16x128xf32> to vector<2x8x16x128xf32>
    %cst_91 = arith.constant 0.000000e+00 : f32
    %357 = vector.shape_cast %353 : vector<1x1x16x1xi1> to vector<1x1x16x1xi1>
    %358 = vector.broadcast %357 : vector<1x1x16x1xi1> to vector<2x8x16x128xi1>
    %359 = vector.broadcast %cst_91 : f32 to vector<2x8x16x128xf32>
    %360 = arith.select %358, %356, %359 : vector<2x8x16x128xi1>, vector<2x8x16x128xf32>
    %cst_92 = arith.constant 0.000000e+00 : f32
    %361 = vector.broadcast %cst_92 : f32 to vector<2x1x16x128xf32>
    %362 = vector.extract_strided_slice %360 {offsets = [0, 0, 0, 0], sizes = [2, 7, 16, 128], strides = [1, 1, 1, 1]} : vector<2x8x16x128xf32> to vector<2x7x16x128xf32>
    %363 = tpu.concatenate %361, %362 in 1 : vector<2x1x16x128xf32>, vector<2x7x16x128xf32> -> vector<2x8x16x128xf32>
    %364 = vector.extract_strided_slice %273 {offsets = [2, 0], sizes = [1, 128], strides = [1, 1]} : vector<9x128xf32> to vector<1x128xf32>
    %365 = vector.shape_cast %364 : vector<1x128xf32> to vector<128xf32>
    %366 = vector.shape_cast %365 : vector<128xf32> to vector<1x1x1x128xf32>
    %367 = vector.broadcast %366 : vector<1x1x1x128xf32> to vector<2x8x16x128xf32>
    %368 = arith.mulf %363, %367 : vector<2x8x16x128xf32>
    %369 = arith.addf %344, %368 : vector<2x8x16x128xf32>
    %370 = vector.extract_strided_slice %273 {offsets = [5, 0], sizes = [1, 128], strides = [1, 1]} : vector<9x128xf32> to vector<1x128xf32>
    %371 = vector.shape_cast %370 : vector<1x128xf32> to vector<128xf32>
    %372 = vector.shape_cast %371 : vector<128xf32> to vector<1x1x1x128xf32>
    %373 = vector.broadcast %372 : vector<1x1x1x128xf32> to vector<2x8x16x128xf32>
    %374 = arith.mulf %360, %373 : vector<2x8x16x128xf32>
    %375 = arith.addf %369, %374 : vector<2x8x16x128xf32>
    %cst_93 = arith.constant 0.000000e+00 : f32
    %376 = vector.broadcast %cst_93 : f32 to vector<2x1x16x128xf32>
    %377 = vector.extract_strided_slice %360 {offsets = [0, 1, 0, 0], sizes = [2, 7, 16, 128], strides = [1, 1, 1, 1]} : vector<2x8x16x128xf32> to vector<2x7x16x128xf32>
    %378 = tpu.concatenate %377, %376 in 1 : vector<2x7x16x128xf32>, vector<2x1x16x128xf32> -> vector<2x8x16x128xf32>
    %379 = vector.extract_strided_slice %273 {offsets = [8, 0], sizes = [1, 128], strides = [1, 1]} : vector<9x128xf32> to vector<1x128xf32>
    %380 = vector.shape_cast %379 : vector<1x128xf32> to vector<128xf32>
    %381 = vector.shape_cast %380 : vector<128xf32> to vector<1x1x1x128xf32>
    %382 = vector.broadcast %381 : vector<1x1x1x128xf32> to vector<2x8x16x128xf32>
    %383 = arith.mulf %378, %382 : vector<2x8x16x128xf32>
    %384 = arith.addf %375, %383 : vector<2x8x16x128xf32>
    %385 = vector.shape_cast %274 : vector<1x128xf32> to vector<128xf32>
    %386 = vector.shape_cast %385 : vector<128xf32> to vector<1x1x1x128xf32>
    %387 = vector.broadcast %386 : vector<1x1x1x128xf32> to vector<2x8x16x128xf32>
    %388 = arith.addf %384, %387 : vector<2x8x16x128xf32>
    %389 = vector.shape_cast %388 : vector<2x8x16x128xf32> to vector<256x128xf32>
    %cst_94 = arith.constant dense<0.000000e+00> : vector<256x256xf32>
    %390 = tpu.matmul %389, %275, %cst_94 {dimension_numbers = #tpu.dot_dimension_numbers<[1], [0], [0], [1], [0, 0, 1, 1], [], []>} : vector<256x128xf32>, vector<128x256xf32>, vector<256x256xf32> -> vector<256x256xf32>
    %391 = vector.shape_cast %276 : vector<1x256xf32> to vector<256xf32>
    %392 = vector.shape_cast %391 : vector<256xf32> to vector<1x256xf32>
    %393 = vector.broadcast %392 : vector<1x256xf32> to vector<256x256xf32>
    %394 = arith.addf %390, %393 : vector<256x256xf32>
    %cst_95 = arith.constant 0.000000e+00 : f32
    %395 = vector.broadcast %cst_95 : f32 to vector<256x256xf32>
    %396 = arith.maximumf %394, %395 : vector<256x256xf32>
    %397 = vector.shape_cast %277 : vector<1x256xf32> to vector<256xf32>
    %398 = vector.shape_cast %397 : vector<256xf32> to vector<1x256xf32>
    %399 = vector.broadcast %398 : vector<1x256xf32> to vector<256x256xf32>
    %400 = arith.mulf %396, %399 : vector<256x256xf32>
    %401 = vector.shape_cast %278 : vector<1x256xf32> to vector<256xf32>
    %402 = vector.shape_cast %401 : vector<256xf32> to vector<1x256xf32>
    %403 = vector.broadcast %402 : vector<1x256xf32> to vector<256x256xf32>
    %404 = arith.addf %400, %403 : vector<256x256xf32>
    %405 = vector.shape_cast %404 : vector<256x256xf32> to vector<2x8x16x256xf32>
    %406 = vector.shape_cast %405 : vector<2x8x16x256xf32> to vector<2x4x2x16x256xf32>
    %cst_96 = arith.constant dense<0xFF800000> : vector<2x4x16x256xf32>
    %407 = vector.multi_reduction <maximumf>, %406, %cst_96 [2] : vector<2x4x2x16x256xf32> to vector<2x4x16x256xf32>
    %408 = vector.shape_cast %407 : vector<2x4x16x256xf32> to vector<8x16x256xf32>
    %c14_i32_97 = arith.constant 14 : i32
    %409 = tpu.dynamic_rotate %408 by %c14_i32_97 dim 1 : vector<8x16x256xf32>, i32 -> vector<8x16x256xf32>
    %410 = vector.shape_cast %409 : vector<8x16x256xf32> to vector<2x4x16x256xf32>
    %411 = arith.maximumf %407, %410 : vector<2x4x16x256xf32>
    %412 = tpu.iota {dimensions = array<i32: 2>} : vector<1x1x16x1xi32>
    %c4_i32 = arith.constant 4 : i32
    %c0_i32_98 = arith.constant 0 : i32
    %413 = arith.cmpi eq, %c4_i32, %c0_i32_98 : i32
    %c1_i32_99 = arith.constant 1 : i32
    %414 = arith.select %413, %c1_i32_99, %c4_i32 : i32
    %415 = vector.broadcast %414 : i32 to vector<1x1x16x1xi32>
    %416 = arith.remsi %412, %415 : vector<1x1x16x1xi32>
    %c0_i32_100 = arith.constant 0 : i32
    %417 = vector.broadcast %c0_i32_100 : i32 to vector<1x1x16x1xi32>
    %418 = arith.cmpi ne, %416, %417 : vector<1x1x16x1xi32>
    %c0_i32_101 = arith.constant 0 : i32
    %419 = vector.broadcast %c0_i32_101 : i32 to vector<1x1x16x1xi32>
    %420 = arith.cmpi slt, %416, %419 : vector<1x1x16x1xi32>
    %c0_i32_102 = arith.constant 0 : i32
    %421 = arith.cmpi slt, %414, %c0_i32_102 : i32
    %422 = vector.broadcast %421 : i1 to vector<1x1x16x1xi1>
    %423 = vector.broadcast %422 : vector<1x1x16x1xi1> to vector<1x1x16x1xi1>
    %424 = arith.xori %420, %423 : vector<1x1x16x1xi1>
    %425 = arith.andi %424, %418 : vector<1x1x16x1xi1>
    %426 = vector.broadcast %414 : i32 to vector<1x1x16x1xi32>
    %427 = arith.addi %416, %426 : vector<1x1x16x1xi32>
    %428 = arith.select %425, %427, %416 : vector<1x1x16x1xi1>, vector<1x1x16x1xi32>
    %c0_i32_103 = arith.constant 0 : i32
    %429 = vector.broadcast %c0_i32_103 : i32 to vector<1x1x16x1xi32>
    %430 = arith.cmpi eq, %428, %429 : vector<1x1x16x1xi32>
    %cst_104 = arith.constant 1.000000e+00 : f32
    %cst_105 = arith.constant 0.000000e+00 : f32
    %431 = vector.broadcast %cst_104 : f32 to vector<1x1x16x1xf32>
    %432 = vector.broadcast %cst_105 : f32 to vector<1x1x16x1xf32>
    %433 = arith.select %430, %431, %432 : vector<1x1x16x1xi1>, vector<1x1x16x1xf32>
    %434 = vector.broadcast %433 : vector<1x1x16x1xf32> to vector<2x4x16x256xf32>
    %435 = arith.mulf %411, %434 : vector<2x4x16x256xf32>
    %cst_106 = arith.constant dense<0.000000e+00> : vector<2x256xf32>
    %436 = vector.multi_reduction <add>, %435, %cst_106 [1, 2] : vector<2x4x16x256xf32> to vector<2x256xf32>
    %cst_107 = arith.constant 6.250000e-02 : f32
    %437 = vector.broadcast %cst_107 : f32 to vector<2x256xf32>
    %438 = arith.mulf %436, %437 : vector<2x256xf32>
    %c0_108 = arith.constant 0 : index
    %c0_109 = arith.constant 0 : index
    %439 = vector.load %arg20[%c0_108, %c0_109] : memref<256x128xf32, #tpu.memory_space<vmem>>, vector<256x128xf32>
    %cst_110 = arith.constant dense<0.000000e+00> : vector<2x128xf32>
    %440 = tpu.matmul %438, %439, %cst_110 {dimension_numbers = #tpu.dot_dimension_numbers<[1], [0], [0], [1], [0, 0, 1, 1], [], []>} : vector<2x256xf32>, vector<256x128xf32>, vector<2x128xf32> -> vector<2x128xf32>
    %c0_111 = arith.constant 0 : index
    %c0_112 = arith.constant 0 : index
    %441 = vector.load %arg21[%c0_111, %c0_112] : memref<1x128xf32, #tpu.memory_space<vmem>>, vector<1x128xf32>
    %442 = vector.shape_cast %441 : vector<1x128xf32> to vector<128xf32>
    %443 = vector.shape_cast %442 : vector<128xf32> to vector<1x128xf32>
    %444 = vector.broadcast %443 : vector<1x128xf32> to vector<2x128xf32>
    %445 = arith.addf %440, %444 : vector<2x128xf32>
    %c0_113 = arith.constant 0 : index
    %c0_114 = arith.constant 0 : index
    %c0_115 = arith.constant 0 : index
    %446 = vector.load %arg22[%c0_113, %c0_114, %c0_115] : memref<1x2x128xf32, #tpu.memory_space<vmem>>, vector<1x2x128xf32>
    %447 = vector.shape_cast %446 : vector<1x2x128xf32> to vector<2x128xf32>
    %448 = vector.shape_cast %445 : vector<2x128xf32> to vector<1x2x128xf32>
    tpu.vector_store %arg22[%c0_113, %c0_114, %c0_115], %448 {strides = array<i32>} : memref<1x2x128xf32, #tpu.memory_space<vmem>>, vector<1x2x128xf32>,
    return
  }
  func.func @transform_0(%arg0: i32) -> (i32, i32, i32, i32) {
    %c0_i32 = arith.constant 0 : i32
    %c0_i32_0 = arith.constant 0 : i32
    %c0_i32_1 = arith.constant 0 : i32
    %c0_i32_2 = arith.constant 0 : i32
    return %arg0, %c0_i32, %c0_i32_0, %c0_i32_1 : i32, i32, i32, i32
  }
  func.func @transform_1(%arg0: i32) -> (i32, i32) {
    %c0_i32 = arith.constant 0 : i32
    %c0_i32_0 = arith.constant 0 : i32
    %c0_i32_1 = arith.constant 0 : i32
    return %c0_i32, %c0_i32_0 : i32, i32
  }
  func.func @transform_2(%arg0: i32) -> (i32, i32) {
    %c0_i32 = arith.constant 0 : i32
    %c0_i32_0 = arith.constant 0 : i32
    %c0_i32_1 = arith.constant 0 : i32
    return %c0_i32, %c0_i32_0 : i32, i32
  }
  func.func @transform_3(%arg0: i32) -> (i32, i32) {
    %c0_i32 = arith.constant 0 : i32
    %c0_i32_0 = arith.constant 0 : i32
    %c0_i32_1 = arith.constant 0 : i32
    return %c0_i32, %c0_i32_0 : i32, i32
  }
  func.func @transform_4(%arg0: i32) -> (i32, i32) {
    %c0_i32 = arith.constant 0 : i32
    %c0_i32_0 = arith.constant 0 : i32
    %c0_i32_1 = arith.constant 0 : i32
    return %c0_i32, %c0_i32_0 : i32, i32
  }
  func.func @transform_5(%arg0: i32) -> (i32, i32) {
    %c0_i32 = arith.constant 0 : i32
    %c0_i32_0 = arith.constant 0 : i32
    %c0_i32_1 = arith.constant 0 : i32
    return %c0_i32, %c0_i32_0 : i32, i32
  }
  func.func @transform_6(%arg0: i32) -> (i32, i32) {
    %c0_i32 = arith.constant 0 : i32
    %c0_i32_0 = arith.constant 0 : i32
    %c0_i32_1 = arith.constant 0 : i32
    return %c0_i32, %c0_i32_0 : i32, i32
  }
  func.func @transform_7(%arg0: i32) -> (i32, i32) {
    %c0_i32 = arith.constant 0 : i32
    %c0_i32_0 = arith.constant 0 : i32
    %c0_i32_1 = arith.constant 0 : i32
    return %c0_i32, %c0_i32_0 : i32, i32
  }
  func.func @transform_8(%arg0: i32) -> (i32, i32) {
    %c0_i32 = arith.constant 0 : i32
    %c0_i32_0 = arith.constant 0 : i32
    %c0_i32_1 = arith.constant 0 : i32
    return %c0_i32, %c0_i32_0 : i32, i32
  }
  func.func @transform_9(%arg0: i32) -> (i32, i32) {
    %c0_i32 = arith.constant 0 : i32
    %c0_i32_0 = arith.constant 0 : i32
    %c0_i32_1 = arith.constant 0 : i32
    return %c0_i32, %c0_i32_0 : i32, i32
  }
  func.func @transform_10(%arg0: i32) -> (i32, i32) {
    %c0_i32 = arith.constant 0 : i32
    %c0_i32_0 = arith.constant 0 : i32
    %c0_i32_1 = arith.constant 0 : i32
    return %c0_i32, %c0_i32_0 : i32, i32
  }
  func.func @transform_11(%arg0: i32) -> (i32, i32) {
    %c0_i32 = arith.constant 0 : i32
    %c0_i32_0 = arith.constant 0 : i32
    %c0_i32_1 = arith.constant 0 : i32
    return %c0_i32, %c0_i32_0 : i32, i32
  }
  func.func @transform_12(%arg0: i32) -> (i32, i32) {
    %c0_i32 = arith.constant 0 : i32
    %c0_i32_0 = arith.constant 0 : i32
    %c0_i32_1 = arith.constant 0 : i32
    return %c0_i32, %c0_i32_0 : i32, i32
  }
  func.func @transform_13(%arg0: i32) -> (i32, i32) {
    %c0_i32 = arith.constant 0 : i32
    %c0_i32_0 = arith.constant 0 : i32
    %c0_i32_1 = arith.constant 0 : i32
    return %c0_i32, %c0_i32_0 : i32, i32
  }
  func.func @transform_14(%arg0: i32) -> (i32, i32) {
    %c0_i32 = arith.constant 0 : i32
    %c0_i32_0 = arith.constant 0 : i32
    %c0_i32_1 = arith.constant 0 : i32
    return %c0_i32, %c0_i32_0 : i32, i32
  }
  func.func @transform_15(%arg0: i32) -> (i32, i32) {
    %c0_i32 = arith.constant 0 : i32
    %c0_i32_0 = arith.constant 0 : i32
    %c0_i32_1 = arith.constant 0 : i32
    return %c0_i32, %c0_i32_0 : i32, i32
  }
  func.func @transform_16(%arg0: i32) -> (i32, i32) {
    %c0_i32 = arith.constant 0 : i32
    %c0_i32_0 = arith.constant 0 : i32
    %c0_i32_1 = arith.constant 0 : i32
    return %c0_i32, %c0_i32_0 : i32, i32
  }
  func.func @transform_17(%arg0: i32) -> (i32, i32) {
    %c0_i32 = arith.constant 0 : i32
    %c0_i32_0 = arith.constant 0 : i32
    %c0_i32_1 = arith.constant 0 : i32
    return %c0_i32, %c0_i32_0 : i32, i32
  }
  func.func @transform_18(%arg0: i32) -> (i32, i32) {
    %c0_i32 = arith.constant 0 : i32
    %c0_i32_0 = arith.constant 0 : i32
    %c0_i32_1 = arith.constant 0 : i32
    return %c0_i32, %c0_i32_0 : i32, i32
  }
  func.func @transform_19(%arg0: i32) -> (i32, i32) {
    %c0_i32 = arith.constant 0 : i32
    %c0_i32_0 = arith.constant 0 : i32
    %c0_i32_1 = arith.constant 0 : i32
    return %c0_i32, %c0_i32_0 : i32, i32
  }
  func.func @transform_20(%arg0: i32) -> (i32, i32) {
    %c0_i32 = arith.constant 0 : i32
    %c0_i32_0 = arith.constant 0 : i32
    %c0_i32_1 = arith.constant 0 : i32
    return %c0_i32, %c0_i32_0 : i32, i32
  }
  func.func @transform_21(%arg0: i32) -> (i32, i32, i32) {
    %c0_i32 = arith.constant 0 : i32
    %c0_i32_0 = arith.constant 0 : i32
    %c0_i32_1 = arith.constant 0 : i32
    return %arg0, %c0_i32, %c0_i32_0 : i32, i32, i32
  }
}

</mosaic_0001>

<llo_original>
// kernel: faster_cnn_forward.1
$region0: #{faster_cnn_forward.1}
  #allocation0 [shape = 'u32[]', space=smem, size = 0x4, offset = 0x4, fixed_abs, tag = 'smem constant byte address 0x4 - core index']
  #allocation1 [shape = 'u32[72,128]{1,0:T(1,128)}', space=vmem, size = 0x9000, scoped, tag = 'internal scratch']
  %s0 = inlined_call_operand.vmem [shape: f32[4,16,16,3], index: 0, kind: input, shape index: {}]
  %s1 = inlined_call_operand.vmem [shape: f32[9,3], index: 1, kind: input, shape index: {}]
  %s2 = inlined_call_operand.vmem [shape: f32[1,3], index: 2, kind: input, shape index: {}]
  %s3 = inlined_call_operand.vmem [shape: f32[3,64], index: 3, kind: input, shape index: {}]
  %s4 = inlined_call_operand.vmem [shape: f32[1,64], index: 4, kind: input, shape index: {}]
  %s5 = inlined_call_operand.vmem [shape: f32[1,64], index: 5, kind: input, shape index: {}]
  %s6 = inlined_call_operand.vmem [shape: f32[1,64], index: 6, kind: input, shape index: {}]
  %s7 = inlined_call_operand.vmem [shape: f32[9,64], index: 7, kind: input, shape index: {}]
  %s8 = inlined_call_operand.vmem [shape: f32[1,64], index: 8, kind: input, shape index: {}]
  %s9 = inlined_call_operand.vmem [shape: f32[64,128], index: 9, kind: input, shape index: {}]
  %s10 = inlined_call_operand.vmem [shape: f32[1,128], index: 10, kind: input, shape index: {}]
  %s11 = inlined_call_operand.vmem [shape: f32[1,128], index: 11, kind: input, shape index: {}]
  %s12 = inlined_call_operand.vmem [shape: f32[1,128], index: 12, kind: input, shape index: {}]
  %s13 = inlined_call_operand.vmem [shape: f32[9,128], index: 13, kind: input, shape index: {}]
  %s14 = inlined_call_operand.vmem [shape: f32[1,128], index: 14, kind: input, shape index: {}]
  %s15 = inlined_call_operand.vmem [shape: f32[128,256], index: 15, kind: input, shape index: {}]
  %s16 = inlined_call_operand.vmem [shape: f32[1,256], index: 16, kind: input, shape index: {}]
  %s17 = inlined_call_operand.vmem [shape: f32[1,256], index: 17, kind: input, shape index: {}]
  %s18 = inlined_call_operand.vmem [shape: f32[1,256], index: 18, kind: input, shape index: {}]
  %s19 = inlined_call_operand.vmem [shape: f32[256,128], index: 19, kind: input, shape index: {}]
  %s20 = inlined_call_operand.vmem [shape: f32[1,128], index: 20, kind: input, shape index: {}]
  %s21 = inlined_call_operand.hbm [shape: f32[2,2,128], index: 21, kind: output, shape index: {}]
  %s22 = sld [smem:[#allocation0]]
  $region117: #{faster_cnn_forward.1} parent=0
    _
  %s24 = ssub.s32 1, %s22
  %s25 = scalar_select 0, %s24, %s22
  $region1: #{faster_cnn_forward.1} parent=0
    #allocation2 [shape = 'u8[2048]{0}', space=vmem, size = 0x800, scoped, tag = 'output window, operand 0']
    #allocation3 [shape = 's32[2]{0}', space=sflag, size = 0x8, scoped, tag = 'scoped memory for faster_cnn_forward.1']
    %26 = vsyncpa [#allocation3], 0
    %s27 = scalar_lea.sflag [#allocation3], 1
    %28 = vsyncpa %s27, 0
    loop: start=0, step=1, limit=4
    $region2: #{faster_cnn_forward.1} parent=1 // loop_pre_header
      _
    $region3: #{faster_cnn_forward.1} parent=1 // loop_header
      %s30 = sphi 0, %s34
      %p31 = scmp.ge.s32.totalorder %s30, 4
      %s40 = sphi 0, %s42
      %s43 = sphi 0, %s40
      %s44 = sphi 0, %s43
      %s60 = sphi 0, %s44
      %s64 = sphi 0, %s64
      %s66 = sphi 0, %s64
      %s67 = sphi 0, %s66
      %s81 = sphi 0, %s67
      %s85 = sphi 0, %s85
      %s87 = sphi 0, %s85
      %s88 = sphi 0, %s87
      %s102 = sphi 0, %s88
      %s106 = sphi 0, %s106
      %s108 = sphi 0, %s106
      %s109 = sphi 0, %s108
      %s123 = sphi 0, %s109
      %s127 = sphi 0, %s127
      %s129 = sphi 0, %s127
      %s130 = sphi 0, %s129
      %s144 = sphi 0, %s130
      %s148 = sphi 0, %s148
      %s150 = sphi 0, %s148
      %s151 = sphi 0, %s150
      %s165 = sphi 0, %s151
      %s169 = sphi 0, %s169
      %s171 = sphi 0, %s169
      %s172 = sphi 0, %s171
      %s186 = sphi 0, %s172
      %s190 = sphi 0, %s190
      %s192 = sphi 0, %s190
      %s193 = sphi 0, %s192
      %s207 = sphi 0, %s193
      %s211 = sphi 0, %s211
      %s213 = sphi 0, %s211
      %s214 = sphi 0, %s213
      %s228 = sphi 0, %s214
      %s232 = sphi 0, %s232
      %s234 = sphi 0, %s232
      %s235 = sphi 0, %s234
      %s249 = sphi 0, %s235
      %s253 = sphi 0, %s253
      %s255 = sphi 0, %s253
      %s256 = sphi 0, %s255
      %s270 = sphi 0, %s256
      %s274 = sphi 0, %s274
      %s276 = sphi 0, %s274
      %s277 = sphi 0, %s276
      %s291 = sphi 0, %s277
      %s295 = sphi 0, %s295
      %s297 = sphi 0, %s295
      %s298 = sphi 0, %s297
      %s312 = sphi 0, %s298
      %s316 = sphi 0, %s316
      %s318 = sphi 0, %s316
      %s319 = sphi 0, %s318
      %s333 = sphi 0, %s319
      %s337 = sphi 0, %s337
      %s339 = sphi 0, %s337
      %s340 = sphi 0, %s339
      %s354 = sphi 0, %s340
      %s358 = sphi 0, %s358
      %s360 = sphi 0, %s358
      %s361 = sphi 0, %s360
      %s375 = sphi 0, %s361
      %s379 = sphi 0, %s379
      %s381 = sphi 0, %s379
      %s382 = sphi 0, %s381
      %s396 = sphi 0, %s382
      %s400 = sphi 0, %s400
      %s402 = sphi 0, %s400
      %s403 = sphi 0, %s402
      %s417 = sphi 0, %s403
      %s421 = sphi 0, %s421
      %s423 = sphi 0, %s421
      %s424 = sphi 0, %s423
      %s438 = sphi 0, %s424
      %s442 = sphi 0, %s442
      %s444 = sphi 0, %s442
      %s445 = sphi 0, %s444
      %s459 = sphi 0, %s445
      %s463 = sphi 0, %s463
      %s465 = sphi 0, %s463
      %s466 = sphi 0, %s465
      %s480 = sphi 0, %s466
      %s486 = sphi 0, %s488
      %s489 = sphi 0, %s486
      %s490 = sphi 0, %s489
      %s506 = sphi 0, %s490
    $region4: #{faster_cnn_forward.1} parent=1 // loop_header_branch
      %33 = sbr.rel (%p31) target = $region8
    $region5: #{faster_cnn_forward.1} parent=1 // loop_body
      %s35 = ssub.s32 %s30, 1
      %s36 = ssub.s32 %s30, 2
      %s37 = sadd.s32 %s30, 1
      %s38 = ssub.s32 %s30, %s37
      %p39 = scmp.eq.s32.totalorder %s38, 0
      %s41 = sadd.s32 %s40, 1
      %s42 = scalar_select %p39, %s40, %s41
      %p45 = pneg %p39
      %p46 = scmp.eq.s32.totalorder %s30, 1
      %p47 = por %p45, %p46
      %p48 = scmp.ne.s32.totalorder %s40, %s43
      %p49 = scmp.eq.s32.totalorder %s30, 0
      %p50 = por %p48, %p49
      %p51 = scmp.ne.s32.totalorder %s40, %s43
      %p52 = scmp.eq.s32.totalorder %s35, 1
      %p53 = por %p51, %p52
      %p54 = scmp.ne.s32.totalorder %s43, %s44
      %p55 = scmp.eq.s32.totalorder %s35, 0
      %p56 = por %p54, %p55
      %p57 = scmp.ne.s32.totalorder %s43, %s44
      %p58 = scmp.eq.s32.totalorder %s36, 1
      %p59 = por %p57, %p58
      %p61 = scmp.ne.s32.totalorder %s44, %s60
      %p62 = scmp.eq.s32.totalorder %s36, 0
      %p63 = por %p61, %p62
      %s65 = sadd.s32 %s64, 1
      %p68 = scmp.eq.s32.totalorder %s30, 1
      %p69 = scmp.ne.s32.totalorder %s64, %s66
      %p70 = scmp.eq.s32.totalorder %s30, 0
      %p71 = por %p69, %p70
      %p72 = scmp.ne.s32.totalorder %s64, %s66
      %p73 = scmp.eq.s32.totalorder %s35, 1
      %p74 = por %p72, %p73
      %p75 = scmp.ne.s32.totalorder %s66, %s67
      %p76 = scmp.eq.s32.totalorder %s35, 0
      %p77 = por %p75, %p76
      %p78 = scmp.ne.s32.totalorder %s66, %s67
      %p79 = scmp.eq.s32.totalorder %s36, 1
      %p80 = por %p78, %p79
      %p82 = scmp.ne.s32.totalorder %s67, %s81
      %p83 = scmp.eq.s32.totalorder %s36, 0
      %p84 = por %p82, %p83
      %s86 = sadd.s32 %s85, 1
      %p89 = scmp.eq.s32.totalorder %s30, 1
      %p90 = scmp.ne.s32.totalorder %s85, %s87
      %p91 = scmp.eq.s32.totalorder %s30, 0
      %p92 = por %p90, %p91
      %p93 = scmp.ne.s32.totalorder %s85, %s87
      %p94 = scmp.eq.s32.totalorder %s35, 1
      %p95 = por %p93, %p94
      %p96 = scmp.ne.s32.totalorder %s87, %s88
      %p97 = scmp.eq.s32.totalorder %s35, 0
      %p98 = por %p96, %p97
      %p99 = scmp.ne.s32.totalorder %s87, %s88
      %p100 = scmp.eq.s32.totalorder %s36, 1
      %p101 = por %p99, %p100
      %p103 = scmp.ne.s32.totalorder %s88, %s102
      %p104 = scmp.eq.s32.totalorder %s36, 0
      %p105 = por %p103, %p104
      %s107 = sadd.s32 %s106, 1
      %p110 = scmp.eq.s32.totalorder %s30, 1
      %p111 = scmp.ne.s32.totalorder %s106, %s108
      %p112 = scmp.eq.s32.totalorder %s30, 0
      %p113 = por %p111, %p112
      %p114 = scmp.ne.s32.totalorder %s106, %s108
      %p115 = scmp.eq.s32.totalorder %s35, 1
      %p116 = por %p114, %p115
      %p117 = scmp.ne.s32.totalorder %s108, %s109
      %p118 = scmp.eq.s32.totalorder %s35, 0
      %p119 = por %p117, %p118
      %p120 = scmp.ne.s32.totalorder %s108, %s109
      %p121 = scmp.eq.s32.totalorder %s36, 1
      %p122 = por %p120, %p121
      %p124 = scmp.ne.s32.totalorder %s109, %s123
      %p125 = scmp.eq.s32.totalorder %s36, 0
      %p126 = por %p124, %p125
      %s128 = sadd.s32 %s127, 1
      %p131 = scmp.eq.s32.totalorder %s30, 1
      %p132 = scmp.ne.s32.totalorder %s127, %s129
      %p133 = scmp.eq.s32.totalorder %s30, 0
      %p134 = por %p132, %p133
      %p135 = scmp.ne.s32.totalorder %s127, %s129
      %p136 = scmp.eq.s32.totalorder %s35, 1
      %p137 = por %p135, %p136
      %p138 = scmp.ne.s32.totalorder %s129, %s130
      %p139 = scmp.eq.s32.totalorder %s35, 0
      %p140 = por %p138, %p139
      %p141 = scmp.ne.s32.totalorder %s129, %s130
      %p142 = scmp.eq.s32.totalorder %s36, 1
      %p143 = por %p141, %p142
      %p145 = scmp.ne.s32.totalorder %s130, %s144
      %p146 = scmp.eq.s32.totalorder %s36, 0
      %p147 = por %p145, %p146
      %s149 = sadd.s32 %s148, 1
      %p152 = scmp.eq.s32.totalorder %s30, 1
      %p153 = scmp.ne.s32.totalorder %s148, %s150
      %p154 = scmp.eq.s32.totalorder %s30, 0
      %p155 = por %p153, %p154
      %p156 = scmp.ne.s32.totalorder %s148, %s150
      %p157 = scmp.eq.s32.totalorder %s35, 1
      %p158 = por %p156, %p157
      %p159 = scmp.ne.s32.totalorder %s150, %s151
      %p160 = scmp.eq.s32.totalorder %s35, 0
      %p161 = por %p159, %p160
      %p162 = scmp.ne.s32.totalorder %s150, %s151
      %p163 = scmp.eq.s32.totalorder %s36, 1
      %p164 = por %p162, %p163
      %p166 = scmp.ne.s32.totalorder %s151, %s165
      %p167 = scmp.eq.s32.totalorder %s36, 0
      %p168 = por %p166, %p167
      %s170 = sadd.s32 %s169, 1
      %p173 = scmp.eq.s32.totalorder %s30, 1
      %p174 = scmp.ne.s32.totalorder %s169, %s171
      %p175 = scmp.eq.s32.totalorder %s30, 0
      %p176 = por %p174, %p175
      %p177 = scmp.ne.s32.totalorder %s169, %s171
      %p178 = scmp.eq.s32.totalorder %s35, 1
      %p179 = por %p177, %p178
      %p180 = scmp.ne.s32.totalorder %s171, %s172
      %p181 = scmp.eq.s32.totalorder %s35, 0
      %p182 = por %p180, %p181
      %p183 = scmp.ne.s32.totalorder %s171, %s172
      %p184 = scmp.eq.s32.totalorder %s36, 1
      %p185 = por %p183, %p184
      %p187 = scmp.ne.s32.totalorder %s172, %s186
      %p188 = scmp.eq.s32.totalorder %s36, 0
      %p189 = por %p187, %p188
      %s191 = sadd.s32 %s190, 1
      %p194 = scmp.eq.s32.totalorder %s30, 1
      %p195 = scmp.ne.s32.totalorder %s190, %s192
      %p196 = scmp.eq.s32.totalorder %s30, 0
      %p197 = por %p195, %p196
      %p198 = scmp.ne.s32.totalorder %s190, %s192
      %p199 = scmp.eq.s32.totalorder %s35, 1
      %p200 = por %p198, %p199
      %p201 = scmp.ne.s32.totalorder %s192, %s193
      %p202 = scmp.eq.s32.totalorder %s35, 0
      %p203 = por %p201, %p202
      %p204 = scmp.ne.s32.totalorder %s192, %s193
      %p205 = scmp.eq.s32.totalorder %s36, 1
      %p206 = por %p204, %p205
      %p208 = scmp.ne.s32.totalorder %s193, %s207
      %p209 = scmp.eq.s32.totalorder %s36, 0
      %p210 = por %p208, %p209
      %s212 = sadd.s32 %s211, 1
      %p215 = scmp.eq.s32.totalorder %s30, 1
      %p216 = scmp.ne.s32.totalorder %s211, %s213
      %p217 = scmp.eq.s32.totalorder %s30, 0
      %p218 = por %p216, %p217
      %p219 = scmp.ne.s32.totalorder %s211, %s213
      %p220 = scmp.eq.s32.totalorder %s35, 1
      %p221 = por %p219, %p220
      %p222 = scmp.ne.s32.totalorder %s213, %s214
      %p223 = scmp.eq.s32.totalorder %s35, 0
      %p224 = por %p222, %p223
      %p225 = scmp.ne.s32.totalorder %s213, %s214
      %p226 = scmp.eq.s32.totalorder %s36, 1
      %p227 = por %p225, %p226
      %p229 = scmp.ne.s32.totalorder %s214, %s228
      %p230 = scmp.eq.s32.totalorder %s36, 0
      %p231 = por %p229, %p230
      %s233 = sadd.s32 %s232, 1
      %p236 = scmp.eq.s32.totalorder %s30, 1
      %p237 = scmp.ne.s32.totalorder %s232, %s234
      %p238 = scmp.eq.s32.totalorder %s30, 0
      %p239 = por %p237, %p238
      %p240 = scmp.ne.s32.totalorder %s232, %s234
      %p241 = scmp.eq.s32.totalorder %s35, 1
      %p242 = por %p240, %p241
      %p243 = scmp.ne.s32.totalorder %s234, %s235
      %p244 = scmp.eq.s32.totalorder %s35, 0
      %p245 = por %p243, %p244
      %p246 = scmp.ne.s32.totalorder %s234, %s235
      %p247 = scmp.eq.s32.totalorder %s36, 1
      %p248 = por %p246, %p247
      %p250 = scmp.ne.s32.totalorder %s235, %s249
      %p251 = scmp.eq.s32.totalorder %s36, 0
      %p252 = por %p250, %p251
      %s254 = sadd.s32 %s253, 1
      %p257 = scmp.eq.s32.totalorder %s30, 1
      %p258 = scmp.ne.s32.totalorder %s253, %s255
      %p259 = scmp.eq.s32.totalorder %s30, 0
      %p260 = por %p258, %p259
      %p261 = scmp.ne.s32.totalorder %s253, %s255
      %p262 = scmp.eq.s32.totalorder %s35, 1
      %p263 = por %p261, %p262
      %p264 = scmp.ne.s32.totalorder %s255, %s256
      %p265 = scmp.eq.s32.totalorder %s35, 0
      %p266 = por %p264, %p265
      %p267 = scmp.ne.s32.totalorder %s255, %s256
      %p268 = scmp.eq.s32.totalorder %s36, 1
      %p269 = por %p267, %p268
      %p271 = scmp.ne.s32.totalorder %s256, %s270
      %p272 = scmp.eq.s32.totalorder %s36, 0
      %p273 = por %p271, %p272
      %s275 = sadd.s32 %s274, 1
      %p278 = scmp.eq.s32.totalorder %s30, 1
      %p279 = scmp.ne.s32.totalorder %s274, %s276
      %p280 = scmp.eq.s32.totalorder %s30, 0
      %p281 = por %p279, %p280
      %p282 = scmp.ne.s32.totalorder %s274, %s276
      %p283 = scmp.eq.s32.totalorder %s35, 1
      %p284 = por %p282, %p283
      %p285 = scmp.ne.s32.totalorder %s276, %s277
      %p286 = scmp.eq.s32.totalorder %s35, 0
      %p287 = por %p285, %p286
      %p288 = scmp.ne.s32.totalorder %s276, %s277
      %p289 = scmp.eq.s32.totalorder %s36, 1
      %p290 = por %p288, %p289
      %p292 = scmp.ne.s32.totalorder %s277, %s291
      %p293 = scmp.eq.s32.totalorder %s36, 0
      %p294 = por %p292, %p293
      %s296 = sadd.s32 %s295, 1
      %p299 = scmp.eq.s32.totalorder %s30, 1
      %p300 = scmp.ne.s32.totalorder %s295, %s297
      %p301 = scmp.eq.s32.totalorder %s30, 0
      %p302 = por %p300, %p301
      %p303 = scmp.ne.s32.totalorder %s295, %s297
      %p304 = scmp.eq.s32.totalorder %s35, 1
      %p305 = por %p303, %p304
      %p306 = scmp.ne.s32.totalorder %s297, %s298
      %p307 = scmp.eq.s32.totalorder %s35, 0
      %p308 = por %p306, %p307
      %p309 = scmp.ne.s32.totalorder %s297, %s298
      %p310 = scmp.eq.s32.totalorder %s36, 1
      %p311 = por %p309, %p310
      %p313 = scmp.ne.s32.totalorder %s298, %s312
      %p314 = scmp.eq.s32.totalorder %s36, 0
      %p315 = por %p313, %p314
      %s317 = sadd.s32 %s316, 1
      %p320 = scmp.eq.s32.totalorder %s30, 1
      %p321 = scmp.ne.s32.totalorder %s316, %s318
      %p322 = scmp.eq.s32.totalorder %s30, 0
      %p323 = por %p321, %p322
      %p324 = scmp.ne.s32.totalorder %s316, %s318
      %p325 = scmp.eq.s32.totalorder %s35, 1
      %p326 = por %p324, %p325
      %p327 = scmp.ne.s32.totalorder %s318, %s319
      %p328 = scmp.eq.s32.totalorder %s35, 0
      %p329 = por %p327, %p328
      %p330 = scmp.ne.s32.totalorder %s318, %s319
      %p331 = scmp.eq.s32.totalorder %s36, 1
      %p332 = por %p330, %p331
      %p334 = scmp.ne.s32.totalorder %s319, %s333
      %p335 = scmp.eq.s32.totalorder %s36, 0
      %p336 = por %p334, %p335
      %s338 = sadd.s32 %s337, 1
      %p341 = scmp.eq.s32.totalorder %s30, 1
      %p342 = scmp.ne.s32.totalorder %s337, %s339
      %p343 = scmp.eq.s32.totalorder %s30, 0
      %p344 = por %p342, %p343
      %p345 = scmp.ne.s32.totalorder %s337, %s339
      %p346 = scmp.eq.s32.totalorder %s35, 1
      %p347 = por %p345, %p346
      %p348 = scmp.ne.s32.totalorder %s339, %s340
      %p349 = scmp.eq.s32.totalorder %s35, 0
      %p350 = por %p348, %p349
      %p351 = scmp.ne.s32.totalorder %s339, %s340
      %p352 = scmp.eq.s32.totalorder %s36, 1
      %p353 = por %p351, %p352
      %p355 = scmp.ne.s32.totalorder %s340, %s354
      %p356 = scmp.eq.s32.totalorder %s36, 0
      %p357 = por %p355, %p356
      %s359 = sadd.s32 %s358, 1
      %p362 = scmp.eq.s32.totalorder %s30, 1
      %p363 = scmp.ne.s32.totalorder %s358, %s360
      %p364 = scmp.eq.s32.totalorder %s30, 0
      %p365 = por %p363, %p364
      %p366 = scmp.ne.s32.totalorder %s358, %s360
      %p367 = scmp.eq.s32.totalorder %s35, 1
      %p368 = por %p366, %p367
      %p369 = scmp.ne.s32.totalorder %s360, %s361
      %p370 = scmp.eq.s32.totalorder %s35, 0
      %p371 = por %p369, %p370
      %p372 = scmp.ne.s32.totalorder %s360, %s361
      %p373 = scmp.eq.s32.totalorder %s36, 1
      %p374 = por %p372, %p373
      %p376 = scmp.ne.s32.totalorder %s361, %s375
      %p377 = scmp.eq.s32.totalorder %s36, 0
      %p378 = por %p376, %p377
      %s380 = sadd.s32 %s379, 1
      %p383 = scmp.eq.s32.totalorder %s30, 1
      %p384 = scmp.ne.s32.totalorder %s379, %s381
      %p385 = scmp.eq.s32.totalorder %s30, 0
      %p386 = por %p384, %p385
      %p387 = scmp.ne.s32.totalorder %s379, %s381
      %p388 = scmp.eq.s32.totalorder %s35, 1
      %p389 = por %p387, %p388
      %p390 = scmp.ne.s32.totalorder %s381, %s382
      %p391 = scmp.eq.s32.totalorder %s35, 0
      %p392 = por %p390, %p391
      %p393 = scmp.ne.s32.totalorder %s381, %s382
      %p394 = scmp.eq.s32.totalorder %s36, 1
      %p395 = por %p393, %p394
      %p397 = scmp.ne.s32.totalorder %s382, %s396
      %p398 = scmp.eq.s32.totalorder %s36, 0
      %p399 = por %p397, %p398
      %s401 = sadd.s32 %s400, 1
      %p404 = scmp.eq.s32.totalorder %s30, 1
      %p405 = scmp.ne.s32.totalorder %s400, %s402
      %p406 = scmp.eq.s32.totalorder %s30, 0
      %p407 = por %p405, %p406
      %p408 = scmp.ne.s32.totalorder %s400, %s402
      %p409 = scmp.eq.s32.totalorder %s35, 1
      %p410 = por %p408, %p409
      %p411 = scmp.ne.s32.totalorder %s402, %s403
      %p412 = scmp.eq.s32.totalorder %s35, 0
      %p413 = por %p411, %p412
      %p414 = scmp.ne.s32.totalorder %s402, %s403
      %p415 = scmp.eq.s32.totalorder %s36, 1
      %p416 = por %p414, %p415
      %p418 = scmp.ne.s32.totalorder %s403, %s417
      %p419 = scmp.eq.s32.totalorder %s36, 0
      %p420 = por %p418, %p419
      %s422 = sadd.s32 %s421, 1
      %p425 = scmp.eq.s32.totalorder %s30, 1
      %p426 = scmp.ne.s32.totalorder %s421, %s423
      %p427 = scmp.eq.s32.totalorder %s30, 0
      %p428 = por %p426, %p427
      %p429 = scmp.ne.s32.totalorder %s421, %s423
      %p430 = scmp.eq.s32.totalorder %s35, 1
      %p431 = por %p429, %p430
      %p432 = scmp.ne.s32.totalorder %s423, %s424
      %p433 = scmp.eq.s32.totalorder %s35, 0
      %p434 = por %p432, %p433
      %p435 = scmp.ne.s32.totalorder %s423, %s424
      %p436 = scmp.eq.s32.totalorder %s36, 1
      %p437 = por %p435, %p436
      %p439 = scmp.ne.s32.totalorder %s424, %s438
      %p440 = scmp.eq.s32.totalorder %s36, 0
      %p441 = por %p439, %p440
      %s443 = sadd.s32 %s442, 1
      %p446 = scmp.eq.s32.totalorder %s30, 1
      %p447 = scmp.ne.s32.totalorder %s442, %s444
      %p448 = scmp.eq.s32.totalorder %s30, 0
      %p449 = por %p447, %p448
      %p450 = scmp.ne.s32.totalorder %s442, %s444
      %p451 = scmp.eq.s32.totalorder %s35, 1
      %p452 = por %p450, %p451
      %p453 = scmp.ne.s32.totalorder %s444, %s445
      %p454 = scmp.eq.s32.totalorder %s35, 0
      %p455 = por %p453, %p454
      %p456 = scmp.ne.s32.totalorder %s444, %s445
      %p457 = scmp.eq.s32.totalorder %s36, 1
      %p458 = por %p456, %p457
      %p460 = scmp.ne.s32.totalorder %s445, %s459
      %p461 = scmp.eq.s32.totalorder %s36, 0
      %p462 = por %p460, %p461
      %s464 = sadd.s32 %s463, 1
      %p467 = scmp.eq.s32.totalorder %s30, 1
      %p468 = scmp.ne.s32.totalorder %s463, %s465
      %p469 = scmp.eq.s32.totalorder %s30, 0
      %p470 = por %p468, %p469
      %p471 = scmp.ne.s32.totalorder %s463, %s465
      %p472 = scmp.eq.s32.totalorder %s35, 1
      %p473 = por %p471, %p472
      %p474 = scmp.ne.s32.totalorder %s465, %s466
      %p475 = scmp.eq.s32.totalorder %s35, 0
      %p476 = por %p474, %p475
      %p477 = scmp.ne.s32.totalorder %s465, %s466
      %p478 = scmp.eq.s32.totalorder %s36, 1
      %p479 = por %p477, %p478
      %p481 = scmp.ne.s32.totalorder %s466, %s480
      %p482 = scmp.eq.s32.totalorder %s36, 0
      %p483 = por %p481, %p482
      %s484 = ssub.s32 %s30, %s37
      %p485 = scmp.eq.s32.totalorder %s484, 0
      %s487 = sadd.s32 %s486, 1
      %s488 = scalar_select %p485, %s486, %s487
      %p491 = pneg %p485
      %p492 = scmp.eq.s32.totalorder %s30, 1
      %p493 = por %p491, %p492
      %p494 = scmp.ne.s32.totalorder %s486, %s489
      %p495 = scmp.eq.s32.totalorder %s30, 0
      %p496 = por %p494, %p495
      %p497 = scmp.ne.s32.totalorder %s486, %s489
      %p498 = scmp.eq.s32.totalorder %s35, 1
      %p499 = por %p497, %p498
      %p500 = scmp.ne.s32.totalorder %s489, %s490
      %p501 = scmp.eq.s32.totalorder %s35, 0
      %p502 = por %p500, %p501
      %p503 = scmp.ne.s32.totalorder %s489, %s490
      %p504 = scmp.eq.s32.totalorder %s36, 1
      %p505 = por %p503, %p504
      %p507 = scmp.ne.s32.totalorder %s490, %s506
      %p508 = scmp.eq.s32.totalorder %s36, 0
      %p509 = por %p507, %p508
      %p510 = scmp.le.s32.totalorder 1, %s30
      %p511 = scmp.lt.s32.totalorder %s30, 3
      %p512 = pnand %p510, %p511
      %p513 = pneg %p512
      // Predicated region
      $region9: #{faster_cnn_forward.1} parent=5 // pred_check
        _
      $region10: #{faster_cnn_forward.1} parent=5 // pred_check_branch
        %515 = sbr.rel (%p512) target = $region12
      $region11: #{faster_cnn_forward.1} parent=5 // pred_region
        %s516 = ssub.s32 %s30, 1
        // Predicated region
        $region13: #{faster_cnn_forward.1} parent=11 // pred_check
          %p517 = pneg %p77
        $region14: #{faster_cnn_forward.1} parent=11 // pred_check_branch
          %519 = sbr.rel (%p517) target = $region16
        $region15: #{faster_cnn_forward.1} parent=11 // pred_region
          _
        $region16: #{faster_cnn_forward.1} parent=11 // pred_fallthru
          _
        // Predicated region
        $region17: #{faster_cnn_forward.1} parent=11 // pred_check
          %p520 = pneg %p98
        $region18: #{faster_cnn_forward.1} parent=11 // pred_check_branch
          %522 = sbr.rel (%p520) target = $region20
        $region19: #{faster_cnn_forward.1} parent=11 // pred_region
          _
        $region20: #{faster_cnn_forward.1} parent=11 // pred_fallthru
          _
        // Predicated region
        $region21: #{faster_cnn_forward.1} parent=11 // pred_check
          %p523 = pneg %p119
        $region22: #{faster_cnn_forward.1} parent=11 // pred_check_branch
          %525 = sbr.rel (%p523) target = $region24
        $region23: #{faster_cnn_forward.1} parent=11 // pred_region
          _
        $region24: #{faster_cnn_forward.1} parent=11 // pred_fallthru
          _
        // Predicated region
        $region25: #{faster_cnn_forward.1} parent=11 // pred_check
          %p526 = pneg %p140
        $region26: #{faster_cnn_forward.1} parent=11 // pred_check_branch
          %528 = sbr.rel (%p526) target = $region28
        $region27: #{faster_cnn_forward.1} parent=11 // pred_region
          _
        $region28: #{faster_cnn_forward.1} parent=11 // pred_fallthru
          _
        // Predicated region
        $region29: #{faster_cnn_forward.1} parent=11 // pred_check
          %p529 = pneg %p161
        $region30: #{faster_cnn_forward.1} parent=11 // pred_check_branch
          %531 = sbr.rel (%p529) target = $region32
        $region31: #{faster_cnn_forward.1} parent=11 // pred_region
          _
        $region32: #{faster_cnn_forward.1} parent=11 // pred_fallthru
          _
        // Predicated region
        $region33: #{faster_cnn_forward.1} parent=11 // pred_check
          %p532 = pneg %p182
        $region34: #{faster_cnn_forward.1} parent=11 // pred_check_branch
          %534 = sbr.rel (%p532) target = $region36
        $region35: #{faster_cnn_forward.1} parent=11 // pred_region
          _
        $region36: #{faster_cnn_forward.1} parent=11 // pred_fallthru
          _
        // Predicated region
        $region37: #{faster_cnn_forward.1} parent=11 // pred_check
          %p535 = pneg %p203
        $region38: #{faster_cnn_forward.1} parent=11 // pred_check_branch
          %537 = sbr.rel (%p535) target = $region40
        $region39: #{faster_cnn_forward.1} parent=11 // pred_region
          _
        $region40: #{faster_cnn_forward.1} parent=11 // pred_fallthru
          _
        // Predicated region
        $region41: #{faster_cnn_forward.1} parent=11 // pred_check
          %p538 = pneg %p224
        $region42: #{faster_cnn_forward.1} parent=11 // pred_check_branch
          %540 = sbr.rel (%p538) target = $region44
        $region43: #{faster_cnn_forward.1} parent=11 // pred_region
          _
        $region44: #{faster_cnn_forward.1} parent=11 // pred_fallthru
          _
        // Predicated region
        $region45: #{faster_cnn_forward.1} parent=11 // pred_check
          %p541 = pneg %p245
        $region46: #{faster_cnn_forward.1} parent=11 // pred_check_branch
          %543 = sbr.rel (%p541) target = $region48
        $region47: #{faster_cnn_forward.1} parent=11 // pred_region
          _
        $region48: #{faster_cnn_forward.1} parent=11 // pred_fallthru
          _
        // Predicated region
        $region49: #{faster_cnn_forward.1} parent=11 // pred_check
          %p544 = pneg %p266
        $region50: #{faster_cnn_forward.1} parent=11 // pred_check_branch
          %546 = sbr.rel (%p544) target = $region52
        $region51: #{faster_cnn_forward.1} parent=11 // pred_region
          _
        $region52: #{faster_cnn_forward.1} parent=11 // pred_fallthru
          _
        // Predicated region
        $region53: #{faster_cnn_forward.1} parent=11 // pred_check
          %p547 = pneg %p287
        $region54: #{faster_cnn_forward.1} parent=11 // pred_check_branch
          %549 = sbr.rel (%p547) target = $region56
        $region55: #{faster_cnn_forward.1} parent=11 // pred_region
          _
        $region56: #{faster_cnn_forward.1} parent=11 // pred_fallthru
          _
        // Predicated region
        $region57: #{faster_cnn_forward.1} parent=11 // pred_check
          %p550 = pneg %p308
        $region58: #{faster_cnn_forward.1} parent=11 // pred_check_branch
          %552 = sbr.rel (%p550) target = $region60
        $region59: #{faster_cnn_forward.1} parent=11 // pred_region
          _
        $region60: #{faster_cnn_forward.1} parent=11 // pred_fallthru
          _
        // Predicated region
        $region61: #{faster_cnn_forward.1} parent=11 // pred_check
          %p553 = pneg %p329
        $region62: #{faster_cnn_forward.1} parent=11 // pred_check_branch
          %555 = sbr.rel (%p553) target = $region64
        $region63: #{faster_cnn_forward.1} parent=11 // pred_region
          _
        $region64: #{faster_cnn_forward.1} parent=11 // pred_fallthru
          _
        // Predicated region
        $region65: #{faster_cnn_forward.1} parent=11 // pred_check
          %p556 = pneg %p350
        $region66: #{faster_cnn_forward.1} parent=11 // pred_check_branch
          %558 = sbr.rel (%p556) target = $region68
        $region67: #{faster_cnn_forward.1} parent=11 // pred_region
          _
        $region68: #{faster_cnn_forward.1} parent=11 // pred_fallthru
          _
        // Predicated region
        $region69: #{faster_cnn_forward.1} parent=11 // pred_check
          %p559 = pneg %p371
        $region70: #{faster_cnn_forward.1} parent=11 // pred_check_branch
          %561 = sbr.rel (%p559) target = $region72
        $region71: #{faster_cnn_forward.1} parent=11 // pred_region
          _
        $region72: #{faster_cnn_forward.1} parent=11 // pred_fallthru
          _
        // Predicated region
        $region73: #{faster_cnn_forward.1} parent=11 // pred_check
          %p562 = pneg %p392
        $region74: #{faster_cnn_forward.1} parent=11 // pred_check_branch
          %564 = sbr.rel (%p562) target = $region76
        $region75: #{faster_cnn_forward.1} parent=11 // pred_region
          _
        $region76: #{faster_cnn_forward.1} parent=11 // pred_fallthru
          _
        // Predicated region
        $region77: #{faster_cnn_forward.1} parent=11 // pred_check
          %p565 = pneg %p413
        $region78: #{faster_cnn_forward.1} parent=11 // pred_check_branch
          %567 = sbr.rel (%p565) target = $region80
        $region79: #{faster_cnn_forward.1} parent=11 // pred_region
          _
        $region80: #{faster_cnn_forward.1} parent=11 // pred_fallthru
          _
        // Predicated region
        $region81: #{faster_cnn_forward.1} parent=11 // pred_check
          %p568 = pneg %p434
        $region82: #{faster_cnn_forward.1} parent=11 // pred_check_branch
          %570 = sbr.rel (%p568) target = $region84
        $region83: #{faster_cnn_forward.1} parent=11 // pred_region
          _
        $region84: #{faster_cnn_forward.1} parent=11 // pred_fallthru
          _
        // Predicated region
        $region85: #{faster_cnn_forward.1} parent=11 // pred_check
          %p571 = pneg %p455
        $region86: #{faster_cnn_forward.1} parent=11 // pred_check_branch
          %573 = sbr.rel (%p571) target = $region88
        $region87: #{faster_cnn_forward.1} parent=11 // pred_region
          _
        $region88: #{faster_cnn_forward.1} parent=11 // pred_fallthru
          _
        // Predicated region
        $region89: #{faster_cnn_forward.1} parent=11 // pred_check
          %p574 = pneg %p476
        $region90: #{faster_cnn_forward.1} parent=11 // pred_check_branch
          %576 = sbr.rel (%p574) target = $region92
        $region91: #{faster_cnn_forward.1} parent=11 // pred_region
          _
        $region92: #{faster_cnn_forward.1} parent=11 // pred_fallthru
          _
      $region12: #{faster_cnn_forward.1} parent=5 // pred_fallthru
        _
      %p577 = scmp.lt.s32.totalorder %s30, 2
      // Predicated region
      $region93: #{faster_cnn_forward.1} parent=5 // pred_check
        %p578 = pneg %p577
      $region94: #{faster_cnn_forward.1} parent=5 // pred_check_branch
        %580 = sbr.rel (%p578) target = $region96
      $region95: #{faster_cnn_forward.1} parent=5 // pred_region
        // Predicated region
        $region97: #{faster_cnn_forward.1} parent=95 // pred_check
          %p581 = pneg %p50
        $region98: #{faster_cnn_forward.1} parent=95 // pred_check_branch
          %583 = sbr.rel (%p581) target = $region100
        $region99: #{faster_cnn_forward.1} parent=95 // pred_region
          %s584 = smul.u32 2, %s30
          %p585 = scmp.lt.s32.totalorder %s584, 3
          %s586 = scalar_select %p585, %s584, 3
          %s587 = smul.addr %s586, 32
          %s588 = smul.addr %s587, 8
          %s589 = scalar_lea.vmem %s0, %s588
          %s590 = smul.u32 2, %s30
        $region100: #{faster_cnn_forward.1} parent=95 // pred_fallthru
          _
      $region96: #{faster_cnn_forward.1} parent=5 // pred_fallthru
        _
      %p591 = scmp.le.s32.totalorder 1, %s30
      %p592 = scmp.lt.s32.totalorder %s30, 3
      %p593 = pnand %p591, %p592
      %p594 = pneg %p593
      // Predicated region
      $region101: #{faster_cnn_forward.1} parent=5 // pred_check
        _
      $region102: #{faster_cnn_forward.1} parent=5 // pred_check_branch
        %596 = sbr.rel (%p593) target = $region104
      $region103: #{faster_cnn_forward.1} parent=5 // pred_region
        %s597 = ssub.s32 %s30, 1
        %s598 = smul.u32 2, %s35
        %p599 = scmp.lt.s32.totalorder %s598, 3
        %s600 = scalar_select %p599, %s598, 3
        %s601 = smul.addr %s600, 32
        %s602 = smul.addr %s601, 8
        %s603 = scalar_lea.vmem %s0, %s602
        %p604 = pneg %p56
        %p605 = pneg %p53
        %p606 = pneg %p77
        %p607 = pneg %p74
        %p608 = pneg %p98
        %p609 = pneg %p95
        %p610 = pneg %p119
        %p611 = pneg %p116
        %p612 = pneg %p140
        %p613 = pneg %p137
        %p614 = pneg %p161
        %p615 = pneg %p158
        %p616 = pneg %p182
        %p617 = pneg %p179
        %p618 = pneg %p203
        %p619 = pneg %p200
        %p620 = pneg %p224
        %p621 = pneg %p221
        %p622 = pneg %p245
        %p623 = pneg %p242
        %p624 = pneg %p266
        %p625 = pneg %p263
        %p626 = pneg %p287
        %p627 = pneg %p284
        %p628 = pneg %p308
        %p629 = pneg %p305
        %p630 = pneg %p329
        %p631 = pneg %p326
        %p632 = pneg %p350
        %p633 = pneg %p347
        %p634 = pneg %p371
        %p635 = pneg %p368
        %p636 = pneg %p392
        %p637 = pneg %p389
        %p638 = pneg %p413
        %p639 = pneg %p410
        %p640 = pneg %p434
        %p641 = pneg %p431
        %p642 = pneg %p455
        %p643 = pneg %p452
        %p644 = pneg %p476
        %p645 = pneg %p473
        %p646 = pneg %p502
        %p647 = pneg %p499
        %s648 = sand.u32 %s489, 1
        %s649 = scalar_lea.sflag [#allocation3], %s648
        %s650 = sand.u32 %s489, 1
        %s651 = smul.addr %s650, 2
        %s652 = scalar_lea.vmem [#allocation2], %s651
        %s653 = smul.u32 2, %s35
        %p654 = scmp.lt.s32.totalorder %s653, 3
        %s655 = scalar_select %p654, %s653, 3
        %s656 = smul.addr %s655, 32
        %s657 = smul.addr %s656, 8
        %s658 = scalar_lea.vmem %s0, %s657
        %s659 = smul.u32 2, %s35
        %v660 = vld [vmem:[%s658] sm:$0xff]
        %v661 = vld [vmem:[%s658 + $0x8] sm:$0xff]
        %v662 = vld [vmem:[%s658 + $0x10] sm:$0xff]
        %v663 = vld [vmem:[%s658 + $0x18] sm:$0xff]
        %v664 = vld [vmem:[%s658 + $0x20] sm:$0xff]
        %v665 = vld [vmem:[%s658 + $0x28] sm:$0xff]
        %v666 = vld [vmem:[%s658 + $0x30] sm:$0xff]
        %v667 = vld [vmem:[%s658 + $0x38] sm:$0xff]
        %v668 = vld [vmem:[%s658 + $0x40] sm:$0xff]
        %v669 = vld [vmem:[%s658 + $0x48] sm:$0xff]
        %v670 = vld [vmem:[%s658 + $0x50] sm:$0xff]
        %v671 = vld [vmem:[%s658 + $0x58] sm:$0xff]
        %v672 = vld [vmem:[%s658 + $0x60] sm:$0xff]
        %v673 = vld [vmem:[%s658 + $0x68] sm:$0xff]
        %v674 = vld [vmem:[%s658 + $0x70] sm:$0xff]
        %v675 = vld [vmem:[%s658 + $0x78] sm:$0xff]
        %v676 = vld [vmem:[%s658 + $0x80] sm:$0xff]
        %v677 = vld [vmem:[%s658 + $0x88] sm:$0xff]
        %v678 = vld [vmem:[%s658 + $0x90] sm:$0xff]
        %v679 = vld [vmem:[%s658 + $0x98] sm:$0xff]
        %v680 = vld [vmem:[%s658 + $0xa0] sm:$0xff]
        %v681 = vld [vmem:[%s658 + $0xa8] sm:$0xff]
        %v682 = vld [vmem:[%s658 + $0xb0] sm:$0xff]
        %v683 = vld [vmem:[%s658 + $0xb8] sm:$0xff]
        %v684 = vld [vmem:[%s658 + $0xc0] sm:$0xff]
        %v685 = vld [vmem:[%s658 + $0xc8] sm:$0xff]
        %v686 = vld [vmem:[%s658 + $0xd0] sm:$0xff]
        %v687 = vld [vmem:[%s658 + $0xd8] sm:$0xff]
        %v688 = vld [vmem:[%s658 + $0xe0] sm:$0xff]
        %v689 = vld [vmem:[%s658 + $0xe8] sm:$0xff]
        %v690 = vld [vmem:[%s658 + $0xf0] sm:$0xff]
        %v691 = vld [vmem:[%s658 + $0xf8] sm:$0xff]
        %v692 = vld [vmem:[%s658 + $0x100] sm:$0xff]
        %v693 = vld [vmem:[%s658 + $0x108] sm:$0xff]
        %v694 = vld [vmem:[%s658 + $0x110] sm:$0xff]
        %v695 = vld [vmem:[%s658 + $0x118] sm:$0xff]
        %v696 = vld [vmem:[%s658 + $0x120] sm:$0xff]
        %v697 = vld [vmem:[%s658 + $0x128] sm:$0xff]
        %v698 = vld [vmem:[%s658 + $0x130] sm:$0xff]
        %v699 = vld [vmem:[%s658 + $0x138] sm:$0xff]
        %v700 = vld [vmem:[%s658 + $0x140] sm:$0xff]
        %v701 = vld [vmem:[%s658 + $0x148] sm:$0xff]
        %v702 = vld [vmem:[%s658 + $0x150] sm:$0xff]
        %v703 = vld [vmem:[%s658 + $0x158] sm:$0xff]
        %v704 = vld [vmem:[%s658 + $0x160] sm:$0xff]
        %v705 = vld [vmem:[%s658 + $0x168] sm:$0xff]
        %v706 = vld [vmem:[%s658 + $0x170] sm:$0xff]
        %v707 = vld [vmem:[%s658 + $0x178] sm:$0xff]
        %v708 = vld [vmem:[%s658 + $0x180] sm:$0xff]
        %v709 = vld [vmem:[%s658 + $0x188] sm:$0xff]
        %v710 = vld [vmem:[%s658 + $0x190] sm:$0xff]
        %v711 = vld [vmem:[%s658 + $0x198] sm:$0xff]
        %v712 = vld [vmem:[%s658 + $0x1a0] sm:$0xff]
        %v713 = vld [vmem:[%s658 + $0x1a8] sm:$0xff]
        %v714 = vld [vmem:[%s658 + $0x1b0] sm:$0xff]
        %v715 = vld [vmem:[%s658 + $0x1b8] sm:$0xff]
        %v716 = vld [vmem:[%s658 + $0x1c0] sm:$0xff]
        %v717 = vld [vmem:[%s658 + $0x1c8] sm:$0xff]
        %v718 = vld [vmem:[%s658 + $0x1d0] sm:$0xff]
        %v719 = vld [vmem:[%s658 + $0x1d8] sm:$0xff]
        %v720 = vld [vmem:[%s658 + $0x1e0] sm:$0xff]
        %v721 = vld [vmem:[%s658 + $0x1e8] sm:$0xff]
        %v722 = vld [vmem:[%s658 + $0x1f0] sm:$0xff]
        %v723 = vld [vmem:[%s658 + $0x1f8] sm:$0xff]
        %v724 = vld [vmem:[%s1] sm:$0xff]
        %v725 = vld [vmem:[%s1 + $0x8] sm:$0x1]
        %v726 = vld [vmem:[%s2] sm:$0x1]
        %v727 = vld [vmem:[%s3] sm:$0x7]
        %v728 = vld [vmem:[%s4] sm:$0x1]
        %v729 = vld [vmem:[%s5] sm:$0x1]
        %v730 = vld [vmem:[%s6] sm:$0x1]
        %v731 = vlaneseq
        %v732 = vshrl.u32 %v731, 7
        %v733 = vadd.s32 %v732, 8
        %v734 = vadd.s32 %v732, 4294967295
        %v735 = vadd.s32 %v733, 4294967295
        %vm736 = vcmp.ge.s32.totalorder %v734, 0
        %vm737 = vcmp.ge.s32.totalorder %v735, 0
        %vm738 = vcmp.le.s32.totalorder %v734, 15
        %vm739 = vcmp.le.s32.totalorder %v735, 15
        %vm740 = vmand %vm736, %vm738
        %vm741 = vmand %vm737, %vm739
        %v742 = vrot.slane %v660, 7
        %v743 = vrot.slane %v662, 7
        %v744 = vrot.slane %v664, 7
        %v745 = vrot.slane %v666, 7
        %v746 = vrot.slane %v668, 7
        %v747 = vrot.slane %v670, 7
        %v748 = vrot.slane %v672, 7
        %v749 = vrot.slane %v674, 7
        %v750 = vrot.slane %v676, 7
        %v751 = vrot.slane %v678, 7
        %v752 = vrot.slane %v680, 7
        %v753 = vrot.slane %v682, 7
        %v754 = vrot.slane %v684, 7
        %v755 = vrot.slane %v686, 7
        %v756 = vrot.slane %v688, 7
        %v757 = vrot.slane %v690, 7
        %v758 = vrot.slane %v692, 7
        %v759 = vrot.slane %v694, 7
        %v760 = vrot.slane %v696, 7
        %v761 = vrot.slane %v698, 7
        %v762 = vrot.slane %v700, 7
        %v763 = vrot.slane %v702, 7
        %v764 = vrot.slane %v704, 7
        %v765 = vrot.slane %v706, 7
        %v766 = vrot.slane %v708, 7
        %v767 = vrot.slane %v710, 7
        %v768 = vrot.slane %v712, 7
        %v769 = vrot.slane %v714, 7
        %v770 = vrot.slane %v716, 7
        %v771 = vrot.slane %v718, 7
        %v772 = vrot.slane %v720, 7
        %v773 = vrot.slane %v722, 7
        %v774 = vrot.slane %v661, 7
        %v775 = vrot.slane %v663, 7
        %v776 = vrot.slane %v665, 7
        %v777 = vrot.slane %v667, 7
        %v778 = vrot.slane %v669, 7
        %v779 = vrot.slane %v671, 7
        %v780 = vrot.slane %v673, 7
        %v781 = vrot.slane %v675, 7
        %v782 = vrot.slane %v677, 7
        %v783 = vrot.slane %v679, 7
        %v784 = vrot.slane %v681, 7
        %v785 = vrot.slane %v683, 7
        %v786 = vrot.slane %v685, 7
        %v787 = vrot.slane %v687, 7
        %v788 = vrot.slane %v689, 7
        %v789 = vrot.slane %v691, 7
        %v790 = vrot.slane %v693, 7
        %v791 = vrot.slane %v695, 7
        %v792 = vrot.slane %v697, 7
        %v793 = vrot.slane %v699, 7
        %v794 = vrot.slane %v701, 7
        %v795 = vrot.slane %v703, 7
        %v796 = vrot.slane %v705, 7
        %v797 = vrot.slane %v707, 7
        %v798 = vrot.slane %v709, 7
        %v799 = vrot.slane %v711, 7
        %v800 = vrot.slane %v713, 7
        %v801 = vrot.slane %v715, 7
        %v802 = vrot.slane %v717, 7
        %v803 = vrot.slane %v719, 7
        %v804 = vrot.slane %v721, 7
        %v805 = vrot.slane %v723, 7
        %vm806 = vcmp.lt.s32.totalorder %v732, 1
        %v807 = vsel %vm806, %v742, %v774
        %v808 = vsel %vm806, %v743, %v775
        %v809 = vsel %vm806, %v744, %v776
        %v810 = vsel %vm806, %v745, %v777
        %v811 = vsel %vm806, %v746, %v778
        %v812 = vsel %vm806, %v747, %v779
        %v813 = vsel %vm806, %v748, %v780
        %v814 = vsel %vm806, %v749, %v781
        %v815 = vsel %vm806, %v750, %v782
        %v816 = vsel %vm806, %v751, %v783
        %v817 = vsel %vm806, %v752, %v784
        %v818 = vsel %vm806, %v753, %v785
        %v819 = vsel %vm806, %v754, %v786
        %v820 = vsel %vm806, %v755, %v787
        %v821 = vsel %vm806, %v756, %v788
        %v822 = vsel %vm806, %v757, %v789
        %v823 = vsel %vm806, %v758, %v790
        %v824 = vsel %vm806, %v759, %v791
        %v825 = vsel %vm806, %v760, %v792
        %v826 = vsel %vm806, %v761, %v793
        %v827 = vsel %vm806, %v762, %v794
        %v828 = vsel %vm806, %v763, %v795
        %v829 = vsel %vm806, %v764, %v796
        %v830 = vsel %vm806, %v765, %v797
        %v831 = vsel %vm806, %v766, %v798
        %v832 = vsel %vm806, %v767, %v799
        %v833 = vsel %vm806, %v768, %v800
        %v834 = vsel %vm806, %v769, %v801
        %v835 = vsel %vm806, %v770, %v802
        %v836 = vsel %vm806, %v771, %v803
        %v837 = vsel %vm806, %v772, %v804
        %v838 = vsel %vm806, %v773, %v805
        %v839 = vsel %vm806, %v774, %v742
        %v840 = vsel %vm806, %v775, %v743
        %v841 = vsel %vm806, %v776, %v744
        %v842 = vsel %vm806, %v777, %v745
        %v843 = vsel %vm806, %v778, %v746
        %v844 = vsel %vm806, %v779, %v747
        %v845 = vsel %vm806, %v780, %v748
        %v846 = vsel %vm806, %v781, %v749
        %v847 = vsel %vm806, %v782, %v750
        %v848 = vsel %vm806, %v783, %v751
        %v849 = vsel %vm806, %v784, %v752
        %v850 = vsel %vm806, %v785, %v753
        %v851 = vsel %vm806, %v786, %v754
        %v852 = vsel %vm806, %v787, %v755
        %v853 = vsel %vm806, %v788, %v756
        %v854 = vsel %vm806, %v789, %v757
        %v855 = vsel %vm806, %v790, %v758
        %v856 = vsel %vm806, %v791, %v759
        %v857 = vsel %vm806, %v792, %v760
        %v858 = vsel %vm806, %v793, %v761
        %v859 = vsel %vm806, %v794, %v762
        %v860 = vsel %vm806, %v795, %v763
        %v861 = vsel %vm806, %v796, %v764
        %v862 = vsel %vm806, %v797, %v765
        %v863 = vsel %vm806, %v798, %v766
        %v864 = vsel %vm806, %v799, %v767
        %v865 = vsel %vm806, %v800, %v768
        %v866 = vsel %vm806, %v801, %v769
        %v867 = vsel %vm806, %v802, %v770
        %v868 = vsel %vm806, %v803, %v771
        %v869 = vsel %vm806, %v804, %v772
        %v870 = vsel %vm806, %v805, %v773
        %v871 = vsel %vm740, 1, 0
        %v872 = vsel %vm741, 1, 0
        %vm873 = vcmp.eq.s32.totalorder %v871, 1
        %vm874 = vcmp.eq.s32.totalorder %v872, 1
        %v875 = vsel %vm873, %v839, 0.0
        %v876 = vsel %vm874, %v807, 0.0
        %v877 = vsel %vm873, %v840, 0.0
        %v878 = vsel %vm874, %v808, 0.0
        %v879 = vsel %vm873, %v841, 0.0
        %v880 = vsel %vm874, %v809, 0.0
        %v881 = vsel %vm873, %v842, 0.0
        %v882 = vsel %vm874, %v810, 0.0
        %v883 = vsel %vm873, %v843, 0.0
        %v884 = vsel %vm874, %v811, 0.0
        %v885 = vsel %vm873, %v844, 0.0
        %v886 = vsel %vm874, %v812, 0.0
        %v887 = vsel %vm873, %v845, 0.0
        %v888 = vsel %vm874, %v813, 0.0
        %v889 = vsel %vm873, %v846, 0.0
        %v890 = vsel %vm874, %v814, 0.0
        %v891 = vsel %vm873, %v847, 0.0
        %v892 = vsel %vm874, %v815, 0.0
        %v893 = vsel %vm873, %v848, 0.0
        %v894 = vsel %vm874, %v816, 0.0
        %v895 = vsel %vm873, %v849, 0.0
        %v896 = vsel %vm874, %v817, 0.0
        %v897 = vsel %vm873, %v850, 0.0
        %v898 = vsel %vm874, %v818, 0.0
        %v899 = vsel %vm873, %v851, 0.0
        %v900 = vsel %vm874, %v819, 0.0
        %v901 = vsel %vm873, %v852, 0.0
        %v902 = vsel %vm874, %v820, 0.0
        %v903 = vsel %vm873, %v853, 0.0
        %v904 = vsel %vm874, %v821, 0.0
        %v905 = vsel %vm873, %v854, 0.0
        %v906 = vsel %vm874, %v822, 0.0
        %v907 = vsel %vm873, %v855, 0.0
        %v908 = vsel %vm874, %v823, 0.0
        %v909 = vsel %vm873, %v856, 0.0
        %v910 = vsel %vm874, %v824, 0.0
        %v911 = vsel %vm873, %v857, 0.0
        %v912 = vsel %vm874, %v825, 0.0
        %v913 = vsel %vm873, %v858, 0.0
        %v914 = vsel %vm874, %v826, 0.0
        %v915 = vsel %vm873, %v859, 0.0
        %v916 = vsel %vm874, %v827, 0.0
        %v917 = vsel %vm873, %v860, 0.0
        %v918 = vsel %vm874, %v828, 0.0
        %v919 = vsel %vm873, %v861, 0.0
        %v920 = vsel %vm874, %v829, 0.0
        %v921 = vsel %vm873, %v862, 0.0
        %v922 = vsel %vm874, %v830, 0.0
        %v923 = vsel %vm873, %v863, 0.0
        %v924 = vsel %vm874, %v831, 0.0
        %v925 = vsel %vm873, %v864, 0.0
        %v926 = vsel %vm874, %v832, 0.0
        %v927 = vsel %vm873, %v865, 0.0
        %v928 = vsel %vm874, %v833, 0.0
        %v929 = vsel %vm873, %v866, 0.0
        %v930 = vsel %vm874, %v834, 0.0
        %v931 = vsel %vm873, %v867, 0.0
        %v932 = vsel %vm874, %v835, 0.0
        %v933 = vsel %vm873, %v868, 0.0
        %v934 = vsel %vm874, %v836, 0.0
        %v935 = vsel %vm873, %v869, 0.0
        %v936 = vsel %vm874, %v837, 0.0
        %v937 = vsel %vm873, %v870, 0.0
        %v938 = vsel %vm874, %v838, 0.0
        %v939 = vperm.slane %v724, 0
        %v940 = vmul.f32 %v939, 0.0
        %v941 = vmul.f32 %v875, %v939
        %v942 = vmul.f32 %v876, %v939
        %v943 = vmul.f32 %v877, %v939
        %v944 = vmul.f32 %v878, %v939
        %v945 = vmul.f32 %v879, %v939
        %v946 = vmul.f32 %v880, %v939
        %v947 = vmul.f32 %v881, %v939
        %v948 = vmul.f32 %v882, %v939
        %v949 = vmul.f32 %v883, %v939
        %v950 = vmul.f32 %v884, %v939
        %v951 = vmul.f32 %v885, %v939
        %v952 = vmul.f32 %v886, %v939
        %v953 = vmul.f32 %v887, %v939
        %v954 = vmul.f32 %v888, %v939
        %v955 = vmul.f32 %v889, %v939
        %v956 = vmul.f32 %v890, %v939
        %v957 = vmul.f32 %v891, %v939
        %v958 = vmul.f32 %v892, %v939
        %v959 = vmul.f32 %v893, %v939
        %v960 = vmul.f32 %v894, %v939
        %v961 = vmul.f32 %v895, %v939
        %v962 = vmul.f32 %v896, %v939
        %v963 = vmul.f32 %v897, %v939
        %v964 = vmul.f32 %v898, %v939
        %v965 = vmul.f32 %v899, %v939
        %v966 = vmul.f32 %v900, %v939
        %v967 = vmul.f32 %v901, %v939
        %v968 = vmul.f32 %v902, %v939
        %v969 = vmul.f32 %v903, %v939
        %v970 = vmul.f32 %v904, %v939
        %v971 = vmul.f32 %v907, %v939
        %v972 = vmul.f32 %v908, %v939
        %v973 = vmul.f32 %v909, %v939
        %v974 = vmul.f32 %v910, %v939
        %v975 = vmul.f32 %v911, %v939
        %v976 = vmul.f32 %v912, %v939
        %v977 = vmul.f32 %v913, %v939
        %v978 = vmul.f32 %v914, %v939
        %v979 = vmul.f32 %v915, %v939
        %v980 = vmul.f32 %v916, %v939
        %v981 = vmul.f32 %v917, %v939
        %v982 = vmul.f32 %v918, %v939
        %v983 = vmul.f32 %v919, %v939
        %v984 = vmul.f32 %v920, %v939
        %v985 = vmul.f32 %v921, %v939
        %v986 = vmul.f32 %v922, %v939
        %v987 = vmul.f32 %v923, %v939
        %v988 = vmul.f32 %v924, %v939
        %v989 = vmul.f32 %v925, %v939
        %v990 = vmul.f32 %v926, %v939
        %v991 = vmul.f32 %v927, %v939
        %v992 = vmul.f32 %v928, %v939
        %v993 = vmul.f32 %v929, %v939
        %v994 = vmul.f32 %v930, %v939
        %v995 = vmul.f32 %v931, %v939
        %v996 = vmul.f32 %v932, %v939
        %v997 = vmul.f32 %v933, %v939
        %v998 = vmul.f32 %v934, %v939
        %v999 = vmul.f32 %v935, %v939
        %v1000 = vmul.f32 %v936, %v939
        %v1001 = vadd.f32 %v940, 0.0
        %v1002 = vadd.f32 %v941, 0.0
        %v1003 = vadd.f32 %v942, 0.0
        %v1004 = vadd.f32 %v943, 0.0
        %v1005 = vadd.f32 %v944, 0.0
        %v1006 = vadd.f32 %v945, 0.0
        %v1007 = vadd.f32 %v946, 0.0
        %v1008 = vadd.f32 %v947, 0.0
        %v1009 = vadd.f32 %v948, 0.0
        %v1010 = vadd.f32 %v949, 0.0
        %v1011 = vadd.f32 %v950, 0.0
        %v1012 = vadd.f32 %v951, 0.0
        %v1013 = vadd.f32 %v952, 0.0
        %v1014 = vadd.f32 %v953, 0.0
        %v1015 = vadd.f32 %v954, 0.0
        %v1016 = vadd.f32 %v955, 0.0
        %v1017 = vadd.f32 %v956, 0.0
        %v1018 = vadd.f32 %v957, 0.0
        %v1019 = vadd.f32 %v958, 0.0
        %v1020 = vadd.f32 %v959, 0.0
        %v1021 = vadd.f32 %v960, 0.0
        %v1022 = vadd.f32 %v961, 0.0
        %v1023 = vadd.f32 %v962, 0.0
        %v1024 = vadd.f32 %v963, 0.0
        %v1025 = vadd.f32 %v964, 0.0
        %v1026 = vadd.f32 %v965, 0.0
        %v1027 = vadd.f32 %v966, 0.0
        %v1028 = vadd.f32 %v967, 0.0
        %v1029 = vadd.f32 %v968, 0.0
        %v1030 = vadd.f32 %v969, 0.0
        %v1031 = vadd.f32 %v970, 0.0
        %v1032 = vadd.f32 %v971, 0.0
        %v1033 = vadd.f32 %v972, 0.0
        %v1034 = vadd.f32 %v973, 0.0
        %v1035 = vadd.f32 %v974, 0.0
        %v1036 = vadd.f32 %v975, 0.0
        %v1037 = vadd.f32 %v976, 0.0
        %v1038 = vadd.f32 %v977, 0.0
        %v1039 = vadd.f32 %v978, 0.0
        %v1040 = vadd.f32 %v979, 0.0
        %v1041 = vadd.f32 %v980, 0.0
        %v1042 = vadd.f32 %v981, 0.0
        %v1043 = vadd.f32 %v982, 0.0
        %v1044 = vadd.f32 %v983, 0.0
        %v1045 = vadd.f32 %v984, 0.0
        %v1046 = vadd.f32 %v985, 0.0
        %v1047 = vadd.f32 %v986, 0.0
        %v1048 = vadd.f32 %v987, 0.0
        %v1049 = vadd.f32 %v988, 0.0
        %v1050 = vadd.f32 %v989, 0.0
        %v1051 = vadd.f32 %v990, 0.0
        %v1052 = vadd.f32 %v991, 0.0
        %v1053 = vadd.f32 %v992, 0.0
        %v1054 = vadd.f32 %v993, 0.0
        %v1055 = vadd.f32 %v994, 0.0
        %v1056 = vadd.f32 %v995, 0.0
        %v1057 = vadd.f32 %v996, 0.0
        %v1058 = vadd.f32 %v997, 0.0
        %v1059 = vadd.f32 %v998, 0.0
        %v1060 = vadd.f32 %v999, 0.0
        %v1061 = vadd.f32 %v1000, 0.0
        %v1062 = vperm.slane %v724, 3
        %v1063 = vmul.f32 %v875, %v1062
        %v1064 = vmul.f32 %v876, %v1062
        %v1065 = vmul.f32 %v877, %v1062
        %v1066 = vmul.f32 %v878, %v1062
        %v1067 = vmul.f32 %v879, %v1062
        %v1068 = vmul.f32 %v880, %v1062
        %v1069 = vmul.f32 %v881, %v1062
        %v1070 = vmul.f32 %v882, %v1062
        %v1071 = vmul.f32 %v883, %v1062
        %v1072 = vmul.f32 %v884, %v1062
        %v1073 = vmul.f32 %v885, %v1062
        %v1074 = vmul.f32 %v886, %v1062
        %v1075 = vmul.f32 %v887, %v1062
        %v1076 = vmul.f32 %v888, %v1062
        %v1077 = vmul.f32 %v889, %v1062
        %v1078 = vmul.f32 %v890, %v1062
        %v1079 = vmul.f32 %v891, %v1062
        %v1080 = vmul.f32 %v892, %v1062
        %v1081 = vmul.f32 %v893, %v1062
        %v1082 = vmul.f32 %v894, %v1062
        %v1083 = vmul.f32 %v895, %v1062
        %v1084 = vmul.f32 %v896, %v1062
        %v1085 = vmul.f32 %v897, %v1062
        %v1086 = vmul.f32 %v898, %v1062
        %v1087 = vmul.f32 %v899, %v1062
        %v1088 = vmul.f32 %v900, %v1062
        %v1089 = vmul.f32 %v901, %v1062
        %v1090 = vmul.f32 %v902, %v1062
        %v1091 = vmul.f32 %v903, %v1062
        %v1092 = vmul.f32 %v904, %v1062
        %v1093 = vmul.f32 %v905, %v1062
        %v1094 = vmul.f32 %v906, %v1062
        %v1095 = vmul.f32 %v907, %v1062
        %v1096 = vmul.f32 %v908, %v1062
        %v1097 = vmul.f32 %v909, %v1062
        %v1098 = vmul.f32 %v910, %v1062
        %v1099 = vmul.f32 %v911, %v1062
        %v1100 = vmul.f32 %v912, %v1062
        %v1101 = vmul.f32 %v913, %v1062
        %v1102 = vmul.f32 %v914, %v1062
        %v1103 = vmul.f32 %v915, %v1062
        %v1104 = vmul.f32 %v916, %v1062
        %v1105 = vmul.f32 %v917, %v1062
        %v1106 = vmul.f32 %v918, %v1062
        %v1107 = vmul.f32 %v919, %v1062
        %v1108 = vmul.f32 %v920, %v1062
        %v1109 = vmul.f32 %v921, %v1062
        %v1110 = vmul.f32 %v922, %v1062
        %v1111 = vmul.f32 %v923, %v1062
        %v1112 = vmul.f32 %v924, %v1062
        %v1113 = vmul.f32 %v925, %v1062
        %v1114 = vmul.f32 %v926, %v1062
        %v1115 = vmul.f32 %v927, %v1062
        %v1116 = vmul.f32 %v928, %v1062
        %v1117 = vmul.f32 %v929, %v1062
        %v1118 = vmul.f32 %v930, %v1062
        %v1119 = vmul.f32 %v931, %v1062
        %v1120 = vmul.f32 %v932, %v1062
        %v1121 = vmul.f32 %v933, %v1062
        %v1122 = vmul.f32 %v934, %v1062
        %v1123 = vmul.f32 %v935, %v1062
        %v1124 = vmul.f32 %v936, %v1062
        %v1125 = vmul.f32 %v937, %v1062
        %v1126 = vmul.f32 %v938, %v1062
        %v1127 = vadd.f32 %v1001, %v1063
        %v1128 = vadd.f32 %v1001, %v1064
        %v1129 = vadd.f32 %v1002, %v1065
        %v1130 = vadd.f32 %v1003, %v1066
        %v1131 = vadd.f32 %v1004, %v1067
        %v1132 = vadd.f32 %v1005, %v1068
        %v1133 = vadd.f32 %v1006, %v1069
        %v1134 = vadd.f32 %v1007, %v1070
        %v1135 = vadd.f32 %v1008, %v1071
        %v1136 = vadd.f32 %v1009, %v1072
        %v1137 = vadd.f32 %v1010, %v1073
        %v1138 = vadd.f32 %v1011, %v1074
        %v1139 = vadd.f32 %v1012, %v1075
        %v1140 = vadd.f32 %v1013, %v1076
        %v1141 = vadd.f32 %v1014, %v1077
        %v1142 = vadd.f32 %v1015, %v1078
        %v1143 = vadd.f32 %v1016, %v1079
        %v1144 = vadd.f32 %v1017, %v1080
        %v1145 = vadd.f32 %v1018, %v1081
        %v1146 = vadd.f32 %v1019, %v1082
        %v1147 = vadd.f32 %v1020, %v1083
        %v1148 = vadd.f32 %v1021, %v1084
        %v1149 = vadd.f32 %v1022, %v1085
        %v1150 = vadd.f32 %v1023, %v1086
        %v1151 = vadd.f32 %v1024, %v1087
        %v1152 = vadd.f32 %v1025, %v1088
        %v1153 = vadd.f32 %v1026, %v1089
        %v1154 = vadd.f32 %v1027, %v1090
        %v1155 = vadd.f32 %v1028, %v1091
        %v1156 = vadd.f32 %v1029, %v1092
        %v1157 = vadd.f32 %v1030, %v1093
        %v1158 = vadd.f32 %v1031, %v1094
        %v1159 = vadd.f32 %v1001, %v1095
        %v1160 = vadd.f32 %v1001, %v1096
        %v1161 = vadd.f32 %v1032, %v1097
        %v1162 = vadd.f32 %v1033, %v1098
        %v1163 = vadd.f32 %v1034, %v1099
        %v1164 = vadd.f32 %v1035, %v1100
        %v1165 = vadd.f32 %v1036, %v1101
        %v1166 = vadd.f32 %v1037, %v1102
        %v1167 = vadd.f32 %v1038, %v1103
        %v1168 = vadd.f32 %v1039, %v1104
        %v1169 = vadd.f32 %v1040, %v1105
        %v1170 = vadd.f32 %v1041, %v1106
        %v1171 = vadd.f32 %v1042, %v1107
        %v1172 = vadd.f32 %v1043, %v1108
        %v1173 = vadd.f32 %v1044, %v1109
        %v1174 = vadd.f32 %v1045, %v1110
        %v1175 = vadd.f32 %v1046, %v1111
        %v1176 = vadd.f32 %v1047, %v1112
        %v1177 = vadd.f32 %v1048, %v1113
        %v1178 = vadd.f32 %v1049, %v1114
        %v1179 = vadd.f32 %v1050, %v1115
        %v1180 = vadd.f32 %v1051, %v1116
        %v1181 = vadd.f32 %v1052, %v1117
        %v1182 = vadd.f32 %v1053, %v1118
        %v1183 = vadd.f32 %v1054, %v1119
        %v1184 = vadd.f32 %v1055, %v1120
        %v1185 = vadd.f32 %v1056, %v1121
        %v1186 = vadd.f32 %v1057, %v1122
        %v1187 = vadd.f32 %v1058, %v1123
        %v1188 = vadd.f32 %v1059, %v1124
        %v1189 = vadd.f32 %v1060, %v1125
        %v1190 = vadd.f32 %v1061, %v1126
        %v1191 = vperm.slane %v724, 6
        %v1192 = vmul.f32 %v877, %v1191
        %v1193 = vmul.f32 %v878, %v1191
        %v1194 = vmul.f32 %v879, %v1191
        %v1195 = vmul.f32 %v880, %v1191
        %v1196 = vmul.f32 %v881, %v1191
        %v1197 = vmul.f32 %v882, %v1191
        %v1198 = vmul.f32 %v883, %v1191
        %v1199 = vmul.f32 %v884, %v1191
        %v1200 = vmul.f32 %v885, %v1191
        %v1201 = vmul.f32 %v886, %v1191
        %v1202 = vmul.f32 %v887, %v1191
        %v1203 = vmul.f32 %v888, %v1191
        %v1204 = vmul.f32 %v889, %v1191
        %v1205 = vmul.f32 %v890, %v1191
        %v1206 = vmul.f32 %v891, %v1191
        %v1207 = vmul.f32 %v892, %v1191
        %v1208 = vmul.f32 %v893, %v1191
        %v1209 = vmul.f32 %v894, %v1191
        %v1210 = vmul.f32 %v895, %v1191
        %v1211 = vmul.f32 %v896, %v1191
        %v1212 = vmul.f32 %v897, %v1191
        %v1213 = vmul.f32 %v898, %v1191
        %v1214 = vmul.f32 %v899, %v1191
        %v1215 = vmul.f32 %v900, %v1191
        %v1216 = vmul.f32 %v901, %v1191
        %v1217 = vmul.f32 %v902, %v1191
        %v1218 = vmul.f32 %v903, %v1191
        %v1219 = vmul.f32 %v904, %v1191
        %v1220 = vmul.f32 %v905, %v1191
        %v1221 = vmul.f32 %v906, %v1191
        %v1222 = vmul.f32 %v1191, 0.0
        %v1223 = vmul.f32 %v909, %v1191
        %v1224 = vmul.f32 %v910, %v1191
        %v1225 = vmul.f32 %v911, %v1191
        %v1226 = vmul.f32 %v912, %v1191
        %v1227 = vmul.f32 %v913, %v1191
        %v1228 = vmul.f32 %v914, %v1191
        %v1229 = vmul.f32 %v915, %v1191
        %v1230 = vmul.f32 %v916, %v1191
        %v1231 = vmul.f32 %v917, %v1191
        %v1232 = vmul.f32 %v918, %v1191
        %v1233 = vmul.f32 %v919, %v1191
        %v1234 = vmul.f32 %v920, %v1191
        %v1235 = vmul.f32 %v921, %v1191
        %v1236 = vmul.f32 %v922, %v1191
        %v1237 = vmul.f32 %v923, %v1191
        %v1238 = vmul.f32 %v924, %v1191
        %v1239 = vmul.f32 %v925, %v1191
        %v1240 = vmul.f32 %v926, %v1191
        %v1241 = vmul.f32 %v927, %v1191
        %v1242 = vmul.f32 %v928, %v1191
        %v1243 = vmul.f32 %v929, %v1191
        %v1244 = vmul.f32 %v930, %v1191
        %v1245 = vmul.f32 %v931, %v1191
        %v1246 = vmul.f32 %v932, %v1191
        %v1247 = vmul.f32 %v933, %v1191
        %v1248 = vmul.f32 %v934, %v1191
        %v1249 = vmul.f32 %v935, %v1191
        %v1250 = vmul.f32 %v936, %v1191
        %v1251 = vmul.f32 %v937, %v1191
        %v1252 = vmul.f32 %v938, %v1191
        %v1253 = vadd.f32 %v1127, %v1192
        %v1254 = vadd.f32 %v1128, %v1193
        %v1255 = vadd.f32 %v1129, %v1194
        %v1256 = vadd.f32 %v1130, %v1195
        %v1257 = vadd.f32 %v1131, %v1196
        %v1258 = vadd.f32 %v1132, %v1197
        %v1259 = vadd.f32 %v1133, %v1198
        %v1260 = vadd.f32 %v1134, %v1199
        %v1261 = vadd.f32 %v1135, %v1200
        %v1262 = vadd.f32 %v1136, %v1201
        %v1263 = vadd.f32 %v1137, %v1202
        %v1264 = vadd.f32 %v1138, %v1203
        %v1265 = vadd.f32 %v1139, %v1204
        %v1266 = vadd.f32 %v1140, %v1205
        %v1267 = vadd.f32 %v1141, %v1206
        %v1268 = vadd.f32 %v1142, %v1207
        %v1269 = vadd.f32 %v1143, %v1208
        %v1270 = vadd.f32 %v1144, %v1209
        %v1271 = vadd.f32 %v1145, %v1210
        %v1272 = vadd.f32 %v1146, %v1211
        %v1273 = vadd.f32 %v1147, %v1212
        %v1274 = vadd.f32 %v1148, %v1213
        %v1275 = vadd.f32 %v1149, %v1214
        %v1276 = vadd.f32 %v1150, %v1215
        %v1277 = vadd.f32 %v1151, %v1216
        %v1278 = vadd.f32 %v1152, %v1217
        %v1279 = vadd.f32 %v1153, %v1218
        %v1280 = vadd.f32 %v1154, %v1219
        %v1281 = vadd.f32 %v1155, %v1220
        %v1282 = vadd.f32 %v1156, %v1221
        %v1283 = vadd.f32 %v1157, %v1222
        %v1284 = vadd.f32 %v1158, %v1222
        %v1285 = vadd.f32 %v1159, %v1223
        %v1286 = vadd.f32 %v1160, %v1224
        %v1287 = vadd.f32 %v1161, %v1225
        %v1288 = vadd.f32 %v1162, %v1226
        %v1289 = vadd.f32 %v1163, %v1227
        %v1290 = vadd.f32 %v1164, %v1228
        %v1291 = vadd.f32 %v1165, %v1229
        %v1292 = vadd.f32 %v1166, %v1230
        %v1293 = vadd.f32 %v1167, %v1231
        %v1294 = vadd.f32 %v1168, %v1232
        %v1295 = vadd.f32 %v1169, %v1233
        %v1296 = vadd.f32 %v1170, %v1234
        %v1297 = vadd.f32 %v1171, %v1235
        %v1298 = vadd.f32 %v1172, %v1236
        %v1299 = vadd.f32 %v1173, %v1237
        %v1300 = vadd.f32 %v1174, %v1238
        %v1301 = vadd.f32 %v1175, %v1239
        %v1302 = vadd.f32 %v1176, %v1240
        %v1303 = vadd.f32 %v1177, %v1241
        %v1304 = vadd.f32 %v1178, %v1242
        %v1305 = vadd.f32 %v1179, %v1243
        %v1306 = vadd.f32 %v1180, %v1244
        %v1307 = vadd.f32 %v1181, %v1245
        %v1308 = vadd.f32 %v1182, %v1246
        %v1309 = vadd.f32 %v1183, %v1247
        %v1310 = vadd.f32 %v1184, %v1248
        %v1311 = vadd.f32 %v1185, %v1249
        %v1312 = vadd.f32 %v1186, %v1250
        %v1313 = vadd.f32 %v1187, %v1251
        %v1314 = vadd.f32 %v1188, %v1252
        %v1315 = vadd.f32 %v1189, %v1222
        %v1316 = vadd.f32 %v1190, %v1222
        %v1317 = vperm.slane %v724, 1
        %v1318 = vmul.f32 %v1317, 0.0
        %v1319 = vmul.f32 %v660, %v1317
        %v1320 = vmul.f32 %v661, %v1317
        %v1321 = vmul.f32 %v662, %v1317
        %v1322 = vmul.f32 %v663, %v1317
        %v1323 = vmul.f32 %v664, %v1317
        %v1324 = vmul.f32 %v665, %v1317
        %v1325 = vmul.f32 %v666, %v1317
        %v1326 = vmul.f32 %v667, %v1317
        %v1327 = vmul.f32 %v668, %v1317
        %v1328 = vmul.f32 %v669, %v1317
        %v1329 = vmul.f32 %v670, %v1317
        %v1330 = vmul.f32 %v671, %v1317
        %v1331 = vmul.f32 %v672, %v1317
        %v1332 = vmul.f32 %v673, %v1317
        %v1333 = vmul.f32 %v674, %v1317
        %v1334 = vmul.f32 %v675, %v1317
        %v1335 = vmul.f32 %v676, %v1317
        %v1336 = vmul.f32 %v677, %v1317
        %v1337 = vmul.f32 %v678, %v1317
        %v1338 = vmul.f32 %v679, %v1317
        %v1339 = vmul.f32 %v680, %v1317
        %v1340 = vmul.f32 %v681, %v1317
        %v1341 = vmul.f32 %v682, %v1317
        %v1342 = vmul.f32 %v683, %v1317
        %v1343 = vmul.f32 %v684, %v1317
        %v1344 = vmul.f32 %v685, %v1317
        %v1345 = vmul.f32 %v686, %v1317
        %v1346 = vmul.f32 %v687, %v1317
        %v1347 = vmul.f32 %v688, %v1317
        %v1348 = vmul.f32 %v689, %v1317
        %v1349 = vmul.f32 %v692, %v1317
        %v1350 = vmul.f32 %v693, %v1317
        %v1351 = vmul.f32 %v694, %v1317
        %v1352 = vmul.f32 %v695, %v1317
        %v1353 = vmul.f32 %v696, %v1317
        %v1354 = vmul.f32 %v697, %v1317
        %v1355 = vmul.f32 %v698, %v1317
        %v1356 = vmul.f32 %v699, %v1317
        %v1357 = vmul.f32 %v700, %v1317
        %v1358 = vmul.f32 %v701, %v1317
        %v1359 = vmul.f32 %v702, %v1317
        %v1360 = vmul.f32 %v703, %v1317
        %v1361 = vmul.f32 %v704, %v1317
        %v1362 = vmul.f32 %v705, %v1317
        %v1363 = vmul.f32 %v706, %v1317
        %v1364 = vmul.f32 %v707, %v1317
        %v1365 = vmul.f32 %v708, %v1317
        %v1366 = vmul.f32 %v709, %v1317
        %v1367 = vmul.f32 %v710, %v1317
        %v1368 = vmul.f32 %v711, %v1317
        %v1369 = vmul.f32 %v712, %v1317
        %v1370 = vmul.f32 %v713, %v1317
        %v1371 = vmul.f32 %v714, %v1317
        %v1372 = vmul.f32 %v715, %v1317
        %v1373 = vmul.f32 %v716, %v1317
        %v1374 = vmul.f32 %v717, %v1317
        %v1375 = vmul.f32 %v718, %v1317
        %v1376 = vmul.f32 %v719, %v1317
        %v1377 = vmul.f32 %v720, %v1317
        %v1378 = vmul.f32 %v721, %v1317
        %v1379 = vadd.f32 %v1253, %v1318
        %v1380 = vadd.f32 %v1254, %v1318
        %v1381 = vadd.f32 %v1255, %v1319
        %v1382 = vadd.f32 %v1256, %v1320
        %v1383 = vadd.f32 %v1257, %v1321
        %v1384 = vadd.f32 %v1258, %v1322
        %v1385 = vadd.f32 %v1259, %v1323
        %v1386 = vadd.f32 %v1260, %v1324
        %v1387 = vadd.f32 %v1261, %v1325
        %v1388 = vadd.f32 %v1262, %v1326
        %v1389 = vadd.f32 %v1263, %v1327
        %v1390 = vadd.f32 %v1264, %v1328
        %v1391 = vadd.f32 %v1265, %v1329
        %v1392 = vadd.f32 %v1266, %v1330
        %v1393 = vadd.f32 %v1267, %v1331
        %v1394 = vadd.f32 %v1268, %v1332
        %v1395 = vadd.f32 %v1269, %v1333
        %v1396 = vadd.f32 %v1270, %v1334
        %v1397 = vadd.f32 %v1271, %v1335
        %v1398 = vadd.f32 %v1272, %v1336
        %v1399 = vadd.f32 %v1273, %v1337
        %v1400 = vadd.f32 %v1274, %v1338
        %v1401 = vadd.f32 %v1275, %v1339
        %v1402 = vadd.f32 %v1276, %v1340
        %v1403 = vadd.f32 %v1277, %v1341
        %v1404 = vadd.f32 %v1278, %v1342
        %v1405 = vadd.f32 %v1279, %v1343
        %v1406 = vadd.f32 %v1280, %v1344
        %v1407 = vadd.f32 %v1281, %v1345
        %v1408 = vadd.f32 %v1282, %v1346
        %v1409 = vadd.f32 %v1283, %v1347
        %v1410 = vadd.f32 %v1284, %v1348
        %v1411 = vadd.f32 %v1285, %v1318
        %v1412 = vadd.f32 %v1286, %v1318
        %v1413 = vadd.f32 %v1287, %v1349
        %v1414 = vadd.f32 %v1288, %v1350
        %v1415 = vadd.f32 %v1289, %v1351
        %v1416 = vadd.f32 %v1290, %v1352
        %v1417 = vadd.f32 %v1291, %v1353
        %v1418 = vadd.f32 %v1292, %v1354
        %v1419 = vadd.f32 %v1293, %v1355
        %v1420 = vadd.f32 %v1294, %v1356
        %v1421 = vadd.f32 %v1295, %v1357
        %v1422 = vadd.f32 %v1296, %v1358
        %v1423 = vadd.f32 %v1297, %v1359
        %v1424 = vadd.f32 %v1298, %v1360
        %v1425 = vadd.f32 %v1299, %v1361
        %v1426 = vadd.f32 %v1300, %v1362
        %v1427 = vadd.f32 %v1301, %v1363
        %v1428 = vadd.f32 %v1302, %v1364
        %v1429 = vadd.f32 %v1303, %v1365
        %v1430 = vadd.f32 %v1304, %v1366
        %v1431 = vadd.f32 %v1305, %v1367
        %v1432 = vadd.f32 %v1306, %v1368
        %v1433 = vadd.f32 %v1307, %v1369
        %v1434 = vadd.f32 %v1308, %v1370
        %v1435 = vadd.f32 %v1309, %v1371
        %v1436 = vadd.f32 %v1310, %v1372
        %v1437 = vadd.f32 %v1311, %v1373
        %v1438 = vadd.f32 %v1312, %v1374
        %v1439 = vadd.f32 %v1313, %v1375
        %v1440 = vadd.f32 %v1314, %v1376
        %v1441 = vadd.f32 %v1315, %v1377
        %v1442 = vadd.f32 %v1316, %v1378
        %v1443 = vperm.slane %v724, 4
        %v1444 = vmul.f32 %v660, %v1443
        %v1445 = vmul.f32 %v661, %v1443
        %v1446 = vmul.f32 %v662, %v1443
        %v1447 = vmul.f32 %v663, %v1443
        %v1448 = vmul.f32 %v664, %v1443
        %v1449 = vmul.f32 %v665, %v1443
        %v1450 = vmul.f32 %v666, %v1443
        %v1451 = vmul.f32 %v667, %v1443
        %v1452 = vmul.f32 %v668, %v1443
        %v1453 = vmul.f32 %v669, %v1443
        %v1454 = vmul.f32 %v670, %v1443
        %v1455 = vmul.f32 %v671, %v1443
        %v1456 = vmul.f32 %v672, %v1443
        %v1457 = vmul.f32 %v673, %v1443
        %v1458 = vmul.f32 %v674, %v1443
        %v1459 = vmul.f32 %v675, %v1443
        %v1460 = vmul.f32 %v676, %v1443
        %v1461 = vmul.f32 %v677, %v1443
        %v1462 = vmul.f32 %v678, %v1443
        %v1463 = vmul.f32 %v679, %v1443
        %v1464 = vmul.f32 %v680, %v1443
        %v1465 = vmul.f32 %v681, %v1443
        %v1466 = vmul.f32 %v682, %v1443
        %v1467 = vmul.f32 %v683, %v1443
        %v1468 = vmul.f32 %v684, %v1443
        %v1469 = vmul.f32 %v685, %v1443
        %v1470 = vmul.f32 %v686, %v1443
        %v1471 = vmul.f32 %v687, %v1443
        %v1472 = vmul.f32 %v688, %v1443
        %v1473 = vmul.f32 %v689, %v1443
        %v1474 = vmul.f32 %v690, %v1443
        %v1475 = vmul.f32 %v691, %v1443
        %v1476 = vmul.f32 %v692, %v1443
        %v1477 = vmul.f32 %v693, %v1443
        %v1478 = vmul.f32 %v694, %v1443
        %v1479 = vmul.f32 %v695, %v1443
        %v1480 = vmul.f32 %v696, %v1443
        %v1481 = vmul.f32 %v697, %v1443
        %v1482 = vmul.f32 %v698, %v1443
        %v1483 = vmul.f32 %v699, %v1443
        %v1484 = vmul.f32 %v700, %v1443
        %v1485 = vmul.f32 %v701, %v1443
        %v1486 = vmul.f32 %v702, %v1443
        %v1487 = vmul.f32 %v703, %v1443
        %v1488 = vmul.f32 %v704, %v1443
        %v1489 = vmul.f32 %v705, %v1443
        %v1490 = vmul.f32 %v706, %v1443
        %v1491 = vmul.f32 %v707, %v1443
        %v1492 = vmul.f32 %v708, %v1443
        %v1493 = vmul.f32 %v709, %v1443
        %v1494 = vmul.f32 %v710, %v1443
        %v1495 = vmul.f32 %v711, %v1443
        %v1496 = vmul.f32 %v712, %v1443
        %v1497 = vmul.f32 %v713, %v1443
        %v1498 = vmul.f32 %v714, %v1443
        %v1499 = vmul.f32 %v715, %v1443
        %v1500 = vmul.f32 %v716, %v1443
        %v1501 = vmul.f32 %v717, %v1443
        %v1502 = vmul.f32 %v718, %v1443
        %v1503 = vmul.f32 %v719, %v1443
        %v1504 = vmul.f32 %v720, %v1443
        %v1505 = vmul.f32 %v721, %v1443
        %v1506 = vmul.f32 %v722, %v1443
        %v1507 = vmul.f32 %v723, %v1443
        %v1508 = vadd.f32 %v1379, %v1444
        %v1509 = vadd.f32 %v1380, %v1445
        %v1510 = vadd.f32 %v1381, %v1446
        %v1511 = vadd.f32 %v1382, %v1447
        %v1512 = vadd.f32 %v1383, %v1448
        %v1513 = vadd.f32 %v1384, %v1449
        %v1514 = vadd.f32 %v1385, %v1450
        %v1515 = vadd.f32 %v1386, %v1451
        %v1516 = vadd.f32 %v1387, %v1452
        %v1517 = vadd.f32 %v1388, %v1453
        %v1518 = vadd.f32 %v1389, %v1454
        %v1519 = vadd.f32 %v1390, %v1455
        %v1520 = vadd.f32 %v1391, %v1456
        %v1521 = vadd.f32 %v1392, %v1457
        %v1522 = vadd.f32 %v1393, %v1458
        %v1523 = vadd.f32 %v1394, %v1459
        %v1524 = vadd.f32 %v1395, %v1460
        %v1525 = vadd.f32 %v1396, %v1461
        %v1526 = vadd.f32 %v1397, %v1462
        %v1527 = vadd.f32 %v1398, %v1463
        %v1528 = vadd.f32 %v1399, %v1464
        %v1529 = vadd.f32 %v1400, %v1465
        %v1530 = vadd.f32 %v1401, %v1466
        %v1531 = vadd.f32 %v1402, %v1467
        %v1532 = vadd.f32 %v1403, %v1468
        %v1533 = vadd.f32 %v1404, %v1469
        %v1534 = vadd.f32 %v1405, %v1470
        %v1535 = vadd.f32 %v1406, %v1471
        %v1536 = vadd.f32 %v1407, %v1472
        %v1537 = vadd.f32 %v1408, %v1473
        %v1538 = vadd.f32 %v1409, %v1474
        %v1539 = vadd.f32 %v1410, %v1475
        %v1540 = vadd.f32 %v1411, %v1476
        %v1541 = vadd.f32 %v1412, %v1477
        %v1542 = vadd.f32 %v1413, %v1478
        %v1543 = vadd.f32 %v1414, %v1479
        %v1544 = vadd.f32 %v1415, %v1480
        %v1545 = vadd.f32 %v1416, %v1481
        %v1546 = vadd.f32 %v1417, %v1482
        %v1547 = vadd.f32 %v1418, %v1483
        %v1548 = vadd.f32 %v1419, %v1484
        %v1549 = vadd.f32 %v1420, %v1485
        %v1550 = vadd.f32 %v1421, %v1486
        %v1551 = vadd.f32 %v1422, %v1487
        %v1552 = vadd.f32 %v1423, %v1488
        %v1553 = vadd.f32 %v1424, %v1489
        %v1554 = vadd.f32 %v1425, %v1490
        %v1555 = vadd.f32 %v1426, %v1491
        %v1556 = vadd.f32 %v1427, %v1492
        %v1557 = vadd.f32 %v1428, %v1493
        %v1558 = vadd.f32 %v1429, %v1494
        %v1559 = vadd.f32 %v1430, %v1495
        %v1560 = vadd.f32 %v1431, %v1496
        %v1561 = vadd.f32 %v1432, %v1497
        %v1562 = vadd.f32 %v1433, %v1498
        %v1563 = vadd.f32 %v1434, %v1499
        %v1564 = vadd.f32 %v1435, %v1500
        %v1565 = vadd.f32 %v1436, %v1501
        %v1566 = vadd.f32 %v1437, %v1502
        %v1567 = vadd.f32 %v1438, %v1503
        %v1568 = vadd.f32 %v1439, %v1504
        %v1569 = vadd.f32 %v1440, %v1505
        %v1570 = vadd.f32 %v1441, %v1506
        %v1571 = vadd.f32 %v1442, %v1507
        %v1572 = vperm.slane %v724, 7
        %v1573 = vmul.f32 %v662, %v1572
        %v1574 = vmul.f32 %v663, %v1572
        %v1575 = vmul.f32 %v664, %v1572
        %v1576 = vmul.f32 %v665, %v1572
        %v1577 = vmul.f32 %v666, %v1572
        %v1578 = vmul.f32 %v667, %v1572
        %v1579 = vmul.f32 %v668, %v1572
        %v1580 = vmul.f32 %v669, %v1572
        %v1581 = vmul.f32 %v670, %v1572
        %v1582 = vmul.f32 %v671, %v1572
        %v1583 = vmul.f32 %v672, %v1572
        %v1584 = vmul.f32 %v673, %v1572
        %v1585 = vmul.f32 %v674, %v1572
        %v1586 = vmul.f32 %v675, %v1572
        %v1587 = vmul.f32 %v676, %v1572
        %v1588 = vmul.f32 %v677, %v1572
        %v1589 = vmul.f32 %v678, %v1572
        %v1590 = vmul.f32 %v679, %v1572
        %v1591 = vmul.f32 %v680, %v1572
        %v1592 = vmul.f32 %v681, %v1572
        %v1593 = vmul.f32 %v682, %v1572
        %v1594 = vmul.f32 %v683, %v1572
        %v1595 = vmul.f32 %v684, %v1572
        %v1596 = vmul.f32 %v685, %v1572
        %v1597 = vmul.f32 %v686, %v1572
        %v1598 = vmul.f32 %v687, %v1572
        %v1599 = vmul.f32 %v688, %v1572
        %v1600 = vmul.f32 %v689, %v1572
        %v1601 = vmul.f32 %v690, %v1572
        %v1602 = vmul.f32 %v691, %v1572
        %v1603 = vmul.f32 %v1572, 0.0
        %v1604 = vmul.f32 %v694, %v1572
        %v1605 = vmul.f32 %v695, %v1572
        %v1606 = vmul.f32 %v696, %v1572
        %v1607 = vmul.f32 %v697, %v1572
        %v1608 = vmul.f32 %v698, %v1572
        %v1609 = vmul.f32 %v699, %v1572
        %v1610 = vmul.f32 %v700, %v1572
        %v1611 = vmul.f32 %v701, %v1572
        %v1612 = vmul.f32 %v702, %v1572
        %v1613 = vmul.f32 %v703, %v1572
        %v1614 = vmul.f32 %v704, %v1572
        %v1615 = vmul.f32 %v705, %v1572
        %v1616 = vmul.f32 %v706, %v1572
        %v1617 = vmul.f32 %v707, %v1572
        %v1618 = vmul.f32 %v708, %v1572
        %v1619 = vmul.f32 %v709, %v1572
        %v1620 = vmul.f32 %v710, %v1572
        %v1621 = vmul.f32 %v711, %v1572
        %v1622 = vmul.f32 %v712, %v1572
        %v1623 = vmul.f32 %v713, %v1572
        %v1624 = vmul.f32 %v714, %v1572
        %v1625 = vmul.f32 %v715, %v1572
        %v1626 = vmul.f32 %v716, %v1572
        %v1627 = vmul.f32 %v717, %v1572
        %v1628 = vmul.f32 %v718, %v1572
        %v1629 = vmul.f32 %v719, %v1572
        %v1630 = vmul.f32 %v720, %v1572
        %v1631 = vmul.f32 %v721, %v1572
        %v1632 = vmul.f32 %v722, %v1572
        %v1633 = vmul.f32 %v723, %v1572
        %v1634 = vadd.f32 %v1508, %v1573
        %v1635 = vadd.f32 %v1509, %v1574
        %v1636 = vadd.f32 %v1510, %v1575
        %v1637 = vadd.f32 %v1511, %v1576
        %v1638 = vadd.f32 %v1512, %v1577
        %v1639 = vadd.f32 %v1513, %v1578
        %v1640 = vadd.f32 %v1514, %v1579
        %v1641 = vadd.f32 %v1515, %v1580
        %v1642 = vadd.f32 %v1516, %v1581
        %v1643 = vadd.f32 %v1517, %v1582
        %v1644 = vadd.f32 %v1518, %v1583
        %v1645 = vadd.f32 %v1519, %v1584
        %v1646 = vadd.f32 %v1520, %v1585
        %v1647 = vadd.f32 %v1521, %v1586
        %v1648 = vadd.f32 %v1522, %v1587
        %v1649 = vadd.f32 %v1523, %v1588
        %v1650 = vadd.f32 %v1524, %v1589
        %v1651 = vadd.f32 %v1525, %v1590
        %v1652 = vadd.f32 %v1526, %v1591
        %v1653 = vadd.f32 %v1527, %v1592
        %v1654 = vadd.f32 %v1528, %v1593
        %v1655 = vadd.f32 %v1529, %v1594
        %v1656 = vadd.f32 %v1530, %v1595
        %v1657 = vadd.f32 %v1531, %v1596
        %v1658 = vadd.f32 %v1532, %v1597
        %v1659 = vadd.f32 %v1533, %v1598
        %v1660 = vadd.f32 %v1534, %v1599
        %v1661 = vadd.f32 %v1535, %v1600
        %v1662 = vadd.f32 %v1536, %v1601
        %v1663 = vadd.f32 %v1537, %v1602
        %v1664 = vadd.f32 %v1538, %v1603
        %v1665 = vadd.f32 %v1539, %v1603
        %v1666 = vadd.f32 %v1540, %v1604
        %v1667 = vadd.f32 %v1541, %v1605
        %v1668 = vadd.f32 %v1542, %v1606
        %v1669 = vadd.f32 %v1543, %v1607
        %v1670 = vadd.f32 %v1544, %v1608
        %v1671 = vadd.f32 %v1545, %v1609
        %v1672 = vadd.f32 %v1546, %v1610
        %v1673 = vadd.f32 %v1547, %v1611
        %v1674 = vadd.f32 %v1548, %v1612
        %v1675 = vadd.f32 %v1549, %v1613
        %v1676 = vadd.f32 %v1550, %v1614
        %v1677 = vadd.f32 %v1551, %v1615
        %v1678 = vadd.f32 %v1552, %v1616
        %v1679 = vadd.f32 %v1553, %v1617
        %v1680 = vadd.f32 %v1554, %v1618
        %v1681 = vadd.f32 %v1555, %v1619
        %v1682 = vadd.f32 %v1556, %v1620
        %v1683 = vadd.f32 %v1557, %v1621
        %v1684 = vadd.f32 %v1558, %v1622
        %v1685 = vadd.f32 %v1559, %v1623
        %v1686 = vadd.f32 %v1560, %v1624
        %v1687 = vadd.f32 %v1561, %v1625
        %v1688 = vadd.f32 %v1562, %v1626
        %v1689 = vadd.f32 %v1563, %v1627
        %v1690 = vadd.f32 %v1564, %v1628
        %v1691 = vadd.f32 %v1565, %v1629
        %v1692 = vadd.f32 %v1566, %v1630
        %v1693 = vadd.f32 %v1567, %v1631
        %v1694 = vadd.f32 %v1568, %v1632
        %v1695 = vadd.f32 %v1569, %v1633
        %v1696 = vadd.f32 %v1570, %v1603
        %v1697 = vadd.f32 %v1571, %v1603
        %v1698 = vadd.s32 %v732, 1
        %v1699 = vadd.s32 %v733, 1
        %vm1700 = vcmp.ge.s32.totalorder %v1698, 0
        %vm1701 = vcmp.ge.s32.totalorder %v1699, 0
        %vm1702 = vcmp.le.s32.totalorder %v1698, 15
        %vm1703 = vcmp.le.s32.totalorder %v1699, 15
        %vm1704 = vmand %vm1700, %vm1702
        %vm1705 = vmand %vm1701, %vm1703
        %v1706 = vrot.slane %v660, 1
        %v1707 = vrot.slane %v662, 1
        %v1708 = vrot.slane %v664, 1
        %v1709 = vrot.slane %v666, 1
        %v1710 = vrot.slane %v668, 1
        %v1711 = vrot.slane %v670, 1
        %v1712 = vrot.slane %v672, 1
        %v1713 = vrot.slane %v674, 1
        %v1714 = vrot.slane %v676, 1
        %v1715 = vrot.slane %v678, 1
        %v1716 = vrot.slane %v680, 1
        %v1717 = vrot.slane %v682, 1
        %v1718 = vrot.slane %v684, 1
        %v1719 = vrot.slane %v686, 1
        %v1720 = vrot.slane %v688, 1
        %v1721 = vrot.slane %v690, 1
        %v1722 = vrot.slane %v692, 1
        %v1723 = vrot.slane %v694, 1
        %v1724 = vrot.slane %v696, 1
        %v1725 = vrot.slane %v698, 1
        %v1726 = vrot.slane %v700, 1
        %v1727 = vrot.slane %v702, 1
        %v1728 = vrot.slane %v704, 1
        %v1729 = vrot.slane %v706, 1
        %v1730 = vrot.slane %v708, 1
        %v1731 = vrot.slane %v710, 1
        %v1732 = vrot.slane %v712, 1
        %v1733 = vrot.slane %v714, 1
        %v1734 = vrot.slane %v716, 1
        %v1735 = vrot.slane %v718, 1
        %v1736 = vrot.slane %v720, 1
        %v1737 = vrot.slane %v722, 1
        %v1738 = vrot.slane %v661, 1
        %v1739 = vrot.slane %v663, 1
        %v1740 = vrot.slane %v665, 1
        %v1741 = vrot.slane %v667, 1
        %v1742 = vrot.slane %v669, 1
        %v1743 = vrot.slane %v671, 1
        %v1744 = vrot.slane %v673, 1
        %v1745 = vrot.slane %v675, 1
        %v1746 = vrot.slane %v677, 1
        %v1747 = vrot.slane %v679, 1
        %v1748 = vrot.slane %v681, 1
        %v1749 = vrot.slane %v683, 1
        %v1750 = vrot.slane %v685, 1
        %v1751 = vrot.slane %v687, 1
        %v1752 = vrot.slane %v689, 1
        %v1753 = vrot.slane %v691, 1
        %v1754 = vrot.slane %v693, 1
        %v1755 = vrot.slane %v695, 1
        %v1756 = vrot.slane %v697, 1
        %v1757 = vrot.slane %v699, 1
        %v1758 = vrot.slane %v701, 1
        %v1759 = vrot.slane %v703, 1
        %v1760 = vrot.slane %v705, 1
        %v1761 = vrot.slane %v707, 1
        %v1762 = vrot.slane %v709, 1
        %v1763 = vrot.slane %v711, 1
        %v1764 = vrot.slane %v713, 1
        %v1765 = vrot.slane %v715, 1
        %v1766 = vrot.slane %v717, 1
        %v1767 = vrot.slane %v719, 1
        %v1768 = vrot.slane %v721, 1
        %v1769 = vrot.slane %v723, 1
        %vm1770 = vcmp.lt.s32.totalorder %v732, 7
        %v1771 = vsel %vm1770, %v1706, %v1738
        %v1772 = vsel %vm1770, %v1707, %v1739
        %v1773 = vsel %vm1770, %v1708, %v1740
        %v1774 = vsel %vm1770, %v1709, %v1741
        %v1775 = vsel %vm1770, %v1710, %v1742
        %v1776 = vsel %vm1770, %v1711, %v1743
        %v1777 = vsel %vm1770, %v1712, %v1744
        %v1778 = vsel %vm1770, %v1713, %v1745
        %v1779 = vsel %vm1770, %v1714, %v1746
        %v1780 = vsel %vm1770, %v1715, %v1747
        %v1781 = vsel %vm1770, %v1716, %v1748
        %v1782 = vsel %vm1770, %v1717, %v1749
        %v1783 = vsel %vm1770, %v1718, %v1750
        %v1784 = vsel %vm1770, %v1719, %v1751
        %v1785 = vsel %vm1770, %v1720, %v1752
        %v1786 = vsel %vm1770, %v1721, %v1753
        %v1787 = vsel %vm1770, %v1722, %v1754
        %v1788 = vsel %vm1770, %v1723, %v1755
        %v1789 = vsel %vm1770, %v1724, %v1756
        %v1790 = vsel %vm1770, %v1725, %v1757
        %v1791 = vsel %vm1770, %v1726, %v1758
        %v1792 = vsel %vm1770, %v1727, %v1759
        %v1793 = vsel %vm1770, %v1728, %v1760
        %v1794 = vsel %vm1770, %v1729, %v1761
        %v1795 = vsel %vm1770, %v1730, %v1762
        %v1796 = vsel %vm1770, %v1731, %v1763
        %v1797 = vsel %vm1770, %v1732, %v1764
        %v1798 = vsel %vm1770, %v1733, %v1765
        %v1799 = vsel %vm1770, %v1734, %v1766
        %v1800 = vsel %vm1770, %v1735, %v1767
        %v1801 = vsel %vm1770, %v1736, %v1768
        %v1802 = vsel %vm1770, %v1737, %v1769
        %v1803 = vsel %vm1770, %v1738, %v1706
        %v1804 = vsel %vm1770, %v1739, %v1707
        %v1805 = vsel %vm1770, %v1740, %v1708
        %v1806 = vsel %vm1770, %v1741, %v1709
        %v1807 = vsel %vm1770, %v1742, %v1710
        %v1808 = vsel %vm1770, %v1743, %v1711
        %v1809 = vsel %vm1770, %v1744, %v1712
        %v1810 = vsel %vm1770, %v1745, %v1713
        %v1811 = vsel %vm1770, %v1746, %v1714
        %v1812 = vsel %vm1770, %v1747, %v1715
        %v1813 = vsel %vm1770, %v1748, %v1716
        %v1814 = vsel %vm1770, %v1749, %v1717
        %v1815 = vsel %vm1770, %v1750, %v1718
        %v1816 = vsel %vm1770, %v1751, %v1719
        %v1817 = vsel %vm1770, %v1752, %v1720
        %v1818 = vsel %vm1770, %v1753, %v1721
        %v1819 = vsel %vm1770, %v1754, %v1722
        %v1820 = vsel %vm1770, %v1755, %v1723
        %v1821 = vsel %vm1770, %v1756, %v1724
        %v1822 = vsel %vm1770, %v1757, %v1725
        %v1823 = vsel %vm1770, %v1758, %v1726
        %v1824 = vsel %vm1770, %v1759, %v1727
        %v1825 = vsel %vm1770, %v1760, %v1728
        %v1826 = vsel %vm1770, %v1761, %v1729
        %v1827 = vsel %vm1770, %v1762, %v1730
        %v1828 = vsel %vm1770, %v1763, %v1731
        %v1829 = vsel %vm1770, %v1764, %v1732
        %v1830 = vsel %vm1770, %v1765, %v1733
        %v1831 = vsel %vm1770, %v1766, %v1734
        %v1832 = vsel %vm1770, %v1767, %v1735
        %v1833 = vsel %vm1770, %v1768, %v1736
        %v1834 = vsel %vm1770, %v1769, %v1737
        %v1835 = vsel %vm1704, 1, 0
        %v1836 = vsel %vm1705, 1, 0
        %vm1837 = vcmp.eq.s32.totalorder %v1835, 1
        %vm1838 = vcmp.eq.s32.totalorder %v1836, 1
        %v1839 = vsel %vm1837, %v1771, 0.0
        %v1840 = vsel %vm1838, %v1803, 0.0
        %v1841 = vsel %vm1837, %v1772, 0.0
        %v1842 = vsel %vm1838, %v1804, 0.0
        %v1843 = vsel %vm1837, %v1773, 0.0
        %v1844 = vsel %vm1838, %v1805, 0.0
        %v1845 = vsel %vm1837, %v1774, 0.0
        %v1846 = vsel %vm1838, %v1806, 0.0
        %v1847 = vsel %vm1837, %v1775, 0.0
        %v1848 = vsel %vm1838, %v1807, 0.0
        %v1849 = vsel %vm1837, %v1776, 0.0
        %v1850 = vsel %vm1838, %v1808, 0.0
        %v1851 = vsel %vm1837, %v1777, 0.0
        %v1852 = vsel %vm1838, %v1809, 0.0
        %v1853 = vsel %vm1837, %v1778, 0.0
        %v1854 = vsel %vm1838, %v1810, 0.0
        %v1855 = vsel %vm1837, %v1779, 0.0
        %v1856 = vsel %vm1838, %v1811, 0.0
        %v1857 = vsel %vm1837, %v1780, 0.0
        %v1858 = vsel %vm1838, %v1812, 0.0
        %v1859 = vsel %vm1837, %v1781, 0.0
        %v1860 = vsel %vm1838, %v1813, 0.0
        %v1861 = vsel %vm1837, %v1782, 0.0
        %v1862 = vsel %vm1838, %v1814, 0.0
        %v1863 = vsel %vm1837, %v1783, 0.0
        %v1864 = vsel %vm1838, %v1815, 0.0
        %v1865 = vsel %vm1837, %v1784, 0.0
        %v1866 = vsel %vm1838, %v1816, 0.0
        %v1867 = vsel %vm1837, %v1785, 0.0
        %v1868 = vsel %vm1838, %v1817, 0.0
        %v1869 = vsel %vm1837, %v1786, 0.0
        %v1870 = vsel %vm1838, %v1818, 0.0
        %v1871 = vsel %vm1837, %v1787, 0.0
        %v1872 = vsel %vm1838, %v1819, 0.0
        %v1873 = vsel %vm1837, %v1788, 0.0
        %v1874 = vsel %vm1838, %v1820, 0.0
        %v1875 = vsel %vm1837, %v1789, 0.0
        %v1876 = vsel %vm1838, %v1821, 0.0
        %v1877 = vsel %vm1837, %v1790, 0.0
        %v1878 = vsel %vm1838, %v1822, 0.0
        %v1879 = vsel %vm1837, %v1791, 0.0
        %v1880 = vsel %vm1838, %v1823, 0.0
        %v1881 = vsel %vm1837, %v1792, 0.0
        %v1882 = vsel %vm1838, %v1824, 0.0
        %v1883 = vsel %vm1837, %v1793, 0.0
        %v1884 = vsel %vm1838, %v1825, 0.0
        %v1885 = vsel %vm1837, %v1794, 0.0
        %v1886 = vsel %vm1838, %v1826, 0.0
        %v1887 = vsel %vm1837, %v1795, 0.0
        %v1888 = vsel %vm1838, %v1827, 0.0
        %v1889 = vsel %vm1837, %v1796, 0.0
        %v1890 = vsel %vm1838, %v1828, 0.0
        %v1891 = vsel %vm1837, %v1797, 0.0
        %v1892 = vsel %vm1838, %v1829, 0.0
        %v1893 = vsel %vm1837, %v1798, 0.0
        %v1894 = vsel %vm1838, %v1830, 0.0
        %v1895 = vsel %vm1837, %v1799, 0.0
        %v1896 = vsel %vm1838, %v1831, 0.0
        %v1897 = vsel %vm1837, %v1800, 0.0
        %v1898 = vsel %vm1838, %v1832, 0.0
        %v1899 = vsel %vm1837, %v1801, 0.0
        %v1900 = vsel %vm1838, %v1833, 0.0
        %v1901 = vsel %vm1837, %v1802, 0.0
        %v1902 = vsel %vm1838, %v1834, 0.0
        %v1903 = vperm.slane %v724, 2
        %v1904 = vmul.f32 %v1903, 0.0
        %v1905 = vmul.f32 %v1839, %v1903
        %v1906 = vmul.f32 %v1840, %v1903
        %v1907 = vmul.f32 %v1841, %v1903
        %v1908 = vmul.f32 %v1842, %v1903
        %v1909 = vmul.f32 %v1843, %v1903
        %v1910 = vmul.f32 %v1844, %v1903
        %v1911 = vmul.f32 %v1845, %v1903
        %v1912 = vmul.f32 %v1846, %v1903
        %v1913 = vmul.f32 %v1847, %v1903
        %v1914 = vmul.f32 %v1848, %v1903
        %v1915 = vmul.f32 %v1849, %v1903
        %v1916 = vmul.f32 %v1850, %v1903
        %v1917 = vmul.f32 %v1851, %v1903
        %v1918 = vmul.f32 %v1852, %v1903
        %v1919 = vmul.f32 %v1853, %v1903
        %v1920 = vmul.f32 %v1854, %v1903
        %v1921 = vmul.f32 %v1855, %v1903
        %v1922 = vmul.f32 %v1856, %v1903
        %v1923 = vmul.f32 %v1857, %v1903
        %v1924 = vmul.f32 %v1858, %v1903
        %v1925 = vmul.f32 %v1859, %v1903
        %v1926 = vmul.f32 %v1860, %v1903
        %v1927 = vmul.f32 %v1861, %v1903
        %v1928 = vmul.f32 %v1862, %v1903
        %v1929 = vmul.f32 %v1863, %v1903
        %v1930 = vmul.f32 %v1864, %v1903
        %v1931 = vmul.f32 %v1865, %v1903
        %v1932 = vmul.f32 %v1866, %v1903
        %v1933 = vmul.f32 %v1867, %v1903
        %v1934 = vmul.f32 %v1868, %v1903
        %v1935 = vmul.f32 %v1871, %v1903
        %v1936 = vmul.f32 %v1872, %v1903
        %v1937 = vmul.f32 %v1873, %v1903
        %v1938 = vmul.f32 %v1874, %v1903
        %v1939 = vmul.f32 %v1875, %v1903
        %v1940 = vmul.f32 %v1876, %v1903
        %v1941 = vmul.f32 %v1877, %v1903
        %v1942 = vmul.f32 %v1878, %v1903
        %v1943 = vmul.f32 %v1879, %v1903
        %v1944 = vmul.f32 %v1880, %v1903
        %v1945 = vmul.f32 %v1881, %v1903
        %v1946 = vmul.f32 %v1882, %v1903
        %v1947 = vmul.f32 %v1883, %v1903
        %v1948 = vmul.f32 %v1884, %v1903
        %v1949 = vmul.f32 %v1885, %v1903
        %v1950 = vmul.f32 %v1886, %v1903
        %v1951 = vmul.f32 %v1887, %v1903
        %v1952 = vmul.f32 %v1888, %v1903
        %v1953 = vmul.f32 %v1889, %v1903
        %v1954 = vmul.f32 %v1890, %v1903
        %v1955 = vmul.f32 %v1891, %v1903
        %v1956 = vmul.f32 %v1892, %v1903
        %v1957 = vmul.f32 %v1893, %v1903
        %v1958 = vmul.f32 %v1894, %v1903
        %v1959 = vmul.f32 %v1895, %v1903
        %v1960 = vmul.f32 %v1896, %v1903
        %v1961 = vmul.f32 %v1897, %v1903
        %v1962 = vmul.f32 %v1898, %v1903
        %v1963 = vmul.f32 %v1899, %v1903
        %v1964 = vmul.f32 %v1900, %v1903
        %v1965 = vadd.f32 %v1634, %v1904
        %v1966 = vadd.f32 %v1635, %v1904
        %v1967 = vadd.f32 %v1636, %v1905
        %v1968 = vadd.f32 %v1637, %v1906
        %v1969 = vadd.f32 %v1638, %v1907
        %v1970 = vadd.f32 %v1639, %v1908
        %v1971 = vadd.f32 %v1640, %v1909
        %v1972 = vadd.f32 %v1641, %v1910
        %v1973 = vadd.f32 %v1642, %v1911
        %v1974 = vadd.f32 %v1643, %v1912
        %v1975 = vadd.f32 %v1644, %v1913
        %v1976 = vadd.f32 %v1645, %v1914
        %v1977 = vadd.f32 %v1646, %v1915
        %v1978 = vadd.f32 %v1647, %v1916
        %v1979 = vadd.f32 %v1648, %v1917
        %v1980 = vadd.f32 %v1649, %v1918
        %v1981 = vadd.f32 %v1650, %v1919
        %v1982 = vadd.f32 %v1651, %v1920
        %v1983 = vadd.f32 %v1652, %v1921
        %v1984 = vadd.f32 %v1653, %v1922
        %v1985 = vadd.f32 %v1654, %v1923
        %v1986 = vadd.f32 %v1655, %v1924
        %v1987 = vadd.f32 %v1656, %v1925
        %v1988 = vadd.f32 %v1657, %v1926
        %v1989 = vadd.f32 %v1658, %v1927
        %v1990 = vadd.f32 %v1659, %v1928
        %v1991 = vadd.f32 %v1660, %v1929
        %v1992 = vadd.f32 %v1661, %v1930
        %v1993 = vadd.f32 %v1662, %v1931
        %v1994 = vadd.f32 %v1663, %v1932
        %v1995 = vadd.f32 %v1664, %v1933
        %v1996 = vadd.f32 %v1665, %v1934
        %v1997 = vadd.f32 %v1666, %v1904
        %v1998 = vadd.f32 %v1667, %v1904
        %v1999 = vadd.f32 %v1668, %v1935
        %v2000 = vadd.f32 %v1669, %v1936
        %v2001 = vadd.f32 %v1670, %v1937
        %v2002 = vadd.f32 %v1671, %v1938
        %v2003 = vadd.f32 %v1672, %v1939
        %v2004 = vadd.f32 %v1673, %v1940
        %v2005 = vadd.f32 %v1674, %v1941
        %v2006 = vadd.f32 %v1675, %v1942
        %v2007 = vadd.f32 %v1676, %v1943
        %v2008 = vadd.f32 %v1677, %v1944
        %v2009 = vadd.f32 %v1678, %v1945
        %v2010 = vadd.f32 %v1679, %v1946
        %v2011 = vadd.f32 %v1680, %v1947
        %v2012 = vadd.f32 %v1681, %v1948
        %v2013 = vadd.f32 %v1682, %v1949
        %v2014 = vadd.f32 %v1683, %v1950
        %v2015 = vadd.f32 %v1684, %v1951
        %v2016 = vadd.f32 %v1685, %v1952
        %v2017 = vadd.f32 %v1686, %v1953
        %v2018 = vadd.f32 %v1687, %v1954
        %v2019 = vadd.f32 %v1688, %v1955
        %v2020 = vadd.f32 %v1689, %v1956
        %v2021 = vadd.f32 %v1690, %v1957
        %v2022 = vadd.f32 %v1691, %v1958
        %v2023 = vadd.f32 %v1692, %v1959
        %v2024 = vadd.f32 %v1693, %v1960
        %v2025 = vadd.f32 %v1694, %v1961
        %v2026 = vadd.f32 %v1695, %v1962
        %v2027 = vadd.f32 %v1696, %v1963
        %v2028 = vadd.f32 %v1697, %v1964
        %v2029 = vperm.slane %v724, 5
        %v2030 = vmul.f32 %v1839, %v2029
        %v2031 = vmul.f32 %v1840, %v2029
        %v2032 = vmul.f32 %v1841, %v2029
        %v2033 = vmul.f32 %v1842, %v2029
        %v2034 = vmul.f32 %v1843, %v2029
        %v2035 = vmul.f32 %v1844, %v2029
        %v2036 = vmul.f32 %v1845, %v2029
        %v2037 = vmul.f32 %v1846, %v2029
        %v2038 = vmul.f32 %v1847, %v2029
        %v2039 = vmul.f32 %v1848, %v2029
        %v2040 = vmul.f32 %v1849, %v2029
        %v2041 = vmul.f32 %v1850, %v2029
        %v2042 = vmul.f32 %v1851, %v2029
        %v2043 = vmul.f32 %v1852, %v2029
        %v2044 = vmul.f32 %v1853, %v2029
        %v2045 = vmul.f32 %v1854, %v2029
        %v2046 = vmul.f32 %v1855, %v2029
        %v2047 = vmul.f32 %v1856, %v2029
        %v2048 = vmul.f32 %v1857, %v2029
        %v2049 = vmul.f32 %v1858, %v2029
        %v2050 = vmul.f32 %v1859, %v2029
        %v2051 = vmul.f32 %v1860, %v2029
        %v2052 = vmul.f32 %v1861, %v2029
        %v2053 = vmul.f32 %v1862, %v2029
        %v2054 = vmul.f32 %v1863, %v2029
        %v2055 = vmul.f32 %v1864, %v2029
        %v2056 = vmul.f32 %v1865, %v2029
        %v2057 = vmul.f32 %v1866, %v2029
        %v2058 = vmul.f32 %v1867, %v2029
        %v2059 = vmul.f32 %v1868, %v2029
        %v2060 = vmul.f32 %v1869, %v2029
        %v2061 = vmul.f32 %v1870, %v2029
        %v2062 = vmul.f32 %v1871, %v2029
        %v2063 = vmul.f32 %v1872, %v2029
        %v2064 = vmul.f32 %v1873, %v2029
        %v2065 = vmul.f32 %v1874, %v2029
        %v2066 = vmul.f32 %v1875, %v2029
        %v2067 = vmul.f32 %v1876, %v2029
        %v2068 = vmul.f32 %v1877, %v2029
        %v2069 = vmul.f32 %v1878, %v2029
        %v2070 = vmul.f32 %v1879, %v2029
        %v2071 = vmul.f32 %v1880, %v2029
        %v2072 = vmul.f32 %v1881, %v2029
        %v2073 = vmul.f32 %v1882, %v2029
        %v2074 = vmul.f32 %v1883, %v2029
        %v2075 = vmul.f32 %v1884, %v2029
        %v2076 = vmul.f32 %v1885, %v2029
        %v2077 = vmul.f32 %v1886, %v2029
        %v2078 = vmul.f32 %v1887, %v2029
        %v2079 = vmul.f32 %v1888, %v2029
        %v2080 = vmul.f32 %v1889, %v2029
        %v2081 = vmul.f32 %v1890, %v2029
        %v2082 = vmul.f32 %v1891, %v2029
        %v2083 = vmul.f32 %v1892, %v2029
        %v2084 = vmul.f32 %v1893, %v2029
        %v2085 = vmul.f32 %v1894, %v2029
        %v2086 = vmul.f32 %v1895, %v2029
        %v2087 = vmul.f32 %v1896, %v2029
        %v2088 = vmul.f32 %v1897, %v2029
        %v2089 = vmul.f32 %v1898, %v2029
        %v2090 = vmul.f32 %v1899, %v2029
        %v2091 = vmul.f32 %v1900, %v2029
        %v2092 = vmul.f32 %v1901, %v2029
        %v2093 = vmul.f32 %v1902, %v2029
        %v2094 = vadd.f32 %v1965, %v2030
        %v2095 = vadd.f32 %v1966, %v2031
        %v2096 = vadd.f32 %v1967, %v2032
        %v2097 = vadd.f32 %v1968, %v2033
        %v2098 = vadd.f32 %v1969, %v2034
        %v2099 = vadd.f32 %v1970, %v2035
        %v2100 = vadd.f32 %v1971, %v2036
        %v2101 = vadd.f32 %v1972, %v2037
        %v2102 = vadd.f32 %v1973, %v2038
        %v2103 = vadd.f32 %v1974, %v2039
        %v2104 = vadd.f32 %v1975, %v2040
        %v2105 = vadd.f32 %v1976, %v2041
        %v2106 = vadd.f32 %v1977, %v2042
        %v2107 = vadd.f32 %v1978, %v2043
        %v2108 = vadd.f32 %v1979, %v2044
        %v2109 = vadd.f32 %v1980, %v2045
        %v2110 = vadd.f32 %v1981, %v2046
        %v2111 = vadd.f32 %v1982, %v2047
        %v2112 = vadd.f32 %v1983, %v2048
        %v2113 = vadd.f32 %v1984, %v2049
        %v2114 = vadd.f32 %v1985, %v2050
        %v2115 = vadd.f32 %v1986, %v2051
        %v2116 = vadd.f32 %v1987, %v2052
        %v2117 = vadd.f32 %v1988, %v2053
        %v2118 = vadd.f32 %v1989, %v2054
        %v2119 = vadd.f32 %v1990, %v2055
        %v2120 = vadd.f32 %v1991, %v2056
        %v2121 = vadd.f32 %v1992, %v2057
        %v2122 = vadd.f32 %v1993, %v2058
        %v2123 = vadd.f32 %v1994, %v2059
        %v2124 = vadd.f32 %v1995, %v2060
        %v2125 = vadd.f32 %v1996, %v2061
        %v2126 = vadd.f32 %v1997, %v2062
        %v2127 = vadd.f32 %v1998, %v2063
        %v2128 = vadd.f32 %v1999, %v2064
        %v2129 = vadd.f32 %v2000, %v2065
        %v2130 = vadd.f32 %v2001, %v2066
        %v2131 = vadd.f32 %v2002, %v2067
        %v2132 = vadd.f32 %v2003, %v2068
        %v2133 = vadd.f32 %v2004, %v2069
        %v2134 = vadd.f32 %v2005, %v2070
        %v2135 = vadd.f32 %v2006, %v2071
        %v2136 = vadd.f32 %v2007, %v2072
        %v2137 = vadd.f32 %v2008, %v2073
        %v2138 = vadd.f32 %v2009, %v2074
        %v2139 = vadd.f32 %v2010, %v2075
        %v2140 = vadd.f32 %v2011, %v2076
        %v2141 = vadd.f32 %v2012, %v2077
        %v2142 = vadd.f32 %v2013, %v2078
        %v2143 = vadd.f32 %v2014, %v2079
        %v2144 = vadd.f32 %v2015, %v2080
        %v2145 = vadd.f32 %v2016, %v2081
        %v2146 = vadd.f32 %v2017, %v2082
        %v2147 = vadd.f32 %v2018, %v2083
        %v2148 = vadd.f32 %v2019, %v2084
        %v2149 = vadd.f32 %v2020, %v2085
        %v2150 = vadd.f32 %v2021, %v2086
        %v2151 = vadd.f32 %v2022, %v2087
        %v2152 = vadd.f32 %v2023, %v2088
        %v2153 = vadd.f32 %v2024, %v2089
        %v2154 = vadd.f32 %v2025, %v2090
        %v2155 = vadd.f32 %v2026, %v2091
        %v2156 = vadd.f32 %v2027, %v2092
        %v2157 = vadd.f32 %v2028, %v2093
        %v2158 = vperm.slane %v725, 0
        %v2159 = vmul.f32 %v1841, %v2158
        %v2160 = vmul.f32 %v1842, %v2158
        %v2161 = vmul.f32 %v1843, %v2158
        %v2162 = vmul.f32 %v1844, %v2158
        %v2163 = vmul.f32 %v1845, %v2158
        %v2164 = vmul.f32 %v1846, %v2158
        %v2165 = vmul.f32 %v1847, %v2158
        %v2166 = vmul.f32 %v1848, %v2158
        %v2167 = vmul.f32 %v1849, %v2158
        %v2168 = vmul.f32 %v1850, %v2158
        %v2169 = vmul.f32 %v1851, %v2158
        %v2170 = vmul.f32 %v1852, %v2158
        %v2171 = vmul.f32 %v1853, %v2158
        %v2172 = vmul.f32 %v1854, %v2158
        %v2173 = vmul.f32 %v1855, %v2158
        %v2174 = vmul.f32 %v1856, %v2158
        %v2175 = vmul.f32 %v1857, %v2158
        %v2176 = vmul.f32 %v1858, %v2158
        %v2177 = vmul.f32 %v1859, %v2158
        %v2178 = vmul.f32 %v1860, %v2158
        %v2179 = vmul.f32 %v1861, %v2158
        %v2180 = vmul.f32 %v1862, %v2158
        %v2181 = vmul.f32 %v1863, %v2158
        %v2182 = vmul.f32 %v1864, %v2158
        %v2183 = vmul.f32 %v1865, %v2158
        %v2184 = vmul.f32 %v1866, %v2158
        %v2185 = vmul.f32 %v1867, %v2158
        %v2186 = vmul.f32 %v1868, %v2158
        %v2187 = vmul.f32 %v1869, %v2158
        %v2188 = vmul.f32 %v1870, %v2158
        %v2189 = vmul.f32 %v2158, 0.0
        %v2190 = vmul.f32 %v1873, %v2158
        %v2191 = vmul.f32 %v1874, %v2158
        %v2192 = vmul.f32 %v1875, %v2158
        %v2193 = vmul.f32 %v1876, %v2158
        %v2194 = vmul.f32 %v1877, %v2158
        %v2195 = vmul.f32 %v1878, %v2158
        %v2196 = vmul.f32 %v1879, %v2158
        %v2197 = vmul.f32 %v1880, %v2158
        %v2198 = vmul.f32 %v1881, %v2158
        %v2199 = vmul.f32 %v1882, %v2158
        %v2200 = vmul.f32 %v1883, %v2158
        %v2201 = vmul.f32 %v1884, %v2158
        %v2202 = vmul.f32 %v1885, %v2158
        %v2203 = vmul.f32 %v1886, %v2158
        %v2204 = vmul.f32 %v1887, %v2158
        %v2205 = vmul.f32 %v1888, %v2158
        %v2206 = vmul.f32 %v1889, %v2158
        %v2207 = vmul.f32 %v1890, %v2158
        %v2208 = vmul.f32 %v1891, %v2158
        %v2209 = vmul.f32 %v1892, %v2158
        %v2210 = vmul.f32 %v1893, %v2158
        %v2211 = vmul.f32 %v1894, %v2158
        %v2212 = vmul.f32 %v1895, %v2158
        %v2213 = vmul.f32 %v1896, %v2158
        %v2214 = vmul.f32 %v1897, %v2158
        %v2215 = vmul.f32 %v1898, %v2158
        %v2216 = vmul.f32 %v1899, %v2158
        %v2217 = vmul.f32 %v1900, %v2158
        %v2218 = vmul.f32 %v1901, %v2158
        %v2219 = vmul.f32 %v1902, %v2158
        %v2220 = vadd.f32 %v2094, %v2159
        %v2221 = vadd.f32 %v2095, %v2160
        %v2222 = vadd.f32 %v2096, %v2161
        %v2223 = vadd.f32 %v2097, %v2162
        %v2224 = vadd.f32 %v2098, %v2163
        %v2225 = vadd.f32 %v2099, %v2164
        %v2226 = vadd.f32 %v2100, %v2165
        %v2227 = vadd.f32 %v2101, %v2166
        %v2228 = vadd.f32 %v2102, %v2167
        %v2229 = vadd.f32 %v2103, %v2168
        %v2230 = vadd.f32 %v2104, %v2169
        %v2231 = vadd.f32 %v2105, %v2170
        %v2232 = vadd.f32 %v2106, %v2171
        %v2233 = vadd.f32 %v2107, %v2172
        %v2234 = vadd.f32 %v2108, %v2173
        %v2235 = vadd.f32 %v2109, %v2174
        %v2236 = vadd.f32 %v2110, %v2175
        %v2237 = vadd.f32 %v2111, %v2176
        %v2238 = vadd.f32 %v2112, %v2177
        %v2239 = vadd.f32 %v2113, %v2178
        %v2240 = vadd.f32 %v2114, %v2179
        %v2241 = vadd.f32 %v2115, %v2180
        %v2242 = vadd.f32 %v2116, %v2181
        %v2243 = vadd.f32 %v2117, %v2182
        %v2244 = vadd.f32 %v2118, %v2183
        %v2245 = vadd.f32 %v2119, %v2184
        %v2246 = vadd.f32 %v2120, %v2185
        %v2247 = vadd.f32 %v2121, %v2186
        %v2248 = vadd.f32 %v2122, %v2187
        %v2249 = vadd.f32 %v2123, %v2188
        %v2250 = vadd.f32 %v2124, %v2189
        %v2251 = vadd.f32 %v2125, %v2189
        %v2252 = vadd.f32 %v2126, %v2190
        %v2253 = vadd.f32 %v2127, %v2191
        %v2254 = vadd.f32 %v2128, %v2192
        %v2255 = vadd.f32 %v2129, %v2193
        %v2256 = vadd.f32 %v2130, %v2194
        %v2257 = vadd.f32 %v2131, %v2195
        %v2258 = vadd.f32 %v2132, %v2196
        %v2259 = vadd.f32 %v2133, %v2197
        %v2260 = vadd.f32 %v2134, %v2198
        %v2261 = vadd.f32 %v2135, %v2199
        %v2262 = vadd.f32 %v2136, %v2200
        %v2263 = vadd.f32 %v2137, %v2201
        %v2264 = vadd.f32 %v2138, %v2202
        %v2265 = vadd.f32 %v2139, %v2203
        %v2266 = vadd.f32 %v2140, %v2204
        %v2267 = vadd.f32 %v2141, %v2205
        %v2268 = vadd.f32 %v2142, %v2206
        %v2269 = vadd.f32 %v2143, %v2207
        %v2270 = vadd.f32 %v2144, %v2208
        %v2271 = vadd.f32 %v2145, %v2209
        %v2272 = vadd.f32 %v2146, %v2210
        %v2273 = vadd.f32 %v2147, %v2211
        %v2274 = vadd.f32 %v2148, %v2212
        %v2275 = vadd.f32 %v2149, %v2213
        %v2276 = vadd.f32 %v2150, %v2214
        %v2277 = vadd.f32 %v2151, %v2215
        %v2278 = vadd.f32 %v2152, %v2216
        %v2279 = vadd.f32 %v2153, %v2217
        %v2280 = vadd.f32 %v2154, %v2218
        %v2281 = vadd.f32 %v2155, %v2219
        %v2282 = vadd.f32 %v2156, %v2189
        %v2283 = vadd.f32 %v2157, %v2189
        %v2285 = vperm.slane %v726, 0
        %v2287 = vadd.f32 %v2220, %v2285
        %v2288 = vadd.f32 %v2221, %v2285
        %v2289 = vadd.f32 %v2222, %v2285
        %v2290 = vadd.f32 %v2223, %v2285
        %v2291 = vadd.f32 %v2224, %v2285
        %v2292 = vadd.f32 %v2225, %v2285
        %v2293 = vadd.f32 %v2226, %v2285
        %v2294 = vadd.f32 %v2227, %v2285
        %v2295 = vadd.f32 %v2228, %v2285
        %v2296 = vadd.f32 %v2229, %v2285
        %v2297 = vadd.f32 %v2230, %v2285
        %v2298 = vadd.f32 %v2231, %v2285
        %v2299 = vadd.f32 %v2232, %v2285
        %v2300 = vadd.f32 %v2233, %v2285
        %v2301 = vadd.f32 %v2234, %v2285
        %v2302 = vadd.f32 %v2235, %v2285
        %v2303 = vadd.f32 %v2236, %v2285
        %v2304 = vadd.f32 %v2237, %v2285
        %v2305 = vadd.f32 %v2238, %v2285
        %v2306 = vadd.f32 %v2239, %v2285
        %v2307 = vadd.f32 %v2240, %v2285
        %v2308 = vadd.f32 %v2241, %v2285
        %v2309 = vadd.f32 %v2242, %v2285
        %v2310 = vadd.f32 %v2243, %v2285
        %v2311 = vadd.f32 %v2244, %v2285
        %v2312 = vadd.f32 %v2245, %v2285
        %v2313 = vadd.f32 %v2246, %v2285
        %v2314 = vadd.f32 %v2247, %v2285
        %v2315 = vadd.f32 %v2248, %v2285
        %v2316 = vadd.f32 %v2249, %v2285
        %v2317 = vadd.f32 %v2250, %v2285
        %v2318 = vadd.f32 %v2251, %v2285
        %v2319 = vadd.f32 %v2252, %v2285
        %v2320 = vadd.f32 %v2253, %v2285
        %v2321 = vadd.f32 %v2254, %v2285
        %v2322 = vadd.f32 %v2255, %v2285
        %v2323 = vadd.f32 %v2256, %v2285
        %v2324 = vadd.f32 %v2257, %v2285
        %v2325 = vadd.f32 %v2258, %v2285
        %v2326 = vadd.f32 %v2259, %v2285
        %v2327 = vadd.f32 %v2260, %v2285
        %v2328 = vadd.f32 %v2261, %v2285
        %v2329 = vadd.f32 %v2262, %v2285
        %v2330 = vadd.f32 %v2263, %v2285
        %v2331 = vadd.f32 %v2264, %v2285
        %v2332 = vadd.f32 %v2265, %v2285
        %v2333 = vadd.f32 %v2266, %v2285
        %v2334 = vadd.f32 %v2267, %v2285
        %v2335 = vadd.f32 %v2268, %v2285
        %v2336 = vadd.f32 %v2269, %v2285
        %v2337 = vadd.f32 %v2270, %v2285
        %v2338 = vadd.f32 %v2271, %v2285
        %v2339 = vadd.f32 %v2272, %v2285
        %v2340 = vadd.f32 %v2273, %v2285
        %v2341 = vadd.f32 %v2274, %v2285
        %v2342 = vadd.f32 %v2275, %v2285
        %v2343 = vadd.f32 %v2276, %v2285
        %v2344 = vadd.f32 %v2277, %v2285
        %v2345 = vadd.f32 %v2278, %v2285
        %v2346 = vadd.f32 %v2279, %v2285
        %v2347 = vadd.f32 %v2280, %v2285
        %v2348 = vadd.f32 %v2281, %v2285
        %v2349 = vadd.f32 %v2282, %v2285
        %v2350 = vadd.f32 %v2283, %v2285
        %v2352 = vperm.slane %v728, 0
        %vm2354 = vcmask 23552
        %v2356 = vsel %vm2354, %v2287, 0
        %v2359 = vsel %vm2354, %v2288, 0
        %v2362 = vsel %vm2354, %v2289, 0
        %v2365 = vsel %vm2354, %v2290, 0
        %v2368 = vsel %vm2354, %v2291, 0
        %v2371 = vsel %vm2354, %v2292, 0
        %v2374 = vsel %vm2354, %v2293, 0
        %v2377 = vsel %vm2354, %v2294, 0
        %v2380 = vsel %vm2354, %v2295, 0
        %v2383 = vsel %vm2354, %v2296, 0
        %v2386 = vsel %vm2354, %v2297, 0
        %v2389 = vsel %vm2354, %v2298, 0
        %v2392 = vsel %vm2354, %v2299, 0
        %v2395 = vsel %vm2354, %v2300, 0
        %v2398 = vsel %vm2354, %v2301, 0
        %v2401 = vsel %vm2354, %v2302, 0
        %v2404 = vsel %vm2354, %v2303, 0
        %v2407 = vsel %vm2354, %v2304, 0
        %v2410 = vsel %vm2354, %v2305, 0
        %v2413 = vsel %vm2354, %v2306, 0
        %v2416 = vsel %vm2354, %v2307, 0
        %v2419 = vsel %vm2354, %v2308, 0
        %v2422 = vsel %vm2354, %v2309, 0
        %v2425 = vsel %vm2354, %v2310, 0
        %v2428 = vsel %vm2354, %v2311, 0
        %v2431 = vsel %vm2354, %v2312, 0
        %v2434 = vsel %vm2354, %v2313, 0
        %v2437 = vsel %vm2354, %v2314, 0
        %v2440 = vsel %vm2354, %v2315, 0
        %v2443 = vsel %vm2354, %v2316, 0
        %v2446 = vsel %vm2354, %v2317, 0
        %v2449 = vsel %vm2354, %v2318, 0
        %v2452 = vsel %vm2354, %v2319, 0
        %v2455 = vsel %vm2354, %v2320, 0
        %v2458 = vsel %vm2354, %v2321, 0
        %v2461 = vsel %vm2354, %v2322, 0
        %v2464 = vsel %vm2354, %v2323, 0
        %v2467 = vsel %vm2354, %v2324, 0
        %v2470 = vsel %vm2354, %v2325, 0
        %v2473 = vsel %vm2354, %v2326, 0
        %v2476 = vsel %vm2354, %v2327, 0
        %v2479 = vsel %vm2354, %v2328, 0
        %v2482 = vsel %vm2354, %v2329, 0
        %v2485 = vsel %vm2354, %v2330, 0
        %v2488 = vsel %vm2354, %v2331, 0
        %v2491 = vsel %vm2354, %v2332, 0
        %v2494 = vsel %vm2354, %v2333, 0
        %v2497 = vsel %vm2354, %v2334, 0
        %v2500 = vsel %vm2354, %v2335, 0
        %v2503 = vsel %vm2354, %v2336, 0
        %v2506 = vsel %vm2354, %v2337, 0
        %v2509 = vsel %vm2354, %v2338, 0
        %v2512 = vsel %vm2354, %v2339, 0
        %v2515 = vsel %vm2354, %v2340, 0
        %v2518 = vsel %vm2354, %v2341, 0
        %v2521 = vsel %vm2354, %v2342, 0
        %v2524 = vsel %vm2354, %v2343, 0
        %v2527 = vsel %vm2354, %v2344, 0
        %v2530 = vsel %vm2354, %v2345, 0
        %v2533 = vsel %vm2354, %v2346, 0
        %v2536 = vsel %vm2354, %v2347, 0
        %v2539 = vsel %vm2354, %v2348, 0
        %v2542 = vsel %vm2354, %v2349, 0
        %v2545 = vsel %vm2354, %v2350, 0
        %vm2547 = vcmask 1042432
        %v2549 = vsel %vm2547, %v727, 0
        %2551 = vmatpush.msra.mxu0 0.0
        %2552 = vmatpush.msra.mxu0 0.0
        %2553 = vmatpush.msra.mxu0 0.0
        %2554 = vmatpush.msra.mxu0 0.0
        %2555 = vmatpush.msra.mxu0 0.0
        %2556 = vmatpush.msra.mxu0 0.0
        %2557 = vmatpush.msra.mxu0 0.0
        %2558 = vmatpush.msra.mxu0 0.0
        %2559 = vmatpush.msra.mxu0 0.0
        %2560 = vmatpush.msra.mxu0 0.0
        %2561 = vmatpush.msra.mxu0 0.0
        %2562 = vmatpush.msra.mxu0 0.0
        %2563 = vmatpush.msra.mxu0 0.0
        %2564 = vmatpush.msra.mxu0 0.0
        %2565 = vmatpush.msra.mxu0 0.0
        %2566 = vmatpush.msra.mxu0 %v2549
        %2567 = vmatmul.f32.gmra.mxu0 %v2356
        %v2568 = vpop.f32.mrf.mxu0
        %v2569 = vadd.f32 %v2352, %v2568
        %2570 = vmatmul.f32.gmra.mxu0 %v2359
        %v2571 = vpop.f32.mrf.mxu0
        %v2572 = vadd.f32 %v2352, %v2571
        %2573 = vmatmul.f32.gmra.mxu0 %v2362
        %v2574 = vpop.f32.mrf.mxu0
        %v2575 = vadd.f32 %v2352, %v2574
        %2576 = vmatmul.f32.gmra.mxu0 %v2365
        %v2577 = vpop.f32.mrf.mxu0
        %v2578 = vadd.f32 %v2352, %v2577
        %2579 = vmatmul.f32.gmra.mxu0 %v2368
        %v2580 = vpop.f32.mrf.mxu0
        %v2581 = vadd.f32 %v2352, %v2580
        %2582 = vmatmul.f32.gmra.mxu0 %v2371
        %v2583 = vpop.f32.mrf.mxu0
        %v2584 = vadd.f32 %v2352, %v2583
        %2585 = vmatmul.f32.gmra.mxu0 %v2374
        %v2586 = vpop.f32.mrf.mxu0
        %v2587 = vadd.f32 %v2352, %v2586
        %2588 = vmatmul.f32.gmra.mxu0 %v2377
        %v2589 = vpop.f32.mrf.mxu0
        %v2590 = vadd.f32 %v2352, %v2589
        %2591 = vmatmul.f32.gmra.mxu0 %v2380
        %v2592 = vpop.f32.mrf.mxu0
        %v2593 = vadd.f32 %v2352, %v2592
        %2594 = vmatmul.f32.gmra.mxu0 %v2383
        %v2595 = vpop.f32.mrf.mxu0
        %v2596 = vadd.f32 %v2352, %v2595
        %2597 = vmatmul.f32.gmra.mxu0 %v2386
        %v2598 = vpop.f32.mrf.mxu0
        %v2599 = vadd.f32 %v2352, %v2598
        %2600 = vmatmul.f32.gmra.mxu0 %v2389
        %v2601 = vpop.f32.mrf.mxu0
        %v2602 = vadd.f32 %v2352, %v2601
        %2603 = vmatmul.f32.gmra.mxu0 %v2392
        %v2604 = vpop.f32.mrf.mxu0
        %v2605 = vadd.f32 %v2352, %v2604
        %2606 = vmatmul.f32.gmra.mxu0 %v2395
        %v2607 = vpop.f32.mrf.mxu0
        %v2608 = vadd.f32 %v2352, %v2607
        %2609 = vmatmul.f32.gmra.mxu0 %v2398
        %v2610 = vpop.f32.mrf.mxu0
        %v2611 = vadd.f32 %v2352, %v2610
        %2612 = vmatmul.f32.gmra.mxu0 %v2401
        %v2613 = vpop.f32.mrf.mxu0
        %v2614 = vadd.f32 %v2352, %v2613
        %2615 = vmatmul.f32.gmra.mxu0 %v2404
        %v2616 = vpop.f32.mrf.mxu0
        %v2617 = vadd.f32 %v2352, %v2616
        %2618 = vmatmul.f32.gmra.mxu0 %v2407
        %v2619 = vpop.f32.mrf.mxu0
        %v2620 = vadd.f32 %v2352, %v2619
        %2621 = vmatmul.f32.gmra.mxu0 %v2410
        %v2622 = vpop.f32.mrf.mxu0
        %v2623 = vadd.f32 %v2352, %v2622
        %2624 = vmatmul.f32.gmra.mxu0 %v2413
        %v2625 = vpop.f32.mrf.mxu0
        %v2626 = vadd.f32 %v2352, %v2625
        %2627 = vmatmul.f32.gmra.mxu0 %v2416
        %v2628 = vpop.f32.mrf.mxu0
        %v2629 = vadd.f32 %v2352, %v2628
        %2630 = vmatmul.f32.gmra.mxu0 %v2419
        %v2631 = vpop.f32.mrf.mxu0
        %v2632 = vadd.f32 %v2352, %v2631
        %2633 = vmatmul.f32.gmra.mxu0 %v2422
        %v2634 = vpop.f32.mrf.mxu0
        %v2635 = vadd.f32 %v2352, %v2634
        %2636 = vmatmul.f32.gmra.mxu0 %v2425
        %v2637 = vpop.f32.mrf.mxu0
        %v2638 = vadd.f32 %v2352, %v2637
        %2639 = vmatmul.f32.gmra.mxu0 %v2428
        %v2640 = vpop.f32.mrf.mxu0
        %v2641 = vadd.f32 %v2352, %v2640
        %2642 = vmatmul.f32.gmra.mxu0 %v2431
        %v2643 = vpop.f32.mrf.mxu0
        %v2644 = vadd.f32 %v2352, %v2643
        %2645 = vmatmul.f32.gmra.mxu0 %v2434
        %v2646 = vpop.f32.mrf.mxu0
        %v2647 = vadd.f32 %v2352, %v2646
        %2648 = vmatmul.f32.gmra.mxu0 %v2437
        %v2649 = vpop.f32.mrf.mxu0
        %v2650 = vadd.f32 %v2352, %v2649
        %2651 = vmatmul.f32.gmra.mxu0 %v2440
        %v2652 = vpop.f32.mrf.mxu0
        %v2653 = vadd.f32 %v2352, %v2652
        %2654 = vmatmul.f32.gmra.mxu0 %v2443
        %v2655 = vpop.f32.mrf.mxu0
        %v2656 = vadd.f32 %v2352, %v2655
        %2657 = vmatmul.f32.gmra.mxu0 %v2446
        %v2658 = vpop.f32.mrf.mxu0
        %v2659 = vadd.f32 %v2352, %v2658
        %2660 = vmatmul.f32.gmra.mxu0 %v2449
        %v2661 = vpop.f32.mrf.mxu0
        %v2662 = vadd.f32 %v2352, %v2661
        %2663 = vmatmul.f32.gmra.mxu0 %v2452
        %v2664 = vpop.f32.mrf.mxu0
        %v2665 = vadd.f32 %v2352, %v2664
        %2666 = vmatmul.f32.gmra.mxu0 %v2455
        %v2667 = vpop.f32.mrf.mxu0
        %v2668 = vadd.f32 %v2352, %v2667
        %2669 = vmatmul.f32.gmra.mxu0 %v2458
        %v2670 = vpop.f32.mrf.mxu0
        %v2671 = vadd.f32 %v2352, %v2670
        %2672 = vmatmul.f32.gmra.mxu0 %v2461
        %v2673 = vpop.f32.mrf.mxu0
        %v2674 = vadd.f32 %v2352, %v2673
        %2675 = vmatmul.f32.gmra.mxu0 %v2464
        %v2676 = vpop.f32.mrf.mxu0
        %v2677 = vadd.f32 %v2352, %v2676
        %2678 = vmatmul.f32.gmra.mxu0 %v2467
        %v2679 = vpop.f32.mrf.mxu0
        %v2680 = vadd.f32 %v2352, %v2679
        %2681 = vmatmul.f32.gmra.mxu0 %v2470
        %v2682 = vpop.f32.mrf.mxu0
        %v2683 = vadd.f32 %v2352, %v2682
        %2684 = vmatmul.f32.gmra.mxu0 %v2473
        %v2685 = vpop.f32.mrf.mxu0
        %v2686 = vadd.f32 %v2352, %v2685
        %2687 = vmatmul.f32.gmra.mxu0 %v2476
        %v2688 = vpop.f32.mrf.mxu0
        %v2689 = vadd.f32 %v2352, %v2688
        %2690 = vmatmul.f32.gmra.mxu0 %v2479
        %v2691 = vpop.f32.mrf.mxu0
        %v2692 = vadd.f32 %v2352, %v2691
        %2693 = vmatmul.f32.gmra.mxu0 %v2482
        %v2694 = vpop.f32.mrf.mxu0
        %v2695 = vadd.f32 %v2352, %v2694
        %2696 = vmatmul.f32.gmra.mxu0 %v2485
        %v2697 = vpop.f32.mrf.mxu0
        %v2698 = vadd.f32 %v2352, %v2697
        %2699 = vmatmul.f32.gmra.mxu0 %v2488
        %v2700 = vpop.f32.mrf.mxu0
        %v2701 = vadd.f32 %v2352, %v2700
        %2702 = vmatmul.f32.gmra.mxu0 %v2491
        %v2703 = vpop.f32.mrf.mxu0
        %v2704 = vadd.f32 %v2352, %v2703
        %2705 = vmatmul.f32.gmra.mxu0 %v2494
        %v2706 = vpop.f32.mrf.mxu0
        %v2707 = vadd.f32 %v2352, %v2706
        %2708 = vmatmul.f32.gmra.mxu0 %v2497
        %v2709 = vpop.f32.mrf.mxu0
        %v2710 = vadd.f32 %v2352, %v2709
        %2711 = vmatmul.f32.gmra.mxu0 %v2500
        %v2712 = vpop.f32.mrf.mxu0
        %v2713 = vadd.f32 %v2352, %v2712
        %2714 = vmatmul.f32.gmra.mxu0 %v2503
        %v2715 = vpop.f32.mrf.mxu0
        %v2716 = vadd.f32 %v2352, %v2715
        %2717 = vmatmul.f32.gmra.mxu0 %v2506
        %v2718 = vpop.f32.mrf.mxu0
        %v2719 = vadd.f32 %v2352, %v2718
        %2720 = vmatmul.f32.gmra.mxu0 %v2509
        %v2721 = vpop.f32.mrf.mxu0
        %v2722 = vadd.f32 %v2352, %v2721
        %2723 = vmatmul.f32.gmra.mxu0 %v2512
        %v2724 = vpop.f32.mrf.mxu0
        %v2725 = vadd.f32 %v2352, %v2724
        %2726 = vmatmul.f32.gmra.mxu0 %v2515
        %v2727 = vpop.f32.mrf.mxu0
        %v2728 = vadd.f32 %v2352, %v2727
        %2729 = vmatmul.f32.gmra.mxu0 %v2518
        %v2730 = vpop.f32.mrf.mxu0
        %v2731 = vadd.f32 %v2352, %v2730
        %2732 = vmatmul.f32.gmra.mxu0 %v2521
        %v2733 = vpop.f32.mrf.mxu0
        %v2734 = vadd.f32 %v2352, %v2733
        %2735 = vmatmul.f32.gmra.mxu0 %v2524
        %v2736 = vpop.f32.mrf.mxu0
        %v2737 = vadd.f32 %v2352, %v2736
        %2738 = vmatmul.f32.gmra.mxu0 %v2527
        %v2739 = vpop.f32.mrf.mxu0
        %v2740 = vadd.f32 %v2352, %v2739
        %2741 = vmatmul.f32.gmra.mxu0 %v2530
        %v2742 = vpop.f32.mrf.mxu0
        %v2743 = vadd.f32 %v2352, %v2742
        %2744 = vmatmul.f32.gmra.mxu0 %v2533
        %v2745 = vpop.f32.mrf.mxu0
        %v2746 = vadd.f32 %v2352, %v2745
        %2747 = vmatmul.f32.gmra.mxu0 %v2536
        %v2748 = vpop.f32.mrf.mxu0
        %v2749 = vadd.f32 %v2352, %v2748
        %2750 = vmatmul.f32.gmra.mxu0 %v2539
        %v2751 = vpop.f32.mrf.mxu0
        %v2752 = vadd.f32 %v2352, %v2751
        %2753 = vmatmul.f32.gmra.mxu0 %v2542
        %v2754 = vpop.f32.mrf.mxu0
        %v2755 = vadd.f32 %v2352, %v2754
        %2756 = vmatmul.f32.gmra.mxu0 %v2545
        %v2757 = vpop.f32.mrf.mxu0
        %v2758 = vadd.f32 %v2352, %v2757
        %2759 = vdwg.mxu0
        %v2760 = vmax.f32 %v2569, 0.0
        %v2761 = vmax.f32 %v2572, 0.0
        %v2762 = vmax.f32 %v2575, 0.0
        %v2763 = vmax.f32 %v2578, 0.0
        %v2764 = vmax.f32 %v2581, 0.0
        %v2765 = vmax.f32 %v2584, 0.0
        %v2766 = vmax.f32 %v2587, 0.0
        %v2767 = vmax.f32 %v2590, 0.0
        %v2768 = vmax.f32 %v2593, 0.0
        %v2769 = vmax.f32 %v2596, 0.0
        %v2770 = vmax.f32 %v2599, 0.0
        %v2771 = vmax.f32 %v2602, 0.0
        %v2772 = vmax.f32 %v2605, 0.0
        %v2773 = vmax.f32 %v2608, 0.0
        %v2774 = vmax.f32 %v2611, 0.0
        %v2775 = vmax.f32 %v2614, 0.0
        %v2776 = vmax.f32 %v2617, 0.0
        %v2777 = vmax.f32 %v2620, 0.0
        %v2778 = vmax.f32 %v2623, 0.0
        %v2779 = vmax.f32 %v2626, 0.0
        %v2780 = vmax.f32 %v2629, 0.0
        %v2781 = vmax.f32 %v2632, 0.0
        %v2782 = vmax.f32 %v2635, 0.0
        %v2783 = vmax.f32 %v2638, 0.0
        %v2784 = vmax.f32 %v2641, 0.0
        %v2785 = vmax.f32 %v2644, 0.0
        %v2786 = vmax.f32 %v2647, 0.0
        %v2787 = vmax.f32 %v2650, 0.0
        %v2788 = vmax.f32 %v2653, 0.0
        %v2789 = vmax.f32 %v2656, 0.0
        %v2790 = vmax.f32 %v2659, 0.0
        %v2791 = vmax.f32 %v2662, 0.0
        %v2792 = vmax.f32 %v2665, 0.0
        %v2793 = vmax.f32 %v2668, 0.0
        %v2794 = vmax.f32 %v2671, 0.0
        %v2795 = vmax.f32 %v2674, 0.0
        %v2796 = vmax.f32 %v2677, 0.0
        %v2797 = vmax.f32 %v2680, 0.0
        %v2798 = vmax.f32 %v2683, 0.0
        %v2799 = vmax.f32 %v2686, 0.0
        %v2800 = vmax.f32 %v2689, 0.0
        %v2801 = vmax.f32 %v2692, 0.0
        %v2802 = vmax.f32 %v2695, 0.0
        %v2803 = vmax.f32 %v2698, 0.0
        %v2804 = vmax.f32 %v2701, 0.0
        %v2805 = vmax.f32 %v2704, 0.0
        %v2806 = vmax.f32 %v2707, 0.0
        %v2807 = vmax.f32 %v2710, 0.0
        %v2808 = vmax.f32 %v2713, 0.0
        %v2809 = vmax.f32 %v2716, 0.0
        %v2810 = vmax.f32 %v2719, 0.0
        %v2811 = vmax.f32 %v2722, 0.0
        %v2812 = vmax.f32 %v2725, 0.0
        %v2813 = vmax.f32 %v2728, 0.0
        %v2814 = vmax.f32 %v2731, 0.0
        %v2815 = vmax.f32 %v2734, 0.0
        %v2816 = vmax.f32 %v2737, 0.0
        %v2817 = vmax.f32 %v2740, 0.0
        %v2818 = vmax.f32 %v2743, 0.0
        %v2819 = vmax.f32 %v2746, 0.0
        %v2820 = vmax.f32 %v2749, 0.0
        %v2821 = vmax.f32 %v2752, 0.0
        %v2822 = vmax.f32 %v2755, 0.0
        %v2823 = vmax.f32 %v2758, 0.0
        %v2825 = vperm.slane %v729, 0
        %v2827 = vmul.f32 %v2760, %v2825
        %v2828 = vmul.f32 %v2761, %v2825
        %v2829 = vmul.f32 %v2762, %v2825
        %v2830 = vmul.f32 %v2763, %v2825
        %v2831 = vmul.f32 %v2764, %v2825
        %v2832 = vmul.f32 %v2765, %v2825
        %v2833 = vmul.f32 %v2766, %v2825
        %v2834 = vmul.f32 %v2767, %v2825
        %v2835 = vmul.f32 %v2768, %v2825
        %v2836 = vmul.f32 %v2769, %v2825
        %v2837 = vmul.f32 %v2770, %v2825
        %v2838 = vmul.f32 %v2771, %v2825
        %v2839 = vmul.f32 %v2772, %v2825
        %v2840 = vmul.f32 %v2773, %v2825
        %v2841 = vmul.f32 %v2774, %v2825
        %v2842 = vmul.f32 %v2775, %v2825
        %v2843 = vmul.f32 %v2776, %v2825
        %v2844 = vmul.f32 %v2777, %v2825
        %v2845 = vmul.f32 %v2778, %v2825
        %v2846 = vmul.f32 %v2779, %v2825
        %v2847 = vmul.f32 %v2780, %v2825
        %v2848 = vmul.f32 %v2781, %v2825
        %v2849 = vmul.f32 %v2782, %v2825
        %v2850 = vmul.f32 %v2783, %v2825
        %v2851 = vmul.f32 %v2784, %v2825
        %v2852 = vmul.f32 %v2785, %v2825
        %v2853 = vmul.f32 %v2786, %v2825
        %v2854 = vmul.f32 %v2787, %v2825
        %v2855 = vmul.f32 %v2788, %v2825
        %v2856 = vmul.f32 %v2789, %v2825
        %v2857 = vmul.f32 %v2790, %v2825
        %v2858 = vmul.f32 %v2791, %v2825
        %v2859 = vmul.f32 %v2792, %v2825
        %v2860 = vmul.f32 %v2793, %v2825
        %v2861 = vmul.f32 %v2794, %v2825
        %v2862 = vmul.f32 %v2795, %v2825
        %v2863 = vmul.f32 %v2796, %v2825
        %v2864 = vmul.f32 %v2797, %v2825
        %v2865 = vmul.f32 %v2798, %v2825
        %v2866 = vmul.f32 %v2799, %v2825
        %v2867 = vmul.f32 %v2800, %v2825
        %v2868 = vmul.f32 %v2801, %v2825
        %v2869 = vmul.f32 %v2802, %v2825
        %v2870 = vmul.f32 %v2803, %v2825
        %v2871 = vmul.f32 %v2804, %v2825
        %v2872 = vmul.f32 %v2805, %v2825
        %v2873 = vmul.f32 %v2806, %v2825
        %v2874 = vmul.f32 %v2807, %v2825
        %v2875 = vmul.f32 %v2808, %v2825
        %v2876 = vmul.f32 %v2809, %v2825
        %v2877 = vmul.f32 %v2810, %v2825
        %v2878 = vmul.f32 %v2811, %v2825
        %v2879 = vmul.f32 %v2812, %v2825
        %v2880 = vmul.f32 %v2813, %v2825
        %v2881 = vmul.f32 %v2814, %v2825
        %v2882 = vmul.f32 %v2815, %v2825
        %v2883 = vmul.f32 %v2816, %v2825
        %v2884 = vmul.f32 %v2817, %v2825
        %v2885 = vmul.f32 %v2818, %v2825
        %v2886 = vmul.f32 %v2819, %v2825
        %v2887 = vmul.f32 %v2820, %v2825
        %v2888 = vmul.f32 %v2821, %v2825
        %v2889 = vmul.f32 %v2822, %v2825
        %v2890 = vmul.f32 %v2823, %v2825
        %v2892 = vperm.slane %v730, 0
        %v2894 = vadd.f32 %v2827, %v2892
        %v2895 = vadd.f32 %v2828, %v2892
        %v2896 = vadd.f32 %v2829, %v2892
        %v2897 = vadd.f32 %v2830, %v2892
        %v2898 = vadd.f32 %v2831, %v2892
        %v2899 = vadd.f32 %v2832, %v2892
        %v2900 = vadd.f32 %v2833, %v2892
        %v2901 = vadd.f32 %v2834, %v2892
        %v2902 = vadd.f32 %v2835, %v2892
        %v2903 = vadd.f32 %v2836, %v2892
        %v2904 = vadd.f32 %v2837, %v2892
        %v2905 = vadd.f32 %v2838, %v2892
        %v2906 = vadd.f32 %v2839, %v2892
        %v2907 = vadd.f32 %v2840, %v2892
        %v2908 = vadd.f32 %v2841, %v2892
        %v2909 = vadd.f32 %v2842, %v2892
        %v2910 = vadd.f32 %v2843, %v2892
        %v2911 = vadd.f32 %v2844, %v2892
        %v2912 = vadd.f32 %v2845, %v2892
        %v2913 = vadd.f32 %v2846, %v2892
        %v2914 = vadd.f32 %v2847, %v2892
        %v2915 = vadd.f32 %v2848, %v2892
        %v2916 = vadd.f32 %v2849, %v2892
        %v2917 = vadd.f32 %v2850, %v2892
        %v2918 = vadd.f32 %v2851, %v2892
        %v2919 = vadd.f32 %v2852, %v2892
        %v2920 = vadd.f32 %v2853, %v2892
        %v2921 = vadd.f32 %v2854, %v2892
        %v2922 = vadd.f32 %v2855, %v2892
        %v2923 = vadd.f32 %v2856, %v2892
        %v2924 = vadd.f32 %v2857, %v2892
        %v2925 = vadd.f32 %v2858, %v2892
        %v2926 = vadd.f32 %v2859, %v2892
        %v2927 = vadd.f32 %v2860, %v2892
        %v2928 = vadd.f32 %v2861, %v2892
        %v2929 = vadd.f32 %v2862, %v2892
        %v2930 = vadd.f32 %v2863, %v2892
        %v2931 = vadd.f32 %v2864, %v2892
        %v2932 = vadd.f32 %v2865, %v2892
        %v2933 = vadd.f32 %v2866, %v2892
        %v2934 = vadd.f32 %v2867, %v2892
        %v2935 = vadd.f32 %v2868, %v2892
        %v2936 = vadd.f32 %v2869, %v2892
        %v2937 = vadd.f32 %v2870, %v2892
        %v2938 = vadd.f32 %v2871, %v2892
        %v2939 = vadd.f32 %v2872, %v2892
        %v2940 = vadd.f32 %v2873, %v2892
        %v2941 = vadd.f32 %v2874, %v2892
        %v2942 = vadd.f32 %v2875, %v2892
        %v2943 = vadd.f32 %v2876, %v2892
        %v2944 = vadd.f32 %v2877, %v2892
        %v2945 = vadd.f32 %v2878, %v2892
        %v2946 = vadd.f32 %v2879, %v2892
        %v2947 = vadd.f32 %v2880, %v2892
        %v2948 = vadd.f32 %v2881, %v2892
        %v2949 = vadd.f32 %v2882, %v2892
        %v2950 = vadd.f32 %v2883, %v2892
        %v2951 = vadd.f32 %v2884, %v2892
        %v2952 = vadd.f32 %v2885, %v2892
        %v2953 = vadd.f32 %v2886, %v2892
        %v2954 = vadd.f32 %v2887, %v2892
        %v2955 = vadd.f32 %v2888, %v2892
        %v2956 = vadd.f32 %v2889, %v2892
        %v2957 = vadd.f32 %v2890, %v2892
        %v2958 = vld [vmem:[%s7] sm:$0xff]
        %v2959 = vld [vmem:[%s7 + $0x8] sm:$0x1]
        %v2960 = vld [vmem:[%s8] sm:$0x1]
        %v2961 = vld [vmem:[%s9] sm:$0xff]
        %v2962 = vld [vmem:[%s9 + $0x8] sm:$0xff]
        %v2963 = vld [vmem:[%s9 + $0x10] sm:$0xff]
        %v2964 = vld [vmem:[%s9 + $0x18] sm:$0xff]
        %v2965 = vld [vmem:[%s9 + $0x20] sm:$0xff]
        %v2966 = vld [vmem:[%s9 + $0x28] sm:$0xff]
        %v2967 = vld [vmem:[%s9 + $0x30] sm:$0xff]
        %v2968 = vld [vmem:[%s9 + $0x38] sm:$0xff]
        %v2969 = vld [vmem:[%s10] sm:$0x1]
        %v2970 = vld [vmem:[%s11] sm:$0x1]
        %v2971 = vld [vmem:[%s12] sm:$0x1]
        %v2972 = vrot.slane %v2894, 7
        %v2973 = vrot.slane %v2896, 7
        %v2974 = vrot.slane %v2898, 7
        %v2975 = vrot.slane %v2900, 7
        %v2976 = vrot.slane %v2902, 7
        %v2977 = vrot.slane %v2904, 7
        %v2978 = vrot.slane %v2906, 7
        %v2979 = vrot.slane %v2908, 7
        %v2980 = vrot.slane %v2910, 7
        %v2981 = vrot.slane %v2912, 7
        %v2982 = vrot.slane %v2914, 7
        %v2983 = vrot.slane %v2916, 7
        %v2984 = vrot.slane %v2918, 7
        %v2985 = vrot.slane %v2920, 7
        %v2986 = vrot.slane %v2922, 7
        %v2987 = vrot.slane %v2924, 7
        %v2988 = vrot.slane %v2926, 7
        %v2989 = vrot.slane %v2928, 7
        %v2990 = vrot.slane %v2930, 7
        %v2991 = vrot.slane %v2932, 7
        %v2992 = vrot.slane %v2934, 7
        %v2993 = vrot.slane %v2936, 7
        %v2994 = vrot.slane %v2938, 7
        %v2995 = vrot.slane %v2940, 7
        %v2996 = vrot.slane %v2942, 7
        %v2997 = vrot.slane %v2944, 7
        %v2998 = vrot.slane %v2946, 7
        %v2999 = vrot.slane %v2948, 7
        %v3000 = vrot.slane %v2950, 7
        %v3001 = vrot.slane %v2952, 7
        %v3002 = vrot.slane %v2954, 7
        %v3003 = vrot.slane %v2956, 7
        %v3004 = vrot.slane %v2895, 7
        %v3005 = vrot.slane %v2897, 7
        %v3006 = vrot.slane %v2899, 7
        %v3007 = vrot.slane %v2901, 7
        %v3008 = vrot.slane %v2903, 7
        %v3009 = vrot.slane %v2905, 7
        %v3010 = vrot.slane %v2907, 7
        %v3011 = vrot.slane %v2909, 7
        %v3012 = vrot.slane %v2911, 7
        %v3013 = vrot.slane %v2913, 7
        %v3014 = vrot.slane %v2915, 7
        %v3015 = vrot.slane %v2917, 7
        %v3016 = vrot.slane %v2919, 7
        %v3017 = vrot.slane %v2921, 7
        %v3018 = vrot.slane %v2923, 7
        %v3019 = vrot.slane %v2925, 7
        %v3020 = vrot.slane %v2927, 7
        %v3021 = vrot.slane %v2929, 7
        %v3022 = vrot.slane %v2931, 7
        %v3023 = vrot.slane %v2933, 7
        %v3024 = vrot.slane %v2935, 7
        %v3025 = vrot.slane %v2937, 7
        %v3026 = vrot.slane %v2939, 7
        %v3027 = vrot.slane %v2941, 7
        %v3028 = vrot.slane %v2943, 7
        %v3029 = vrot.slane %v2945, 7
        %v3030 = vrot.slane %v2947, 7
        %v3031 = vrot.slane %v2949, 7
        %v3032 = vrot.slane %v2951, 7
        %v3033 = vrot.slane %v2953, 7
        %v3034 = vrot.slane %v2955, 7
        %v3035 = vrot.slane %v2957, 7
        %v3036 = vsel %vm806, %v2972, %v3004
        %v3037 = vsel %vm806, %v2973, %v3005
        %v3038 = vsel %vm806, %v2974, %v3006
        %v3039 = vsel %vm806, %v2975, %v3007
        %v3040 = vsel %vm806, %v2976, %v3008
        %v3041 = vsel %vm806, %v2977, %v3009
        %v3042 = vsel %vm806, %v2978, %v3010
        %v3043 = vsel %vm806, %v2979, %v3011
        %v3044 = vsel %vm806, %v2980, %v3012
        %v3045 = vsel %vm806, %v2981, %v3013
        %v3046 = vsel %vm806, %v2982, %v3014
        %v3047 = vsel %vm806, %v2983, %v3015
        %v3048 = vsel %vm806, %v2984, %v3016
        %v3049 = vsel %vm806, %v2985, %v3017
        %v3050 = vsel %vm806, %v2986, %v3018
        %v3051 = vsel %vm806, %v2987, %v3019
        %v3052 = vsel %vm806, %v2988, %v3020
        %v3053 = vsel %vm806, %v2989, %v3021
        %v3054 = vsel %vm806, %v2990, %v3022
        %v3055 = vsel %vm806, %v2991, %v3023
        %v3056 = vsel %vm806, %v2992, %v3024
        %v3057 = vsel %vm806, %v2993, %v3025
        %v3058 = vsel %vm806, %v2994, %v3026
        %v3059 = vsel %vm806, %v2995, %v3027
        %v3060 = vsel %vm806, %v2996, %v3028
        %v3061 = vsel %vm806, %v2997, %v3029
        %v3062 = vsel %vm806, %v2998, %v3030
        %v3063 = vsel %vm806, %v2999, %v3031
        %v3064 = vsel %vm806, %v3000, %v3032
        %v3065 = vsel %vm806, %v3001, %v3033
        %v3066 = vsel %vm806, %v3002, %v3034
        %v3067 = vsel %vm806, %v3003, %v3035
        %v3068 = vsel %vm806, %v3004, %v2972
        %v3069 = vsel %vm806, %v3005, %v2973
        %v3070 = vsel %vm806, %v3006, %v2974
        %v3071 = vsel %vm806, %v3007, %v2975
        %v3072 = vsel %vm806, %v3008, %v2976
        %v3073 = vsel %vm806, %v3009, %v2977
        %v3074 = vsel %vm806, %v3010, %v2978
        %v3075 = vsel %vm806, %v3011, %v2979
        %v3076 = vsel %vm806, %v3012, %v2980
        %v3077 = vsel %vm806, %v3013, %v2981
        %v3078 = vsel %vm806, %v3014, %v2982
        %v3079 = vsel %vm806, %v3015, %v2983
        %v3080 = vsel %vm806, %v3016, %v2984
        %v3081 = vsel %vm806, %v3017, %v2985
        %v3082 = vsel %vm806, %v3018, %v2986
        %v3083 = vsel %vm806, %v3019, %v2987
        %v3084 = vsel %vm806, %v3020, %v2988
        %v3085 = vsel %vm806, %v3021, %v2989
        %v3086 = vsel %vm806, %v3022, %v2990
        %v3087 = vsel %vm806, %v3023, %v2991
        %v3088 = vsel %vm806, %v3024, %v2992
        %v3089 = vsel %vm806, %v3025, %v2993
        %v3090 = vsel %vm806, %v3026, %v2994
        %v3091 = vsel %vm806, %v3027, %v2995
        %v3092 = vsel %vm806, %v3028, %v2996
        %v3093 = vsel %vm806, %v3029, %v2997
        %v3094 = vsel %vm806, %v3030, %v2998
        %v3095 = vsel %vm806, %v3031, %v2999
        %v3096 = vsel %vm806, %v3032, %v3000
        %v3097 = vsel %vm806, %v3033, %v3001
        %v3098 = vsel %vm806, %v3034, %v3002
        %v3099 = vsel %vm806, %v3035, %v3003
        %v3100 = vsel %vm873, %v3068, 0.0
        %v3101 = vsel %vm874, %v3036, 0.0
        %v3102 = vsel %vm873, %v3069, 0.0
        %v3103 = vsel %vm874, %v3037, 0.0
        %v3104 = vsel %vm873, %v3070, 0.0
        %v3105 = vsel %vm874, %v3038, 0.0
        %v3106 = vsel %vm873, %v3071, 0.0
        %v3107 = vsel %vm874, %v3039, 0.0
        %v3108 = vsel %vm873, %v3072, 0.0
        %v3109 = vsel %vm874, %v3040, 0.0
        %v3110 = vsel %vm873, %v3073, 0.0
        %v3111 = vsel %vm874, %v3041, 0.0
        %v3112 = vsel %vm873, %v3074, 0.0
        %v3113 = vsel %vm874, %v3042, 0.0
        %v3114 = vsel %vm873, %v3075, 0.0
        %v3115 = vsel %vm874, %v3043, 0.0
        %v3116 = vsel %vm873, %v3076, 0.0
        %v3117 = vsel %vm874, %v3044, 0.0
        %v3118 = vsel %vm873, %v3077, 0.0
        %v3119 = vsel %vm874, %v3045, 0.0
        %v3120 = vsel %vm873, %v3078, 0.0
        %v3121 = vsel %vm874, %v3046, 0.0
        %v3122 = vsel %vm873, %v3079, 0.0
        %v3123 = vsel %vm874, %v3047, 0.0
        %v3124 = vsel %vm873, %v3080, 0.0
        %v3125 = vsel %vm874, %v3048, 0.0
        %v3126 = vsel %vm873, %v3081, 0.0
        %v3127 = vsel %vm874, %v3049, 0.0
        %v3128 = vsel %vm873, %v3082, 0.0
        %v3129 = vsel %vm874, %v3050, 0.0
        %v3130 = vsel %vm873, %v3083, 0.0
        %v3131 = vsel %vm874, %v3051, 0.0
        %v3132 = vsel %vm873, %v3084, 0.0
        %v3133 = vsel %vm874, %v3052, 0.0
        %v3134 = vsel %vm873, %v3085, 0.0
        %v3135 = vsel %vm874, %v3053, 0.0
        %v3136 = vsel %vm873, %v3086, 0.0
        %v3137 = vsel %vm874, %v3054, 0.0
        %v3138 = vsel %vm873, %v3087, 0.0
        %v3139 = vsel %vm874, %v3055, 0.0
        %v3140 = vsel %vm873, %v3088, 0.0
        %v3141 = vsel %vm874, %v3056, 0.0
        %v3142 = vsel %vm873, %v3089, 0.0
        %v3143 = vsel %vm874, %v3057, 0.0
        %v3144 = vsel %vm873, %v3090, 0.0
        %v3145 = vsel %vm874, %v3058, 0.0
        %v3146 = vsel %vm873, %v3091, 0.0
        %v3147 = vsel %vm874, %v3059, 0.0
        %v3148 = vsel %vm873, %v3092, 0.0
        %v3149 = vsel %vm874, %v3060, 0.0
        %v3150 = vsel %vm873, %v3093, 0.0
        %v3151 = vsel %vm874, %v3061, 0.0
        %v3152 = vsel %vm873, %v3094, 0.0
        %v3153 = vsel %vm874, %v3062, 0.0
        %v3154 = vsel %vm873, %v3095, 0.0
        %v3155 = vsel %vm874, %v3063, 0.0
        %v3156 = vsel %vm873, %v3096, 0.0
        %v3157 = vsel %vm874, %v3064, 0.0
        %v3158 = vsel %vm873, %v3097, 0.0
        %v3159 = vsel %vm874, %v3065, 0.0
        %v3160 = vsel %vm873, %v3098, 0.0
        %v3161 = vsel %vm874, %v3066, 0.0
        %v3162 = vsel %vm873, %v3099, 0.0
        %v3163 = vsel %vm874, %v3067, 0.0
        %v3164 = vperm.slane %v2958, 0
        %v3165 = vmul.f32 %v3164, 0.0
        %v3166 = vmul.f32 %v3100, %v3164
        %v3167 = vmul.f32 %v3101, %v3164
        %v3168 = vmul.f32 %v3102, %v3164
        %v3169 = vmul.f32 %v3103, %v3164
        %v3170 = vmul.f32 %v3104, %v3164
        %v3171 = vmul.f32 %v3105, %v3164
        %v3172 = vmul.f32 %v3106, %v3164
        %v3173 = vmul.f32 %v3107, %v3164
        %v3174 = vmul.f32 %v3108, %v3164
        %v3175 = vmul.f32 %v3109, %v3164
        %v3176 = vmul.f32 %v3110, %v3164
        %v3177 = vmul.f32 %v3111, %v3164
        %v3178 = vmul.f32 %v3112, %v3164
        %v3179 = vmul.f32 %v3113, %v3164
        %v3180 = vmul.f32 %v3114, %v3164
        %v3181 = vmul.f32 %v3115, %v3164
        %v3182 = vmul.f32 %v3116, %v3164
        %v3183 = vmul.f32 %v3117, %v3164
        %v3184 = vmul.f32 %v3118, %v3164
        %v3185 = vmul.f32 %v3119, %v3164
        %v3186 = vmul.f32 %v3120, %v3164
        %v3187 = vmul.f32 %v3121, %v3164
        %v3188 = vmul.f32 %v3122, %v3164
        %v3189 = vmul.f32 %v3123, %v3164
        %v3190 = vmul.f32 %v3124, %v3164
        %v3191 = vmul.f32 %v3125, %v3164
        %v3192 = vmul.f32 %v3126, %v3164
        %v3193 = vmul.f32 %v3127, %v3164
        %v3194 = vmul.f32 %v3128, %v3164
        %v3195 = vmul.f32 %v3129, %v3164
        %v3196 = vmul.f32 %v3132, %v3164
        %v3197 = vmul.f32 %v3133, %v3164
        %v3198 = vmul.f32 %v3134, %v3164
        %v3199 = vmul.f32 %v3135, %v3164
        %v3200 = vmul.f32 %v3136, %v3164
        %v3201 = vmul.f32 %v3137, %v3164
        %v3202 = vmul.f32 %v3138, %v3164
        %v3203 = vmul.f32 %v3139, %v3164
        %v3204 = vmul.f32 %v3140, %v3164
        %v3205 = vmul.f32 %v3141, %v3164
        %v3206 = vmul.f32 %v3142, %v3164
        %v3207 = vmul.f32 %v3143, %v3164
        %v3208 = vmul.f32 %v3144, %v3164
        %v3209 = vmul.f32 %v3145, %v3164
        %v3210 = vmul.f32 %v3146, %v3164
        %v3211 = vmul.f32 %v3147, %v3164
        %v3212 = vmul.f32 %v3148, %v3164
        %v3213 = vmul.f32 %v3149, %v3164
        %v3214 = vmul.f32 %v3150, %v3164
        %v3215 = vmul.f32 %v3151, %v3164
        %v3216 = vmul.f32 %v3152, %v3164
        %v3217 = vmul.f32 %v3153, %v3164
        %v3218 = vmul.f32 %v3154, %v3164
        %v3219 = vmul.f32 %v3155, %v3164
        %v3220 = vmul.f32 %v3156, %v3164
        %v3221 = vmul.f32 %v3157, %v3164
        %v3222 = vmul.f32 %v3158, %v3164
        %v3223 = vmul.f32 %v3159, %v3164
        %v3224 = vmul.f32 %v3160, %v3164
        %v3225 = vmul.f32 %v3161, %v3164
        %v3226 = vadd.f32 %v3165, 0.0
        %v3227 = vadd.f32 %v3166, 0.0
        %v3228 = vadd.f32 %v3167, 0.0
        %v3229 = vadd.f32 %v3168, 0.0
        %v3230 = vadd.f32 %v3169, 0.0
        %v3231 = vadd.f32 %v3170, 0.0
        %v3232 = vadd.f32 %v3171, 0.0
        %v3233 = vadd.f32 %v3172, 0.0
        %v3234 = vadd.f32 %v3173, 0.0
        %v3235 = vadd.f32 %v3174, 0.0
        %v3236 = vadd.f32 %v3175, 0.0
        %v3237 = vadd.f32 %v3176, 0.0
        %v3238 = vadd.f32 %v3177, 0.0
        %v3239 = vadd.f32 %v3178, 0.0
        %v3240 = vadd.f32 %v3179, 0.0
        %v3241 = vadd.f32 %v3180, 0.0
        %v3242 = vadd.f32 %v3181, 0.0
        %v3243 = vadd.f32 %v3182, 0.0
        %v3244 = vadd.f32 %v3183, 0.0
        %v3245 = vadd.f32 %v3184, 0.0
        %v3246 = vadd.f32 %v3185, 0.0
        %v3247 = vadd.f32 %v3186, 0.0
        %v3248 = vadd.f32 %v3187, 0.0
        %v3249 = vadd.f32 %v3188, 0.0
        %v3250 = vadd.f32 %v3189, 0.0
        %v3251 = vadd.f32 %v3190, 0.0
        %v3252 = vadd.f32 %v3191, 0.0
        %v3253 = vadd.f32 %v3192, 0.0
        %v3254 = vadd.f32 %v3193, 0.0
        %v3255 = vadd.f32 %v3194, 0.0
        %v3256 = vadd.f32 %v3195, 0.0
        %v3257 = vadd.f32 %v3196, 0.0
        %v3258 = vadd.f32 %v3197, 0.0
        %v3259 = vadd.f32 %v3198, 0.0
        %v3260 = vadd.f32 %v3199, 0.0
        %v3261 = vadd.f32 %v3200, 0.0
        %v3262 = vadd.f32 %v3201, 0.0
        %v3263 = vadd.f32 %v3202, 0.0
        %v3264 = vadd.f32 %v3203, 0.0
        %v3265 = vadd.f32 %v3204, 0.0
        %v3266 = vadd.f32 %v3205, 0.0
        %v3267 = vadd.f32 %v3206, 0.0
        %v3268 = vadd.f32 %v3207, 0.0
        %v3269 = vadd.f32 %v3208, 0.0
        %v3270 = vadd.f32 %v3209, 0.0
        %v3271 = vadd.f32 %v3210, 0.0
        %v3272 = vadd.f32 %v3211, 0.0
        %v3273 = vadd.f32 %v3212, 0.0
        %v3274 = vadd.f32 %v3213, 0.0
        %v3275 = vadd.f32 %v3214, 0.0
        %v3276 = vadd.f32 %v3215, 0.0
        %v3277 = vadd.f32 %v3216, 0.0
        %v3278 = vadd.f32 %v3217, 0.0
        %v3279 = vadd.f32 %v3218, 0.0
        %v3280 = vadd.f32 %v3219, 0.0
        %v3281 = vadd.f32 %v3220, 0.0
        %v3282 = vadd.f32 %v3221, 0.0
        %v3283 = vadd.f32 %v3222, 0.0
        %v3284 = vadd.f32 %v3223, 0.0
        %v3285 = vadd.f32 %v3224, 0.0
        %v3286 = vadd.f32 %v3225, 0.0
        %v3287 = vperm.slane %v2958, 3
        %v3288 = vmul.f32 %v3100, %v3287
        %v3289 = vmul.f32 %v3101, %v3287
        %v3290 = vmul.f32 %v3102, %v3287
        %v3291 = vmul.f32 %v3103, %v3287
        %v3292 = vmul.f32 %v3104, %v3287
        %v3293 = vmul.f32 %v3105, %v3287
        %v3294 = vmul.f32 %v3106, %v3287
        %v3295 = vmul.f32 %v3107, %v3287
        %v3296 = vmul.f32 %v3108, %v3287
        %v3297 = vmul.f32 %v3109, %v3287
        %v3298 = vmul.f32 %v3110, %v3287
        %v3299 = vmul.f32 %v3111, %v3287
        %v3300 = vmul.f32 %v3112, %v3287
        %v3301 = vmul.f32 %v3113, %v3287
        %v3302 = vmul.f32 %v3114, %v3287
        %v3303 = vmul.f32 %v3115, %v3287
        %v3304 = vmul.f32 %v3116, %v3287
        %v3305 = vmul.f32 %v3117, %v3287
        %v3306 = vmul.f32 %v3118, %v3287
        %v3307 = vmul.f32 %v3119, %v3287
        %v3308 = vmul.f32 %v3120, %v3287
        %v3309 = vmul.f32 %v3121, %v3287
        %v3310 = vmul.f32 %v3122, %v3287
        %v3311 = vmul.f32 %v3123, %v3287
        %v3312 = vmul.f32 %v3124, %v3287
        %v3313 = vmul.f32 %v3125, %v3287
        %v3314 = vmul.f32 %v3126, %v3287
        %v3315 = vmul.f32 %v3127, %v3287
        %v3316 = vmul.f32 %v3128, %v3287
        %v3317 = vmul.f32 %v3129, %v3287
        %v3318 = vmul.f32 %v3130, %v3287
        %v3319 = vmul.f32 %v3131, %v3287
        %v3320 = vmul.f32 %v3132, %v3287
        %v3321 = vmul.f32 %v3133, %v3287
        %v3322 = vmul.f32 %v3134, %v3287
        %v3323 = vmul.f32 %v3135, %v3287
        %v3324 = vmul.f32 %v3136, %v3287
        %v3325 = vmul.f32 %v3137, %v3287
        %v3326 = vmul.f32 %v3138, %v3287
        %v3327 = vmul.f32 %v3139, %v3287
        %v3328 = vmul.f32 %v3140, %v3287
        %v3329 = vmul.f32 %v3141, %v3287
        %v3330 = vmul.f32 %v3142, %v3287
        %v3331 = vmul.f32 %v3143, %v3287
        %v3332 = vmul.f32 %v3144, %v3287
        %v3333 = vmul.f32 %v3145, %v3287
        %v3334 = vmul.f32 %v3146, %v3287
        %v3335 = vmul.f32 %v3147, %v3287
        %v3336 = vmul.f32 %v3148, %v3287
        %v3337 = vmul.f32 %v3149, %v3287
        %v3338 = vmul.f32 %v3150, %v3287
        %v3339 = vmul.f32 %v3151, %v3287
        %v3340 = vmul.f32 %v3152, %v3287
        %v3341 = vmul.f32 %v3153, %v3287
        %v3342 = vmul.f32 %v3154, %v3287
        %v3343 = vmul.f32 %v3155, %v3287
        %v3344 = vmul.f32 %v3156, %v3287
        %v3345 = vmul.f32 %v3157, %v3287
        %v3346 = vmul.f32 %v3158, %v3287
        %v3347 = vmul.f32 %v3159, %v3287
        %v3348 = vmul.f32 %v3160, %v3287
        %v3349 = vmul.f32 %v3161, %v3287
        %v3350 = vmul.f32 %v3162, %v3287
        %v3351 = vmul.f32 %v3163, %v3287
        %v3352 = vadd.f32 %v3226, %v3288
        %v3353 = vadd.f32 %v3226, %v3289
        %v3354 = vadd.f32 %v3227, %v3290
        %v3355 = vadd.f32 %v3228, %v3291
        %v3356 = vadd.f32 %v3229, %v3292
        %v3357 = vadd.f32 %v3230, %v3293
        %v3358 = vadd.f32 %v3231, %v3294
        %v3359 = vadd.f32 %v3232, %v3295
        %v3360 = vadd.f32 %v3233, %v3296
        %v3361 = vadd.f32 %v3234, %v3297
        %v3362 = vadd.f32 %v3235, %v3298
        %v3363 = vadd.f32 %v3236, %v3299
        %v3364 = vadd.f32 %v3237, %v3300
        %v3365 = vadd.f32 %v3238, %v3301
        %v3366 = vadd.f32 %v3239, %v3302
        %v3367 = vadd.f32 %v3240, %v3303
        %v3368 = vadd.f32 %v3241, %v3304
        %v3369 = vadd.f32 %v3242, %v3305
        %v3370 = vadd.f32 %v3243, %v3306
        %v3371 = vadd.f32 %v3244, %v3307
        %v3372 = vadd.f32 %v3245, %v3308
        %v3373 = vadd.f32 %v3246, %v3309
        %v3374 = vadd.f32 %v3247, %v3310
        %v3375 = vadd.f32 %v3248, %v3311
        %v3376 = vadd.f32 %v3249, %v3312
        %v3377 = vadd.f32 %v3250, %v3313
        %v3378 = vadd.f32 %v3251, %v3314
        %v3379 = vadd.f32 %v3252, %v3315
        %v3380 = vadd.f32 %v3253, %v3316
        %v3381 = vadd.f32 %v3254, %v3317
        %v3382 = vadd.f32 %v3255, %v3318
        %v3383 = vadd.f32 %v3256, %v3319
        %v3384 = vadd.f32 %v3226, %v3320
        %v3385 = vadd.f32 %v3226, %v3321
        %v3386 = vadd.f32 %v3257, %v3322
        %v3387 = vadd.f32 %v3258, %v3323
        %v3388 = vadd.f32 %v3259, %v3324
        %v3389 = vadd.f32 %v3260, %v3325
        %v3390 = vadd.f32 %v3261, %v3326
        %v3391 = vadd.f32 %v3262, %v3327
        %v3392 = vadd.f32 %v3263, %v3328
        %v3393 = vadd.f32 %v3264, %v3329
        %v3394 = vadd.f32 %v3265, %v3330
        %v3395 = vadd.f32 %v3266, %v3331
        %v3396 = vadd.f32 %v3267, %v3332
        %v3397 = vadd.f32 %v3268, %v3333
        %v3398 = vadd.f32 %v3269, %v3334
        %v3399 = vadd.f32 %v3270, %v3335
        %v3400 = vadd.f32 %v3271, %v3336
        %v3401 = vadd.f32 %v3272, %v3337
        %v3402 = vadd.f32 %v3273, %v3338
        %v3403 = vadd.f32 %v3274, %v3339
        %v3404 = vadd.f32 %v3275, %v3340
        %v3405 = vadd.f32 %v3276, %v3341
        %v3406 = vadd.f32 %v3277, %v3342
        %v3407 = vadd.f32 %v3278, %v3343
        %v3408 = vadd.f32 %v3279, %v3344
        %v3409 = vadd.f32 %v3280, %v3345
        %v3410 = vadd.f32 %v3281, %v3346
        %v3411 = vadd.f32 %v3282, %v3347
        %v3412 = vadd.f32 %v3283, %v3348
        %v3413 = vadd.f32 %v3284, %v3349
        %v3414 = vadd.f32 %v3285, %v3350
        %v3415 = vadd.f32 %v3286, %v3351
        %v3416 = vperm.slane %v2958, 6
        %v3417 = vmul.f32 %v3102, %v3416
        %v3418 = vmul.f32 %v3103, %v3416
        %v3419 = vmul.f32 %v3104, %v3416
        %v3420 = vmul.f32 %v3105, %v3416
        %v3421 = vmul.f32 %v3106, %v3416
        %v3422 = vmul.f32 %v3107, %v3416
        %v3423 = vmul.f32 %v3108, %v3416
        %v3424 = vmul.f32 %v3109, %v3416
        %v3425 = vmul.f32 %v3110, %v3416
        %v3426 = vmul.f32 %v3111, %v3416
        %v3427 = vmul.f32 %v3112, %v3416
        %v3428 = vmul.f32 %v3113, %v3416
        %v3429 = vmul.f32 %v3114, %v3416
        %v3430 = vmul.f32 %v3115, %v3416
        %v3431 = vmul.f32 %v3116, %v3416
        %v3432 = vmul.f32 %v3117, %v3416
        %v3433 = vmul.f32 %v3118, %v3416
        %v3434 = vmul.f32 %v3119, %v3416
        %v3435 = vmul.f32 %v3120, %v3416
        %v3436 = vmul.f32 %v3121, %v3416
        %v3437 = vmul.f32 %v3122, %v3416
        %v3438 = vmul.f32 %v3123, %v3416
        %v3439 = vmul.f32 %v3124, %v3416
        %v3440 = vmul.f32 %v3125, %v3416
        %v3441 = vmul.f32 %v3126, %v3416
        %v3442 = vmul.f32 %v3127, %v3416
        %v3443 = vmul.f32 %v3128, %v3416
        %v3444 = vmul.f32 %v3129, %v3416
        %v3445 = vmul.f32 %v3130, %v3416
        %v3446 = vmul.f32 %v3131, %v3416
        %v3447 = vmul.f32 %v3416, 0.0
        %v3448 = vmul.f32 %v3134, %v3416
        %v3449 = vmul.f32 %v3135, %v3416
        %v3450 = vmul.f32 %v3136, %v3416
        %v3451 = vmul.f32 %v3137, %v3416
        %v3452 = vmul.f32 %v3138, %v3416
        %v3453 = vmul.f32 %v3139, %v3416
        %v3454 = vmul.f32 %v3140, %v3416
        %v3455 = vmul.f32 %v3141, %v3416
        %v3456 = vmul.f32 %v3142, %v3416
        %v3457 = vmul.f32 %v3143, %v3416
        %v3458 = vmul.f32 %v3144, %v3416
        %v3459 = vmul.f32 %v3145, %v3416
        %v3460 = vmul.f32 %v3146, %v3416
        %v3461 = vmul.f32 %v3147, %v3416
        %v3462 = vmul.f32 %v3148, %v3416
        %v3463 = vmul.f32 %v3149, %v3416
        %v3464 = vmul.f32 %v3150, %v3416
        %v3465 = vmul.f32 %v3151, %v3416
        %v3466 = vmul.f32 %v3152, %v3416
        %v3467 = vmul.f32 %v3153, %v3416
        %v3468 = vmul.f32 %v3154, %v3416
        %v3469 = vmul.f32 %v3155, %v3416
        %v3470 = vmul.f32 %v3156, %v3416
        %v3471 = vmul.f32 %v3157, %v3416
        %v3472 = vmul.f32 %v3158, %v3416
        %v3473 = vmul.f32 %v3159, %v3416
        %v3474 = vmul.f32 %v3160, %v3416
        %v3475 = vmul.f32 %v3161, %v3416
        %v3476 = vmul.f32 %v3162, %v3416
        %v3477 = vmul.f32 %v3163, %v3416
        %v3478 = vadd.f32 %v3352, %v3417
        %v3479 = vadd.f32 %v3353, %v3418
        %v3480 = vadd.f32 %v3354, %v3419
        %v3481 = vadd.f32 %v3355, %v3420
        %v3482 = vadd.f32 %v3356, %v3421
        %v3483 = vadd.f32 %v3357, %v3422
        %v3484 = vadd.f32 %v3358, %v3423
        %v3485 = vadd.f32 %v3359, %v3424
        %v3486 = vadd.f32 %v3360, %v3425
        %v3487 = vadd.f32 %v3361, %v3426
        %v3488 = vadd.f32 %v3362, %v3427
        %v3489 = vadd.f32 %v3363, %v3428
        %v3490 = vadd.f32 %v3364, %v3429
        %v3491 = vadd.f32 %v3365, %v3430
        %v3492 = vadd.f32 %v3366, %v3431
        %v3493 = vadd.f32 %v3367, %v3432
        %v3494 = vadd.f32 %v3368, %v3433
        %v3495 = vadd.f32 %v3369, %v3434
        %v3496 = vadd.f32 %v3370, %v3435
        %v3497 = vadd.f32 %v3371, %v3436
        %v3498 = vadd.f32 %v3372, %v3437
        %v3499 = vadd.f32 %v3373, %v3438
        %v3500 = vadd.f32 %v3374, %v3439
        %v3501 = vadd.f32 %v3375, %v3440
        %v3502 = vadd.f32 %v3376, %v3441
        %v3503 = vadd.f32 %v3377, %v3442
        %v3504 = vadd.f32 %v3378, %v3443
        %v3505 = vadd.f32 %v3379, %v3444
        %v3506 = vadd.f32 %v3380, %v3445
        %v3507 = vadd.f32 %v3381, %v3446
        %v3508 = vadd.f32 %v3382, %v3447
        %v3509 = vadd.f32 %v3383, %v3447
        %v3510 = vadd.f32 %v3384, %v3448
        %v3511 = vadd.f32 %v3385, %v3449
        %v3512 = vadd.f32 %v3386, %v3450
        %v3513 = vadd.f32 %v3387, %v3451
        %v3514 = vadd.f32 %v3388, %v3452
        %v3515 = vadd.f32 %v3389, %v3453
        %v3516 = vadd.f32 %v3390, %v3454
        %v3517 = vadd.f32 %v3391, %v3455
        %v3518 = vadd.f32 %v3392, %v3456
        %v3519 = vadd.f32 %v3393, %v3457
        %v3520 = vadd.f32 %v3394, %v3458
        %v3521 = vadd.f32 %v3395, %v3459
        %v3522 = vadd.f32 %v3396, %v3460
        %v3523 = vadd.f32 %v3397, %v3461
        %v3524 = vadd.f32 %v3398, %v3462
        %v3525 = vadd.f32 %v3399, %v3463
        %v3526 = vadd.f32 %v3400, %v3464
        %v3527 = vadd.f32 %v3401, %v3465
        %v3528 = vadd.f32 %v3402, %v3466
        %v3529 = vadd.f32 %v3403, %v3467
        %v3530 = vadd.f32 %v3404, %v3468
        %v3531 = vadd.f32 %v3405, %v3469
        %v3532 = vadd.f32 %v3406, %v3470
        %v3533 = vadd.f32 %v3407, %v3471
        %v3534 = vadd.f32 %v3408, %v3472
        %v3535 = vadd.f32 %v3409, %v3473
        %v3536 = vadd.f32 %v3410, %v3474
        %v3537 = vadd.f32 %v3411, %v3475
        %v3538 = vadd.f32 %v3412, %v3476
        %v3539 = vadd.f32 %v3413, %v3477
        %v3540 = vadd.f32 %v3414, %v3447
        %v3541 = vadd.f32 %v3415, %v3447
        %v3542 = vperm.slane %v2958, 1
        %v3543 = vmul.f32 %v3542, 0.0
        %v3544 = vmul.f32 %v2894, %v3542
        %v3545 = vmul.f32 %v2895, %v3542
        %v3546 = vmul.f32 %v2896, %v3542
        %v3547 = vmul.f32 %v2897, %v3542
        %v3548 = vmul.f32 %v2898, %v3542
        %v3549 = vmul.f32 %v2899, %v3542
        %v3550 = vmul.f32 %v2900, %v3542
        %v3551 = vmul.f32 %v2901, %v3542
        %v3552 = vmul.f32 %v2902, %v3542
        %v3553 = vmul.f32 %v2903, %v3542
        %v3554 = vmul.f32 %v2904, %v3542
        %v3555 = vmul.f32 %v2905, %v3542
        %v3556 = vmul.f32 %v2906, %v3542
        %v3557 = vmul.f32 %v2907, %v3542
        %v3558 = vmul.f32 %v2908, %v3542
        %v3559 = vmul.f32 %v2909, %v3542
        %v3560 = vmul.f32 %v2910, %v3542
        %v3561 = vmul.f32 %v2911, %v3542
        %v3562 = vmul.f32 %v2912, %v3542
        %v3563 = vmul.f32 %v2913, %v3542
        %v3564 = vmul.f32 %v2914, %v3542
        %v3565 = vmul.f32 %v2915, %v3542
        %v3566 = vmul.f32 %v2916, %v3542
        %v3567 = vmul.f32 %v2917, %v3542
        %v3568 = vmul.f32 %v2918, %v3542
        %v3569 = vmul.f32 %v2919, %v3542
        %v3570 = vmul.f32 %v2920, %v3542
        %v3571 = vmul.f32 %v2921, %v3542
        %v3572 = vmul.f32 %v2922, %v3542
        %v3573 = vmul.f32 %v2923, %v3542
        %v3574 = vmul.f32 %v2926, %v3542
        %v3575 = vmul.f32 %v2927, %v3542
        %v3576 = vmul.f32 %v2928, %v3542
        %v3577 = vmul.f32 %v2929, %v3542
        %v3578 = vmul.f32 %v2930, %v3542
        %v3579 = vmul.f32 %v2931, %v3542
        %v3580 = vmul.f32 %v2932, %v3542
        %v3581 = vmul.f32 %v2933, %v3542
        %v3582 = vmul.f32 %v2934, %v3542
        %v3583 = vmul.f32 %v2935, %v3542
        %v3584 = vmul.f32 %v2936, %v3542
        %v3585 = vmul.f32 %v2937, %v3542
        %v3586 = vmul.f32 %v2938, %v3542
        %v3587 = vmul.f32 %v2939, %v3542
        %v3588 = vmul.f32 %v2940, %v3542
        %v3589 = vmul.f32 %v2941, %v3542
        %v3590 = vmul.f32 %v2942, %v3542
        %v3591 = vmul.f32 %v2943, %v3542
        %v3592 = vmul.f32 %v2944, %v3542
        %v3593 = vmul.f32 %v2945, %v3542
        %v3594 = vmul.f32 %v2946, %v3542
        %v3595 = vmul.f32 %v2947, %v3542
        %v3596 = vmul.f32 %v2948, %v3542
        %v3597 = vmul.f32 %v2949, %v3542
        %v3598 = vmul.f32 %v2950, %v3542
        %v3599 = vmul.f32 %v2951, %v3542
        %v3600 = vmul.f32 %v2952, %v3542
        %v3601 = vmul.f32 %v2953, %v3542
        %v3602 = vmul.f32 %v2954, %v3542
        %v3603 = vmul.f32 %v2955, %v3542
        %v3604 = vadd.f32 %v3478, %v3543
        %v3605 = vadd.f32 %v3479, %v3543
        %v3606 = vadd.f32 %v3480, %v3544
        %v3607 = vadd.f32 %v3481, %v3545
        %v3608 = vadd.f32 %v3482, %v3546
        %v3609 = vadd.f32 %v3483, %v3547
        %v3610 = vadd.f32 %v3484, %v3548
        %v3611 = vadd.f32 %v3485, %v3549
        %v3612 = vadd.f32 %v3486, %v3550
        %v3613 = vadd.f32 %v3487, %v3551
        %v3614 = vadd.f32 %v3488, %v3552
        %v3615 = vadd.f32 %v3489, %v3553
        %v3616 = vadd.f32 %v3490, %v3554
        %v3617 = vadd.f32 %v3491, %v3555
        %v3618 = vadd.f32 %v3492, %v3556
        %v3619 = vadd.f32 %v3493, %v3557
        %v3620 = vadd.f32 %v3494, %v3558
        %v3621 = vadd.f32 %v3495, %v3559
        %v3622 = vadd.f32 %v3496, %v3560
        %v3623 = vadd.f32 %v3497, %v3561
        %v3624 = vadd.f32 %v3498, %v3562
        %v3625 = vadd.f32 %v3499, %v3563
        %v3626 = vadd.f32 %v3500, %v3564
        %v3627 = vadd.f32 %v3501, %v3565
        %v3628 = vadd.f32 %v3502, %v3566
        %v3629 = vadd.f32 %v3503, %v3567
        %v3630 = vadd.f32 %v3504, %v3568
        %v3631 = vadd.f32 %v3505, %v3569
        %v3632 = vadd.f32 %v3506, %v3570
        %v3633 = vadd.f32 %v3507, %v3571
        %v3634 = vadd.f32 %v3508, %v3572
        %v3635 = vadd.f32 %v3509, %v3573
        %v3636 = vadd.f32 %v3510, %v3543
        %v3637 = vadd.f32 %v3511, %v3543
        %v3638 = vadd.f32 %v3512, %v3574
        %v3639 = vadd.f32 %v3513, %v3575
        %v3640 = vadd.f32 %v3514, %v3576
        %v3641 = vadd.f32 %v3515, %v3577
        %v3642 = vadd.f32 %v3516, %v3578
        %v3643 = vadd.f32 %v3517, %v3579
        %v3644 = vadd.f32 %v3518, %v3580
        %v3645 = vadd.f32 %v3519, %v3581
        %v3646 = vadd.f32 %v3520, %v3582
        %v3647 = vadd.f32 %v3521, %v3583
        %v3648 = vadd.f32 %v3522, %v3584
        %v3649 = vadd.f32 %v3523, %v3585
        %v3650 = vadd.f32 %v3524, %v3586
        %v3651 = vadd.f32 %v3525, %v3587
        %v3652 = vadd.f32 %v3526, %v3588
        %v3653 = vadd.f32 %v3527, %v3589
        %v3654 = vadd.f32 %v3528, %v3590
        %v3655 = vadd.f32 %v3529, %v3591
        %v3656 = vadd.f32 %v3530, %v3592
        %v3657 = vadd.f32 %v3531, %v3593
        %v3658 = vadd.f32 %v3532, %v3594
        %v3659 = vadd.f32 %v3533, %v3595
        %v3660 = vadd.f32 %v3534, %v3596
        %v3661 = vadd.f32 %v3535, %v3597
        %v3662 = vadd.f32 %v3536, %v3598
        %v3663 = vadd.f32 %v3537, %v3599
        %v3664 = vadd.f32 %v3538, %v3600
        %v3665 = vadd.f32 %v3539, %v3601
        %v3666 = vadd.f32 %v3540, %v3602
        %v3667 = vadd.f32 %v3541, %v3603
        %v3668 = vperm.slane %v2958, 4
        %v3669 = vmul.f32 %v2894, %v3668
        %v3670 = vmul.f32 %v2895, %v3668
        %v3671 = vmul.f32 %v2896, %v3668
        %v3672 = vmul.f32 %v2897, %v3668
        %v3673 = vmul.f32 %v2898, %v3668
        %v3674 = vmul.f32 %v2899, %v3668
        %v3675 = vmul.f32 %v2900, %v3668
        %v3676 = vmul.f32 %v2901, %v3668
        %v3677 = vmul.f32 %v2902, %v3668
        %v3678 = vmul.f32 %v2903, %v3668
        %v3679 = vmul.f32 %v2904, %v3668
        %v3680 = vmul.f32 %v2905, %v3668
        %v3681 = vmul.f32 %v2906, %v3668
        %v3682 = vmul.f32 %v2907, %v3668
        %v3683 = vmul.f32 %v2908, %v3668
        %v3684 = vmul.f32 %v2909, %v3668
        %v3685 = vmul.f32 %v2910, %v3668
        %v3686 = vmul.f32 %v2911, %v3668
        %v3687 = vmul.f32 %v2912, %v3668
        %v3688 = vmul.f32 %v2913, %v3668
        %v3689 = vmul.f32 %v2914, %v3668
        %v3690 = vmul.f32 %v2915, %v3668
        %v3691 = vmul.f32 %v2916, %v3668
        %v3692 = vmul.f32 %v2917, %v3668
        %v3693 = vmul.f32 %v2918, %v3668
        %v3694 = vmul.f32 %v2919, %v3668
        %v3695 = vmul.f32 %v2920, %v3668
        %v3696 = vmul.f32 %v2921, %v3668
        %v3697 = vmul.f32 %v2922, %v3668
        %v3698 = vmul.f32 %v2923, %v3668
        %v3699 = vmul.f32 %v2924, %v3668
        %v3700 = vmul.f32 %v2925, %v3668
        %v3701 = vmul.f32 %v2926, %v3668
        %v3702 = vmul.f32 %v2927, %v3668
        %v3703 = vmul.f32 %v2928, %v3668
        %v3704 = vmul.f32 %v2929, %v3668
        %v3705 = vmul.f32 %v2930, %v3668
        %v3706 = vmul.f32 %v2931, %v3668
        %v3707 = vmul.f32 %v2932, %v3668
        %v3708 = vmul.f32 %v2933, %v3668
        %v3709 = vmul.f32 %v2934, %v3668
        %v3710 = vmul.f32 %v2935, %v3668
        %v3711 = vmul.f32 %v2936, %v3668
        %v3712 = vmul.f32 %v2937, %v3668
        %v3713 = vmul.f32 %v2938, %v3668
        %v3714 = vmul.f32 %v2939, %v3668
        %v3715 = vmul.f32 %v2940, %v3668
        %v3716 = vmul.f32 %v2941, %v3668
        %v3717 = vmul.f32 %v2942, %v3668
        %v3718 = vmul.f32 %v2943, %v3668
        %v3719 = vmul.f32 %v2944, %v3668
        %v3720 = vmul.f32 %v2945, %v3668
        %v3721 = vmul.f32 %v2946, %v3668
        %v3722 = vmul.f32 %v2947, %v3668
        %v3723 = vmul.f32 %v2948, %v3668
        %v3724 = vmul.f32 %v2949, %v3668
        %v3725 = vmul.f32 %v2950, %v3668
        %v3726 = vmul.f32 %v2951, %v3668
        %v3727 = vmul.f32 %v2952, %v3668
        %v3728 = vmul.f32 %v2953, %v3668
        %v3729 = vmul.f32 %v2954, %v3668
        %v3730 = vmul.f32 %v2955, %v3668
        %v3731 = vmul.f32 %v2956, %v3668
        %v3732 = vmul.f32 %v2957, %v3668
        %v3733 = vadd.f32 %v3604, %v3669
        %v3734 = vadd.f32 %v3605, %v3670
        %v3735 = vadd.f32 %v3606, %v3671
        %v3736 = vadd.f32 %v3607, %v3672
        %v3737 = vadd.f32 %v3608, %v3673
        %v3738 = vadd.f32 %v3609, %v3674
        %v3739 = vadd.f32 %v3610, %v3675
        %v3740 = vadd.f32 %v3611, %v3676
        %v3741 = vadd.f32 %v3612, %v3677
        %v3742 = vadd.f32 %v3613, %v3678
        %v3743 = vadd.f32 %v3614, %v3679
        %v3744 = vadd.f32 %v3615, %v3680
        %v3745 = vadd.f32 %v3616, %v3681
        %v3746 = vadd.f32 %v3617, %v3682
        %v3747 = vadd.f32 %v3618, %v3683
        %v3748 = vadd.f32 %v3619, %v3684
        %v3749 = vadd.f32 %v3620, %v3685
        %v3750 = vadd.f32 %v3621, %v3686
        %v3751 = vadd.f32 %v3622, %v3687
        %v3752 = vadd.f32 %v3623, %v3688
        %v3753 = vadd.f32 %v3624, %v3689
        %v3754 = vadd.f32 %v3625, %v3690
        %v3755 = vadd.f32 %v3626, %v3691
        %v3756 = vadd.f32 %v3627, %v3692
        %v3757 = vadd.f32 %v3628, %v3693
        %v3758 = vadd.f32 %v3629, %v3694
        %v3759 = vadd.f32 %v3630, %v3695
        %v3760 = vadd.f32 %v3631, %v3696
        %v3761 = vadd.f32 %v3632, %v3697
        %v3762 = vadd.f32 %v3633, %v3698
        %v3763 = vadd.f32 %v3634, %v3699
        %v3764 = vadd.f32 %v3635, %v3700
        %v3765 = vadd.f32 %v3636, %v3701
        %v3766 = vadd.f32 %v3637, %v3702
        %v3767 = vadd.f32 %v3638, %v3703
        %v3768 = vadd.f32 %v3639, %v3704
        %v3769 = vadd.f32 %v3640, %v3705
        %v3770 = vadd.f32 %v3641, %v3706
        %v3771 = vadd.f32 %v3642, %v3707
        %v3772 = vadd.f32 %v3643, %v3708
        %v3773 = vadd.f32 %v3644, %v3709
        %v3774 = vadd.f32 %v3645, %v3710
        %v3775 = vadd.f32 %v3646, %v3711
        %v3776 = vadd.f32 %v3647, %v3712
        %v3777 = vadd.f32 %v3648, %v3713
        %v3778 = vadd.f32 %v3649, %v3714
        %v3779 = vadd.f32 %v3650, %v3715
        %v3780 = vadd.f32 %v3651, %v3716
        %v3781 = vadd.f32 %v3652, %v3717
        %v3782 = vadd.f32 %v3653, %v3718
        %v3783 = vadd.f32 %v3654, %v3719
        %v3784 = vadd.f32 %v3655, %v3720
        %v3785 = vadd.f32 %v3656, %v3721
        %v3786 = vadd.f32 %v3657, %v3722
        %v3787 = vadd.f32 %v3658, %v3723
        %v3788 = vadd.f32 %v3659, %v3724
        %v3789 = vadd.f32 %v3660, %v3725
        %v3790 = vadd.f32 %v3661, %v3726
        %v3791 = vadd.f32 %v3662, %v3727
        %v3792 = vadd.f32 %v3663, %v3728
        %v3793 = vadd.f32 %v3664, %v3729
        %v3794 = vadd.f32 %v3665, %v3730
        %v3795 = vadd.f32 %v3666, %v3731
        %v3796 = vadd.f32 %v3667, %v3732
        %v3797 = vperm.slane %v2958, 7
        %v3798 = vmul.f32 %v2896, %v3797
        %v3799 = vmul.f32 %v2897, %v3797
        %v3800 = vmul.f32 %v2898, %v3797
        %v3801 = vmul.f32 %v2899, %v3797
        %v3802 = vmul.f32 %v2900, %v3797
        %v3803 = vmul.f32 %v2901, %v3797
        %v3804 = vmul.f32 %v2902, %v3797
        %v3805 = vmul.f32 %v2903, %v3797
        %v3806 = vmul.f32 %v2904, %v3797
        %v3807 = vmul.f32 %v2905, %v3797
        %v3808 = vmul.f32 %v2906, %v3797
        %v3809 = vmul.f32 %v2907, %v3797
        %v3810 = vmul.f32 %v2908, %v3797
        %v3811 = vmul.f32 %v2909, %v3797
        %v3812 = vmul.f32 %v2910, %v3797
        %v3813 = vmul.f32 %v2911, %v3797
        %v3814 = vmul.f32 %v2912, %v3797
        %v3815 = vmul.f32 %v2913, %v3797
        %v3816 = vmul.f32 %v2914, %v3797
        %v3817 = vmul.f32 %v2915, %v3797
        %v3818 = vmul.f32 %v2916, %v3797
        %v3819 = vmul.f32 %v2917, %v3797
        %v3820 = vmul.f32 %v2918, %v3797
        %v3821 = vmul.f32 %v2919, %v3797
        %v3822 = vmul.f32 %v2920, %v3797
        %v3823 = vmul.f32 %v2921, %v3797
        %v3824 = vmul.f32 %v2922, %v3797
        %v3825 = vmul.f32 %v2923, %v3797
        %v3826 = vmul.f32 %v2924, %v3797
        %v3827 = vmul.f32 %v2925, %v3797
        %v3828 = vmul.f32 %v3797, 0.0
        %v3829 = vmul.f32 %v2928, %v3797
        %v3830 = vmul.f32 %v2929, %v3797
        %v3831 = vmul.f32 %v2930, %v3797
        %v3832 = vmul.f32 %v2931, %v3797
        %v3833 = vmul.f32 %v2932, %v3797
        %v3834 = vmul.f32 %v2933, %v3797
        %v3835 = vmul.f32 %v2934, %v3797
        %v3836 = vmul.f32 %v2935, %v3797
        %v3837 = vmul.f32 %v2936, %v3797
        %v3838 = vmul.f32 %v2937, %v3797
        %v3839 = vmul.f32 %v2938, %v3797
        %v3840 = vmul.f32 %v2939, %v3797
        %v3841 = vmul.f32 %v2940, %v3797
        %v3842 = vmul.f32 %v2941, %v3797
        %v3843 = vmul.f32 %v2942, %v3797
        %v3844 = vmul.f32 %v2943, %v3797
        %v3845 = vmul.f32 %v2944, %v3797
        %v3846 = vmul.f32 %v2945, %v3797
        %v3847 = vmul.f32 %v2946, %v3797
        %v3848 = vmul.f32 %v2947, %v3797
        %v3849 = vmul.f32 %v2948, %v3797
        %v3850 = vmul.f32 %v2949, %v3797
        %v3851 = vmul.f32 %v2950, %v3797
        %v3852 = vmul.f32 %v2951, %v3797
        %v3853 = vmul.f32 %v2952, %v3797
        %v3854 = vmul.f32 %v2953, %v3797
        %v3855 = vmul.f32 %v2954, %v3797
        %v3856 = vmul.f32 %v2955, %v3797
        %v3857 = vmul.f32 %v2956, %v3797
        %v3858 = vmul.f32 %v2957, %v3797
        %v3859 = vadd.f32 %v3733, %v3798
        %v3860 = vadd.f32 %v3734, %v3799
        %v3861 = vadd.f32 %v3735, %v3800
        %v3862 = vadd.f32 %v3736, %v3801
        %v3863 = vadd.f32 %v3737, %v3802
        %v3864 = vadd.f32 %v3738, %v3803
        %v3865 = vadd.f32 %v3739, %v3804
        %v3866 = vadd.f32 %v3740, %v3805
        %v3867 = vadd.f32 %v3741, %v3806
        %v3868 = vadd.f32 %v3742, %v3807
        %v3869 = vadd.f32 %v3743, %v3808
        %v3870 = vadd.f32 %v3744, %v3809
        %v3871 = vadd.f32 %v3745, %v3810
        %v3872 = vadd.f32 %v3746, %v3811
        %v3873 = vadd.f32 %v3747, %v3812
        %v3874 = vadd.f32 %v3748, %v3813
        %v3875 = vadd.f32 %v3749, %v3814
        %v3876 = vadd.f32 %v3750, %v3815
        %v3877 = vadd.f32 %v3751, %v3816
        %v3878 = vadd.f32 %v3752, %v3817
        %v3879 = vadd.f32 %v3753, %v3818
        %v3880 = vadd.f32 %v3754, %v3819
        %v3881 = vadd.f32 %v3755, %v3820
        %v3882 = vadd.f32 %v3756, %v3821
        %v3883 = vadd.f32 %v3757, %v3822
        %v3884 = vadd.f32 %v3758, %v3823
        %v3885 = vadd.f32 %v3759, %v3824
        %v3886 = vadd.f32 %v3760, %v3825
        %v3887 = vadd.f32 %v3761, %v3826
        %v3888 = vadd.f32 %v3762, %v3827
        %v3889 = vadd.f32 %v3763, %v3828
        %v3890 = vadd.f32 %v3764, %v3828
        %v3891 = vadd.f32 %v3765, %v3829
        %v3892 = vadd.f32 %v3766, %v3830
        %v3893 = vadd.f32 %v3767, %v3831
        %v3894 = vadd.f32 %v3768, %v3832
        %v3895 = vadd.f32 %v3769, %v3833
        %v3896 = vadd.f32 %v3770, %v3834
        %v3897 = vadd.f32 %v3771, %v3835
        %v3898 = vadd.f32 %v3772, %v3836
        %v3899 = vadd.f32 %v3773, %v3837
        %v3900 = vadd.f32 %v3774, %v3838
        %v3901 = vadd.f32 %v3775, %v3839
        %v3902 = vadd.f32 %v3776, %v3840
        %v3903 = vadd.f32 %v3777, %v3841
        %v3904 = vadd.f32 %v3778, %v3842
        %v3905 = vadd.f32 %v3779, %v3843
        %v3906 = vadd.f32 %v3780, %v3844
        %v3907 = vadd.f32 %v3781, %v3845
        %v3908 = vadd.f32 %v3782, %v3846
        %v3909 = vadd.f32 %v3783, %v3847
        %v3910 = vadd.f32 %v3784, %v3848
        %v3911 = vadd.f32 %v3785, %v3849
        %v3912 = vadd.f32 %v3786, %v3850
        %v3913 = vadd.f32 %v3787, %v3851
        %v3914 = vadd.f32 %v3788, %v3852
        %v3915 = vadd.f32 %v3789, %v3853
        %v3916 = vadd.f32 %v3790, %v3854
        %v3917 = vadd.f32 %v3791, %v3855
        %v3918 = vadd.f32 %v3792, %v3856
        %v3919 = vadd.f32 %v3793, %v3857
        %v3920 = vadd.f32 %v3794, %v3858
        %v3921 = vadd.f32 %v3795, %v3828
        %v3922 = vadd.f32 %v3796, %v3828
        %v3923 = vrot.slane %v2894, 1
        %v3924 = vrot.slane %v2896, 1
        %v3925 = vrot.slane %v2898, 1
        %v3926 = vrot.slane %v2900, 1
        %v3927 = vrot.slane %v2902, 1
        %v3928 = vrot.slane %v2904, 1
        %v3929 = vrot.slane %v2906, 1
        %v3930 = vrot.slane %v2908, 1
        %v3931 = vrot.slane %v2910, 1
        %v3932 = vrot.slane %v2912, 1
        %v3933 = vrot.slane %v2914, 1
        %v3934 = vrot.slane %v2916, 1
        %v3935 = vrot.slane %v2918, 1
        %v3936 = vrot.slane %v2920, 1
        %v3937 = vrot.slane %v2922, 1
        %v3938 = vrot.slane %v2924, 1
        %v3939 = vrot.slane %v2926, 1
        %v3940 = vrot.slane %v2928, 1
        %v3941 = vrot.slane %v2930, 1
        %v3942 = vrot.slane %v2932, 1
        %v3943 = vrot.slane %v2934, 1
        %v3944 = vrot.slane %v2936, 1
        %v3945 = vrot.slane %v2938, 1
        %v3946 = vrot.slane %v2940, 1
        %v3947 = vrot.slane %v2942, 1
        %v3948 = vrot.slane %v2944, 1
        %v3949 = vrot.slane %v2946, 1
        %v3950 = vrot.slane %v2948, 1
        %v3951 = vrot.slane %v2950, 1
        %v3952 = vrot.slane %v2952, 1
        %v3953 = vrot.slane %v2954, 1
        %v3954 = vrot.slane %v2956, 1
        %v3955 = vrot.slane %v2895, 1
        %v3956 = vrot.slane %v2897, 1
        %v3957 = vrot.slane %v2899, 1
        %v3958 = vrot.slane %v2901, 1
        %v3959 = vrot.slane %v2903, 1
        %v3960 = vrot.slane %v2905, 1
        %v3961 = vrot.slane %v2907, 1
        %v3962 = vrot.slane %v2909, 1
        %v3963 = vrot.slane %v2911, 1
        %v3964 = vrot.slane %v2913, 1
        %v3965 = vrot.slane %v2915, 1
        %v3966 = vrot.slane %v2917, 1
        %v3967 = vrot.slane %v2919, 1
        %v3968 = vrot.slane %v2921, 1
        %v3969 = vrot.slane %v2923, 1
        %v3970 = vrot.slane %v2925, 1
        %v3971 = vrot.slane %v2927, 1
        %v3972 = vrot.slane %v2929, 1
        %v3973 = vrot.slane %v2931, 1
        %v3974 = vrot.slane %v2933, 1
        %v3975 = vrot.slane %v2935, 1
        %v3976 = vrot.slane %v2937, 1
        %v3977 = vrot.slane %v2939, 1
        %v3978 = vrot.slane %v2941, 1
        %v3979 = vrot.slane %v2943, 1
        %v3980 = vrot.slane %v2945, 1
        %v3981 = vrot.slane %v2947, 1
        %v3982 = vrot.slane %v2949, 1
        %v3983 = vrot.slane %v2951, 1
        %v3984 = vrot.slane %v2953, 1
        %v3985 = vrot.slane %v2955, 1
        %v3986 = vrot.slane %v2957, 1
        %v3987 = vsel %vm1770, %v3923, %v3955
        %v3988 = vsel %vm1770, %v3924, %v3956
        %v3989 = vsel %vm1770, %v3925, %v3957
        %v3990 = vsel %vm1770, %v3926, %v3958
        %v3991 = vsel %vm1770, %v3927, %v3959
        %v3992 = vsel %vm1770, %v3928, %v3960
        %v3993 = vsel %vm1770, %v3929, %v3961
        %v3994 = vsel %vm1770, %v3930, %v3962
        %v3995 = vsel %vm1770, %v3931, %v3963
        %v3996 = vsel %vm1770, %v3932, %v3964
        %v3997 = vsel %vm1770, %v3933, %v3965
        %v3998 = vsel %vm1770, %v3934, %v3966
        %v3999 = vsel %vm1770, %v3935, %v3967
        %v4000 = vsel %vm1770, %v3936, %v3968
        %v4001 = vsel %vm1770, %v3937, %v3969
        %v4002 = vsel %vm1770, %v3938, %v3970
        %v4003 = vsel %vm1770, %v3939, %v3971
        %v4004 = vsel %vm1770, %v3940, %v3972
        %v4005 = vsel %vm1770, %v3941, %v3973
        %v4006 = vsel %vm1770, %v3942, %v3974
        %v4007 = vsel %vm1770, %v3943, %v3975
        %v4008 = vsel %vm1770, %v3944, %v3976
        %v4009 = vsel %vm1770, %v3945, %v3977
        %v4010 = vsel %vm1770, %v3946, %v3978
        %v4011 = vsel %vm1770, %v3947, %v3979
        %v4012 = vsel %vm1770, %v3948, %v3980
        %v4013 = vsel %vm1770, %v3949, %v3981
        %v4014 = vsel %vm1770, %v3950, %v3982
        %v4015 = vsel %vm1770, %v3951, %v3983
        %v4016 = vsel %vm1770, %v3952, %v3984
        %v4017 = vsel %vm1770, %v3953, %v3985
        %v4018 = vsel %vm1770, %v3954, %v3986
        %v4019 = vsel %vm1770, %v3955, %v3923
        %v4020 = vsel %vm1770, %v3956, %v3924
        %v4021 = vsel %vm1770, %v3957, %v3925
        %v4022 = vsel %vm1770, %v3958, %v3926
        %v4023 = vsel %vm1770, %v3959, %v3927
        %v4024 = vsel %vm1770, %v3960, %v3928
        %v4025 = vsel %vm1770, %v3961, %v3929
        %v4026 = vsel %vm1770, %v3962, %v3930
        %v4027 = vsel %vm1770, %v3963, %v3931
        %v4028 = vsel %vm1770, %v3964, %v3932
        %v4029 = vsel %vm1770, %v3965, %v3933
        %v4030 = vsel %vm1770, %v3966, %v3934
        %v4031 = vsel %vm1770, %v3967, %v3935
        %v4032 = vsel %vm1770, %v3968, %v3936
        %v4033 = vsel %vm1770, %v3969, %v3937
        %v4034 = vsel %vm1770, %v3970, %v3938
        %v4035 = vsel %vm1770, %v3971, %v3939
        %v4036 = vsel %vm1770, %v3972, %v3940
        %v4037 = vsel %vm1770, %v3973, %v3941
        %v4038 = vsel %vm1770, %v3974, %v3942
        %v4039 = vsel %vm1770, %v3975, %v3943
        %v4040 = vsel %vm1770, %v3976, %v3944
        %v4041 = vsel %vm1770, %v3977, %v3945
        %v4042 = vsel %vm1770, %v3978, %v3946
        %v4043 = vsel %vm1770, %v3979, %v3947
        %v4044 = vsel %vm1770, %v3980, %v3948
        %v4045 = vsel %vm1770, %v3981, %v3949
        %v4046 = vsel %vm1770, %v3982, %v3950
        %v4047 = vsel %vm1770, %v3983, %v3951
        %v4048 = vsel %vm1770, %v3984, %v3952
        %v4049 = vsel %vm1770, %v3985, %v3953
        %v4050 = vsel %vm1770, %v3986, %v3954
        %v4051 = vsel %vm1837, %v3987, 0.0
        %v4052 = vsel %vm1838, %v4019, 0.0
        %v4053 = vsel %vm1837, %v3988, 0.0
        %v4054 = vsel %vm1838, %v4020, 0.0
        %v4055 = vsel %vm1837, %v3989, 0.0
        %v4056 = vsel %vm1838, %v4021, 0.0
        %v4057 = vsel %vm1837, %v3990, 0.0
        %v4058 = vsel %vm1838, %v4022, 0.0
        %v4059 = vsel %vm1837, %v3991, 0.0
        %v4060 = vsel %vm1838, %v4023, 0.0
        %v4061 = vsel %vm1837, %v3992, 0.0
        %v4062 = vsel %vm1838, %v4024, 0.0
        %v4063 = vsel %vm1837, %v3993, 0.0
        %v4064 = vsel %vm1838, %v4025, 0.0
        %v4065 = vsel %vm1837, %v3994, 0.0
        %v4066 = vsel %vm1838, %v4026, 0.0
        %v4067 = vsel %vm1837, %v3995, 0.0
        %v4068 = vsel %vm1838, %v4027, 0.0
        %v4069 = vsel %vm1837, %v3996, 0.0
        %v4070 = vsel %vm1838, %v4028, 0.0
        %v4071 = vsel %vm1837, %v3997, 0.0
        %v4072 = vsel %vm1838, %v4029, 0.0
        %v4073 = vsel %vm1837, %v3998, 0.0
        %v4074 = vsel %vm1838, %v4030, 0.0
        %v4075 = vsel %vm1837, %v3999, 0.0
        %v4076 = vsel %vm1838, %v4031, 0.0
        %v4077 = vsel %vm1837, %v4000, 0.0
        %v4078 = vsel %vm1838, %v4032, 0.0
        %v4079 = vsel %vm1837, %v4001, 0.0
        %v4080 = vsel %vm1838, %v4033, 0.0
        %v4081 = vsel %vm1837, %v4002, 0.0
        %v4082 = vsel %vm1838, %v4034, 0.0
        %v4083 = vsel %vm1837, %v4003, 0.0
        %v4084 = vsel %vm1838, %v4035, 0.0
        %v4085 = vsel %vm1837, %v4004, 0.0
        %v4086 = vsel %vm1838, %v4036, 0.0
        %v4087 = vsel %vm1837, %v4005, 0.0
        %v4088 = vsel %vm1838, %v4037, 0.0
        %v4089 = vsel %vm1837, %v4006, 0.0
        %v4090 = vsel %vm1838, %v4038, 0.0
        %v4091 = vsel %vm1837, %v4007, 0.0
        %v4092 = vsel %vm1838, %v4039, 0.0
        %v4093 = vsel %vm1837, %v4008, 0.0
        %v4094 = vsel %vm1838, %v4040, 0.0
        %v4095 = vsel %vm1837, %v4009, 0.0
        %v4096 = vsel %vm1838, %v4041, 0.0
        %v4097 = vsel %vm1837, %v4010, 0.0
        %v4098 = vsel %vm1838, %v4042, 0.0
        %v4099 = vsel %vm1837, %v4011, 0.0
        %v4100 = vsel %vm1838, %v4043, 0.0
        %v4101 = vsel %vm1837, %v4012, 0.0
        %v4102 = vsel %vm1838, %v4044, 0.0
        %v4103 = vsel %vm1837, %v4013, 0.0
        %v4104 = vsel %vm1838, %v4045, 0.0
        %v4105 = vsel %vm1837, %v4014, 0.0
        %v4106 = vsel %vm1838, %v4046, 0.0
        %v4107 = vsel %vm1837, %v4015, 0.0
        %v4108 = vsel %vm1838, %v4047, 0.0
        %v4109 = vsel %vm1837, %v4016, 0.0
        %v4110 = vsel %vm1838, %v4048, 0.0
        %v4111 = vsel %vm1837, %v4017, 0.0
        %v4112 = vsel %vm1838, %v4049, 0.0
        %v4113 = vsel %vm1837, %v4018, 0.0
        %v4114 = vsel %vm1838, %v4050, 0.0
        %v4115 = vperm.slane %v2958, 2
        %v4116 = vmul.f32 %v4115, 0.0
        %v4117 = vmul.f32 %v4051, %v4115
        %v4118 = vmul.f32 %v4052, %v4115
        %v4119 = vmul.f32 %v4053, %v4115
        %v4120 = vmul.f32 %v4054, %v4115
        %v4121 = vmul.f32 %v4055, %v4115
        %v4122 = vmul.f32 %v4056, %v4115
        %v4123 = vmul.f32 %v4057, %v4115
        %v4124 = vmul.f32 %v4058, %v4115
        %v4125 = vmul.f32 %v4059, %v4115
        %v4126 = vmul.f32 %v4060, %v4115
        %v4127 = vmul.f32 %v4061, %v4115
        %v4128 = vmul.f32 %v4062, %v4115
        %v4129 = vmul.f32 %v4063, %v4115
        %v4130 = vmul.f32 %v4064, %v4115
        %v4131 = vmul.f32 %v4065, %v4115
        %v4132 = vmul.f32 %v4066, %v4115
        %v4133 = vmul.f32 %v4067, %v4115
        %v4134 = vmul.f32 %v4068, %v4115
        %v4135 = vmul.f32 %v4069, %v4115
        %v4136 = vmul.f32 %v4070, %v4115
        %v4137 = vmul.f32 %v4071, %v4115
        %v4138 = vmul.f32 %v4072, %v4115
        %v4139 = vmul.f32 %v4073, %v4115
        %v4140 = vmul.f32 %v4074, %v4115
        %v4141 = vmul.f32 %v4075, %v4115
        %v4142 = vmul.f32 %v4076, %v4115
        %v4143 = vmul.f32 %v4077, %v4115
        %v4144 = vmul.f32 %v4078, %v4115
        %v4145 = vmul.f32 %v4079, %v4115
        %v4146 = vmul.f32 %v4080, %v4115
        %v4147 = vmul.f32 %v4083, %v4115
        %v4148 = vmul.f32 %v4084, %v4115
        %v4149 = vmul.f32 %v4085, %v4115
        %v4150 = vmul.f32 %v4086, %v4115
        %v4151 = vmul.f32 %v4087, %v4115
        %v4152 = vmul.f32 %v4088, %v4115
        %v4153 = vmul.f32 %v4089, %v4115
        %v4154 = vmul.f32 %v4090, %v4115
        %v4155 = vmul.f32 %v4091, %v4115
        %v4156 = vmul.f32 %v4092, %v4115
        %v4157 = vmul.f32 %v4093, %v4115
        %v4158 = vmul.f32 %v4094, %v4115
        %v4159 = vmul.f32 %v4095, %v4115
        %v4160 = vmul.f32 %v4096, %v4115
        %v4161 = vmul.f32 %v4097, %v4115
        %v4162 = vmul.f32 %v4098, %v4115
        %v4163 = vmul.f32 %v4099, %v4115
        %v4164 = vmul.f32 %v4100, %v4115
        %v4165 = vmul.f32 %v4101, %v4115
        %v4166 = vmul.f32 %v4102, %v4115
        %v4167 = vmul.f32 %v4103, %v4115
        %v4168 = vmul.f32 %v4104, %v4115
        %v4169 = vmul.f32 %v4105, %v4115
        %v4170 = vmul.f32 %v4106, %v4115
        %v4171 = vmul.f32 %v4107, %v4115
        %v4172 = vmul.f32 %v4108, %v4115
        %v4173 = vmul.f32 %v4109, %v4115
        %v4174 = vmul.f32 %v4110, %v4115
        %v4175 = vmul.f32 %v4111, %v4115
        %v4176 = vmul.f32 %v4112, %v4115
        %v4177 = vadd.f32 %v3859, %v4116
        %v4178 = vadd.f32 %v3860, %v4116
        %v4179 = vadd.f32 %v3861, %v4117
        %v4180 = vadd.f32 %v3862, %v4118
        %v4181 = vadd.f32 %v3863, %v4119
        %v4182 = vadd.f32 %v3864, %v4120
        %v4183 = vadd.f32 %v3865, %v4121
        %v4184 = vadd.f32 %v3866, %v4122
        %v4185 = vadd.f32 %v3867, %v4123
        %v4186 = vadd.f32 %v3868, %v4124
        %v4187 = vadd.f32 %v3869, %v4125
        %v4188 = vadd.f32 %v3870, %v4126
        %v4189 = vadd.f32 %v3871, %v4127
        %v4190 = vadd.f32 %v3872, %v4128
        %v4191 = vadd.f32 %v3873, %v4129
        %v4192 = vadd.f32 %v3874, %v4130
        %v4193 = vadd.f32 %v3875, %v4131
        %v4194 = vadd.f32 %v3876, %v4132
        %v4195 = vadd.f32 %v3877, %v4133
        %v4196 = vadd.f32 %v3878, %v4134
        %v4197 = vadd.f32 %v3879, %v4135
        %v4198 = vadd.f32 %v3880, %v4136
        %v4199 = vadd.f32 %v3881, %v4137
        %v4200 = vadd.f32 %v3882, %v4138
        %v4201 = vadd.f32 %v3883, %v4139
        %v4202 = vadd.f32 %v3884, %v4140
        %v4203 = vadd.f32 %v3885, %v4141
        %v4204 = vadd.f32 %v3886, %v4142
        %v4205 = vadd.f32 %v3887, %v4143
        %v4206 = vadd.f32 %v3888, %v4144
        %v4207 = vadd.f32 %v3889, %v4145
        %v4208 = vadd.f32 %v3890, %v4146
        %v4209 = vadd.f32 %v3891, %v4116
        %v4210 = vadd.f32 %v3892, %v4116
        %v4211 = vadd.f32 %v3893, %v4147
        %v4212 = vadd.f32 %v3894, %v4148
        %v4213 = vadd.f32 %v3895, %v4149
        %v4214 = vadd.f32 %v3896, %v4150
        %v4215 = vadd.f32 %v3897, %v4151
        %v4216 = vadd.f32 %v3898, %v4152
        %v4217 = vadd.f32 %v3899, %v4153
        %v4218 = vadd.f32 %v3900, %v4154
        %v4219 = vadd.f32 %v3901, %v4155
        %v4220 = vadd.f32 %v3902, %v4156
        %v4221 = vadd.f32 %v3903, %v4157
        %v4222 = vadd.f32 %v3904, %v4158
        %v4223 = vadd.f32 %v3905, %v4159
        %v4224 = vadd.f32 %v3906, %v4160
        %v4225 = vadd.f32 %v3907, %v4161
        %v4226 = vadd.f32 %v3908, %v4162
        %v4227 = vadd.f32 %v3909, %v4163
        %v4228 = vadd.f32 %v3910, %v4164
        %v4229 = vadd.f32 %v3911, %v4165
        %v4230 = vadd.f32 %v3912, %v4166
        %v4231 = vadd.f32 %v3913, %v4167
        %v4232 = vadd.f32 %v3914, %v4168
        %v4233 = vadd.f32 %v3915, %v4169
        %v4234 = vadd.f32 %v3916, %v4170
        %v4235 = vadd.f32 %v3917, %v4171
        %v4236 = vadd.f32 %v3918, %v4172
        %v4237 = vadd.f32 %v3919, %v4173
        %v4238 = vadd.f32 %v3920, %v4174
        %v4239 = vadd.f32 %v3921, %v4175
        %v4240 = vadd.f32 %v3922, %v4176
        %v4241 = vperm.slane %v2958, 5
        %v4242 = vmul.f32 %v4051, %v4241
        %v4243 = vmul.f32 %v4052, %v4241
        %v4244 = vmul.f32 %v4053, %v4241
        %v4245 = vmul.f32 %v4054, %v4241
        %v4246 = vmul.f32 %v4055, %v4241
        %v4247 = vmul.f32 %v4056, %v4241
        %v4248 = vmul.f32 %v4057, %v4241
        %v4249 = vmul.f32 %v4058, %v4241
        %v4250 = vmul.f32 %v4059, %v4241
        %v4251 = vmul.f32 %v4060, %v4241
        %v4252 = vmul.f32 %v4061, %v4241
        %v4253 = vmul.f32 %v4062, %v4241
        %v4254 = vmul.f32 %v4063, %v4241
        %v4255 = vmul.f32 %v4064, %v4241
        %v4256 = vmul.f32 %v4065, %v4241
        %v4257 = vmul.f32 %v4066, %v4241
        %v4258 = vmul.f32 %v4067, %v4241
        %v4259 = vmul.f32 %v4068, %v4241
        %v4260 = vmul.f32 %v4069, %v4241
        %v4261 = vmul.f32 %v4070, %v4241
        %v4262 = vmul.f32 %v4071, %v4241
        %v4263 = vmul.f32 %v4072, %v4241
        %v4264 = vmul.f32 %v4073, %v4241
        %v4265 = vmul.f32 %v4074, %v4241
        %v4266 = vmul.f32 %v4075, %v4241
        %v4267 = vmul.f32 %v4076, %v4241
        %v4268 = vmul.f32 %v4077, %v4241
        %v4269 = vmul.f32 %v4078, %v4241
        %v4270 = vmul.f32 %v4079, %v4241
        %v4271 = vmul.f32 %v4080, %v4241
        %v4272 = vmul.f32 %v4081, %v4241
        %v4273 = vmul.f32 %v4082, %v4241
        %v4274 = vmul.f32 %v4083, %v4241
        %v4275 = vmul.f32 %v4084, %v4241
        %v4276 = vmul.f32 %v4085, %v4241
        %v4277 = vmul.f32 %v4086, %v4241
        %v4278 = vmul.f32 %v4087, %v4241
        %v4279 = vmul.f32 %v4088, %v4241
        %v4280 = vmul.f32 %v4089, %v4241
        %v4281 = vmul.f32 %v4090, %v4241
        %v4282 = vmul.f32 %v4091, %v4241
        %v4283 = vmul.f32 %v4092, %v4241
        %v4284 = vmul.f32 %v4093, %v4241
        %v4285 = vmul.f32 %v4094, %v4241
        %v4286 = vmul.f32 %v4095, %v4241
        %v4287 = vmul.f32 %v4096, %v4241
        %v4288 = vmul.f32 %v4097, %v4241
        %v4289 = vmul.f32 %v4098, %v4241
        %v4290 = vmul.f32 %v4099, %v4241
        %v4291 = vmul.f32 %v4100, %v4241
        %v4292 = vmul.f32 %v4101, %v4241
        %v4293 = vmul.f32 %v4102, %v4241
        %v4294 = vmul.f32 %v4103, %v4241
        %v4295 = vmul.f32 %v4104, %v4241
        %v4296 = vmul.f32 %v4105, %v4241
        %v4297 = vmul.f32 %v4106, %v4241
        %v4298 = vmul.f32 %v4107, %v4241
        %v4299 = vmul.f32 %v4108, %v4241
        %v4300 = vmul.f32 %v4109, %v4241
        %v4301 = vmul.f32 %v4110, %v4241
        %v4302 = vmul.f32 %v4111, %v4241
        %v4303 = vmul.f32 %v4112, %v4241
        %v4304 = vmul.f32 %v4113, %v4241
        %v4305 = vmul.f32 %v4114, %v4241
        %v4306 = vadd.f32 %v4177, %v4242
        %v4307 = vadd.f32 %v4178, %v4243
        %v4308 = vadd.f32 %v4179, %v4244
        %v4309 = vadd.f32 %v4180, %v4245
        %v4310 = vadd.f32 %v4181, %v4246
        %v4311 = vadd.f32 %v4182, %v4247
        %v4312 = vadd.f32 %v4183, %v4248
        %v4313 = vadd.f32 %v4184, %v4249
        %v4314 = vadd.f32 %v4185, %v4250
        %v4315 = vadd.f32 %v4186, %v4251
        %v4316 = vadd.f32 %v4187, %v4252
        %v4317 = vadd.f32 %v4188, %v4253
        %v4318 = vadd.f32 %v4189, %v4254
        %v4319 = vadd.f32 %v4190, %v4255
        %v4320 = vadd.f32 %v4191, %v4256
        %v4321 = vadd.f32 %v4192, %v4257
        %v4322 = vadd.f32 %v4193, %v4258
        %v4323 = vadd.f32 %v4194, %v4259
        %v4324 = vadd.f32 %v4195, %v4260
        %v4325 = vadd.f32 %v4196, %v4261
        %v4326 = vadd.f32 %v4197, %v4262
        %v4327 = vadd.f32 %v4198, %v4263
        %v4328 = vadd.f32 %v4199, %v4264
        %v4329 = vadd.f32 %v4200, %v4265
        %v4330 = vadd.f32 %v4201, %v4266
        %v4331 = vadd.f32 %v4202, %v4267
        %v4332 = vadd.f32 %v4203, %v4268
        %v4333 = vadd.f32 %v4204, %v4269
        %v4334 = vadd.f32 %v4205, %v4270
        %v4335 = vadd.f32 %v4206, %v4271
        %v4336 = vadd.f32 %v4207, %v4272
        %v4337 = vadd.f32 %v4208, %v4273
        %v4338 = vadd.f32 %v4209, %v4274
        %v4339 = vadd.f32 %v4210, %v4275
        %v4340 = vadd.f32 %v4211, %v4276
        %v4341 = vadd.f32 %v4212, %v4277
        %v4342 = vadd.f32 %v4213, %v4278
        %v4343 = vadd.f32 %v4214, %v4279
        %v4344 = vadd.f32 %v4215, %v4280
        %v4345 = vadd.f32 %v4216, %v4281
        %v4346 = vadd.f32 %v4217, %v4282
        %v4347 = vadd.f32 %v4218, %v4283
        %v4348 = vadd.f32 %v4219, %v4284
        %v4349 = vadd.f32 %v4220, %v4285
        %v4350 = vadd.f32 %v4221, %v4286
        %v4351 = vadd.f32 %v4222, %v4287
        %v4352 = vadd.f32 %v4223, %v4288
        %v4353 = vadd.f32 %v4224, %v4289
        %v4354 = vadd.f32 %v4225, %v4290
        %v4355 = vadd.f32 %v4226, %v4291
        %v4356 = vadd.f32 %v4227, %v4292
        %v4357 = vadd.f32 %v4228, %v4293
        %v4358 = vadd.f32 %v4229, %v4294
        %v4359 = vadd.f32 %v4230, %v4295
        %v4360 = vadd.f32 %v4231, %v4296
        %v4361 = vadd.f32 %v4232, %v4297
        %v4362 = vadd.f32 %v4233, %v4298
        %v4363 = vadd.f32 %v4234, %v4299
        %v4364 = vadd.f32 %v4235, %v4300
        %v4365 = vadd.f32 %v4236, %v4301
        %v4366 = vadd.f32 %v4237, %v4302
        %v4367 = vadd.f32 %v4238, %v4303
        %v4368 = vadd.f32 %v4239, %v4304
        %v4369 = vadd.f32 %v4240, %v4305
        %v4370 = vperm.slane %v2959, 0
        %v4371 = vmul.f32 %v4053, %v4370
        %v4372 = vmul.f32 %v4054, %v4370
        %v4373 = vmul.f32 %v4055, %v4370
        %v4374 = vmul.f32 %v4056, %v4370
        %v4375 = vmul.f32 %v4057, %v4370
        %v4376 = vmul.f32 %v4058, %v4370
        %v4377 = vmul.f32 %v4059, %v4370
        %v4378 = vmul.f32 %v4060, %v4370
        %v4379 = vmul.f32 %v4061, %v4370
        %v4380 = vmul.f32 %v4062, %v4370
        %v4381 = vmul.f32 %v4063, %v4370
        %v4382 = vmul.f32 %v4064, %v4370
        %v4383 = vmul.f32 %v4065, %v4370
        %v4384 = vmul.f32 %v4066, %v4370
        %v4385 = vmul.f32 %v4067, %v4370
        %v4386 = vmul.f32 %v4068, %v4370
        %v4387 = vmul.f32 %v4069, %v4370
        %v4388 = vmul.f32 %v4070, %v4370
        %v4389 = vmul.f32 %v4071, %v4370
        %v4390 = vmul.f32 %v4072, %v4370
        %v4391 = vmul.f32 %v4073, %v4370
        %v4392 = vmul.f32 %v4074, %v4370
        %v4393 = vmul.f32 %v4075, %v4370
        %v4394 = vmul.f32 %v4076, %v4370
        %v4395 = vmul.f32 %v4077, %v4370
        %v4396 = vmul.f32 %v4078, %v4370
        %v4397 = vmul.f32 %v4079, %v4370
        %v4398 = vmul.f32 %v4080, %v4370
        %v4399 = vmul.f32 %v4081, %v4370
        %v4400 = vmul.f32 %v4082, %v4370
        %v4401 = vmul.f32 %v4370, 0.0
        %v4402 = vmul.f32 %v4085, %v4370
        %v4403 = vmul.f32 %v4086, %v4370
        %v4404 = vmul.f32 %v4087, %v4370
        %v4405 = vmul.f32 %v4088, %v4370
        %v4406 = vmul.f32 %v4089, %v4370
        %v4407 = vmul.f32 %v4090, %v4370
        %v4408 = vmul.f32 %v4091, %v4370
        %v4409 = vmul.f32 %v4092, %v4370
        %v4410 = vmul.f32 %v4093, %v4370
        %v4411 = vmul.f32 %v4094, %v4370
        %v4412 = vmul.f32 %v4095, %v4370
        %v4413 = vmul.f32 %v4096, %v4370
        %v4414 = vmul.f32 %v4097, %v4370
        %v4415 = vmul.f32 %v4098, %v4370
        %v4416 = vmul.f32 %v4099, %v4370
        %v4417 = vmul.f32 %v4100, %v4370
        %v4418 = vmul.f32 %v4101, %v4370
        %v4419 = vmul.f32 %v4102, %v4370
        %v4420 = vmul.f32 %v4103, %v4370
        %v4421 = vmul.f32 %v4104, %v4370
        %v4422 = vmul.f32 %v4105, %v4370
        %v4423 = vmul.f32 %v4106, %v4370
        %v4424 = vmul.f32 %v4107, %v4370
        %v4425 = vmul.f32 %v4108, %v4370
        %v4426 = vmul.f32 %v4109, %v4370
        %v4427 = vmul.f32 %v4110, %v4370
        %v4428 = vmul.f32 %v4111, %v4370
        %v4429 = vmul.f32 %v4112, %v4370
        %v4430 = vmul.f32 %v4113, %v4370
        %v4431 = vmul.f32 %v4114, %v4370
        %v4432 = vadd.f32 %v4306, %v4371
        %v4433 = vadd.f32 %v4307, %v4372
        %v4434 = vadd.f32 %v4308, %v4373
        %v4435 = vadd.f32 %v4309, %v4374
        %v4436 = vadd.f32 %v4310, %v4375
        %v4437 = vadd.f32 %v4311, %v4376
        %v4438 = vadd.f32 %v4312, %v4377
        %v4439 = vadd.f32 %v4313, %v4378
        %v4440 = vadd.f32 %v4314, %v4379
        %v4441 = vadd.f32 %v4315, %v4380
        %v4442 = vadd.f32 %v4316, %v4381
        %v4443 = vadd.f32 %v4317, %v4382
        %v4444 = vadd.f32 %v4318, %v4383
        %v4445 = vadd.f32 %v4319, %v4384
        %v4446 = vadd.f32 %v4320, %v4385
        %v4447 = vadd.f32 %v4321, %v4386
        %v4448 = vadd.f32 %v4322, %v4387
        %v4449 = vadd.f32 %v4323, %v4388
        %v4450 = vadd.f32 %v4324, %v4389
        %v4451 = vadd.f32 %v4325, %v4390
        %v4452 = vadd.f32 %v4326, %v4391
        %v4453 = vadd.f32 %v4327, %v4392
        %v4454 = vadd.f32 %v4328, %v4393
        %v4455 = vadd.f32 %v4329, %v4394
        %v4456 = vadd.f32 %v4330, %v4395
        %v4457 = vadd.f32 %v4331, %v4396
        %v4458 = vadd.f32 %v4332, %v4397
        %v4459 = vadd.f32 %v4333, %v4398
        %v4460 = vadd.f32 %v4334, %v4399
        %v4461 = vadd.f32 %v4335, %v4400
        %v4462 = vadd.f32 %v4336, %v4401
        %v4463 = vadd.f32 %v4337, %v4401
        %v4464 = vadd.f32 %v4338, %v4402
        %v4465 = vadd.f32 %v4339, %v4403
        %v4466 = vadd.f32 %v4340, %v4404
        %v4467 = vadd.f32 %v4341, %v4405
        %v4468 = vadd.f32 %v4342, %v4406
        %v4469 = vadd.f32 %v4343, %v4407
        %v4470 = vadd.f32 %v4344, %v4408
        %v4471 = vadd.f32 %v4345, %v4409
        %v4472 = vadd.f32 %v4346, %v4410
        %v4473 = vadd.f32 %v4347, %v4411
        %v4474 = vadd.f32 %v4348, %v4412
        %v4475 = vadd.f32 %v4349, %v4413
        %v4476 = vadd.f32 %v4350, %v4414
        %v4477 = vadd.f32 %v4351, %v4415
        %v4478 = vadd.f32 %v4352, %v4416
        %v4479 = vadd.f32 %v4353, %v4417
        %v4480 = vadd.f32 %v4354, %v4418
        %v4481 = vadd.f32 %v4355, %v4419
        %v4482 = vadd.f32 %v4356, %v4420
        %v4483 = vadd.f32 %v4357, %v4421
        %v4484 = vadd.f32 %v4358, %v4422
        %v4485 = vadd.f32 %v4359, %v4423
        %v4486 = vadd.f32 %v4360, %v4424
        %v4487 = vadd.f32 %v4361, %v4425
        %v4488 = vadd.f32 %v4362, %v4426
        %v4489 = vadd.f32 %v4363, %v4427
        %v4490 = vadd.f32 %v4364, %v4428
        %v4491 = vadd.f32 %v4365, %v4429
        %v4492 = vadd.f32 %v4366, %v4430
        %v4493 = vadd.f32 %v4367, %v4431
        %v4494 = vadd.f32 %v4368, %v4401
        %v4495 = vadd.f32 %v4369, %v4401
        %v4497 = vperm.slane %v2960, 0
        %v4499 = vadd.f32 %v4432, %v4497
        %v4500 = vadd.f32 %v4433, %v4497
        %v4501 = vadd.f32 %v4434, %v4497
        %v4502 = vadd.f32 %v4435, %v4497
        %v4503 = vadd.f32 %v4436, %v4497
        %v4504 = vadd.f32 %v4437, %v4497
        %v4505 = vadd.f32 %v4438, %v4497
        %v4506 = vadd.f32 %v4439, %v4497
        %v4507 = vadd.f32 %v4440, %v4497
        %v4508 = vadd.f32 %v4441, %v4497
        %v4509 = vadd.f32 %v4442, %v4497
        %v4510 = vadd.f32 %v4443, %v4497
        %v4511 = vadd.f32 %v4444, %v4497
        %v4512 = vadd.f32 %v4445, %v4497
        %v4513 = vadd.f32 %v4446, %v4497
        %v4514 = vadd.f32 %v4447, %v4497
        %v4515 = vadd.f32 %v4448, %v4497
        %v4516 = vadd.f32 %v4449, %v4497
        %v4517 = vadd.f32 %v4450, %v4497
        %v4518 = vadd.f32 %v4451, %v4497
        %v4519 = vadd.f32 %v4452, %v4497
        %v4520 = vadd.f32 %v4453, %v4497
        %v4521 = vadd.f32 %v4454, %v4497
        %v4522 = vadd.f32 %v4455, %v4497
        %v4523 = vadd.f32 %v4456, %v4497
        %v4524 = vadd.f32 %v4457, %v4497
        %v4525 = vadd.f32 %v4458, %v4497
        %v4526 = vadd.f32 %v4459, %v4497
        %v4527 = vadd.f32 %v4460, %v4497
        %v4528 = vadd.f32 %v4461, %v4497
        %v4529 = vadd.f32 %v4462, %v4497
        %v4530 = vadd.f32 %v4463, %v4497
        %v4531 = vadd.f32 %v4464, %v4497
        %v4532 = vadd.f32 %v4465, %v4497
        %v4533 = vadd.f32 %v4466, %v4497
        %v4534 = vadd.f32 %v4467, %v4497
        %v4535 = vadd.f32 %v4468, %v4497
        %v4536 = vadd.f32 %v4469, %v4497
        %v4537 = vadd.f32 %v4470, %v4497
        %v4538 = vadd.f32 %v4471, %v4497
        %v4539 = vadd.f32 %v4472, %v4497
        %v4540 = vadd.f32 %v4473, %v4497
        %v4541 = vadd.f32 %v4474, %v4497
        %v4542 = vadd.f32 %v4475, %v4497
        %v4543 = vadd.f32 %v4476, %v4497
        %v4544 = vadd.f32 %v4477, %v4497
        %v4545 = vadd.f32 %v4478, %v4497
        %v4546 = vadd.f32 %v4479, %v4497
        %v4547 = vadd.f32 %v4480, %v4497
        %v4548 = vadd.f32 %v4481, %v4497
        %v4549 = vadd.f32 %v4482, %v4497
        %v4550 = vadd.f32 %v4483, %v4497
        %v4551 = vadd.f32 %v4484, %v4497
        %v4552 = vadd.f32 %v4485, %v4497
        %v4553 = vadd.f32 %v4486, %v4497
        %v4554 = vadd.f32 %v4487, %v4497
        %v4555 = vadd.f32 %v4488, %v4497
        %v4556 = vadd.f32 %v4489, %v4497
        %v4557 = vadd.f32 %v4490, %v4497
        %v4558 = vadd.f32 %v4491, %v4497
        %v4559 = vadd.f32 %v4492, %v4497
        %v4560 = vadd.f32 %v4493, %v4497
        %v4561 = vadd.f32 %v4494, %v4497
        %v4562 = vadd.f32 %v4495, %v4497
        %v4564 = vperm.slane %v2969, 0
        %vm4566 = vcmask 523264
        %v4568 = vsel %vm4566, %v4499, 0
        %v4571 = vsel %vm4566, %v4500, 0
        %v4574 = vsel %vm4566, %v4501, 0
        %v4577 = vsel %vm4566, %v4502, 0
        %v4580 = vsel %vm4566, %v4503, 0
        %v4583 = vsel %vm4566, %v4504, 0
        %v4586 = vsel %vm4566, %v4505, 0
        %v4589 = vsel %vm4566, %v4506, 0
        %v4592 = vsel %vm4566, %v4507, 0
        %v4595 = vsel %vm4566, %v4508, 0
        %v4598 = vsel %vm4566, %v4509, 0
        %v4601 = vsel %vm4566, %v4510, 0
        %v4604 = vsel %vm4566, %v4511, 0
        %v4607 = vsel %vm4566, %v4512, 0
        %v4610 = vsel %vm4566, %v4513, 0
        %v4613 = vsel %vm4566, %v4514, 0
        %v4616 = vsel %vm4566, %v4515, 0
        %v4619 = vsel %vm4566, %v4516, 0
        %v4622 = vsel %vm4566, %v4517, 0
        %v4625 = vsel %vm4566, %v4518, 0
        %v4628 = vsel %vm4566, %v4519, 0
        %v4631 = vsel %vm4566, %v4520, 0
        %v4634 = vsel %vm4566, %v4521, 0
        %v4637 = vsel %vm4566, %v4522, 0
        %v4640 = vsel %vm4566, %v4523, 0
        %v4643 = vsel %vm4566, %v4524, 0
        %v4646 = vsel %vm4566, %v4525, 0
        %v4649 = vsel %vm4566, %v4526, 0
        %v4652 = vsel %vm4566, %v4527, 0
        %v4655 = vsel %vm4566, %v4528, 0
        %v4658 = vsel %vm4566, %v4529, 0
        %v4661 = vsel %vm4566, %v4530, 0
        %v4664 = vsel %vm4566, %v4531, 0
        %v4667 = vsel %vm4566, %v4532, 0
        %v4670 = vsel %vm4566, %v4533, 0
        %v4673 = vsel %vm4566, %v4534, 0
        %v4676 = vsel %vm4566, %v4535, 0
        %v4679 = vsel %vm4566, %v4536, 0
        %v4682 = vsel %vm4566, %v4537, 0
        %v4685 = vsel %vm4566, %v4538, 0
        %v4688 = vsel %vm4566, %v4539, 0
        %v4691 = vsel %vm4566, %v4540, 0
        %v4694 = vsel %vm4566, %v4541, 0
        %v4697 = vsel %vm4566, %v4542, 0
        %v4700 = vsel %vm4566, %v4543, 0
        %v4703 = vsel %vm4566, %v4544, 0
        %v4706 = vsel %vm4566, %v4545, 0
        %v4709 = vsel %vm4566, %v4546, 0
        %v4712 = vsel %vm4566, %v4547, 0
        %v4715 = vsel %vm4566, %v4548, 0
        %v4718 = vsel %vm4566, %v4549, 0
        %v4721 = vsel %vm4566, %v4550, 0
        %v4724 = vsel %vm4566, %v4551, 0
        %v4727 = vsel %vm4566, %v4552, 0
        %v4730 = vsel %vm4566, %v4553, 0
        %v4733 = vsel %vm4566, %v4554, 0
        %v4736 = vsel %vm4566, %v4555, 0
        %v4739 = vsel %vm4566, %v4556, 0
        %v4742 = vsel %vm4566, %v4557, 0
        %v4745 = vsel %vm4566, %v4558, 0
        %v4748 = vsel %vm4566, %v4559, 0
        %v4751 = vsel %vm4566, %v4560, 0
        %v4754 = vsel %vm4566, %v4561, 0
        %v4757 = vsel %vm4566, %v4562, 0
        %4759 = vmatpush.msra.mxu0 0.0
        %4760 = vmatpush.msra.mxu0 0.0
        %4761 = vmatpush.msra.mxu0 0.0
        %4762 = vmatpush.msra.mxu0 0.0
        %4763 = vmatpush.msra.mxu0 0.0
        %4764 = vmatpush.msra.mxu0 0.0
        %4765 = vmatpush.msra.mxu0 0.0
        %4766 = vmatpush.msra.mxu0 0.0
        %4767 = vmatpush.msra.mxu0 %v2968
        %4768 = vmatpush.msra.mxu0 %v2967
        %4769 = vmatpush.msra.mxu0 %v2966
        %4770 = vmatpush.msra.mxu0 %v2965
        %4771 = vmatpush.msra.mxu0 %v2964
        %4772 = vmatpush.msra.mxu0 %v2963
        %4773 = vmatpush.msra.mxu0 %v2962
        %4774 = vmatpush.msra.mxu0 %v2961
        %4775 = vmatmul.f32.gmra.mxu0 %v4568
        %v4776 = vpop.f32.mrf.mxu0
        %v4777 = vadd.f32 %v4564, %v4776
        %4778 = vmatmul.f32.gmra.mxu0 %v4571
        %v4779 = vpop.f32.mrf.mxu0
        %v4780 = vadd.f32 %v4564, %v4779
        %4781 = vmatmul.f32.gmra.mxu0 %v4574
        %v4782 = vpop.f32.mrf.mxu0
        %v4783 = vadd.f32 %v4564, %v4782
        %4784 = vmatmul.f32.gmra.mxu0 %v4577
        %v4785 = vpop.f32.mrf.mxu0
        %v4786 = vadd.f32 %v4564, %v4785
        %4787 = vmatmul.f32.gmra.mxu0 %v4580
        %v4788 = vpop.f32.mrf.mxu0
        %v4789 = vadd.f32 %v4564, %v4788
        %4790 = vmatmul.f32.gmra.mxu0 %v4583
        %v4791 = vpop.f32.mrf.mxu0
        %v4792 = vadd.f32 %v4564, %v4791
        %4793 = vmatmul.f32.gmra.mxu0 %v4586
        %v4794 = vpop.f32.mrf.mxu0
        %v4795 = vadd.f32 %v4564, %v4794
        %4796 = vmatmul.f32.gmra.mxu0 %v4589
        %v4797 = vpop.f32.mrf.mxu0
        %v4798 = vadd.f32 %v4564, %v4797
        %4799 = vmatmul.f32.gmra.mxu0 %v4592
        %v4800 = vpop.f32.mrf.mxu0
        %v4801 = vadd.f32 %v4564, %v4800
        %4802 = vmatmul.f32.gmra.mxu0 %v4595
        %v4803 = vpop.f32.mrf.mxu0
        %v4804 = vadd.f32 %v4564, %v4803
        %4805 = vmatmul.f32.gmra.mxu0 %v4598
        %v4806 = vpop.f32.mrf.mxu0
        %v4807 = vadd.f32 %v4564, %v4806
        %4808 = vmatmul.f32.gmra.mxu0 %v4601
        %v4809 = vpop.f32.mrf.mxu0
        %v4810 = vadd.f32 %v4564, %v4809
        %4811 = vmatmul.f32.gmra.mxu0 %v4604
        %v4812 = vpop.f32.mrf.mxu0
        %v4813 = vadd.f32 %v4564, %v4812
        %4814 = vmatmul.f32.gmra.mxu0 %v4607
        %v4815 = vpop.f32.mrf.mxu0
        %v4816 = vadd.f32 %v4564, %v4815
        %4817 = vmatmul.f32.gmra.mxu0 %v4610
        %v4818 = vpop.f32.mrf.mxu0
        %v4819 = vadd.f32 %v4564, %v4818
        %4820 = vmatmul.f32.gmra.mxu0 %v4613
        %v4821 = vpop.f32.mrf.mxu0
        %v4822 = vadd.f32 %v4564, %v4821
        %4823 = vmatmul.f32.gmra.mxu0 %v4616
        %v4824 = vpop.f32.mrf.mxu0
        %v4825 = vadd.f32 %v4564, %v4824
        %4826 = vmatmul.f32.gmra.mxu0 %v4619
        %v4827 = vpop.f32.mrf.mxu0
        %v4828 = vadd.f32 %v4564, %v4827
        %4829 = vmatmul.f32.gmra.mxu0 %v4622
        %v4830 = vpop.f32.mrf.mxu0
        %v4831 = vadd.f32 %v4564, %v4830
        %4832 = vmatmul.f32.gmra.mxu0 %v4625
        %v4833 = vpop.f32.mrf.mxu0
        %v4834 = vadd.f32 %v4564, %v4833
        %4835 = vmatmul.f32.gmra.mxu0 %v4628
        %v4836 = vpop.f32.mrf.mxu0
        %v4837 = vadd.f32 %v4564, %v4836
        %4838 = vmatmul.f32.gmra.mxu0 %v4631
        %v4839 = vpop.f32.mrf.mxu0
        %v4840 = vadd.f32 %v4564, %v4839
        %4841 = vmatmul.f32.gmra.mxu0 %v4634
        %v4842 = vpop.f32.mrf.mxu0
        %v4843 = vadd.f32 %v4564, %v4842
        %4844 = vmatmul.f32.gmra.mxu0 %v4637
        %v4845 = vpop.f32.mrf.mxu0
        %v4846 = vadd.f32 %v4564, %v4845
        %4847 = vmatmul.f32.gmra.mxu0 %v4640
        %v4848 = vpop.f32.mrf.mxu0
        %v4849 = vadd.f32 %v4564, %v4848
        %4850 = vmatmul.f32.gmra.mxu0 %v4643
        %v4851 = vpop.f32.mrf.mxu0
        %v4852 = vadd.f32 %v4564, %v4851
        %4853 = vmatmul.f32.gmra.mxu0 %v4646
        %v4854 = vpop.f32.mrf.mxu0
        %v4855 = vadd.f32 %v4564, %v4854
        %4856 = vmatmul.f32.gmra.mxu0 %v4649
        %v4857 = vpop.f32.mrf.mxu0
        %v4858 = vadd.f32 %v4564, %v4857
        %4859 = vmatmul.f32.gmra.mxu0 %v4652
        %v4860 = vpop.f32.mrf.mxu0
        %v4861 = vadd.f32 %v4564, %v4860
        %4862 = vmatmul.f32.gmra.mxu0 %v4655
        %v4863 = vpop.f32.mrf.mxu0
        %v4864 = vadd.f32 %v4564, %v4863
        %4865 = vmatmul.f32.gmra.mxu0 %v4658
        %v4866 = vpop.f32.mrf.mxu0
        %v4867 = vadd.f32 %v4564, %v4866
        %4868 = vmatmul.f32.gmra.mxu0 %v4661
        %v4869 = vpop.f32.mrf.mxu0
        %v4870 = vadd.f32 %v4564, %v4869
        %4871 = vmatmul.f32.gmra.mxu0 %v4664
        %v4872 = vpop.f32.mrf.mxu0
        %v4873 = vadd.f32 %v4564, %v4872
        %4874 = vmatmul.f32.gmra.mxu0 %v4667
        %v4875 = vpop.f32.mrf.mxu0
        %v4876 = vadd.f32 %v4564, %v4875
        %4877 = vmatmul.f32.gmra.mxu0 %v4670
        %v4878 = vpop.f32.mrf.mxu0
        %v4879 = vadd.f32 %v4564, %v4878
        %4880 = vmatmul.f32.gmra.mxu0 %v4673
        %v4881 = vpop.f32.mrf.mxu0
        %v4882 = vadd.f32 %v4564, %v4881
        %4883 = vmatmul.f32.gmra.mxu0 %v4676
        %v4884 = vpop.f32.mrf.mxu0
        %v4885 = vadd.f32 %v4564, %v4884
        %4886 = vmatmul.f32.gmra.mxu0 %v4679
        %v4887 = vpop.f32.mrf.mxu0
        %v4888 = vadd.f32 %v4564, %v4887
        %4889 = vmatmul.f32.gmra.mxu0 %v4682
        %v4890 = vpop.f32.mrf.mxu0
        %v4891 = vadd.f32 %v4564, %v4890
        %4892 = vmatmul.f32.gmra.mxu0 %v4685
        %v4893 = vpop.f32.mrf.mxu0
        %v4894 = vadd.f32 %v4564, %v4893
        %4895 = vmatmul.f32.gmra.mxu0 %v4688
        %v4896 = vpop.f32.mrf.mxu0
        %v4897 = vadd.f32 %v4564, %v4896
        %4898 = vmatmul.f32.gmra.mxu0 %v4691
        %v4899 = vpop.f32.mrf.mxu0
        %v4900 = vadd.f32 %v4564, %v4899
        %4901 = vmatmul.f32.gmra.mxu0 %v4694
        %v4902 = vpop.f32.mrf.mxu0
        %v4903 = vadd.f32 %v4564, %v4902
        %4904 = vmatmul.f32.gmra.mxu0 %v4697
        %v4905 = vpop.f32.mrf.mxu0
        %v4906 = vadd.f32 %v4564, %v4905
        %4907 = vmatmul.f32.gmra.mxu0 %v4700
        %v4908 = vpop.f32.mrf.mxu0
        %v4909 = vadd.f32 %v4564, %v4908
        %4910 = vmatmul.f32.gmra.mxu0 %v4703
        %v4911 = vpop.f32.mrf.mxu0
        %v4912 = vadd.f32 %v4564, %v4911
        %4913 = vmatmul.f32.gmra.mxu0 %v4706
        %v4914 = vpop.f32.mrf.mxu0
        %v4915 = vadd.f32 %v4564, %v4914
        %4916 = vmatmul.f32.gmra.mxu0 %v4709
        %v4917 = vpop.f32.mrf.mxu0
        %v4918 = vadd.f32 %v4564, %v4917
        %4919 = vmatmul.f32.gmra.mxu0 %v4712
        %v4920 = vpop.f32.mrf.mxu0
        %v4921 = vadd.f32 %v4564, %v4920
        %4922 = vmatmul.f32.gmra.mxu0 %v4715
        %v4923 = vpop.f32.mrf.mxu0
        %v4924 = vadd.f32 %v4564, %v4923
        %4925 = vmatmul.f32.gmra.mxu0 %v4718
        %v4926 = vpop.f32.mrf.mxu0
        %v4927 = vadd.f32 %v4564, %v4926
        %4928 = vmatmul.f32.gmra.mxu0 %v4721
        %v4929 = vpop.f32.mrf.mxu0
        %v4930 = vadd.f32 %v4564, %v4929
        %4931 = vmatmul.f32.gmra.mxu0 %v4724
        %v4932 = vpop.f32.mrf.mxu0
        %v4933 = vadd.f32 %v4564, %v4932
        %4934 = vmatmul.f32.gmra.mxu0 %v4727
        %v4935 = vpop.f32.mrf.mxu0
        %v4936 = vadd.f32 %v4564, %v4935
        %4937 = vmatmul.f32.gmra.mxu0 %v4730
        %v4938 = vpop.f32.mrf.mxu0
        %v4939 = vadd.f32 %v4564, %v4938
        %4940 = vmatmul.f32.gmra.mxu0 %v4733
        %v4941 = vpop.f32.mrf.mxu0
        %v4942 = vadd.f32 %v4564, %v4941
        %4943 = vmatmul.f32.gmra.mxu0 %v4736
        %v4944 = vpop.f32.mrf.mxu0
        %v4945 = vadd.f32 %v4564, %v4944
        %4946 = vmatmul.f32.gmra.mxu0 %v4739
        %v4947 = vpop.f32.mrf.mxu0
        %v4948 = vadd.f32 %v4564, %v4947
        %4949 = vmatmul.f32.gmra.mxu0 %v4742
        %v4950 = vpop.f32.mrf.mxu0
        %v4951 = vadd.f32 %v4564, %v4950
        %4952 = vmatmul.f32.gmra.mxu0 %v4745
        %v4953 = vpop.f32.mrf.mxu0
        %v4954 = vadd.f32 %v4564, %v4953
        %4955 = vmatmul.f32.gmra.mxu0 %v4748
        %v4956 = vpop.f32.mrf.mxu0
        %v4957 = vadd.f32 %v4564, %v4956
        %4958 = vmatmul.f32.gmra.mxu0 %v4751
        %v4959 = vpop.f32.mrf.mxu0
        %v4960 = vadd.f32 %v4564, %v4959
        %4961 = vmatmul.f32.gmra.mxu0 %v4754
        %v4962 = vpop.f32.mrf.mxu0
        %v4963 = vadd.f32 %v4564, %v4962
        %4964 = vmatmul.f32.gmra.mxu0 %v4757
        %v4965 = vpop.f32.mrf.mxu0
        %v4966 = vadd.f32 %v4564, %v4965
        %4967 = vdwg.mxu0
        %v4968 = vmax.f32 %v4777, 0.0
        %v4969 = vmax.f32 %v4780, 0.0
        %v4970 = vmax.f32 %v4783, 0.0
        %v4971 = vmax.f32 %v4786, 0.0
        %v4972 = vmax.f32 %v4789, 0.0
        %v4973 = vmax.f32 %v4792, 0.0
        %v4974 = vmax.f32 %v4795, 0.0
        %v4975 = vmax.f32 %v4798, 0.0
        %v4976 = vmax.f32 %v4801, 0.0
        %v4977 = vmax.f32 %v4804, 0.0
        %v4978 = vmax.f32 %v4807, 0.0
        %v4979 = vmax.f32 %v4810, 0.0
        %v4980 = vmax.f32 %v4813, 0.0
        %v4981 = vmax.f32 %v4816, 0.0
        %v4982 = vmax.f32 %v4819, 0.0
        %v4983 = vmax.f32 %v4822, 0.0
        %v4984 = vmax.f32 %v4825, 0.0
        %v4985 = vmax.f32 %v4828, 0.0
        %v4986 = vmax.f32 %v4831, 0.0
        %v4987 = vmax.f32 %v4834, 0.0
        %v4988 = vmax.f32 %v4837, 0.0
        %v4989 = vmax.f32 %v4840, 0.0
        %v4990 = vmax.f32 %v4843, 0.0
        %v4991 = vmax.f32 %v4846, 0.0
        %v4992 = vmax.f32 %v4849, 0.0
        %v4993 = vmax.f32 %v4852, 0.0
        %v4994 = vmax.f32 %v4855, 0.0
        %v4995 = vmax.f32 %v4858, 0.0
        %v4996 = vmax.f32 %v4861, 0.0
        %v4997 = vmax.f32 %v4864, 0.0
        %v4998 = vmax.f32 %v4867, 0.0
        %v4999 = vmax.f32 %v4870, 0.0
        %v5000 = vmax.f32 %v4873, 0.0
        %v5001 = vmax.f32 %v4876, 0.0
        %v5002 = vmax.f32 %v4879, 0.0
        %v5003 = vmax.f32 %v4882, 0.0
        %v5004 = vmax.f32 %v4885, 0.0
        %v5005 = vmax.f32 %v4888, 0.0
        %v5006 = vmax.f32 %v4891, 0.0
        %v5007 = vmax.f32 %v4894, 0.0
        %v5008 = vmax.f32 %v4897, 0.0
        %v5009 = vmax.f32 %v4900, 0.0
        %v5010 = vmax.f32 %v4903, 0.0
        %v5011 = vmax.f32 %v4906, 0.0
        %v5012 = vmax.f32 %v4909, 0.0
        %v5013 = vmax.f32 %v4912, 0.0
        %v5014 = vmax.f32 %v4915, 0.0
        %v5015 = vmax.f32 %v4918, 0.0
        %v5016 = vmax.f32 %v4921, 0.0
        %v5017 = vmax.f32 %v4924, 0.0
        %v5018 = vmax.f32 %v4927, 0.0
        %v5019 = vmax.f32 %v4930, 0.0
        %v5020 = vmax.f32 %v4933, 0.0
        %v5021 = vmax.f32 %v4936, 0.0
        %v5022 = vmax.f32 %v4939, 0.0
        %v5023 = vmax.f32 %v4942, 0.0
        %v5024 = vmax.f32 %v4945, 0.0
        %v5025 = vmax.f32 %v4948, 0.0
        %v5026 = vmax.f32 %v4951, 0.0
        %v5027 = vmax.f32 %v4954, 0.0
        %v5028 = vmax.f32 %v4957, 0.0
        %v5029 = vmax.f32 %v4960, 0.0
        %v5030 = vmax.f32 %v4963, 0.0
        %v5031 = vmax.f32 %v4966, 0.0
        %v5033 = vperm.slane %v2970, 0
        %v5035 = vmul.f32 %v4968, %v5033
        %v5036 = vmul.f32 %v4969, %v5033
        %v5037 = vmul.f32 %v4970, %v5033
        %v5038 = vmul.f32 %v4971, %v5033
        %v5039 = vmul.f32 %v4972, %v5033
        %v5040 = vmul.f32 %v4973, %v5033
        %v5041 = vmul.f32 %v4974, %v5033
        %v5042 = vmul.f32 %v4975, %v5033
        %v5043 = vmul.f32 %v4976, %v5033
        %v5044 = vmul.f32 %v4977, %v5033
        %v5045 = vmul.f32 %v4978, %v5033
        %v5046 = vmul.f32 %v4979, %v5033
        %v5047 = vmul.f32 %v4980, %v5033
        %v5048 = vmul.f32 %v4981, %v5033
        %v5049 = vmul.f32 %v4982, %v5033
        %v5050 = vmul.f32 %v4983, %v5033
        %v5051 = vmul.f32 %v4984, %v5033
        %v5052 = vmul.f32 %v4985, %v5033
        %v5053 = vmul.f32 %v4986, %v5033
        %v5054 = vmul.f32 %v4987, %v5033
        %v5055 = vmul.f32 %v4988, %v5033
        %v5056 = vmul.f32 %v4989, %v5033
        %v5057 = vmul.f32 %v4990, %v5033
        %v5058 = vmul.f32 %v4991, %v5033
        %v5059 = vmul.f32 %v4992, %v5033
        %v5060 = vmul.f32 %v4993, %v5033
        %v5061 = vmul.f32 %v4994, %v5033
        %v5062 = vmul.f32 %v4995, %v5033
        %v5063 = vmul.f32 %v4996, %v5033
        %v5064 = vmul.f32 %v4997, %v5033
        %v5065 = vmul.f32 %v4998, %v5033
        %v5066 = vmul.f32 %v4999, %v5033
        %v5067 = vmul.f32 %v5000, %v5033
        %v5068 = vmul.f32 %v5001, %v5033
        %v5069 = vmul.f32 %v5002, %v5033
        %v5070 = vmul.f32 %v5003, %v5033
        %v5071 = vmul.f32 %v5004, %v5033
        %v5072 = vmul.f32 %v5005, %v5033
        %v5073 = vmul.f32 %v5006, %v5033
        %v5074 = vmul.f32 %v5007, %v5033
        %v5075 = vmul.f32 %v5008, %v5033
        %v5076 = vmul.f32 %v5009, %v5033
        %v5077 = vmul.f32 %v5010, %v5033
        %v5078 = vmul.f32 %v5011, %v5033
        %v5079 = vmul.f32 %v5012, %v5033
        %v5080 = vmul.f32 %v5013, %v5033
        %v5081 = vmul.f32 %v5014, %v5033
        %v5082 = vmul.f32 %v5015, %v5033
        %v5083 = vmul.f32 %v5016, %v5033
        %v5084 = vmul.f32 %v5017, %v5033
        %v5085 = vmul.f32 %v5018, %v5033
        %v5086 = vmul.f32 %v5019, %v5033
        %v5087 = vmul.f32 %v5020, %v5033
        %v5088 = vmul.f32 %v5021, %v5033
        %v5089 = vmul.f32 %v5022, %v5033
        %v5090 = vmul.f32 %v5023, %v5033
        %v5091 = vmul.f32 %v5024, %v5033
        %v5092 = vmul.f32 %v5025, %v5033
        %v5093 = vmul.f32 %v5026, %v5033
        %v5094 = vmul.f32 %v5027, %v5033
        %v5095 = vmul.f32 %v5028, %v5033
        %v5096 = vmul.f32 %v5029, %v5033
        %v5097 = vmul.f32 %v5030, %v5033
        %v5098 = vmul.f32 %v5031, %v5033
        %v5100 = vperm.slane %v2971, 0
        %v5102 = vadd.f32 %v5035, %v5100
        %v5103 = vadd.f32 %v5036, %v5100
        %v5104 = vadd.f32 %v5037, %v5100
        %v5105 = vadd.f32 %v5038, %v5100
        %v5106 = vadd.f32 %v5039, %v5100
        %v5107 = vadd.f32 %v5040, %v5100
        %v5108 = vadd.f32 %v5041, %v5100
        %v5109 = vadd.f32 %v5042, %v5100
        %v5110 = vadd.f32 %v5043, %v5100
        %v5111 = vadd.f32 %v5044, %v5100
        %v5112 = vadd.f32 %v5045, %v5100
        %v5113 = vadd.f32 %v5046, %v5100
        %v5114 = vadd.f32 %v5047, %v5100
        %v5115 = vadd.f32 %v5048, %v5100
        %v5116 = vadd.f32 %v5049, %v5100
        %v5117 = vadd.f32 %v5050, %v5100
        %v5118 = vadd.f32 %v5051, %v5100
        %v5119 = vadd.f32 %v5052, %v5100
        %v5120 = vadd.f32 %v5053, %v5100
        %v5121 = vadd.f32 %v5054, %v5100
        %v5122 = vadd.f32 %v5055, %v5100
        %v5123 = vadd.f32 %v5056, %v5100
        %v5124 = vadd.f32 %v5057, %v5100
        %v5125 = vadd.f32 %v5058, %v5100
        %v5126 = vadd.f32 %v5059, %v5100
        %v5127 = vadd.f32 %v5060, %v5100
        %v5128 = vadd.f32 %v5061, %v5100
        %v5129 = vadd.f32 %v5062, %v5100
        %v5130 = vadd.f32 %v5063, %v5100
        %v5131 = vadd.f32 %v5064, %v5100
        %v5132 = vadd.f32 %v5065, %v5100
        %v5133 = vadd.f32 %v5066, %v5100
        %v5134 = vadd.f32 %v5067, %v5100
        %v5135 = vadd.f32 %v5068, %v5100
        %v5136 = vadd.f32 %v5069, %v5100
        %v5137 = vadd.f32 %v5070, %v5100
        %v5138 = vadd.f32 %v5071, %v5100
        %v5139 = vadd.f32 %v5072, %v5100
        %v5140 = vadd.f32 %v5073, %v5100
        %v5141 = vadd.f32 %v5074, %v5100
        %v5142 = vadd.f32 %v5075, %v5100
        %v5143 = vadd.f32 %v5076, %v5100
        %v5144 = vadd.f32 %v5077, %v5100
        %v5145 = vadd.f32 %v5078, %v5100
        %v5146 = vadd.f32 %v5079, %v5100
        %v5147 = vadd.f32 %v5080, %v5100
        %v5148 = vadd.f32 %v5081, %v5100
        %v5149 = vadd.f32 %v5082, %v5100
        %v5150 = vadd.f32 %v5083, %v5100
        %v5151 = vadd.f32 %v5084, %v5100
        %v5152 = vadd.f32 %v5085, %v5100
        %v5153 = vadd.f32 %v5086, %v5100
        %v5154 = vadd.f32 %v5087, %v5100
        %v5155 = vadd.f32 %v5088, %v5100
        %v5156 = vadd.f32 %v5089, %v5100
        %v5157 = vadd.f32 %v5090, %v5100
        %v5158 = vadd.f32 %v5091, %v5100
        %v5159 = vadd.f32 %v5092, %v5100
        %v5160 = vadd.f32 %v5093, %v5100
        %v5161 = vadd.f32 %v5094, %v5100
        %v5162 = vadd.f32 %v5095, %v5100
        %v5163 = vadd.f32 %v5096, %v5100
        %v5164 = vadd.f32 %v5097, %v5100
        %v5165 = vadd.f32 %v5098, %v5100
        %v5166 = vmax.f32 %v5102, %v5104
        %v5167 = vmax.f32 %v5103, %v5105
        %v5168 = vmax.f32 %v5106, %v5108
        %v5169 = vmax.f32 %v5107, %v5109
        %v5170 = vmax.f32 %v5110, %v5112
        %v5171 = vmax.f32 %v5111, %v5113
        %v5172 = vmax.f32 %v5114, %v5116
        %v5173 = vmax.f32 %v5115, %v5117
        %v5174 = vmax.f32 %v5118, %v5120
        %v5175 = vmax.f32 %v5119, %v5121
        %v5176 = vmax.f32 %v5122, %v5124
        %v5177 = vmax.f32 %v5123, %v5125
        %v5178 = vmax.f32 %v5126, %v5128
        %v5179 = vmax.f32 %v5127, %v5129
        %v5180 = vmax.f32 %v5130, %v5132
        %v5181 = vmax.f32 %v5131, %v5133
        %v5182 = vmax.f32 %v5134, %v5136
        %v5183 = vmax.f32 %v5135, %v5137
        %v5184 = vmax.f32 %v5138, %v5140
        %v5185 = vmax.f32 %v5139, %v5141
        %v5186 = vmax.f32 %v5142, %v5144
        %v5187 = vmax.f32 %v5143, %v5145
        %v5188 = vmax.f32 %v5146, %v5148
        %v5189 = vmax.f32 %v5147, %v5149
        %v5190 = vmax.f32 %v5150, %v5152
        %v5191 = vmax.f32 %v5151, %v5153
        %v5192 = vmax.f32 %v5154, %v5156
        %v5193 = vmax.f32 %v5155, %v5157
        %v5194 = vmax.f32 %v5158, %v5160
        %v5195 = vmax.f32 %v5159, %v5161
        %v5196 = vmax.f32 %v5162, %v5164
        %v5197 = vmax.f32 %v5163, %v5165
        %v5198 = vrot.slane %v5166, 1
        %v5199 = vrot.slane %v5168, 1
        %v5200 = vrot.slane %v5170, 1
        %v5201 = vrot.slane %v5172, 1
        %v5202 = vrot.slane %v5174, 1
        %v5203 = vrot.slane %v5176, 1
        %v5204 = vrot.slane %v5178, 1
        %v5205 = vrot.slane %v5180, 1
        %v5206 = vrot.slane %v5182, 1
        %v5207 = vrot.slane %v5184, 1
        %v5208 = vrot.slane %v5186, 1
        %v5209 = vrot.slane %v5188, 1
        %v5210 = vrot.slane %v5190, 1
        %v5211 = vrot.slane %v5192, 1
        %v5212 = vrot.slane %v5194, 1
        %v5213 = vrot.slane %v5196, 1
        %v5214 = vrot.slane %v5167, 1
        %v5215 = vrot.slane %v5169, 1
        %v5216 = vrot.slane %v5171, 1
        %v5217 = vrot.slane %v5173, 1
        %v5218 = vrot.slane %v5175, 1
        %v5219 = vrot.slane %v5177, 1
        %v5220 = vrot.slane %v5179, 1
        %v5221 = vrot.slane %v5181, 1
        %v5222 = vrot.slane %v5183, 1
        %v5223 = vrot.slane %v5185, 1
        %v5224 = vrot.slane %v5187, 1
        %v5225 = vrot.slane %v5189, 1
        %v5226 = vrot.slane %v5191, 1
        %v5227 = vrot.slane %v5193, 1
        %v5228 = vrot.slane %v5195, 1
        %v5229 = vrot.slane %v5197, 1
        %v5230 = vsel %vm1770, %v5198, %v5214
        %v5231 = vsel %vm1770, %v5199, %v5215
        %v5232 = vsel %vm1770, %v5200, %v5216
        %v5233 = vsel %vm1770, %v5201, %v5217
        %v5234 = vsel %vm1770, %v5202, %v5218
        %v5235 = vsel %vm1770, %v5203, %v5219
        %v5236 = vsel %vm1770, %v5204, %v5220
        %v5237 = vsel %vm1770, %v5205, %v5221
        %v5238 = vsel %vm1770, %v5206, %v5222
        %v5239 = vsel %vm1770, %v5207, %v5223
        %v5240 = vsel %vm1770, %v5208, %v5224
        %v5241 = vsel %vm1770, %v5209, %v5225
        %v5242 = vsel %vm1770, %v5210, %v5226
        %v5243 = vsel %vm1770, %v5211, %v5227
        %v5244 = vsel %vm1770, %v5212, %v5228
        %v5245 = vsel %vm1770, %v5213, %v5229
        %v5246 = vsel %vm1770, %v5214, %v5198
        %v5247 = vsel %vm1770, %v5215, %v5199
        %v5248 = vsel %vm1770, %v5216, %v5200
        %v5249 = vsel %vm1770, %v5217, %v5201
        %v5250 = vsel %vm1770, %v5218, %v5202
        %v5251 = vsel %vm1770, %v5219, %v5203
        %v5252 = vsel %vm1770, %v5220, %v5204
        %v5253 = vsel %vm1770, %v5221, %v5205
        %v5254 = vsel %vm1770, %v5222, %v5206
        %v5255 = vsel %vm1770, %v5223, %v5207
        %v5256 = vsel %vm1770, %v5224, %v5208
        %v5257 = vsel %vm1770, %v5225, %v5209
        %v5258 = vsel %vm1770, %v5226, %v5210
        %v5259 = vsel %vm1770, %v5227, %v5211
        %v5260 = vsel %vm1770, %v5228, %v5212
        %v5261 = vsel %vm1770, %v5229, %v5213
        %v5262 = vmax.f32 %v5166, %v5230
        %v5263 = vmax.f32 %v5167, %v5246
        %v5264 = vmax.f32 %v5168, %v5231
        %v5265 = vmax.f32 %v5169, %v5247
        %v5266 = vmax.f32 %v5170, %v5232
        %v5267 = vmax.f32 %v5171, %v5248
        %v5268 = vmax.f32 %v5172, %v5233
        %v5269 = vmax.f32 %v5173, %v5249
        %v5270 = vmax.f32 %v5174, %v5234
        %v5271 = vmax.f32 %v5175, %v5250
        %v5272 = vmax.f32 %v5176, %v5235
        %v5273 = vmax.f32 %v5177, %v5251
        %v5274 = vmax.f32 %v5178, %v5236
        %v5275 = vmax.f32 %v5179, %v5252
        %v5276 = vmax.f32 %v5180, %v5237
        %v5277 = vmax.f32 %v5181, %v5253
        %v5278 = vmax.f32 %v5182, %v5238
        %v5279 = vmax.f32 %v5183, %v5254
        %v5280 = vmax.f32 %v5184, %v5239
        %v5281 = vmax.f32 %v5185, %v5255
        %v5282 = vmax.f32 %v5186, %v5240
        %v5283 = vmax.f32 %v5187, %v5256
        %v5284 = vmax.f32 %v5188, %v5241
        %v5285 = vmax.f32 %v5189, %v5257
        %v5286 = vmax.f32 %v5190, %v5242
        %v5287 = vmax.f32 %v5191, %v5258
        %v5288 = vmax.f32 %v5192, %v5243
        %v5289 = vmax.f32 %v5193, %v5259
        %v5290 = vmax.f32 %v5194, %v5244
        %v5291 = vmax.f32 %v5195, %v5260
        %v5292 = vmax.f32 %v5196, %v5245
        %v5293 = vmax.f32 %v5197, %v5261
        %v5294 = vld [vmem:[%s13] sm:$0xff]
        %v5295 = vld [vmem:[%s13 + $0x8] sm:$0x1]
        %v5296 = vld [vmem:[%s14] sm:$0x1]
        %v5297 = vld [vmem:[%s15] sm:$0xff]
        %v5298 = vld [vmem:[%s15 + $0x8] sm:$0xff]
        %v5299 = vld [vmem:[%s15 + $0x10] sm:$0xff]
        %v5300 = vld [vmem:[%s15 + $0x18] sm:$0xff]
        %v5301 = vld [vmem:[%s15 + $0x20] sm:$0xff]
        %v5302 = vld [vmem:[%s15 + $0x28] sm:$0xff]
        %v5303 = vld [vmem:[%s15 + $0x30] sm:$0xff]
        %v5304 = vld [vmem:[%s15 + $0x38] sm:$0xff]
        %v5305 = vld [vmem:[%s15 + $0x40] sm:$0xff]
        %v5306 = vld [vmem:[%s15 + $0x48] sm:$0xff]
        %v5307 = vld [vmem:[%s15 + $0x50] sm:$0xff]
        %v5308 = vld [vmem:[%s15 + $0x58] sm:$0xff]
        %v5309 = vld [vmem:[%s15 + $0x60] sm:$0xff]
        %v5310 = vld [vmem:[%s15 + $0x68] sm:$0xff]
        %v5311 = vld [vmem:[%s15 + $0x70] sm:$0xff]
        %v5312 = vld [vmem:[%s15 + $0x78] sm:$0xff]
        %v5313 = vld [vmem:[%s15 + $0x80] sm:$0xff]
        %v5314 = vld [vmem:[%s15 + $0x88] sm:$0xff]
        %v5315 = vld [vmem:[%s15 + $0x90] sm:$0xff]
        %v5316 = vld [vmem:[%s15 + $0x98] sm:$0xff]
        %v5317 = vld [vmem:[%s15 + $0xa0] sm:$0xff]
        %v5318 = vld [vmem:[%s15 + $0xa8] sm:$0xff]
        %v5319 = vld [vmem:[%s15 + $0xb0] sm:$0xff]
        %v5320 = vld [vmem:[%s15 + $0xb8] sm:$0xff]
        %v5321 = vld [vmem:[%s15 + $0xc0] sm:$0xff]
        %v5322 = vld [vmem:[%s15 + $0xc8] sm:$0xff]
        %v5323 = vld [vmem:[%s15 + $0xd0] sm:$0xff]
        %v5324 = vld [vmem:[%s15 + $0xd8] sm:$0xff]
        %v5325 = vld [vmem:[%s15 + $0xe0] sm:$0xff]
        %v5326 = vld [vmem:[%s15 + $0xe8] sm:$0xff]
        %v5327 = vld [vmem:[%s15 + $0xf0] sm:$0xff]
        %v5328 = vld [vmem:[%s15 + $0xf8] sm:$0xff]
        %v5329 = vld [vmem:[%s16] sm:$0x3]
        %v5330 = vld [vmem:[%s17] sm:$0x3]
        %v5331 = vld [vmem:[%s18] sm:$0x3]
        %v5332 = vadd.s32 %v732, 4294967294
        %v5333 = vadd.s32 %v733, 4294967294
        %vm5334 = vcmp.ge.s32.totalorder %v5332, 0
        %vm5335 = vcmp.ge.s32.totalorder %v5333, 0
        %vm5336 = vcmp.le.s32.totalorder %v5332, 15
        %vm5337 = vcmp.le.s32.totalorder %v5333, 15
        %vm5338 = vmand %vm5334, %vm5336
        %vm5339 = vmand %vm5335, %vm5337
        %v5340 = vrot.slane %v5262, 6
        %v5341 = vrot.slane %v5264, 6
        %v5342 = vrot.slane %v5266, 6
        %v5343 = vrot.slane %v5268, 6
        %v5344 = vrot.slane %v5270, 6
        %v5345 = vrot.slane %v5272, 6
        %v5346 = vrot.slane %v5274, 6
        %v5347 = vrot.slane %v5276, 6
        %v5348 = vrot.slane %v5278, 6
        %v5349 = vrot.slane %v5280, 6
        %v5350 = vrot.slane %v5282, 6
        %v5351 = vrot.slane %v5284, 6
        %v5352 = vrot.slane %v5286, 6
        %v5353 = vrot.slane %v5288, 6
        %v5354 = vrot.slane %v5290, 6
        %v5355 = vrot.slane %v5292, 6
        %v5356 = vrot.slane %v5263, 6
        %v5357 = vrot.slane %v5265, 6
        %v5358 = vrot.slane %v5267, 6
        %v5359 = vrot.slane %v5269, 6
        %v5360 = vrot.slane %v5271, 6
        %v5361 = vrot.slane %v5273, 6
        %v5362 = vrot.slane %v5275, 6
        %v5363 = vrot.slane %v5277, 6
        %v5364 = vrot.slane %v5279, 6
        %v5365 = vrot.slane %v5281, 6
        %v5366 = vrot.slane %v5283, 6
        %v5367 = vrot.slane %v5285, 6
        %v5368 = vrot.slane %v5287, 6
        %v5369 = vrot.slane %v5289, 6
        %v5370 = vrot.slane %v5291, 6
        %v5371 = vrot.slane %v5293, 6
        %vm5372 = vcmp.lt.s32.totalorder %v732, 2
        %v5373 = vsel %vm5372, %v5340, %v5356
        %v5374 = vsel %vm5372, %v5341, %v5357
        %v5375 = vsel %vm5372, %v5342, %v5358
        %v5376 = vsel %vm5372, %v5343, %v5359
        %v5377 = vsel %vm5372, %v5344, %v5360
        %v5378 = vsel %vm5372, %v5345, %v5361
        %v5379 = vsel %vm5372, %v5346, %v5362
        %v5380 = vsel %vm5372, %v5347, %v5363
        %v5381 = vsel %vm5372, %v5348, %v5364
        %v5382 = vsel %vm5372, %v5349, %v5365
        %v5383 = vsel %vm5372, %v5350, %v5366
        %v5384 = vsel %vm5372, %v5351, %v5367
        %v5385 = vsel %vm5372, %v5352, %v5368
        %v5386 = vsel %vm5372, %v5353, %v5369
        %v5387 = vsel %vm5372, %v5354, %v5370
        %v5388 = vsel %vm5372, %v5355, %v5371
        %v5389 = vsel %vm5372, %v5356, %v5340
        %v5390 = vsel %vm5372, %v5357, %v5341
        %v5391 = vsel %vm5372, %v5358, %v5342
        %v5392 = vsel %vm5372, %v5359, %v5343
        %v5393 = vsel %vm5372, %v5360, %v5344
        %v5394 = vsel %vm5372, %v5361, %v5345
        %v5395 = vsel %vm5372, %v5362, %v5346
        %v5396 = vsel %vm5372, %v5363, %v5347
        %v5397 = vsel %vm5372, %v5364, %v5348
        %v5398 = vsel %vm5372, %v5365, %v5349
        %v5399 = vsel %vm5372, %v5366, %v5350
        %v5400 = vsel %vm5372, %v5367, %v5351
        %v5401 = vsel %vm5372, %v5368, %v5352
        %v5402 = vsel %vm5372, %v5369, %v5353
        %v5403 = vsel %vm5372, %v5370, %v5354
        %v5404 = vsel %vm5372, %v5371, %v5355
        %v5405 = vsel %vm5338, 1, 0
        %v5406 = vsel %vm5339, 1, 0
        %vm5407 = vcmp.eq.s32.totalorder %v5405, 1
        %vm5408 = vcmp.eq.s32.totalorder %v5406, 1
        %v5409 = vsel %vm5407, %v5389, 0.0
        %v5410 = vsel %vm5408, %v5373, 0.0
        %v5411 = vsel %vm5407, %v5390, 0.0
        %v5412 = vsel %vm5408, %v5374, 0.0
        %v5413 = vsel %vm5407, %v5391, 0.0
        %v5414 = vsel %vm5408, %v5375, 0.0
        %v5415 = vsel %vm5407, %v5392, 0.0
        %v5416 = vsel %vm5408, %v5376, 0.0
        %v5417 = vsel %vm5407, %v5393, 0.0
        %v5418 = vsel %vm5408, %v5377, 0.0
        %v5419 = vsel %vm5407, %v5394, 0.0
        %v5420 = vsel %vm5408, %v5378, 0.0
        %v5421 = vsel %vm5407, %v5395, 0.0
        %v5422 = vsel %vm5408, %v5379, 0.0
        %v5423 = vsel %vm5407, %v5396, 0.0
        %v5424 = vsel %vm5408, %v5380, 0.0
        %v5425 = vsel %vm5407, %v5397, 0.0
        %v5426 = vsel %vm5408, %v5381, 0.0
        %v5427 = vsel %vm5407, %v5398, 0.0
        %v5428 = vsel %vm5408, %v5382, 0.0
        %v5429 = vsel %vm5407, %v5399, 0.0
        %v5430 = vsel %vm5408, %v5383, 0.0
        %v5431 = vsel %vm5407, %v5400, 0.0
        %v5432 = vsel %vm5408, %v5384, 0.0
        %v5433 = vsel %vm5407, %v5401, 0.0
        %v5434 = vsel %vm5408, %v5385, 0.0
        %v5435 = vsel %vm5407, %v5402, 0.0
        %v5436 = vsel %vm5408, %v5386, 0.0
        %v5437 = vsel %vm5407, %v5403, 0.0
        %v5438 = vsel %vm5408, %v5387, 0.0
        %v5439 = vsel %vm5407, %v5404, 0.0
        %v5440 = vsel %vm5408, %v5388, 0.0
        %v5441 = vperm.slane %v5294, 0
        %v5442 = vmul.f32 %v5441, 0.0
        %v5443 = vmul.f32 %v5409, %v5441
        %v5444 = vmul.f32 %v5410, %v5441
        %v5445 = vmul.f32 %v5411, %v5441
        %v5446 = vmul.f32 %v5412, %v5441
        %v5447 = vmul.f32 %v5413, %v5441
        %v5448 = vmul.f32 %v5414, %v5441
        %v5449 = vmul.f32 %v5415, %v5441
        %v5450 = vmul.f32 %v5416, %v5441
        %v5451 = vmul.f32 %v5417, %v5441
        %v5452 = vmul.f32 %v5418, %v5441
        %v5453 = vmul.f32 %v5419, %v5441
        %v5454 = vmul.f32 %v5420, %v5441
        %v5455 = vmul.f32 %v5421, %v5441
        %v5456 = vmul.f32 %v5422, %v5441
        %v5457 = vmul.f32 %v5425, %v5441
        %v5458 = vmul.f32 %v5426, %v5441
        %v5459 = vmul.f32 %v5427, %v5441
        %v5460 = vmul.f32 %v5428, %v5441
        %v5461 = vmul.f32 %v5429, %v5441
        %v5462 = vmul.f32 %v5430, %v5441
        %v5463 = vmul.f32 %v5431, %v5441
        %v5464 = vmul.f32 %v5432, %v5441
        %v5465 = vmul.f32 %v5433, %v5441
        %v5466 = vmul.f32 %v5434, %v5441
        %v5467 = vmul.f32 %v5435, %v5441
        %v5468 = vmul.f32 %v5436, %v5441
        %v5469 = vmul.f32 %v5437, %v5441
        %v5470 = vmul.f32 %v5438, %v5441
        %v5471 = vadd.f32 %v5442, 0.0
        %v5472 = vadd.f32 %v5443, 0.0
        %v5473 = vadd.f32 %v5444, 0.0
        %v5474 = vadd.f32 %v5445, 0.0
        %v5475 = vadd.f32 %v5446, 0.0
        %v5476 = vadd.f32 %v5447, 0.0
        %v5477 = vadd.f32 %v5448, 0.0
        %v5478 = vadd.f32 %v5449, 0.0
        %v5479 = vadd.f32 %v5450, 0.0
        %v5480 = vadd.f32 %v5451, 0.0
        %v5481 = vadd.f32 %v5452, 0.0
        %v5482 = vadd.f32 %v5453, 0.0
        %v5483 = vadd.f32 %v5454, 0.0
        %v5484 = vadd.f32 %v5455, 0.0
        %v5485 = vadd.f32 %v5456, 0.0
        %v5486 = vadd.f32 %v5457, 0.0
        %v5487 = vadd.f32 %v5458, 0.0
        %v5488 = vadd.f32 %v5459, 0.0
        %v5489 = vadd.f32 %v5460, 0.0
        %v5490 = vadd.f32 %v5461, 0.0
        %v5491 = vadd.f32 %v5462, 0.0
        %v5492 = vadd.f32 %v5463, 0.0
        %v5493 = vadd.f32 %v5464, 0.0
        %v5494 = vadd.f32 %v5465, 0.0
        %v5495 = vadd.f32 %v5466, 0.0
        %v5496 = vadd.f32 %v5467, 0.0
        %v5497 = vadd.f32 %v5468, 0.0
        %v5498 = vadd.f32 %v5469, 0.0
        %v5499 = vadd.f32 %v5470, 0.0
        %v5500 = vperm.slane %v5294, 3
        %v5501 = vmul.f32 %v5409, %v5500
        %v5502 = vmul.f32 %v5410, %v5500
        %v5503 = vmul.f32 %v5411, %v5500
        %v5504 = vmul.f32 %v5412, %v5500
        %v5505 = vmul.f32 %v5413, %v5500
        %v5506 = vmul.f32 %v5414, %v5500
        %v5507 = vmul.f32 %v5415, %v5500
        %v5508 = vmul.f32 %v5416, %v5500
        %v5509 = vmul.f32 %v5417, %v5500
        %v5510 = vmul.f32 %v5418, %v5500
        %v5511 = vmul.f32 %v5419, %v5500
        %v5512 = vmul.f32 %v5420, %v5500
        %v5513 = vmul.f32 %v5421, %v5500
        %v5514 = vmul.f32 %v5422, %v5500
        %v5515 = vmul.f32 %v5423, %v5500
        %v5516 = vmul.f32 %v5424, %v5500
        %v5517 = vmul.f32 %v5425, %v5500
        %v5518 = vmul.f32 %v5426, %v5500
        %v5519 = vmul.f32 %v5427, %v5500
        %v5520 = vmul.f32 %v5428, %v5500
        %v5521 = vmul.f32 %v5429, %v5500
        %v5522 = vmul.f32 %v5430, %v5500
        %v5523 = vmul.f32 %v5431, %v5500
        %v5524 = vmul.f32 %v5432, %v5500
        %v5525 = vmul.f32 %v5433, %v5500
        %v5526 = vmul.f32 %v5434, %v5500
        %v5527 = vmul.f32 %v5435, %v5500
        %v5528 = vmul.f32 %v5436, %v5500
        %v5529 = vmul.f32 %v5437, %v5500
        %v5530 = vmul.f32 %v5438, %v5500
        %v5531 = vmul.f32 %v5439, %v5500
        %v5532 = vmul.f32 %v5440, %v5500
        %v5533 = vadd.f32 %v5471, %v5501
        %v5534 = vadd.f32 %v5471, %v5502
        %v5535 = vadd.f32 %v5472, %v5503
        %v5536 = vadd.f32 %v5473, %v5504
        %v5537 = vadd.f32 %v5474, %v5505
        %v5538 = vadd.f32 %v5475, %v5506
        %v5539 = vadd.f32 %v5476, %v5507
        %v5540 = vadd.f32 %v5477, %v5508
        %v5541 = vadd.f32 %v5478, %v5509
        %v5542 = vadd.f32 %v5479, %v5510
        %v5543 = vadd.f32 %v5480, %v5511
        %v5544 = vadd.f32 %v5481, %v5512
        %v5545 = vadd.f32 %v5482, %v5513
        %v5546 = vadd.f32 %v5483, %v5514
        %v5547 = vadd.f32 %v5484, %v5515
        %v5548 = vadd.f32 %v5485, %v5516
        %v5549 = vadd.f32 %v5471, %v5517
        %v5550 = vadd.f32 %v5471, %v5518
        %v5551 = vadd.f32 %v5486, %v5519
        %v5552 = vadd.f32 %v5487, %v5520
        %v5553 = vadd.f32 %v5488, %v5521
        %v5554 = vadd.f32 %v5489, %v5522
        %v5555 = vadd.f32 %v5490, %v5523
        %v5556 = vadd.f32 %v5491, %v5524
        %v5557 = vadd.f32 %v5492, %v5525
        %v5558 = vadd.f32 %v5493, %v5526
        %v5559 = vadd.f32 %v5494, %v5527
        %v5560 = vadd.f32 %v5495, %v5528
        %v5561 = vadd.f32 %v5496, %v5529
        %v5562 = vadd.f32 %v5497, %v5530
        %v5563 = vadd.f32 %v5498, %v5531
        %v5564 = vadd.f32 %v5499, %v5532
        %v5565 = vperm.slane %v5294, 6
        %v5566 = vmul.f32 %v5411, %v5565
        %v5567 = vmul.f32 %v5412, %v5565
        %v5568 = vmul.f32 %v5413, %v5565
        %v5569 = vmul.f32 %v5414, %v5565
        %v5570 = vmul.f32 %v5415, %v5565
        %v5571 = vmul.f32 %v5416, %v5565
        %v5572 = vmul.f32 %v5417, %v5565
        %v5573 = vmul.f32 %v5418, %v5565
        %v5574 = vmul.f32 %v5419, %v5565
        %v5575 = vmul.f32 %v5420, %v5565
        %v5576 = vmul.f32 %v5421, %v5565
        %v5577 = vmul.f32 %v5422, %v5565
        %v5578 = vmul.f32 %v5423, %v5565
        %v5579 = vmul.f32 %v5424, %v5565
        %v5580 = vmul.f32 %v5565, 0.0
        %v5581 = vmul.f32 %v5427, %v5565
        %v5582 = vmul.f32 %v5428, %v5565
        %v5583 = vmul.f32 %v5429, %v5565
        %v5584 = vmul.f32 %v5430, %v5565
        %v5585 = vmul.f32 %v5431, %v5565
        %v5586 = vmul.f32 %v5432, %v5565
        %v5587 = vmul.f32 %v5433, %v5565
        %v5588 = vmul.f32 %v5434, %v5565
        %v5589 = vmul.f32 %v5435, %v5565
        %v5590 = vmul.f32 %v5436, %v5565
        %v5591 = vmul.f32 %v5437, %v5565
        %v5592 = vmul.f32 %v5438, %v5565
        %v5593 = vmul.f32 %v5439, %v5565
        %v5594 = vmul.f32 %v5440, %v5565
        %v5595 = vadd.f32 %v5533, %v5566
        %v5596 = vadd.f32 %v5534, %v5567
        %v5597 = vadd.f32 %v5535, %v5568
        %v5598 = vadd.f32 %v5536, %v5569
        %v5599 = vadd.f32 %v5537, %v5570
        %v5600 = vadd.f32 %v5538, %v5571
        %v5601 = vadd.f32 %v5539, %v5572
        %v5602 = vadd.f32 %v5540, %v5573
        %v5603 = vadd.f32 %v5541, %v5574
        %v5604 = vadd.f32 %v5542, %v5575
        %v5605 = vadd.f32 %v5543, %v5576
        %v5606 = vadd.f32 %v5544, %v5577
        %v5607 = vadd.f32 %v5545, %v5578
        %v5608 = vadd.f32 %v5546, %v5579
        %v5609 = vadd.f32 %v5547, %v5580
        %v5610 = vadd.f32 %v5548, %v5580
        %v5611 = vadd.f32 %v5549, %v5581
        %v5612 = vadd.f32 %v5550, %v5582
        %v5613 = vadd.f32 %v5551, %v5583
        %v5614 = vadd.f32 %v5552, %v5584
        %v5615 = vadd.f32 %v5553, %v5585
        %v5616 = vadd.f32 %v5554, %v5586
        %v5617 = vadd.f32 %v5555, %v5587
        %v5618 = vadd.f32 %v5556, %v5588
        %v5619 = vadd.f32 %v5557, %v5589
        %v5620 = vadd.f32 %v5558, %v5590
        %v5621 = vadd.f32 %v5559, %v5591
        %v5622 = vadd.f32 %v5560, %v5592
        %v5623 = vadd.f32 %v5561, %v5593
        %v5624 = vadd.f32 %v5562, %v5594
        %v5625 = vadd.f32 %v5563, %v5580
        %v5626 = vadd.f32 %v5564, %v5580
        %v5627 = vperm.slane %v5294, 1
        %v5628 = vmul.f32 %v5627, 0.0
        %v5629 = vmul.f32 %v5262, %v5627
        %v5630 = vmul.f32 %v5263, %v5627
        %v5631 = vmul.f32 %v5264, %v5627
        %v5632 = vmul.f32 %v5265, %v5627
        %v5633 = vmul.f32 %v5266, %v5627
        %v5634 = vmul.f32 %v5267, %v5627
        %v5635 = vmul.f32 %v5268, %v5627
        %v5636 = vmul.f32 %v5269, %v5627
        %v5637 = vmul.f32 %v5270, %v5627
        %v5638 = vmul.f32 %v5271, %v5627
        %v5639 = vmul.f32 %v5272, %v5627
        %v5640 = vmul.f32 %v5273, %v5627
        %v5641 = vmul.f32 %v5274, %v5627
        %v5642 = vmul.f32 %v5275, %v5627
        %v5643 = vmul.f32 %v5278, %v5627
        %v5644 = vmul.f32 %v5279, %v5627
        %v5645 = vmul.f32 %v5280, %v5627
        %v5646 = vmul.f32 %v5281, %v5627
        %v5647 = vmul.f32 %v5282, %v5627
        %v5648 = vmul.f32 %v5283, %v5627
        %v5649 = vmul.f32 %v5284, %v5627
        %v5650 = vmul.f32 %v5285, %v5627
        %v5651 = vmul.f32 %v5286, %v5627
        %v5652 = vmul.f32 %v5287, %v5627
        %v5653 = vmul.f32 %v5288, %v5627
        %v5654 = vmul.f32 %v5289, %v5627
        %v5655 = vmul.f32 %v5290, %v5627
        %v5656 = vmul.f32 %v5291, %v5627
        %v5657 = vadd.f32 %v5595, %v5628
        %v5658 = vadd.f32 %v5596, %v5628
        %v5659 = vadd.f32 %v5597, %v5629
        %v5660 = vadd.f32 %v5598, %v5630
        %v5661 = vadd.f32 %v5599, %v5631
        %v5662 = vadd.f32 %v5600, %v5632
        %v5663 = vadd.f32 %v5601, %v5633
        %v5664 = vadd.f32 %v5602, %v5634
        %v5665 = vadd.f32 %v5603, %v5635
        %v5666 = vadd.f32 %v5604, %v5636
        %v5667 = vadd.f32 %v5605, %v5637
        %v5668 = vadd.f32 %v5606, %v5638
        %v5669 = vadd.f32 %v5607, %v5639
        %v5670 = vadd.f32 %v5608, %v5640
        %v5671 = vadd.f32 %v5609, %v5641
        %v5672 = vadd.f32 %v5610, %v5642
        %v5673 = vadd.f32 %v5611, %v5628
        %v5674 = vadd.f32 %v5612, %v5628
        %v5675 = vadd.f32 %v5613, %v5643
        %v5676 = vadd.f32 %v5614, %v5644
        %v5677 = vadd.f32 %v5615, %v5645
        %v5678 = vadd.f32 %v5616, %v5646
        %v5679 = vadd.f32 %v5617, %v5647
        %v5680 = vadd.f32 %v5618, %v5648
        %v5681 = vadd.f32 %v5619, %v5649
        %v5682 = vadd.f32 %v5620, %v5650
        %v5683 = vadd.f32 %v5621, %v5651
        %v5684 = vadd.f32 %v5622, %v5652
        %v5685 = vadd.f32 %v5623, %v5653
        %v5686 = vadd.f32 %v5624, %v5654
        %v5687 = vadd.f32 %v5625, %v5655
        %v5688 = vadd.f32 %v5626, %v5656
        %v5689 = vperm.slane %v5294, 4
        %v5690 = vmul.f32 %v5262, %v5689
        %v5691 = vmul.f32 %v5263, %v5689
        %v5692 = vmul.f32 %v5264, %v5689
        %v5693 = vmul.f32 %v5265, %v5689
        %v5694 = vmul.f32 %v5266, %v5689
        %v5695 = vmul.f32 %v5267, %v5689
        %v5696 = vmul.f32 %v5268, %v5689
        %v5697 = vmul.f32 %v5269, %v5689
        %v5698 = vmul.f32 %v5270, %v5689
        %v5699 = vmul.f32 %v5271, %v5689
        %v5700 = vmul.f32 %v5272, %v5689
        %v5701 = vmul.f32 %v5273, %v5689
        %v5702 = vmul.f32 %v5274, %v5689
        %v5703 = vmul.f32 %v5275, %v5689
        %v5704 = vmul.f32 %v5276, %v5689
        %v5705 = vmul.f32 %v5277, %v5689
        %v5706 = vmul.f32 %v5278, %v5689
        %v5707 = vmul.f32 %v5279, %v5689
        %v5708 = vmul.f32 %v5280, %v5689
        %v5709 = vmul.f32 %v5281, %v5689
        %v5710 = vmul.f32 %v5282, %v5689
        %v5711 = vmul.f32 %v5283, %v5689
        %v5712 = vmul.f32 %v5284, %v5689
        %v5713 = vmul.f32 %v5285, %v5689
        %v5714 = vmul.f32 %v5286, %v5689
        %v5715 = vmul.f32 %v5287, %v5689
        %v5716 = vmul.f32 %v5288, %v5689
        %v5717 = vmul.f32 %v5289, %v5689
        %v5718 = vmul.f32 %v5290, %v5689
        %v5719 = vmul.f32 %v5291, %v5689
        %v5720 = vmul.f32 %v5292, %v5689
        %v5721 = vmul.f32 %v5293, %v5689
        %v5722 = vadd.f32 %v5657, %v5690
        %v5723 = vadd.f32 %v5658, %v5691
        %v5724 = vadd.f32 %v5659, %v5692
        %v5725 = vadd.f32 %v5660, %v5693
        %v5726 = vadd.f32 %v5661, %v5694
        %v5727 = vadd.f32 %v5662, %v5695
        %v5728 = vadd.f32 %v5663, %v5696
        %v5729 = vadd.f32 %v5664, %v5697
        %v5730 = vadd.f32 %v5665, %v5698
        %v5731 = vadd.f32 %v5666, %v5699
        %v5732 = vadd.f32 %v5667, %v5700
        %v5733 = vadd.f32 %v5668, %v5701
        %v5734 = vadd.f32 %v5669, %v5702
        %v5735 = vadd.f32 %v5670, %v5703
        %v5736 = vadd.f32 %v5671, %v5704
        %v5737 = vadd.f32 %v5672, %v5705
        %v5738 = vadd.f32 %v5673, %v5706
        %v5739 = vadd.f32 %v5674, %v5707
        %v5740 = vadd.f32 %v5675, %v5708
        %v5741 = vadd.f32 %v5676, %v5709
        %v5742 = vadd.f32 %v5677, %v5710
        %v5743 = vadd.f32 %v5678, %v5711
        %v5744 = vadd.f32 %v5679, %v5712
        %v5745 = vadd.f32 %v5680, %v5713
        %v5746 = vadd.f32 %v5681, %v5714
        %v5747 = vadd.f32 %v5682, %v5715
        %v5748 = vadd.f32 %v5683, %v5716
        %v5749 = vadd.f32 %v5684, %v5717
        %v5750 = vadd.f32 %v5685, %v5718
        %v5751 = vadd.f32 %v5686, %v5719
        %v5752 = vadd.f32 %v5687, %v5720
        %v5753 = vadd.f32 %v5688, %v5721
        %v5754 = vperm.slane %v5294, 7
        %v5755 = vmul.f32 %v5264, %v5754
        %v5756 = vmul.f32 %v5265, %v5754
        %v5757 = vmul.f32 %v5266, %v5754
        %v5758 = vmul.f32 %v5267, %v5754
        %v5759 = vmul.f32 %v5268, %v5754
        %v5760 = vmul.f32 %v5269, %v5754
        %v5761 = vmul.f32 %v5270, %v5754
        %v5762 = vmul.f32 %v5271, %v5754
        %v5763 = vmul.f32 %v5272, %v5754
        %v5764 = vmul.f32 %v5273, %v5754
        %v5765 = vmul.f32 %v5274, %v5754
        %v5766 = vmul.f32 %v5275, %v5754
        %v5767 = vmul.f32 %v5276, %v5754
        %v5768 = vmul.f32 %v5277, %v5754
        %v5769 = vmul.f32 %v5754, 0.0
        %v5770 = vmul.f32 %v5280, %v5754
        %v5771 = vmul.f32 %v5281, %v5754
        %v5772 = vmul.f32 %v5282, %v5754
        %v5773 = vmul.f32 %v5283, %v5754
        %v5774 = vmul.f32 %v5284, %v5754
        %v5775 = vmul.f32 %v5285, %v5754
        %v5776 = vmul.f32 %v5286, %v5754
        %v5777 = vmul.f32 %v5287, %v5754
        %v5778 = vmul.f32 %v5288, %v5754
        %v5779 = vmul.f32 %v5289, %v5754
        %v5780 = vmul.f32 %v5290, %v5754
        %v5781 = vmul.f32 %v5291, %v5754
        %v5782 = vmul.f32 %v5292, %v5754
        %v5783 = vmul.f32 %v5293, %v5754
        %v5784 = vadd.f32 %v5722, %v5755
        %v5785 = vadd.f32 %v5723, %v5756
        %v5786 = vadd.f32 %v5724, %v5757
        %v5787 = vadd.f32 %v5725, %v5758
        %v5788 = vadd.f32 %v5726, %v5759
        %v5789 = vadd.f32 %v5727, %v5760
        %v5790 = vadd.f32 %v5728, %v5761
        %v5791 = vadd.f32 %v5729, %v5762
        %v5792 = vadd.f32 %v5730, %v5763
        %v5793 = vadd.f32 %v5731, %v5764
        %v5794 = vadd.f32 %v5732, %v5765
        %v5795 = vadd.f32 %v5733, %v5766
        %v5796 = vadd.f32 %v5734, %v5767
        %v5797 = vadd.f32 %v5735, %v5768
        %v5798 = vadd.f32 %v5736, %v5769
        %v5799 = vadd.f32 %v5737, %v5769
        %v5800 = vadd.f32 %v5738, %v5770
        %v5801 = vadd.f32 %v5739, %v5771
        %v5802 = vadd.f32 %v5740, %v5772
        %v5803 = vadd.f32 %v5741, %v5773
        %v5804 = vadd.f32 %v5742, %v5774
        %v5805 = vadd.f32 %v5743, %v5775
        %v5806 = vadd.f32 %v5744, %v5776
        %v5807 = vadd.f32 %v5745, %v5777
        %v5808 = vadd.f32 %v5746, %v5778
        %v5809 = vadd.f32 %v5747, %v5779
        %v5810 = vadd.f32 %v5748, %v5780
        %v5811 = vadd.f32 %v5749, %v5781
        %v5812 = vadd.f32 %v5750, %v5782
        %v5813 = vadd.f32 %v5751, %v5783
        %v5814 = vadd.f32 %v5752, %v5769
        %v5815 = vadd.f32 %v5753, %v5769
        %v5816 = vadd.s32 %v732, 2
        %v5817 = vadd.s32 %v733, 2
        %vm5818 = vcmp.ge.s32.totalorder %v5816, 0
        %vm5819 = vcmp.ge.s32.totalorder %v5817, 0
        %vm5820 = vcmp.le.s32.totalorder %v5816, 15
        %vm5821 = vcmp.le.s32.totalorder %v5817, 15
        %vm5822 = vmand %vm5818, %vm5820
        %vm5823 = vmand %vm5819, %vm5821
        %v5824 = vrot.slane %v5262, 2
        %v5825 = vrot.slane %v5264, 2
        %v5826 = vrot.slane %v5266, 2
        %v5827 = vrot.slane %v5268, 2
        %v5828 = vrot.slane %v5270, 2
        %v5829 = vrot.slane %v5272, 2
        %v5830 = vrot.slane %v5274, 2
        %v5831 = vrot.slane %v5276, 2
        %v5832 = vrot.slane %v5278, 2
        %v5833 = vrot.slane %v5280, 2
        %v5834 = vrot.slane %v5282, 2
        %v5835 = vrot.slane %v5284, 2
        %v5836 = vrot.slane %v5286, 2
        %v5837 = vrot.slane %v5288, 2
        %v5838 = vrot.slane %v5290, 2
        %v5839 = vrot.slane %v5292, 2
        %v5840 = vrot.slane %v5263, 2
        %v5841 = vrot.slane %v5265, 2
        %v5842 = vrot.slane %v5267, 2
        %v5843 = vrot.slane %v5269, 2
        %v5844 = vrot.slane %v5271, 2
        %v5845 = vrot.slane %v5273, 2
        %v5846 = vrot.slane %v5275, 2
        %v5847 = vrot.slane %v5277, 2
        %v5848 = vrot.slane %v5279, 2
        %v5849 = vrot.slane %v5281, 2
        %v5850 = vrot.slane %v5283, 2
        %v5851 = vrot.slane %v5285, 2
        %v5852 = vrot.slane %v5287, 2
        %v5853 = vrot.slane %v5289, 2
        %v5854 = vrot.slane %v5291, 2
        %v5855 = vrot.slane %v5293, 2
        %vm5856 = vcmp.lt.s32.totalorder %v732, 6
        %v5857 = vsel %vm5856, %v5824, %v5840
        %v5858 = vsel %vm5856, %v5825, %v5841
        %v5859 = vsel %vm5856, %v5826, %v5842
        %v5860 = vsel %vm5856, %v5827, %v5843
        %v5861 = vsel %vm5856, %v5828, %v5844
        %v5862 = vsel %vm5856, %v5829, %v5845
        %v5863 = vsel %vm5856, %v5830, %v5846
        %v5864 = vsel %vm5856, %v5831, %v5847
        %v5865 = vsel %vm5856, %v5832, %v5848
        %v5866 = vsel %vm5856, %v5833, %v5849
        %v5867 = vsel %vm5856, %v5834, %v5850
        %v5868 = vsel %vm5856, %v5835, %v5851
        %v5869 = vsel %vm5856, %v5836, %v5852
        %v5870 = vsel %vm5856, %v5837, %v5853
        %v5871 = vsel %vm5856, %v5838, %v5854
        %v5872 = vsel %vm5856, %v5839, %v5855
        %v5873 = vsel %vm5856, %v5840, %v5824
        %v5874 = vsel %vm5856, %v5841, %v5825
        %v5875 = vsel %vm5856, %v5842, %v5826
        %v5876 = vsel %vm5856, %v5843, %v5827
        %v5877 = vsel %vm5856, %v5844, %v5828
        %v5878 = vsel %vm5856, %v5845, %v5829
        %v5879 = vsel %vm5856, %v5846, %v5830
        %v5880 = vsel %vm5856, %v5847, %v5831
        %v5881 = vsel %vm5856, %v5848, %v5832
        %v5882 = vsel %vm5856, %v5849, %v5833
        %v5883 = vsel %vm5856, %v5850, %v5834
        %v5884 = vsel %vm5856, %v5851, %v5835
        %v5885 = vsel %vm5856, %v5852, %v5836
        %v5886 = vsel %vm5856, %v5853, %v5837
        %v5887 = vsel %vm5856, %v5854, %v5838
        %v5888 = vsel %vm5856, %v5855, %v5839
        %v5889 = vsel %vm5822, 1, 0
        %v5890 = vsel %vm5823, 1, 0
        %vm5891 = vcmp.eq.s32.totalorder %v5889, 1
        %vm5892 = vcmp.eq.s32.totalorder %v5890, 1
        %v5893 = vsel %vm5891, %v5857, 0.0
        %v5894 = vsel %vm5892, %v5873, 0.0
        %v5895 = vsel %vm5891, %v5858, 0.0
        %v5896 = vsel %vm5892, %v5874, 0.0
        %v5897 = vsel %vm5891, %v5859, 0.0
        %v5898 = vsel %vm5892, %v5875, 0.0
        %v5899 = vsel %vm5891, %v5860, 0.0
        %v5900 = vsel %vm5892, %v5876, 0.0
        %v5901 = vsel %vm5891, %v5861, 0.0
        %v5902 = vsel %vm5892, %v5877, 0.0
        %v5903 = vsel %vm5891, %v5862, 0.0
        %v5904 = vsel %vm5892, %v5878, 0.0
        %v5905 = vsel %vm5891, %v5863, 0.0
        %v5906 = vsel %vm5892, %v5879, 0.0
        %v5907 = vsel %vm5891, %v5864, 0.0
        %v5908 = vsel %vm5892, %v5880, 0.0
        %v5909 = vsel %vm5891, %v5865, 0.0
        %v5910 = vsel %vm5892, %v5881, 0.0
        %v5911 = vsel %vm5891, %v5866, 0.0
        %v5912 = vsel %vm5892, %v5882, 0.0
        %v5913 = vsel %vm5891, %v5867, 0.0
        %v5914 = vsel %vm5892, %v5883, 0.0
        %v5915 = vsel %vm5891, %v5868, 0.0
        %v5916 = vsel %vm5892, %v5884, 0.0
        %v5917 = vsel %vm5891, %v5869, 0.0
        %v5918 = vsel %vm5892, %v5885, 0.0
        %v5919 = vsel %vm5891, %v5870, 0.0
        %v5920 = vsel %vm5892, %v5886, 0.0
        %v5921 = vsel %vm5891, %v5871, 0.0
        %v5922 = vsel %vm5892, %v5887, 0.0
        %v5923 = vsel %vm5891, %v5872, 0.0
        %v5924 = vsel %vm5892, %v5888, 0.0
        %v5925 = vperm.slane %v5294, 2
        %v5926 = vmul.f32 %v5925, 0.0
        %v5927 = vmul.f32 %v5893, %v5925
        %v5928 = vmul.f32 %v5894, %v5925
        %v5929 = vmul.f32 %v5895, %v5925
        %v5930 = vmul.f32 %v5896, %v5925
        %v5931 = vmul.f32 %v5897, %v5925
        %v5932 = vmul.f32 %v5898, %v5925
        %v5933 = vmul.f32 %v5899, %v5925
        %v5934 = vmul.f32 %v5900, %v5925
        %v5935 = vmul.f32 %v5901, %v5925
        %v5936 = vmul.f32 %v5902, %v5925
        %v5937 = vmul.f32 %v5903, %v5925
        %v5938 = vmul.f32 %v5904, %v5925
        %v5939 = vmul.f32 %v5905, %v5925
        %v5940 = vmul.f32 %v5906, %v5925
        %v5941 = vmul.f32 %v5909, %v5925
        %v5942 = vmul.f32 %v5910, %v5925
        %v5943 = vmul.f32 %v5911, %v5925
        %v5944 = vmul.f32 %v5912, %v5925
        %v5945 = vmul.f32 %v5913, %v5925
        %v5946 = vmul.f32 %v5914, %v5925
        %v5947 = vmul.f32 %v5915, %v5925
        %v5948 = vmul.f32 %v5916, %v5925
        %v5949 = vmul.f32 %v5917, %v5925
        %v5950 = vmul.f32 %v5918, %v5925
        %v5951 = vmul.f32 %v5919, %v5925
        %v5952 = vmul.f32 %v5920, %v5925
        %v5953 = vmul.f32 %v5921, %v5925
        %v5954 = vmul.f32 %v5922, %v5925
        %v5955 = vadd.f32 %v5784, %v5926
        %v5956 = vadd.f32 %v5785, %v5926
        %v5957 = vadd.f32 %v5786, %v5927
        %v5958 = vadd.f32 %v5787, %v5928
        %v5959 = vadd.f32 %v5788, %v5929
        %v5960 = vadd.f32 %v5789, %v5930
        %v5961 = vadd.f32 %v5790, %v5931
        %v5962 = vadd.f32 %v5791, %v5932
        %v5963 = vadd.f32 %v5792, %v5933
        %v5964 = vadd.f32 %v5793, %v5934
        %v5965 = vadd.f32 %v5794, %v5935
        %v5966 = vadd.f32 %v5795, %v5936
        %v5967 = vadd.f32 %v5796, %v5937
        %v5968 = vadd.f32 %v5797, %v5938
        %v5969 = vadd.f32 %v5798, %v5939
        %v5970 = vadd.f32 %v5799, %v5940
        %v5971 = vadd.f32 %v5800, %v5926
        %v5972 = vadd.f32 %v5801, %v5926
        %v5973 = vadd.f32 %v5802, %v5941
        %v5974 = vadd.f32 %v5803, %v5942
        %v5975 = vadd.f32 %v5804, %v5943
        %v5976 = vadd.f32 %v5805, %v5944
        %v5977 = vadd.f32 %v5806, %v5945
        %v5978 = vadd.f32 %v5807, %v5946
        %v5979 = vadd.f32 %v5808, %v5947
        %v5980 = vadd.f32 %v5809, %v5948
        %v5981 = vadd.f32 %v5810, %v5949
        %v5982 = vadd.f32 %v5811, %v5950
        %v5983 = vadd.f32 %v5812, %v5951
        %v5984 = vadd.f32 %v5813, %v5952
        %v5985 = vadd.f32 %v5814, %v5953
        %v5986 = vadd.f32 %v5815, %v5954
        %v5987 = vperm.slane %v5294, 5
        %v5988 = vmul.f32 %v5893, %v5987
        %v5989 = vmul.f32 %v5894, %v5987
        %v5990 = vmul.f32 %v5895, %v5987
        %v5991 = vmul.f32 %v5896, %v5987
        %v5992 = vmul.f32 %v5897, %v5987
        %v5993 = vmul.f32 %v5898, %v5987
        %v5994 = vmul.f32 %v5899, %v5987
        %v5995 = vmul.f32 %v5900, %v5987
        %v5996 = vmul.f32 %v5901, %v5987
        %v5997 = vmul.f32 %v5902, %v5987
        %v5998 = vmul.f32 %v5903, %v5987
        %v5999 = vmul.f32 %v5904, %v5987
        %v6000 = vmul.f32 %v5905, %v5987
        %v6001 = vmul.f32 %v5906, %v5987
        %v6002 = vmul.f32 %v5907, %v5987
        %v6003 = vmul.f32 %v5908, %v5987
        %v6004 = vmul.f32 %v5909, %v5987
        %v6005 = vmul.f32 %v5910, %v5987
        %v6006 = vmul.f32 %v5911, %v5987
        %v6007 = vmul.f32 %v5912, %v5987
        %v6008 = vmul.f32 %v5913, %v5987
        %v6009 = vmul.f32 %v5914, %v5987
        %v6010 = vmul.f32 %v5915, %v5987
        %v6011 = vmul.f32 %v5916, %v5987
        %v6012 = vmul.f32 %v5917, %v5987
        %v6013 = vmul.f32 %v5918, %v5987
        %v6014 = vmul.f32 %v5919, %v5987
        %v6015 = vmul.f32 %v5920, %v5987
        %v6016 = vmul.f32 %v5921, %v5987
        %v6017 = vmul.f32 %v5922, %v5987
        %v6018 = vmul.f32 %v5923, %v5987
        %v6019 = vmul.f32 %v5924, %v5987
        %v6020 = vadd.f32 %v5955, %v5988
        %v6021 = vadd.f32 %v5956, %v5989
        %v6022 = vadd.f32 %v5957, %v5990
        %v6023 = vadd.f32 %v5958, %v5991
        %v6024 = vadd.f32 %v5959, %v5992
        %v6025 = vadd.f32 %v5960, %v5993
        %v6026 = vadd.f32 %v5961, %v5994
        %v6027 = vadd.f32 %v5962, %v5995
        %v6028 = vadd.f32 %v5963, %v5996
        %v6029 = vadd.f32 %v5964, %v5997
        %v6030 = vadd.f32 %v5965, %v5998
        %v6031 = vadd.f32 %v5966, %v5999
        %v6032 = vadd.f32 %v5967, %v6000
        %v6033 = vadd.f32 %v5968, %v6001
        %v6034 = vadd.f32 %v5969, %v6002
        %v6035 = vadd.f32 %v5970, %v6003
        %v6036 = vadd.f32 %v5971, %v6004
        %v6037 = vadd.f32 %v5972, %v6005
        %v6038 = vadd.f32 %v5973, %v6006
        %v6039 = vadd.f32 %v5974, %v6007
        %v6040 = vadd.f32 %v5975, %v6008
        %v6041 = vadd.f32 %v5976, %v6009
        %v6042 = vadd.f32 %v5977, %v6010
        %v6043 = vadd.f32 %v5978, %v6011
        %v6044 = vadd.f32 %v5979, %v6012
        %v6045 = vadd.f32 %v5980, %v6013
        %v6046 = vadd.f32 %v5981, %v6014
        %v6047 = vadd.f32 %v5982, %v6015
        %v6048 = vadd.f32 %v5983, %v6016
        %v6049 = vadd.f32 %v5984, %v6017
        %v6050 = vadd.f32 %v5985, %v6018
        %v6051 = vadd.f32 %v5986, %v6019
        %v6052 = vperm.slane %v5295, 0
        %v6053 = vmul.f32 %v5895, %v6052
        %v6054 = vmul.f32 %v5896, %v6052
        %v6055 = vmul.f32 %v5897, %v6052
        %v6056 = vmul.f32 %v5898, %v6052
        %v6057 = vmul.f32 %v5899, %v6052
        %v6058 = vmul.f32 %v5900, %v6052
        %v6059 = vmul.f32 %v5901, %v6052
        %v6060 = vmul.f32 %v5902, %v6052
        %v6061 = vmul.f32 %v5903, %v6052
        %v6062 = vmul.f32 %v5904, %v6052
        %v6063 = vmul.f32 %v5905, %v6052
        %v6064 = vmul.f32 %v5906, %v6052
        %v6065 = vmul.f32 %v5907, %v6052
        %v6066 = vmul.f32 %v5908, %v6052
        %v6067 = vmul.f32 %v6052, 0.0
        %v6068 = vmul.f32 %v5911, %v6052
        %v6069 = vmul.f32 %v5912, %v6052
        %v6070 = vmul.f32 %v5913, %v6052
        %v6071 = vmul.f32 %v5914, %v6052
        %v6072 = vmul.f32 %v5915, %v6052
        %v6073 = vmul.f32 %v5916, %v6052
        %v6074 = vmul.f32 %v5917, %v6052
        %v6075 = vmul.f32 %v5918, %v6052
        %v6076 = vmul.f32 %v5919, %v6052
        %v6077 = vmul.f32 %v5920, %v6052
        %v6078 = vmul.f32 %v5921, %v6052
        %v6079 = vmul.f32 %v5922, %v6052
        %v6080 = vmul.f32 %v5923, %v6052
        %v6081 = vmul.f32 %v5924, %v6052
        %v6082 = vadd.f32 %v6020, %v6053
        %v6083 = vadd.f32 %v6021, %v6054
        %v6084 = vadd.f32 %v6022, %v6055
        %v6085 = vadd.f32 %v6023, %v6056
        %v6086 = vadd.f32 %v6024, %v6057
        %v6087 = vadd.f32 %v6025, %v6058
        %v6088 = vadd.f32 %v6026, %v6059
        %v6089 = vadd.f32 %v6027, %v6060
        %v6090 = vadd.f32 %v6028, %v6061
        %v6091 = vadd.f32 %v6029, %v6062
        %v6092 = vadd.f32 %v6030, %v6063
        %v6093 = vadd.f32 %v6031, %v6064
        %v6094 = vadd.f32 %v6032, %v6065
        %v6095 = vadd.f32 %v6033, %v6066
        %v6096 = vadd.f32 %v6034, %v6067
        %v6097 = vadd.f32 %v6035, %v6067
        %v6098 = vadd.f32 %v6036, %v6068
        %v6099 = vadd.f32 %v6037, %v6069
        %v6100 = vadd.f32 %v6038, %v6070
        %v6101 = vadd.f32 %v6039, %v6071
        %v6102 = vadd.f32 %v6040, %v6072
        %v6103 = vadd.f32 %v6041, %v6073
        %v6104 = vadd.f32 %v6042, %v6074
        %v6105 = vadd.f32 %v6043, %v6075
        %v6106 = vadd.f32 %v6044, %v6076
        %v6107 = vadd.f32 %v6045, %v6077
        %v6108 = vadd.f32 %v6046, %v6078
        %v6109 = vadd.f32 %v6047, %v6079
        %v6110 = vadd.f32 %v6048, %v6080
        %v6111 = vadd.f32 %v6049, %v6081
        %v6112 = vadd.f32 %v6050, %v6067
        %v6113 = vadd.f32 %v6051, %v6067
        %v6115 = vperm.slane %v5296, 0
        %v6117 = vadd.f32 %v6082, %v6115
        %v6118 = vadd.f32 %v6083, %v6115
        %v6119 = vadd.f32 %v6084, %v6115
        %v6120 = vadd.f32 %v6085, %v6115
        %v6121 = vadd.f32 %v6086, %v6115
        %v6122 = vadd.f32 %v6087, %v6115
        %v6123 = vadd.f32 %v6088, %v6115
        %v6124 = vadd.f32 %v6089, %v6115
        %v6125 = vadd.f32 %v6090, %v6115
        %v6126 = vadd.f32 %v6091, %v6115
        %v6127 = vadd.f32 %v6092, %v6115
        %v6128 = vadd.f32 %v6093, %v6115
        %v6129 = vadd.f32 %v6094, %v6115
        %v6130 = vadd.f32 %v6095, %v6115
        %v6131 = vadd.f32 %v6096, %v6115
        %v6132 = vadd.f32 %v6097, %v6115
        %v6133 = vadd.f32 %v6098, %v6115
        %v6134 = vadd.f32 %v6099, %v6115
        %v6135 = vadd.f32 %v6100, %v6115
        %v6136 = vadd.f32 %v6101, %v6115
        %v6137 = vadd.f32 %v6102, %v6115
        %v6138 = vadd.f32 %v6103, %v6115
        %v6139 = vadd.f32 %v6104, %v6115
        %v6140 = vadd.f32 %v6105, %v6115
        %v6141 = vadd.f32 %v6106, %v6115
        %v6142 = vadd.f32 %v6107, %v6115
        %v6143 = vadd.f32 %v6108, %v6115
        %v6144 = vadd.f32 %v6109, %v6115
        %v6145 = vadd.f32 %v6110, %v6115
        %v6146 = vadd.f32 %v6111, %v6115
        %v6147 = vadd.f32 %v6112, %v6115
        %v6148 = vadd.f32 %v6113, %v6115
        %v6150 = vperm.slane %v5329, 0
        %v6151 = vperm.slane %v5329, 1
        %6154 = vmatpush.msra.mxu0 %v5327
        %6155 = vmatpush.msra.mxu0 %v5325
        %6156 = vmatpush.msra.mxu0 %v5323
        %6157 = vmatpush.msra.mxu0 %v5321
        %6158 = vmatpush.msra.mxu0 %v5319
        %6159 = vmatpush.msra.mxu0 %v5317
        %6160 = vmatpush.msra.mxu0 %v5315
        %6161 = vmatpush.msra.mxu0 %v5313
        %6162 = vmatpush.msra.mxu0 %v5311
        %6163 = vmatpush.msra.mxu0 %v5309
        %6164 = vmatpush.msra.mxu0 %v5307
        %6165 = vmatpush.msra.mxu0 %v5305
        %6166 = vmatpush.msra.mxu0 %v5303
        %6167 = vmatpush.msra.mxu0 %v5301
        %6168 = vmatpush.msra.mxu0 %v5299
        %6169 = vmatpush.msra.mxu0 %v5297
        %6170 = vmatmul.f32.gmra.mxu0 %v6117
        %v6171 = vpop.f32.mrf.mxu0
        %v6172 = vadd.f32 %v6150, %v6171
        %6173 = vmatmul.f32.gmra.mxu0 %v6118
        %v6174 = vpop.f32.mrf.mxu0
        %v6175 = vadd.f32 %v6150, %v6174
        %6176 = vmatmul.f32.gmra.mxu0 %v6119
        %v6177 = vpop.f32.mrf.mxu0
        %v6178 = vadd.f32 %v6150, %v6177
        %6179 = vmatmul.f32.gmra.mxu0 %v6120
        %v6180 = vpop.f32.mrf.mxu0
        %v6181 = vadd.f32 %v6150, %v6180
        %6182 = vmatmul.f32.gmra.mxu0 %v6121
        %v6183 = vpop.f32.mrf.mxu0
        %v6184 = vadd.f32 %v6150, %v6183
        %6185 = vmatmul.f32.gmra.mxu0 %v6122
        %v6186 = vpop.f32.mrf.mxu0
        %v6187 = vadd.f32 %v6150, %v6186
        %6188 = vmatmul.f32.gmra.mxu0 %v6123
        %v6189 = vpop.f32.mrf.mxu0
        %v6190 = vadd.f32 %v6150, %v6189
        %6191 = vmatmul.f32.gmra.mxu0 %v6124
        %v6192 = vpop.f32.mrf.mxu0
        %v6193 = vadd.f32 %v6150, %v6192
        %6194 = vmatmul.f32.gmra.mxu0 %v6125
        %v6195 = vpop.f32.mrf.mxu0
        %v6196 = vadd.f32 %v6150, %v6195
        %6197 = vmatmul.f32.gmra.mxu0 %v6126
        %v6198 = vpop.f32.mrf.mxu0
        %v6199 = vadd.f32 %v6150, %v6198
        %6200 = vmatmul.f32.gmra.mxu0 %v6127
        %v6201 = vpop.f32.mrf.mxu0
        %v6202 = vadd.f32 %v6150, %v6201
        %6203 = vmatmul.f32.gmra.mxu0 %v6128
        %v6204 = vpop.f32.mrf.mxu0
        %v6205 = vadd.f32 %v6150, %v6204
        %6206 = vmatmul.f32.gmra.mxu0 %v6129
        %v6207 = vpop.f32.mrf.mxu0
        %v6208 = vadd.f32 %v6150, %v6207
        %6209 = vmatmul.f32.gmra.mxu0 %v6130
        %v6210 = vpop.f32.mrf.mxu0
        %v6211 = vadd.f32 %v6150, %v6210
        %6212 = vmatmul.f32.gmra.mxu0 %v6131
        %v6213 = vpop.f32.mrf.mxu0
        %v6214 = vadd.f32 %v6150, %v6213
        %6215 = vmatmul.f32.gmra.mxu0 %v6132
        %v6216 = vpop.f32.mrf.mxu0
        %v6217 = vadd.f32 %v6150, %v6216
        %6218 = vmatmul.f32.gmra.mxu0 %v6133
        %v6219 = vpop.f32.mrf.mxu0
        %v6220 = vadd.f32 %v6150, %v6219
        %6221 = vmatmul.f32.gmra.mxu0 %v6134
        %v6222 = vpop.f32.mrf.mxu0
        %v6223 = vadd.f32 %v6150, %v6222
        %6224 = vmatmul.f32.gmra.mxu0 %v6135
        %v6225 = vpop.f32.mrf.mxu0
        %v6226 = vadd.f32 %v6150, %v6225
        %6227 = vmatmul.f32.gmra.mxu0 %v6136
        %v6228 = vpop.f32.mrf.mxu0
        %v6229 = vadd.f32 %v6150, %v6228
        %6230 = vmatmul.f32.gmra.mxu0 %v6137
        %v6231 = vpop.f32.mrf.mxu0
        %v6232 = vadd.f32 %v6150, %v6231
        %6233 = vmatmul.f32.gmra.mxu0 %v6138
        %v6234 = vpop.f32.mrf.mxu0
        %v6235 = vadd.f32 %v6150, %v6234
        %6236 = vmatmul.f32.gmra.mxu0 %v6139
        %v6237 = vpop.f32.mrf.mxu0
        %v6238 = vadd.f32 %v6150, %v6237
        %6239 = vmatmul.f32.gmra.mxu0 %v6140
        %v6240 = vpop.f32.mrf.mxu0
        %v6241 = vadd.f32 %v6150, %v6240
        %6242 = vmatmul.f32.gmra.mxu0 %v6141
        %v6243 = vpop.f32.mrf.mxu0
        %v6244 = vadd.f32 %v6150, %v6243
        %6245 = vmatmul.f32.gmra.mxu0 %v6142
        %v6246 = vpop.f32.mrf.mxu0
        %v6247 = vadd.f32 %v6150, %v6246
        %6248 = vmatmul.f32.gmra.mxu0 %v6143
        %v6249 = vpop.f32.mrf.mxu0
        %v6250 = vadd.f32 %v6150, %v6249
        %6251 = vmatmul.f32.gmra.mxu0 %v6144
        %v6252 = vpop.f32.mrf.mxu0
        %v6253 = vadd.f32 %v6150, %v6252
        %6254 = vmatmul.f32.gmra.mxu0 %v6145
        %v6255 = vpop.f32.mrf.mxu0
        %v6256 = vadd.f32 %v6150, %v6255
        %6257 = vmatmul.f32.gmra.mxu0 %v6146
        %v6258 = vpop.f32.mrf.mxu0
        %v6259 = vadd.f32 %v6150, %v6258
        %6260 = vmatmul.f32.gmra.mxu0 %v6147
        %v6261 = vpop.f32.mrf.mxu0
        %v6262 = vadd.f32 %v6150, %v6261
        %6263 = vmatmul.f32.gmra.mxu0 %v6148
        %v6264 = vpop.f32.mrf.mxu0
        %v6265 = vadd.f32 %v6150, %v6264
        %6266 = vdwg.mxu0
        %6267 = vmatpush.msra.mxu0 %v5328
        %6268 = vmatpush.msra.mxu0 %v5326
        %6269 = vmatpush.msra.mxu0 %v5324
        %6270 = vmatpush.msra.mxu0 %v5322
        %6271 = vmatpush.msra.mxu0 %v5320
        %6272 = vmatpush.msra.mxu0 %v5318
        %6273 = vmatpush.msra.mxu0 %v5316
        %6274 = vmatpush.msra.mxu0 %v5314
        %6275 = vmatpush.msra.mxu0 %v5312
        %6276 = vmatpush.msra.mxu0 %v5310
        %6277 = vmatpush.msra.mxu0 %v5308
        %6278 = vmatpush.msra.mxu0 %v5306
        %6279 = vmatpush.msra.mxu0 %v5304
        %6280 = vmatpush.msra.mxu0 %v5302
        %6281 = vmatpush.msra.mxu0 %v5300
        %6282 = vmatpush.msra.mxu0 %v5298
        %6283 = vmatmul.f32.gmra.mxu0 %v6117
        %v6284 = vpop.f32.mrf.mxu0
        %v6285 = vadd.f32 %v6151, %v6284
        %6286 = vmatmul.f32.gmra.mxu0 %v6118
        %v6287 = vpop.f32.mrf.mxu0
        %v6288 = vadd.f32 %v6151, %v6287
        %6289 = vmatmul.f32.gmra.mxu0 %v6119
        %v6290 = vpop.f32.mrf.mxu0
        %v6291 = vadd.f32 %v6151, %v6290
        %6292 = vmatmul.f32.gmra.mxu0 %v6120
        %v6293 = vpop.f32.mrf.mxu0
        %v6294 = vadd.f32 %v6151, %v6293
        %6295 = vmatmul.f32.gmra.mxu0 %v6121
        %v6296 = vpop.f32.mrf.mxu0
        %v6297 = vadd.f32 %v6151, %v6296
        %6298 = vmatmul.f32.gmra.mxu0 %v6122
        %v6299 = vpop.f32.mrf.mxu0
        %v6300 = vadd.f32 %v6151, %v6299
        %6301 = vmatmul.f32.gmra.mxu0 %v6123
        %v6302 = vpop.f32.mrf.mxu0
        %v6303 = vadd.f32 %v6151, %v6302
        %6304 = vmatmul.f32.gmra.mxu0 %v6124
        %v6305 = vpop.f32.mrf.mxu0
        %v6306 = vadd.f32 %v6151, %v6305
        %6307 = vmatmul.f32.gmra.mxu0 %v6125
        %v6308 = vpop.f32.mrf.mxu0
        %v6309 = vadd.f32 %v6151, %v6308
        %6310 = vmatmul.f32.gmra.mxu0 %v6126
        %v6311 = vpop.f32.mrf.mxu0
        %v6312 = vadd.f32 %v6151, %v6311
        %6313 = vmatmul.f32.gmra.mxu0 %v6127
        %v6314 = vpop.f32.mrf.mxu0
        %v6315 = vadd.f32 %v6151, %v6314
        %6316 = vmatmul.f32.gmra.mxu0 %v6128
        %v6317 = vpop.f32.mrf.mxu0
        %v6318 = vadd.f32 %v6151, %v6317
        %6319 = vmatmul.f32.gmra.mxu0 %v6129
        %v6320 = vpop.f32.mrf.mxu0
        %v6321 = vadd.f32 %v6151, %v6320
        %6322 = vmatmul.f32.gmra.mxu0 %v6130
        %v6323 = vpop.f32.mrf.mxu0
        %v6324 = vadd.f32 %v6151, %v6323
        %6325 = vmatmul.f32.gmra.mxu0 %v6131
        %v6326 = vpop.f32.mrf.mxu0
        %v6327 = vadd.f32 %v6151, %v6326
        %6328 = vmatmul.f32.gmra.mxu0 %v6132
        %v6329 = vpop.f32.mrf.mxu0
        %v6330 = vadd.f32 %v6151, %v6329
        %6331 = vmatmul.f32.gmra.mxu0 %v6133
        %v6332 = vpop.f32.mrf.mxu0
        %v6333 = vadd.f32 %v6151, %v6332
        %6334 = vmatmul.f32.gmra.mxu0 %v6134
        %v6335 = vpop.f32.mrf.mxu0
        %v6336 = vadd.f32 %v6151, %v6335
        %6337 = vmatmul.f32.gmra.mxu0 %v6135
        %v6338 = vpop.f32.mrf.mxu0
        %v6339 = vadd.f32 %v6151, %v6338
        %6340 = vmatmul.f32.gmra.mxu0 %v6136
        %v6341 = vpop.f32.mrf.mxu0
        %v6342 = vadd.f32 %v6151, %v6341
        %6343 = vmatmul.f32.gmra.mxu0 %v6137
        %v6344 = vpop.f32.mrf.mxu0
        %v6345 = vadd.f32 %v6151, %v6344
        %6346 = vmatmul.f32.gmra.mxu0 %v6138
        %v6347 = vpop.f32.mrf.mxu0
        %v6348 = vadd.f32 %v6151, %v6347
        %6349 = vmatmul.f32.gmra.mxu0 %v6139
        %v6350 = vpop.f32.mrf.mxu0
        %v6351 = vadd.f32 %v6151, %v6350
        %6352 = vmatmul.f32.gmra.mxu0 %v6140
        %v6353 = vpop.f32.mrf.mxu0
        %v6354 = vadd.f32 %v6151, %v6353
        %6355 = vmatmul.f32.gmra.mxu0 %v6141
        %v6356 = vpop.f32.mrf.mxu0
        %v6357 = vadd.f32 %v6151, %v6356
        %6358 = vmatmul.f32.gmra.mxu0 %v6142
        %v6359 = vpop.f32.mrf.mxu0
        %v6360 = vadd.f32 %v6151, %v6359
        %6361 = vmatmul.f32.gmra.mxu0 %v6143
        %v6362 = vpop.f32.mrf.mxu0
        %v6363 = vadd.f32 %v6151, %v6362
        %6364 = vmatmul.f32.gmra.mxu0 %v6144
        %v6365 = vpop.f32.mrf.mxu0
        %v6366 = vadd.f32 %v6151, %v6365
        %6367 = vmatmul.f32.gmra.mxu0 %v6145
        %v6368 = vpop.f32.mrf.mxu0
        %v6369 = vadd.f32 %v6151, %v6368
        %6370 = vmatmul.f32.gmra.mxu0 %v6146
        %v6371 = vpop.f32.mrf.mxu0
        %v6372 = vadd.f32 %v6151, %v6371
        %6373 = vmatmul.f32.gmra.mxu0 %v6147
        %v6374 = vpop.f32.mrf.mxu0
        %v6375 = vadd.f32 %v6151, %v6374
        %6376 = vmatmul.f32.gmra.mxu0 %v6148
        %v6377 = vpop.f32.mrf.mxu0
        %v6378 = vadd.f32 %v6151, %v6377
        %6379 = vdwg.mxu0
        %v6380 = vmax.f32 %v6172, 0.0
        %v6381 = vmax.f32 %v6285, 0.0
        %v6382 = vmax.f32 %v6175, 0.0
        %v6383 = vmax.f32 %v6288, 0.0
        %v6384 = vmax.f32 %v6178, 0.0
        %v6385 = vmax.f32 %v6291, 0.0
        %v6386 = vmax.f32 %v6181, 0.0
        %v6387 = vmax.f32 %v6294, 0.0
        %v6388 = vmax.f32 %v6184, 0.0
        %v6389 = vmax.f32 %v6297, 0.0
        %v6390 = vmax.f32 %v6187, 0.0
        %v6391 = vmax.f32 %v6300, 0.0
        %v6392 = vmax.f32 %v6190, 0.0
        %v6393 = vmax.f32 %v6303, 0.0
        %v6394 = vmax.f32 %v6193, 0.0
        %v6395 = vmax.f32 %v6306, 0.0
        %v6396 = vmax.f32 %v6196, 0.0
        %v6397 = vmax.f32 %v6309, 0.0
        %v6398 = vmax.f32 %v6199, 0.0
        %v6399 = vmax.f32 %v6312, 0.0
        %v6400 = vmax.f32 %v6202, 0.0
        %v6401 = vmax.f32 %v6315, 0.0
        %v6402 = vmax.f32 %v6205, 0.0
        %v6403 = vmax.f32 %v6318, 0.0
        %v6404 = vmax.f32 %v6208, 0.0
        %v6405 = vmax.f32 %v6321, 0.0
        %v6406 = vmax.f32 %v6211, 0.0
        %v6407 = vmax.f32 %v6324, 0.0
        %v6408 = vmax.f32 %v6214, 0.0
        %v6409 = vmax.f32 %v6327, 0.0
        %v6410 = vmax.f32 %v6217, 0.0
        %v6411 = vmax.f32 %v6330, 0.0
        %v6412 = vmax.f32 %v6220, 0.0
        %v6413 = vmax.f32 %v6333, 0.0
        %v6414 = vmax.f32 %v6223, 0.0
        %v6415 = vmax.f32 %v6336, 0.0
        %v6416 = vmax.f32 %v6226, 0.0
        %v6417 = vmax.f32 %v6339, 0.0
        %v6418 = vmax.f32 %v6229, 0.0
        %v6419 = vmax.f32 %v6342, 0.0
        %v6420 = vmax.f32 %v6232, 0.0
        %v6421 = vmax.f32 %v6345, 0.0
        %v6422 = vmax.f32 %v6235, 0.0
        %v6423 = vmax.f32 %v6348, 0.0
        %v6424 = vmax.f32 %v6238, 0.0
        %v6425 = vmax.f32 %v6351, 0.0
        %v6426 = vmax.f32 %v6241, 0.0
        %v6427 = vmax.f32 %v6354, 0.0
        %v6428 = vmax.f32 %v6244, 0.0
        %v6429 = vmax.f32 %v6357, 0.0
        %v6430 = vmax.f32 %v6247, 0.0
        %v6431 = vmax.f32 %v6360, 0.0
        %v6432 = vmax.f32 %v6250, 0.0
        %v6433 = vmax.f32 %v6363, 0.0
        %v6434 = vmax.f32 %v6253, 0.0
        %v6435 = vmax.f32 %v6366, 0.0
        %v6436 = vmax.f32 %v6256, 0.0
        %v6437 = vmax.f32 %v6369, 0.0
        %v6438 = vmax.f32 %v6259, 0.0
        %v6439 = vmax.f32 %v6372, 0.0
        %v6440 = vmax.f32 %v6262, 0.0
        %v6441 = vmax.f32 %v6375, 0.0
        %v6442 = vmax.f32 %v6265, 0.0
        %v6443 = vmax.f32 %v6378, 0.0
        %v6445 = vperm.slane %v5330, 0
        %v6446 = vperm.slane %v5330, 1
        %v6449 = vmul.f32 %v6380, %v6445
        %v6450 = vmul.f32 %v6381, %v6446
        %v6451 = vmul.f32 %v6382, %v6445
        %v6452 = vmul.f32 %v6383, %v6446
        %v6453 = vmul.f32 %v6384, %v6445
        %v6454 = vmul.f32 %v6385, %v6446
        %v6455 = vmul.f32 %v6386, %v6445
        %v6456 = vmul.f32 %v6387, %v6446
        %v6457 = vmul.f32 %v6388, %v6445
        %v6458 = vmul.f32 %v6389, %v6446
        %v6459 = vmul.f32 %v6390, %v6445
        %v6460 = vmul.f32 %v6391, %v6446
        %v6461 = vmul.f32 %v6392, %v6445
        %v6462 = vmul.f32 %v6393, %v6446
        %v6463 = vmul.f32 %v6394, %v6445
        %v6464 = vmul.f32 %v6395, %v6446
        %v6465 = vmul.f32 %v6396, %v6445
        %v6466 = vmul.f32 %v6397, %v6446
        %v6467 = vmul.f32 %v6398, %v6445
        %v6468 = vmul.f32 %v6399, %v6446
        %v6469 = vmul.f32 %v6400, %v6445
        %v6470 = vmul.f32 %v6401, %v6446
        %v6471 = vmul.f32 %v6402, %v6445
        %v6472 = vmul.f32 %v6403, %v6446
        %v6473 = vmul.f32 %v6404, %v6445
        %v6474 = vmul.f32 %v6405, %v6446
        %v6475 = vmul.f32 %v6406, %v6445
        %v6476 = vmul.f32 %v6407, %v6446
        %v6477 = vmul.f32 %v6408, %v6445
        %v6478 = vmul.f32 %v6409, %v6446
        %v6479 = vmul.f32 %v6410, %v6445
        %v6480 = vmul.f32 %v6411, %v6446
        %v6481 = vmul.f32 %v6412, %v6445
        %v6482 = vmul.f32 %v6413, %v6446
        %v6483 = vmul.f32 %v6414, %v6445
        %v6484 = vmul.f32 %v6415, %v6446
        %v6485 = vmul.f32 %v6416, %v6445
        %v6486 = vmul.f32 %v6417, %v6446
        %v6487 = vmul.f32 %v6418, %v6445
        %v6488 = vmul.f32 %v6419, %v6446
        %v6489 = vmul.f32 %v6420, %v6445
        %v6490 = vmul.f32 %v6421, %v6446
        %v6491 = vmul.f32 %v6422, %v6445
        %v6492 = vmul.f32 %v6423, %v6446
        %v6493 = vmul.f32 %v6424, %v6445
        %v6494 = vmul.f32 %v6425, %v6446
        %v6495 = vmul.f32 %v6426, %v6445
        %v6496 = vmul.f32 %v6427, %v6446
        %v6497 = vmul.f32 %v6428, %v6445
        %v6498 = vmul.f32 %v6429, %v6446
        %v6499 = vmul.f32 %v6430, %v6445
        %v6500 = vmul.f32 %v6431, %v6446
        %v6501 = vmul.f32 %v6432, %v6445
        %v6502 = vmul.f32 %v6433, %v6446
        %v6503 = vmul.f32 %v6434, %v6445
        %v6504 = vmul.f32 %v6435, %v6446
        %v6505 = vmul.f32 %v6436, %v6445
        %v6506 = vmul.f32 %v6437, %v6446
        %v6507 = vmul.f32 %v6438, %v6445
        %v6508 = vmul.f32 %v6439, %v6446
        %v6509 = vmul.f32 %v6440, %v6445
        %v6510 = vmul.f32 %v6441, %v6446
        %v6511 = vmul.f32 %v6442, %v6445
        %v6512 = vmul.f32 %v6443, %v6446
        %v6514 = vperm.slane %v5331, 0
        %v6515 = vperm.slane %v5331, 1
        %v6518 = vadd.f32 %v6449, %v6514
        %v6519 = vadd.f32 %v6450, %v6515
        %v6520 = vadd.f32 %v6451, %v6514
        %v6521 = vadd.f32 %v6452, %v6515
        %v6522 = vadd.f32 %v6453, %v6514
        %v6523 = vadd.f32 %v6454, %v6515
        %v6524 = vadd.f32 %v6455, %v6514
        %v6525 = vadd.f32 %v6456, %v6515
        %v6526 = vadd.f32 %v6457, %v6514
        %v6527 = vadd.f32 %v6458, %v6515
        %v6528 = vadd.f32 %v6459, %v6514
        %v6529 = vadd.f32 %v6460, %v6515
        %v6530 = vadd.f32 %v6461, %v6514
        %v6531 = vadd.f32 %v6462, %v6515
        %v6532 = vadd.f32 %v6463, %v6514
        %v6533 = vadd.f32 %v6464, %v6515
        %v6534 = vadd.f32 %v6465, %v6514
        %v6535 = vadd.f32 %v6466, %v6515
        %v6536 = vadd.f32 %v6467, %v6514
        %v6537 = vadd.f32 %v6468, %v6515
        %v6538 = vadd.f32 %v6469, %v6514
        %v6539 = vadd.f32 %v6470, %v6515
        %v6540 = vadd.f32 %v6471, %v6514
        %v6541 = vadd.f32 %v6472, %v6515
        %v6542 = vadd.f32 %v6473, %v6514
        %v6543 = vadd.f32 %v6474, %v6515
        %v6544 = vadd.f32 %v6475, %v6514
        %v6545 = vadd.f32 %v6476, %v6515
        %v6546 = vadd.f32 %v6477, %v6514
        %v6547 = vadd.f32 %v6478, %v6515
        %v6548 = vadd.f32 %v6479, %v6514
        %v6549 = vadd.f32 %v6480, %v6515
        %v6550 = vadd.f32 %v6481, %v6514
        %v6551 = vadd.f32 %v6482, %v6515
        %v6552 = vadd.f32 %v6483, %v6514
        %v6553 = vadd.f32 %v6484, %v6515
        %v6554 = vadd.f32 %v6485, %v6514
        %v6555 = vadd.f32 %v6486, %v6515
        %v6556 = vadd.f32 %v6487, %v6514
        %v6557 = vadd.f32 %v6488, %v6515
        %v6558 = vadd.f32 %v6489, %v6514
        %v6559 = vadd.f32 %v6490, %v6515
        %v6560 = vadd.f32 %v6491, %v6514
        %v6561 = vadd.f32 %v6492, %v6515
        %v6562 = vadd.f32 %v6493, %v6514
        %v6563 = vadd.f32 %v6494, %v6515
        %v6564 = vadd.f32 %v6495, %v6514
        %v6565 = vadd.f32 %v6496, %v6515
        %v6566 = vadd.f32 %v6497, %v6514
        %v6567 = vadd.f32 %v6498, %v6515
        %v6568 = vadd.f32 %v6499, %v6514
        %v6569 = vadd.f32 %v6500, %v6515
        %v6570 = vadd.f32 %v6501, %v6514
        %v6571 = vadd.f32 %v6502, %v6515
        %v6572 = vadd.f32 %v6503, %v6514
        %v6573 = vadd.f32 %v6504, %v6515
        %v6574 = vadd.f32 %v6505, %v6514
        %v6575 = vadd.f32 %v6506, %v6515
        %v6576 = vadd.f32 %v6507, %v6514
        %v6577 = vadd.f32 %v6508, %v6515
        %v6578 = vadd.f32 %v6509, %v6514
        %v6579 = vadd.f32 %v6510, %v6515
        %v6580 = vadd.f32 %v6511, %v6514
        %v6581 = vadd.f32 %v6512, %v6515
        %v6582 = vmax.f32 %v6518, %v6522
        %v6583 = vmax.f32 %v6519, %v6523
        %v6584 = vmax.f32 %v6520, %v6524
        %v6585 = vmax.f32 %v6521, %v6525
        %v6586 = vmax.f32 %v6526, %v6530
        %v6587 = vmax.f32 %v6527, %v6531
        %v6588 = vmax.f32 %v6528, %v6532
        %v6589 = vmax.f32 %v6529, %v6533
        %v6590 = vmax.f32 %v6534, %v6538
        %v6591 = vmax.f32 %v6535, %v6539
        %v6592 = vmax.f32 %v6536, %v6540
        %v6593 = vmax.f32 %v6537, %v6541
        %v6594 = vmax.f32 %v6542, %v6546
        %v6595 = vmax.f32 %v6543, %v6547
        %v6596 = vmax.f32 %v6544, %v6548
        %v6597 = vmax.f32 %v6545, %v6549
        %v6598 = vmax.f32 %v6550, %v6554
        %v6599 = vmax.f32 %v6551, %v6555
        %v6600 = vmax.f32 %v6552, %v6556
        %v6601 = vmax.f32 %v6553, %v6557
        %v6602 = vmax.f32 %v6558, %v6562
        %v6603 = vmax.f32 %v6559, %v6563
        %v6604 = vmax.f32 %v6560, %v6564
        %v6605 = vmax.f32 %v6561, %v6565
        %v6606 = vmax.f32 %v6566, %v6570
        %v6607 = vmax.f32 %v6567, %v6571
        %v6608 = vmax.f32 %v6568, %v6572
        %v6609 = vmax.f32 %v6569, %v6573
        %v6610 = vmax.f32 %v6574, %v6578
        %v6611 = vmax.f32 %v6575, %v6579
        %v6612 = vmax.f32 %v6576, %v6580
        %v6613 = vmax.f32 %v6577, %v6581
        %v6614 = vrot.slane %v6582, 2
        %v6615 = vrot.slane %v6583, 2
        %v6616 = vrot.slane %v6586, 2
        %v6617 = vrot.slane %v6587, 2
        %v6618 = vrot.slane %v6590, 2
        %v6619 = vrot.slane %v6591, 2
        %v6620 = vrot.slane %v6594, 2
        %v6621 = vrot.slane %v6595, 2
        %v6622 = vrot.slane %v6598, 2
        %v6623 = vrot.slane %v6599, 2
        %v6624 = vrot.slane %v6602, 2
        %v6625 = vrot.slane %v6603, 2
        %v6626 = vrot.slane %v6606, 2
        %v6627 = vrot.slane %v6607, 2
        %v6628 = vrot.slane %v6610, 2
        %v6629 = vrot.slane %v6611, 2
        %v6630 = vrot.slane %v6584, 2
        %v6631 = vrot.slane %v6585, 2
        %v6632 = vrot.slane %v6588, 2
        %v6633 = vrot.slane %v6589, 2
        %v6634 = vrot.slane %v6592, 2
        %v6635 = vrot.slane %v6593, 2
        %v6636 = vrot.slane %v6596, 2
        %v6637 = vrot.slane %v6597, 2
        %v6638 = vrot.slane %v6600, 2
        %v6639 = vrot.slane %v6601, 2
        %v6640 = vrot.slane %v6604, 2
        %v6641 = vrot.slane %v6605, 2
        %v6642 = vrot.slane %v6608, 2
        %v6643 = vrot.slane %v6609, 2
        %v6644 = vrot.slane %v6612, 2
        %v6645 = vrot.slane %v6613, 2
        %v6646 = vsel %vm5856, %v6614, %v6630
        %v6647 = vsel %vm5856, %v6615, %v6631
        %v6648 = vsel %vm5856, %v6616, %v6632
        %v6649 = vsel %vm5856, %v6617, %v6633
        %v6650 = vsel %vm5856, %v6618, %v6634
        %v6651 = vsel %vm5856, %v6619, %v6635
        %v6652 = vsel %vm5856, %v6620, %v6636
        %v6653 = vsel %vm5856, %v6621, %v6637
        %v6654 = vsel %vm5856, %v6622, %v6638
        %v6655 = vsel %vm5856, %v6623, %v6639
        %v6656 = vsel %vm5856, %v6624, %v6640
        %v6657 = vsel %vm5856, %v6625, %v6641
        %v6658 = vsel %vm5856, %v6626, %v6642
        %v6659 = vsel %vm5856, %v6627, %v6643
        %v6660 = vsel %vm5856, %v6628, %v6644
        %v6661 = vsel %vm5856, %v6629, %v6645
        %v6662 = vsel %vm5856, %v6630, %v6614
        %v6663 = vsel %vm5856, %v6631, %v6615
        %v6664 = vsel %vm5856, %v6632, %v6616
        %v6665 = vsel %vm5856, %v6633, %v6617
        %v6666 = vsel %vm5856, %v6634, %v6618
        %v6667 = vsel %vm5856, %v6635, %v6619
        %v6668 = vsel %vm5856, %v6636, %v6620
        %v6669 = vsel %vm5856, %v6637, %v6621
        %v6670 = vsel %vm5856, %v6638, %v6622
        %v6671 = vsel %vm5856, %v6639, %v6623
        %v6672 = vsel %vm5856, %v6640, %v6624
        %v6673 = vsel %vm5856, %v6641, %v6625
        %v6674 = vsel %vm5856, %v6642, %v6626
        %v6675 = vsel %vm5856, %v6643, %v6627
        %v6676 = vsel %vm5856, %v6644, %v6628
        %v6677 = vsel %vm5856, %v6645, %v6629
        %v6678 = vmax.f32 %v6582, %v6646
        %v6679 = vmax.f32 %v6583, %v6647
        %v6680 = vmax.f32 %v6584, %v6662
        %v6681 = vmax.f32 %v6585, %v6663
        %v6682 = vmax.f32 %v6586, %v6648
        %v6683 = vmax.f32 %v6587, %v6649
        %v6684 = vmax.f32 %v6588, %v6664
        %v6685 = vmax.f32 %v6589, %v6665
        %v6686 = vmax.f32 %v6590, %v6650
        %v6687 = vmax.f32 %v6591, %v6651
        %v6688 = vmax.f32 %v6592, %v6666
        %v6689 = vmax.f32 %v6593, %v6667
        %v6690 = vmax.f32 %v6594, %v6652
        %v6691 = vmax.f32 %v6595, %v6653
        %v6692 = vmax.f32 %v6596, %v6668
        %v6693 = vmax.f32 %v6597, %v6669
        %v6694 = vmax.f32 %v6598, %v6654
        %v6695 = vmax.f32 %v6599, %v6655
        %v6696 = vmax.f32 %v6600, %v6670
        %v6697 = vmax.f32 %v6601, %v6671
        %v6698 = vmax.f32 %v6602, %v6656
        %v6699 = vmax.f32 %v6603, %v6657
        %v6700 = vmax.f32 %v6604, %v6672
        %v6701 = vmax.f32 %v6605, %v6673
        %v6702 = vmax.f32 %v6606, %v6658
        %v6703 = vmax.f32 %v6607, %v6659
        %v6704 = vmax.f32 %v6608, %v6674
        %v6705 = vmax.f32 %v6609, %v6675
        %v6706 = vmax.f32 %v6610, %v6660
        %v6707 = vmax.f32 %v6611, %v6661
        %v6708 = vmax.f32 %v6612, %v6676
        %v6709 = vmax.f32 %v6613, %v6677
        %vm6710 = vcmp.lt.s32.totalorder %v732, 0
        %v6711 = vsub.s32 0, %v732
        %v6712 = vsel %vm6710, %v6711, %v732
        %v6713 = vshrl.u32 %v6712, 2
        %v6714 = vand.u32 %v6712, 3
        %v6715 = vsub.s32 0, %v6714
        %v6716 = vsel %vm6710, %v6715, %v6714
        %vm6717 = vcmp.lt.s32.totalorder %v733, 0
        %v6718 = vsub.s32 0, %v733
        %v6719 = vsel %vm6717, %v6718, %v733
        %v6720 = vshrl.u32 %v6719, 2
        %v6721 = vand.u32 %v6719, 3
        %v6722 = vsub.s32 0, %v6721
        %v6723 = vsel %vm6717, %v6722, %v6721
        %vm6724 = vcmp.ne.s32.totalorder %v6716, 0
        %vm6725 = vcmp.ne.s32.totalorder %v6723, 0
        %vm6726 = vcmp.lt.s32.totalorder %v6716, 0
        %vm6727 = vcmp.lt.s32.totalorder %v6723, 0
        %vm6728 = vmand %vm6726, %vm6724
        %vm6729 = vmand %vm6727, %vm6725
        %v6730 = vadd.s32 %v6716, 4
        %v6731 = vadd.s32 %v6723, 4
        %v6732 = vsel %vm6728, %v6730, %v6716
        %v6733 = vsel %vm6729, %v6731, %v6723
        %vm6734 = vcmp.eq.s32.totalorder %v6732, 0
        %vm6735 = vcmp.eq.s32.totalorder %v6733, 0
        %v6736 = vsel %vm6734, 1.0, 0.0
        %v6737 = vsel %vm6735, 1.0, 0.0
        %v6738 = vmul.f32 %v6678, %v6736
        %v6739 = vmul.f32 %v6679, %v6736
        %v6740 = vmul.f32 %v6680, %v6737
        %v6741 = vmul.f32 %v6681, %v6737
        %v6742 = vmul.f32 %v6682, %v6736
        %v6743 = vmul.f32 %v6683, %v6736
        %v6744 = vmul.f32 %v6684, %v6737
        %v6745 = vmul.f32 %v6685, %v6737
        %v6746 = vmul.f32 %v6686, %v6736
        %v6747 = vmul.f32 %v6687, %v6736
        %v6748 = vmul.f32 %v6688, %v6737
        %v6749 = vmul.f32 %v6689, %v6737
        %v6750 = vmul.f32 %v6690, %v6736
        %v6751 = vmul.f32 %v6691, %v6736
        %v6752 = vmul.f32 %v6692, %v6737
        %v6753 = vmul.f32 %v6693, %v6737
        %v6754 = vmul.f32 %v6694, %v6736
        %v6755 = vmul.f32 %v6695, %v6736
        %v6756 = vmul.f32 %v6696, %v6737
        %v6757 = vmul.f32 %v6697, %v6737
        %v6758 = vmul.f32 %v6698, %v6736
        %v6759 = vmul.f32 %v6699, %v6736
        %v6760 = vmul.f32 %v6700, %v6737
        %v6761 = vmul.f32 %v6701, %v6737
        %v6762 = vmul.f32 %v6702, %v6736
        %v6763 = vmul.f32 %v6703, %v6736
        %v6764 = vmul.f32 %v6704, %v6737
        %v6765 = vmul.f32 %v6705, %v6737
        %v6766 = vmul.f32 %v6706, %v6736
        %v6767 = vmul.f32 %v6707, %v6736
        %v6768 = vmul.f32 %v6708, %v6737
        %v6769 = vmul.f32 %v6709, %v6737
        %v6770 = vadd.f32 %v6738, %v6740
        %v6771 = vadd.f32 %v6770, %v6742
        %v6772 = vadd.f32 %v6771, %v6744
        %v6773 = vadd.f32 %v6772, %v6746
        %v6774 = vadd.f32 %v6773, %v6748
        %v6775 = vadd.f32 %v6774, %v6750
        %v6776 = vadd.f32 %v6775, %v6752
        %v6777 = vrot.slane %v6776, 4
        %v6778 = vadd.f32 %v6776, %v6777
        %v6779 = vrot.slane %v6778, 2
        %v6780 = vadd.f32 %v6778, %v6779
        %v6781 = vrot.slane %v6780, 1
        %v6782 = vadd.f32 %v6780, %v6781
        %v6783 = vadd.f32 %v6739, %v6741
        %v6784 = vadd.f32 %v6783, %v6743
        %v6785 = vadd.f32 %v6784, %v6745
        %v6786 = vadd.f32 %v6785, %v6747
        %v6787 = vadd.f32 %v6786, %v6749
        %v6788 = vadd.f32 %v6787, %v6751
        %v6789 = vadd.f32 %v6788, %v6753
        %v6790 = vrot.slane %v6789, 4
        %v6791 = vadd.f32 %v6789, %v6790
        %v6792 = vrot.slane %v6791, 2
        %v6793 = vadd.f32 %v6791, %v6792
        %v6794 = vrot.slane %v6793, 1
        %v6795 = vadd.f32 %v6793, %v6794
        %v6796 = vadd.f32 %v6754, %v6756
        %v6797 = vadd.f32 %v6796, %v6758
        %v6798 = vadd.f32 %v6797, %v6760
        %v6799 = vadd.f32 %v6798, %v6762
        %v6800 = vadd.f32 %v6799, %v6764
        %v6801 = vadd.f32 %v6800, %v6766
        %v6802 = vadd.f32 %v6801, %v6768
        %v6803 = vrot.slane %v6802, 4
        %v6804 = vadd.f32 %v6802, %v6803
        %v6805 = vrot.slane %v6804, 2
        %v6806 = vadd.f32 %v6804, %v6805
        %v6807 = vrot.slane %v6806, 1
        %v6808 = vadd.f32 %v6806, %v6807
        %v6809 = vadd.f32 %v6755, %v6757
        %v6810 = vadd.f32 %v6809, %v6759
        %v6811 = vadd.f32 %v6810, %v6761
        %v6812 = vadd.f32 %v6811, %v6763
        %v6813 = vadd.f32 %v6812, %v6765
        %v6814 = vadd.f32 %v6813, %v6767
        %v6815 = vadd.f32 %v6814, %v6769
        %v6816 = vrot.slane %v6815, 4
        %v6817 = vadd.f32 %v6815, %v6816
        %v6818 = vrot.slane %v6817, 2
        %v6819 = vadd.f32 %v6817, %v6818
        %v6820 = vrot.slane %v6819, 1
        %v6821 = vadd.f32 %v6819, %v6820
        %v6822 = vmul.f32 %v6782, 0.0625
        %v6823 = vmul.f32 %v6795, 0.0625
        %v6824 = vmul.f32 %v6808, 0.0625
        %v6825 = vmul.f32 %v6821, 0.0625
        %v6826 = vld [vmem:[%s19] sm:$0xff]
        %v6827 = vld [vmem:[%s19 + $0x8] sm:$0xff]
        %v6828 = vld [vmem:[%s19 + $0x10] sm:$0xff]
        %v6829 = vld [vmem:[%s19 + $0x18] sm:$0xff]
        %v6830 = vld [vmem:[%s19 + $0x20] sm:$0xff]
        %v6831 = vld [vmem:[%s19 + $0x28] sm:$0xff]
        %v6832 = vld [vmem:[%s19 + $0x30] sm:$0xff]
        %v6833 = vld [vmem:[%s19 + $0x38] sm:$0xff]
        %v6834 = vld [vmem:[%s19 + $0x40] sm:$0xff]
        %v6835 = vld [vmem:[%s19 + $0x48] sm:$0xff]
        %v6836 = vld [vmem:[%s19 + $0x50] sm:$0xff]
        %v6837 = vld [vmem:[%s19 + $0x58] sm:$0xff]
        %v6838 = vld [vmem:[%s19 + $0x60] sm:$0xff]
        %v6839 = vld [vmem:[%s19 + $0x68] sm:$0xff]
        %v6840 = vld [vmem:[%s19 + $0x70] sm:$0xff]
        %v6841 = vld [vmem:[%s19 + $0x78] sm:$0xff]
        %v6842 = vld [vmem:[%s19 + $0x80] sm:$0xff]
        %v6843 = vld [vmem:[%s19 + $0x88] sm:$0xff]
        %v6844 = vld [vmem:[%s19 + $0x90] sm:$0xff]
        %v6845 = vld [vmem:[%s19 + $0x98] sm:$0xff]
        %v6846 = vld [vmem:[%s19 + $0xa0] sm:$0xff]
        %v6847 = vld [vmem:[%s19 + $0xa8] sm:$0xff]
        %v6848 = vld [vmem:[%s19 + $0xb0] sm:$0xff]
        %v6849 = vld [vmem:[%s19 + $0xb8] sm:$0xff]
        %v6850 = vld [vmem:[%s19 + $0xc0] sm:$0xff]
        %v6851 = vld [vmem:[%s19 + $0xc8] sm:$0xff]
        %v6852 = vld [vmem:[%s19 + $0xd0] sm:$0xff]
        %v6853 = vld [vmem:[%s19 + $0xd8] sm:$0xff]
        %v6854 = vld [vmem:[%s19 + $0xe0] sm:$0xff]
        %v6855 = vld [vmem:[%s19 + $0xe8] sm:$0xff]
        %v6856 = vld [vmem:[%s19 + $0xf0] sm:$0xff]
        %v6857 = vld [vmem:[%s19 + $0xf8] sm:$0xff]
        %v6858 = vld [vmem:[%s20] sm:$0x1]
        %v6860 = vperm.slane %v6858, 0
        %vm6866 = vcmask 1041409
        %v6867 = vsel %vm6866, %v6824, %v6822
        %v6868 = vsel %vm6866, %v6825, %v6823
        %6871 = vmatpush.msra.mxu0 %v6841
        %6872 = vmatpush.msra.mxu0 %v6840
        %6873 = vmatpush.msra.mxu0 %v6839
        %6874 = vmatpush.msra.mxu0 %v6838
        %6875 = vmatpush.msra.mxu0 %v6837
        %6876 = vmatpush.msra.mxu0 %v6836
        %6877 = vmatpush.msra.mxu0 %v6835
        %6878 = vmatpush.msra.mxu0 %v6834
        %6879 = vmatpush.msra.mxu0 %v6833
        %6880 = vmatpush.msra.mxu0 %v6832
        %6881 = vmatpush.msra.mxu0 %v6831
        %6882 = vmatpush.msra.mxu0 %v6830
        %6883 = vmatpush.msra.mxu0 %v6829
        %6884 = vmatpush.msra.mxu0 %v6828
        %6885 = vmatpush.msra.mxu0 %v6827
        %6886 = vmatpush.msra.mxu0 %v6826
        %6887 = vmatmul.f32.gmra.mxu0 %v6867
        %v6888 = vpop.f32.mrf.mxu0
        %v6889 = vadd.f32 %v6860, %v6888
        %6890 = vdwg.mxu0
        %6891 = vmatpush.msra.mxu0 %v6857
        %6892 = vmatpush.msra.mxu0 %v6856
        %6893 = vmatpush.msra.mxu0 %v6855
        %6894 = vmatpush.msra.mxu0 %v6854
        %6895 = vmatpush.msra.mxu0 %v6853
        %6896 = vmatpush.msra.mxu0 %v6852
        %6897 = vmatpush.msra.mxu0 %v6851
        %6898 = vmatpush.msra.mxu0 %v6850
        %6899 = vmatpush.msra.mxu0 %v6849
        %6900 = vmatpush.msra.mxu0 %v6848
        %6901 = vmatpush.msra.mxu0 %v6847
        %6902 = vmatpush.msra.mxu0 %v6846
        %6903 = vmatpush.msra.mxu0 %v6845
        %6904 = vmatpush.msra.mxu0 %v6844
        %6905 = vmatpush.msra.mxu0 %v6843
        %6906 = vmatpush.msra.mxu0 %v6842
        %6907 = vmatmul.f32.gmra.mxu0 %v6868
        %v6908 = vpop.f32.mrf.mxu0
        %v6909 = vadd.f32 %v6889, %v6908
        %6910 = vdwg.mxu0
        %6911 = vst [vmem:[%s652] sm:$0x3] %v6909
        %s6912 = sand.u32 %s489, 1
        %s6913 = scalar_lea.sflag [#allocation3], %s6912
        %s6914 = sand.u32 %s489, 1
        %s6915 = smul.addr %s6914, 2
        %s6916 = scalar_lea.vmem [#allocation2], %s6915
        // Predicated region
        $region105: #{faster_cnn_forward.1} parent=103 // pred_check
          %p6917 = pneg %p499
        $region106: #{faster_cnn_forward.1} parent=103 // pred_check_branch
          %6919 = sbr.rel (%p6917) target = $region108
        $region107: #{faster_cnn_forward.1} parent=103 // pred_region
          %6921 = vsyncadd %s6913, 0
          %s6922 = smul.addr %s35, 2
          %s6923 = scalar_lea.hbm %s21, %s6922
          %s6925 = sshll.u32 %s6916, 4
          %s6926 = int_to_ptr.vmem [resolvable:$true] %s6925
          %s6927 = sshll.u32 %s6923, 4
          %s6928 = int_to_ptr.hbm [resolvable:$true] %s6927
          %6930 = dma.vmem_to_hbm [thread:$0]  %s6926, 32, %s6928, %s6913
        $region108: #{faster_cnn_forward.1} parent=103 // pred_fallthru
          _
      $region104: #{faster_cnn_forward.1} parent=5 // pred_fallthru
        _
      %p6931 = scmp.le.s32.totalorder 2, %s30
      // Predicated region
      $region109: #{faster_cnn_forward.1} parent=5 // pred_check
        %p6932 = pneg %p6931
      $region110: #{faster_cnn_forward.1} parent=5 // pred_check_branch
        %6934 = sbr.rel (%p6932) target = $region112
      $region111: #{faster_cnn_forward.1} parent=5 // pred_region
        %s6935 = ssub.s32 %s30, 2
        // Predicated region
        $region113: #{faster_cnn_forward.1} parent=111 // pred_check
          %p6936 = pneg %p505
        $region114: #{faster_cnn_forward.1} parent=111 // pred_check_branch
          %6938 = sbr.rel (%p6936) target = $region116
        $region115: #{faster_cnn_forward.1} parent=111 // pred_region
          %s6939 = sand.u32 %s490, 1
          %s6940 = scalar_lea.sflag [#allocation3], %s6939
          %s6941 = sand.u32 %s490, 1
          %s6942 = smul.addr %s6941, 2
          %s6943 = scalar_lea.vmem [#allocation2], %s6942
          %6945 = dma.done %s6940, 32
        $region116: #{faster_cnn_forward.1} parent=111 // pred_fallthru
          _
      $region112: #{faster_cnn_forward.1} parent=5 // pred_fallthru
        _
    $region6: #{faster_cnn_forward.1} parent=1 // loop_footer
      %s34 = sadd.s32 1, %s30
    $region7: #{faster_cnn_forward.1} parent=1 // loop_footer_branch
      %29 = sbr.rel target = $region3
    $region8: #{faster_cnn_forward.1} parent=1 // loop_exit
      _
    %6946 = vsyncpa [#allocation3], 1
    %s6947 = scalar_lea.sflag [#allocation3], 1
    %6948 = vsyncpa %s6947, 1

</llo_original>
